<compile_context>
chip_gen: v7x
topology: tpu7x:2x2x1
jax: 0.10.0
libtpu: 0.0.40
codegen_flags: <defaults>
</compile_context>

<pallas_src>
import functools

import jax
import jax.numpy as jnp
from jax.experimental import pallas as pl
from jax.experimental.pallas import tpu as pltpu


def _ssh_kernel(x_ref, wa_ref, ba_ref, wb_ref, bb_ref, wc_ref, bc_ref,
                o_ref,
                xpad_ref, ppad_ref,
                *, H, W, cin, half, quarter):
    """One batch element: full SSH graph in VMEM.

    x_ref : (1, H, W, cin)                   input tile (NHWC)
    w*_ref: (3, 3*cin_stage, cout_stage)     tap-packed stage weights (compute dtype)
    b*_ref: (1, cout_stage)                  fused stage biases (f32)
    o_ref : (1, H, W, out_channels)          output slab (= relu of channel concat)
    xpad_ref : (H+2, W+16, cin)    compute-dtype VMEM, padded x
    ppad_ref : (H+2, W+16, quarter) compute-dtype VMEM, shared padded intermediate
               (holds conv5x5_1, then is overwritten with conv7x7_2)
    Padded-buffer layout: interior at rows [1, H+1), columns [8, W+8); the conv
    reads columns [7+dw, 7+dw+W) so only the 1-px halo around the interior must
    be zero.
    """
    HW = H * W
    ca = quarter + half          # stage A fused Cout ([conv5x5_1 | conv3x3])
    cb = 2 * quarter             # stage B fused Cout ([conv7x7_2 | conv5x5_2])
    PW = W + 16                  # padded width (8 zero cols left, >=1 right)

    def zero_halo(dst_ref):
        # Only the halo actually read by the conv must be zero; zero aligned
        # strips (full top/bottom rows, 8-wide left/right column blocks).
        c = dst_ref.shape[-1]
        dst_ref[0, :, :] = jnp.zeros((PW, c), dst_ref.dtype)
        dst_ref[H + 1, :, :] = jnp.zeros((PW, c), dst_ref.dtype)
        dst_ref[:, 0:8, :] = jnp.zeros((H + 2, 8, c), dst_ref.dtype)
        dst_ref[:, W + 8:W + 16, :] = jnp.zeros((H + 2, 8, c), dst_ref.dtype)

    def set_interior(dst_ref, val_hwc):
        # Interior starts at column 8 -> sublane-aligned full-width stores.
        dst_ref[1:H + 1, 8:W + 8, :] = val_hwc.astype(dst_ref.dtype)

    def conv3x3(src_ref, w_ref, b_ref, c_in, c_out):
        # 'same' 3x3 conv of the zero-padded buffer: 3 MXU dots with K = 3*c_in
        # (the dh taps are folded into the contraction via host-side weight
        # packing), accumulated in f32 as a value seeded with the bias.
        acc = jnp.broadcast_to(b_ref[...], (HW, c_out)).astype(jnp.float32)
        for dw in range(3):
            patch = jnp.concatenate(
                [src_ref[dh:dh + H, 7 + dw:7 + dw + W, :].reshape(HW, c_in)
                 for dh in range(3)],
                axis=-1)                                   # (HW, 3*c_in)
            acc = acc + jnp.dot(patch, w_ref[dw],
                                preferred_element_type=jnp.float32)
        return acc

    # ---- stage A: fused [conv5x5_1 | conv3x3] over x ----
    zero_halo(xpad_ref)
    set_interior(xpad_ref, x_ref[0])
    a = conv3x3(xpad_ref, wa_ref, ba_ref, cin, ca)
    # conv3x3 branch -> relu -> output channels [0, half)
    o_ref[0, :, :, 0:half] = (
        jnp.maximum(a[:, quarter:], 0.0).reshape(H, W, half).astype(o_ref.dtype))
    # conv5x5_1 (no relu) -> re-padded chained intermediate (offset-0 slice)
    zero_halo(ppad_ref)
    set_interior(ppad_ref, a[:, 0:quarter].reshape(H, W, quarter))

    # ---- stage B: fused [conv7x7_2 | conv5x5_2] over conv5x5_1 ----
    b = conv3x3(ppad_ref, wb_ref, bb_ref, quarter, cb)
    relu5 = jnp.maximum(b[:, quarter:], 0.0)               # conv5x5 output (held)
    # conv7x7_2 (no relu) overwrites the shared padded buffer (halo still zero)
    set_interior(ppad_ref, b[:, 0:quarter].reshape(H, W, quarter))

    # ---- stage C: conv7x7_3 over conv7x7_2 ----
    c = conv3x3(ppad_ref, wc_ref, bc_ref, quarter, quarter)
    relu7 = jnp.maximum(c, 0.0)
    # Single contiguous store covering [conv5x5 | conv7x7] (lane-dense when
    # 2*quarter is a multiple of 128).
    tail = jnp.concatenate([relu5, relu7], axis=-1).reshape(H, W, cb)
    o_ref[0, :, :, half:] = tail.astype(o_ref.dtype)


def _pack_taps(w, compute_dtype):
    """(3, 3, cin, cout) HWIO -> (3, 3*cin, cout) with [dw, dh*cin + c, o]."""
    kh, kw, cin, cout = w.shape
    return w.transpose(1, 0, 2, 3).reshape(kw, kh * cin, cout).astype(compute_dtype)


def _fused_params(params, compute_dtype):
    """Concatenate shared-input conv weights along Cout (chained branch first,
    so its slice sits at lane offset 0) and fold the dh taps into K."""
    w3, b3 = params["conv3x3"]
    w51, b51 = params["conv5x5_1"]
    w52, b52 = params["conv5x5_2"]
    w72, b72 = params["conv7x7_2"]
    w73, b73 = params["conv7x7_3"]
    wa = _pack_taps(jnp.concatenate([w51, w3], axis=-1), compute_dtype)
    ba = jnp.concatenate([b51, b3]).astype(jnp.float32).reshape(1, -1)
    wb = _pack_taps(jnp.concatenate([w72, w52], axis=-1), compute_dtype)
    bb = jnp.concatenate([b72, b52]).astype(jnp.float32).reshape(1, -1)
    wc = _pack_taps(w73, compute_dtype)
    bc = b73.astype(jnp.float32).reshape(1, -1)
    return wa, ba, wb, bb, wc, bc


def _vmem_capacity_bytes():
    # Per-generation VMEM capacity (128 MiB v5e/v6e, 64 MiB per-core v7x);
    # conservative fallback if the query is unavailable.
    try:
        cap = int(getattr(pltpu.get_tpu_info(), "vmem_capacity_bytes", 0))
        if cap > 0:
            return cap
    except Exception:
        pass
    return 64 * 1024 * 1024


def ssh_forward_nhwc(params, x_nhwc, *, compute_dtype=None):
    """SSH forward, channels-last. (B, H, W, Cin) -> (B, H, W, out_channels)."""
    B, H, W, cin = x_nhwc.shape
    half = params["conv3x3"][0].shape[-1]
    quarter = params["conv5x5_1"][0].shape[-1]
    out_channels = half + 2 * quarter
    ca, cb = quarter + half, 2 * quarter
    cdt = (jnp.dtype(compute_dtype) if compute_dtype is not None
           else jnp.dtype(x_nhwc.dtype))

    wa, ba, wb, bb, wc, bc = _fused_params(params, cdt)

    kernel = functools.partial(_ssh_kernel, H=H, W=W, cin=cin,
                               half=half, quarter=quarter)

    # VMEM budget: double-buffered I/O + weights, padded scratch (compute
    # dtype), plus in-kernel temporaries (im2col patch, f32 accumulators,
    # held relu5), with 1.5x headroom, clamped to 90% of this chip's VMEM.
    itm = jnp.dtype(x_nhwc.dtype).itemsize
    witm = jnp.dtype(cdt).itemsize
    io_bytes = 2 * H * W * (cin + out_channels) * itm
    w_bytes = 9 * (cin * ca + quarter * cb + quarter * quarter) * witm
    pad_bytes = (H + 2) * (W + 16) * (cin + quarter) * witm
    tmp_bytes = H * W * 4 * (3 * max(cin, quarter) + ca + cb + 2 * quarter)
    est = io_bytes + 2 * w_bytes + pad_bytes + tmp_bytes
    vmem_cap = _vmem_capacity_bytes()
    vmem_limit = int(min(max(int(1.5 * est), 32 * 1024 * 1024),
                         int(0.9 * vmem_cap)))

    flops = 2 * B * H * W * 9 * (cin * ca + quarter * cb + quarter * quarter)
    bytes_accessed = int(B * (H * W * (cin + out_channels) * itm + w_bytes))

    return pl.pallas_call(
        kernel,
        out_shape=jax.ShapeDtypeStruct((B, H, W, out_channels), x_nhwc.dtype),
        grid=(B,),
        in_specs=[
            pl.BlockSpec((1, H, W, cin), lambda i: (i, 0, 0, 0)),
            pl.BlockSpec((3, 3 * cin, ca), lambda i: (0, 0, 0)),
            pl.BlockSpec((1, ca), lambda i: (0, 0)),
            pl.BlockSpec((3, 3 * quarter, cb), lambda i: (0, 0, 0)),
            pl.BlockSpec((1, cb), lambda i: (0, 0)),
            pl.BlockSpec((3, 3 * quarter, quarter), lambda i: (0, 0, 0)),
            pl.BlockSpec((1, quarter), lambda i: (0, 0)),
        ],
        out_specs=pl.BlockSpec((1, H, W, out_channels), lambda i: (i, 0, 0, 0)),
        scratch_shapes=[
            pltpu.VMEM((H + 2, W + 16, cin), cdt),      # padded x
            pltpu.VMEM((H + 2, W + 16, quarter), cdt),  # shared padded intermediate
        ],
        compiler_params=pltpu.CompilerParams(
            dimension_semantics=("parallel",),
            vmem_limit_bytes=vmem_limit),
        cost_estimate=pl.CostEstimate(flops=flops, transcendentals=0,
                                      bytes_accessed=bytes_accessed),
    )(x_nhwc, wa, ba, wb, bb, wc, bc)


def ssh_forward(params, x_nchw, *, compute_dtype=None):
    """PyTorch-layout SSH forward: (B, Cin, H, W) -> (B, out_channels, H, W).

    If the caller can work channels-last, use ssh_forward_nhwc directly and
    skip both transposes (they are pure HBM traffic around the kernel).
    """
    x = jnp.transpose(x_nchw, (0, 2, 3, 1))
    out = ssh_forward_nhwc(params, x, compute_dtype=compute_dtype)
    return jnp.transpose(out, (0, 3, 1, 2))


def init_ssh_params(key, in_channels, out_channels, dtype=jnp.float32):
    assert out_channels % 4 == 0
    half, quarter = out_channels // 2, out_channels // 4

    def conv_init(k, cin, cout):
        kw, kb = jax.random.split(k)
        fan_in = cin * 9
        bound = 1.0 / (fan_in ** 0.5)  # PyTorch Conv2d default init bounds
        w = jax.random.uniform(kw, (3, 3, cin, cout), dtype, -bound, bound)
        b = jax.random.uniform(kb, (cout,), dtype, -bound, bound)
        return w, b

    ks = jax.random.split(key, 5)
    return {
        "conv3x3":   conv_init(ks[0], in_channels, half),
        "conv5x5_1": conv_init(ks[1], in_channels, quarter),
        "conv5x5_2": conv_init(ks[2], quarter, quarter),
        "conv7x7_2": conv_init(ks[3], quarter, quarter),
        "conv7x7_3": conv_init(ks[4], quarter, quarter),
    }


# ---------------- pure-JAX reference (matches the PyTorch module) ----------------

def _ref_conv3x3(x_nhwc, w, b, apply_relu):
    y = jax.lax.conv_general_dilated(
        x_nhwc, w, window_strides=(1, 1), padding="SAME",
        dimension_numbers=("NHWC", "HWIO", "NHWC")) + b
    return jnp.maximum(y, 0.0) if apply_relu else y


def _ref_forward(params, x_nchw):
    x = jnp.transpose(x_nchw, (0, 2, 3, 1))
    c3 = _ref_conv3x3(x, *params["conv3x3"], True)
    c5_1 = _ref_conv3x3(x, *params["conv5x5_1"], False)
    c5 = _ref_conv3x3(c5_1, *params["conv5x5_2"], True)
    c7_2 = _ref_conv3x3(c5_1, *params["conv7x7_2"], False)
    c7 = _ref_conv3x3(c7_2, *params["conv7x7_3"], True)
    out = jnp.concatenate([c3, c5, c7], axis=-1)
    return jnp.transpose(out, (0, 3, 1, 2))


if __name__ == "__main__":
    key = jax.random.PRNGKey(0)
    k_x, k_p = jax.random.split(key)

    B, Cin, H, W = 2, 4, 16, 16
    out_channels = 16

    x = jax.random.normal(k_x, (B, Cin, H, W), jnp.float32)
    params = init_ssh_params(k_p, Cin, out_channels)

    ref = jax.block_until_ready(_ref_forward(params, x))

    # f32 MXU path (tight check).
    out = jax.block_until_ready(jax.jit(ssh_forward)(params, x))
    assert out.shape == (B, out_channels, H, W), out.shape
    assert jnp.allclose(out, ref, atol=1e-4, rtol=1e-4), \
        float(jnp.max(jnp.abs(out - ref)))

    # bf16-operand / f32-accumulate MXU path (looser tolerance).
    ssh_bf16 = functools.partial(ssh_forward, compute_dtype=jnp.bfloat16)
    out_bf16 = jax.block_until_ready(jax.jit(ssh_bf16)(params, x))
    assert jnp.allclose(out_bf16, ref, atol=5e-2, rtol=5e-2), \
        float(jnp.max(jnp.abs(out_bf16 - ref)))

    print("KERNEL_OK")
</pallas_src>

<mosaic_0001>
module attributes {stable_mosaic.version = 11 : i64} {
  func.func @_ssh_kernel(%arg0: i32, %arg1: memref<1x16x16x4xf32, #tpu.memory_space<vmem>>, %arg2: memref<3x12x12xf32, #tpu.memory_space<vmem>>, %arg3: memref<1x12xf32, #tpu.memory_space<vmem>>, %arg4: memref<3x12x8xf32, #tpu.memory_space<vmem>>, %arg5: memref<1x8xf32, #tpu.memory_space<vmem>>, %arg6: memref<3x12x4xf32, #tpu.memory_space<vmem>>, %arg7: memref<1x4xf32, #tpu.memory_space<vmem>>, %arg8: memref<1x16x16x16xf32, #tpu.memory_space<vmem>>, %arg9: memref<18x32x4xf32, #tpu.memory_space<vmem>>, %arg10: memref<18x32x4xf32, #tpu.memory_space<vmem>>) attributes {dimension_semantics = [#tpu.dimension_semantics<parallel>], iteration_bounds = array<i64: 2>, scalar_prefetch = 0 : i64, scratch_operands = 2 : i64, tpu.core_type = #tpu.core_type<tc>, window_params = [{transform_indices = @transform_0, window_bounds = array<i64: 1, 16, 16, 4>}, {pipeline_mode = #tpu.pipeline_mode<synchronous>, transform_indices = @transform_1, window_bounds = array<i64: 3, 12, 12>}, {pipeline_mode = #tpu.pipeline_mode<synchronous>, transform_indices = @transform_2, window_bounds = array<i64: 1, 12>}, {pipeline_mode = #tpu.pipeline_mode<synchronous>, transform_indices = @transform_3, window_bounds = array<i64: 3, 12, 8>}, {pipeline_mode = #tpu.pipeline_mode<synchronous>, transform_indices = @transform_4, window_bounds = array<i64: 1, 8>}, {pipeline_mode = #tpu.pipeline_mode<synchronous>, transform_indices = @transform_5, window_bounds = array<i64: 3, 12, 4>}, {pipeline_mode = #tpu.pipeline_mode<synchronous>, transform_indices = @transform_6, window_bounds = array<i64: 1, 4>}, {transform_indices = @transform_7, window_bounds = array<i64: 1, 16, 16, 16>}]} {
    %cst = arith.constant 0.000000e+00 : f32
    %0 = vector.broadcast %cst : f32 to vector<32x4xf32>
    %c0 = arith.constant 0 : index
    %c0_0 = arith.constant 0 : index
    %c0_1 = arith.constant 0 : index
    %1 = vector.load %arg9[%c0, %c0_0, %c0_1] : memref<18x32x4xf32, #tpu.memory_space<vmem>>, vector<1x32x4xf32>
    %2 = vector.shape_cast %1 : vector<1x32x4xf32> to vector<32x4xf32>
    %3 = vector.shape_cast %0 : vector<32x4xf32> to vector<1x32x4xf32>
    tpu.vector_store %arg9[%c0, %c0_0, %c0_1], %3 {strides = array<i32>} : memref<18x32x4xf32, #tpu.memory_space<vmem>>, vector<1x32x4xf32>,
    %cst_2 = arith.constant 0.000000e+00 : f32
    %4 = vector.broadcast %cst_2 : f32 to vector<32x4xf32>
    %c17 = arith.constant 17 : index
    %c0_3 = arith.constant 0 : index
    %c0_4 = arith.constant 0 : index
    %5 = vector.load %arg9[%c17, %c0_3, %c0_4] : memref<18x32x4xf32, #tpu.memory_space<vmem>>, vector<1x32x4xf32>
    %6 = vector.shape_cast %5 : vector<1x32x4xf32> to vector<32x4xf32>
    %7 = vector.shape_cast %4 : vector<32x4xf32> to vector<1x32x4xf32>
    tpu.vector_store %arg9[%c17, %c0_3, %c0_4], %7 {strides = array<i32>} : memref<18x32x4xf32, #tpu.memory_space<vmem>>, vector<1x32x4xf32>,
    %cst_5 = arith.constant 0.000000e+00 : f32
    %8 = vector.broadcast %cst_5 : f32 to vector<18x8x4xf32>
    %c0_6 = arith.constant 0 : index
    %c0_7 = arith.constant 0 : index
    %c0_8 = arith.constant 0 : index
    %9 = vector.load %arg9[%c0_6, %c0_7, %c0_8] : memref<18x32x4xf32, #tpu.memory_space<vmem>>, vector<18x8x4xf32>
    tpu.vector_store %arg9[%c0_6, %c0_7, %c0_8], %8 {strides = array<i32>} : memref<18x32x4xf32, #tpu.memory_space<vmem>>, vector<18x8x4xf32>,
    %cst_9 = arith.constant 0.000000e+00 : f32
    %10 = vector.broadcast %cst_9 : f32 to vector<18x8x4xf32>
    %c0_10 = arith.constant 0 : index
    %c24 = arith.constant 24 : index
    %c0_11 = arith.constant 0 : index
    %11 = vector.load %arg9[%c0_10, %c24, %c0_11] : memref<18x32x4xf32, #tpu.memory_space<vmem>>, vector<18x8x4xf32>
    tpu.vector_store %arg9[%c0_10, %c24, %c0_11], %10 {strides = array<i32>} : memref<18x32x4xf32, #tpu.memory_space<vmem>>, vector<18x8x4xf32>,
    %c0_12 = arith.constant 0 : index
    %c0_13 = arith.constant 0 : index
    %c0_14 = arith.constant 0 : index
    %c0_15 = arith.constant 0 : index
    %12 = vector.load %arg1[%c0_12, %c0_13, %c0_14, %c0_15] : memref<1x16x16x4xf32, #tpu.memory_space<vmem>>, vector<1x16x16x4xf32>
    %13 = vector.shape_cast %12 : vector<1x16x16x4xf32> to vector<16x16x4xf32>
    %c1 = arith.constant 1 : index
    %c8 = arith.constant 8 : index
    %c0_16 = arith.constant 0 : index
    %14 = vector.load %arg9[%c1, %c8, %c0_16] : memref<18x32x4xf32, #tpu.memory_space<vmem>>, vector<16x16x4xf32>
    tpu.vector_store %arg9[%c1, %c8, %c0_16], %13 {strides = array<i32>} : memref<18x32x4xf32, #tpu.memory_space<vmem>>, vector<16x16x4xf32>,
    %c0_17 = arith.constant 0 : index
    %c0_18 = arith.constant 0 : index
    %15 = vector.load %arg3[%c0_17, %c0_18] : memref<1x12xf32, #tpu.memory_space<vmem>>, vector<1x12xf32>
    %16 = vector.shape_cast %15 : vector<1x12xf32> to vector<1x12xf32>
    %17 = vector.broadcast %16 : vector<1x12xf32> to vector<256x12xf32>
    %c0_19 = arith.constant 0 : index
    %c7 = arith.constant 7 : index
    %c0_20 = arith.constant 0 : index
    %18 = vector.load %arg9[%c0_19, %c7, %c0_20] : memref<18x32x4xf32, #tpu.memory_space<vmem>>, vector<16x16x4xf32>
    %19 = vector.shape_cast %18 : vector<16x16x4xf32> to vector<256x4xf32>
    %c1_21 = arith.constant 1 : index
    %c7_22 = arith.constant 7 : index
    %c0_23 = arith.constant 0 : index
    %20 = vector.load %arg9[%c1_21, %c7_22, %c0_23] : memref<18x32x4xf32, #tpu.memory_space<vmem>>, vector<16x16x4xf32>
    %21 = vector.shape_cast %20 : vector<16x16x4xf32> to vector<256x4xf32>
    %c2 = arith.constant 2 : index
    %c7_24 = arith.constant 7 : index
    %c0_25 = arith.constant 0 : index
    %22 = vector.load %arg9[%c2, %c7_24, %c0_25] : memref<18x32x4xf32, #tpu.memory_space<vmem>>, vector<16x16x4xf32>
    %23 = vector.shape_cast %22 : vector<16x16x4xf32> to vector<256x4xf32>
    %24 = tpu.concatenate %19, %21, %23 in 1 : vector<256x4xf32>, vector<256x4xf32>, vector<256x4xf32> -> vector<256x12xf32>
    %c0_26 = arith.constant 0 : index
    %c0_27 = arith.constant 0 : index
    %c0_28 = arith.constant 0 : index
    %25 = vector.load %arg2[%c0_26, %c0_27, %c0_28] : memref<3x12x12xf32, #tpu.memory_space<vmem>>, vector<1x12x12xf32>
    %26 = vector.shape_cast %25 : vector<1x12x12xf32> to vector<12x12xf32>
    %cst_29 = arith.constant dense<0.000000e+00> : vector<256x12xf32>
    %27 = tpu.matmul %24, %26, %cst_29 {dimension_numbers = #tpu.dot_dimension_numbers<[1], [0], [0], [1], [0, 0, 1, 1], [], []>} : vector<256x12xf32>, vector<12x12xf32>, vector<256x12xf32> -> vector<256x12xf32>
    %28 = arith.addf %17, %27 : vector<256x12xf32>
    %c0_30 = arith.constant 0 : index
    %c8_31 = arith.constant 8 : index
    %c0_32 = arith.constant 0 : index
    %29 = vector.load %arg9[%c0_30, %c8_31, %c0_32] : memref<18x32x4xf32, #tpu.memory_space<vmem>>, vector<16x16x4xf32>
    %30 = vector.shape_cast %29 : vector<16x16x4xf32> to vector<256x4xf32>
    %c1_33 = arith.constant 1 : index
    %c8_34 = arith.constant 8 : index
    %c0_35 = arith.constant 0 : index
    %31 = vector.load %arg9[%c1_33, %c8_34, %c0_35] : memref<18x32x4xf32, #tpu.memory_space<vmem>>, vector<16x16x4xf32>
    %32 = vector.shape_cast %31 : vector<16x16x4xf32> to vector<256x4xf32>
    %c2_36 = arith.constant 2 : index
    %c8_37 = arith.constant 8 : index
    %c0_38 = arith.constant 0 : index
    %33 = vector.load %arg9[%c2_36, %c8_37, %c0_38] : memref<18x32x4xf32, #tpu.memory_space<vmem>>, vector<16x16x4xf32>
    %34 = vector.shape_cast %33 : vector<16x16x4xf32> to vector<256x4xf32>
    %35 = tpu.concatenate %30, %32, %34 in 1 : vector<256x4xf32>, vector<256x4xf32>, vector<256x4xf32> -> vector<256x12xf32>
    %c1_39 = arith.constant 1 : index
    %c0_40 = arith.constant 0 : index
    %c0_41 = arith.constant 0 : index
    %36 = vector.load %arg2[%c1_39, %c0_40, %c0_41] : memref<3x12x12xf32, #tpu.memory_space<vmem>>, vector<1x12x12xf32>
    %37 = vector.shape_cast %36 : vector<1x12x12xf32> to vector<12x12xf32>
    %cst_42 = arith.constant dense<0.000000e+00> : vector<256x12xf32>
    %38 = tpu.matmul %35, %37, %cst_42 {dimension_numbers = #tpu.dot_dimension_numbers<[1], [0], [0], [1], [0, 0, 1, 1], [], []>} : vector<256x12xf32>, vector<12x12xf32>, vector<256x12xf32> -> vector<256x12xf32>
    %39 = arith.addf %28, %38 : vector<256x12xf32>
    %c0_43 = arith.constant 0 : index
    %c9 = arith.constant 9 : index
    %c0_44 = arith.constant 0 : index
    %40 = vector.load %arg9[%c0_43, %c9, %c0_44] : memref<18x32x4xf32, #tpu.memory_space<vmem>>, vector<16x16x4xf32>
    %41 = vector.shape_cast %40 : vector<16x16x4xf32> to vector<256x4xf32>
    %c1_45 = arith.constant 1 : index
    %c9_46 = arith.constant 9 : index
    %c0_47 = arith.constant 0 : index
    %42 = vector.load %arg9[%c1_45, %c9_46, %c0_47] : memref<18x32x4xf32, #tpu.memory_space<vmem>>, vector<16x16x4xf32>
    %43 = vector.shape_cast %42 : vector<16x16x4xf32> to vector<256x4xf32>
    %c2_48 = arith.constant 2 : index
    %c9_49 = arith.constant 9 : index
    %c0_50 = arith.constant 0 : index
    %44 = vector.load %arg9[%c2_48, %c9_49, %c0_50] : memref<18x32x4xf32, #tpu.memory_space<vmem>>, vector<16x16x4xf32>
    %45 = vector.shape_cast %44 : vector<16x16x4xf32> to vector<256x4xf32>
    %46 = tpu.concatenate %41, %43, %45 in 1 : vector<256x4xf32>, vector<256x4xf32>, vector<256x4xf32> -> vector<256x12xf32>
    %c2_51 = arith.constant 2 : index
    %c0_52 = arith.constant 0 : index
    %c0_53 = arith.constant 0 : index
    %47 = vector.load %arg2[%c2_51, %c0_52, %c0_53] : memref<3x12x12xf32, #tpu.memory_space<vmem>>, vector<1x12x12xf32>
    %48 = vector.shape_cast %47 : vector<1x12x12xf32> to vector<12x12xf32>
    %cst_54 = arith.constant dense<0.000000e+00> : vector<256x12xf32>
    %49 = tpu.matmul %46, %48, %cst_54 {dimension_numbers = #tpu.dot_dimension_numbers<[1], [0], [0], [1], [0, 0, 1, 1], [], []>} : vector<256x12xf32>, vector<12x12xf32>, vector<256x12xf32> -> vector<256x12xf32>
    %50 = arith.addf %39, %49 : vector<256x12xf32>
    %51 = vector.extract_strided_slice %50 {offsets = [0, 4], sizes = [256, 8], strides = [1, 1]} : vector<256x12xf32> to vector<256x8xf32>
    %cst_55 = arith.constant 0.000000e+00 : f32
    %52 = vector.broadcast %cst_55 : f32 to vector<256x8xf32>
    %53 = arith.maximumf %51, %52 : vector<256x8xf32>
    %54 = vector.shape_cast %53 : vector<256x8xf32> to vector<16x16x8xf32>
    %c0_56 = arith.constant 0 : index
    %c0_57 = arith.constant 0 : index
    %c0_58 = arith.constant 0 : index
    %c0_59 = arith.constant 0 : index
    %55 = vector.load %arg8[%c0_56, %c0_57, %c0_58, %c0_59] : memref<1x16x16x16xf32, #tpu.memory_space<vmem>>, vector<1x16x16x8xf32>
    %56 = vector.shape_cast %55 : vector<1x16x16x8xf32> to vector<16x16x8xf32>
    %57 = vector.shape_cast %54 : vector<16x16x8xf32> to vector<1x16x16x8xf32>
    tpu.vector_store %arg8[%c0_56, %c0_57, %c0_58, %c0_59], %57 {strides = array<i32>} : memref<1x16x16x16xf32, #tpu.memory_space<vmem>>, vector<1x16x16x8xf32>,
    %cst_60 = arith.constant 0.000000e+00 : f32
    %58 = vector.broadcast %cst_60 : f32 to vector<32x4xf32>
    %c0_61 = arith.constant 0 : index
    %c0_62 = arith.constant 0 : index
    %c0_63 = arith.constant 0 : index
    %59 = vector.load %arg10[%c0_61, %c0_62, %c0_63] : memref<18x32x4xf32, #tpu.memory_space<vmem>>, vector<1x32x4xf32>
    %60 = vector.shape_cast %59 : vector<1x32x4xf32> to vector<32x4xf32>
    %61 = vector.shape_cast %58 : vector<32x4xf32> to vector<1x32x4xf32>
    tpu.vector_store %arg10[%c0_61, %c0_62, %c0_63], %61 {strides = array<i32>} : memref<18x32x4xf32, #tpu.memory_space<vmem>>, vector<1x32x4xf32>,
    %cst_64 = arith.constant 0.000000e+00 : f32
    %62 = vector.broadcast %cst_64 : f32 to vector<32x4xf32>
    %c17_65 = arith.constant 17 : index
    %c0_66 = arith.constant 0 : index
    %c0_67 = arith.constant 0 : index
    %63 = vector.load %arg10[%c17_65, %c0_66, %c0_67] : memref<18x32x4xf32, #tpu.memory_space<vmem>>, vector<1x32x4xf32>
    %64 = vector.shape_cast %63 : vector<1x32x4xf32> to vector<32x4xf32>
    %65 = vector.shape_cast %62 : vector<32x4xf32> to vector<1x32x4xf32>
    tpu.vector_store %arg10[%c17_65, %c0_66, %c0_67], %65 {strides = array<i32>} : memref<18x32x4xf32, #tpu.memory_space<vmem>>, vector<1x32x4xf32>,
    %cst_68 = arith.constant 0.000000e+00 : f32
    %66 = vector.broadcast %cst_68 : f32 to vector<18x8x4xf32>
    %c0_69 = arith.constant 0 : index
    %c0_70 = arith.constant 0 : index
    %c0_71 = arith.constant 0 : index
    %67 = vector.load %arg10[%c0_69, %c0_70, %c0_71] : memref<18x32x4xf32, #tpu.memory_space<vmem>>, vector<18x8x4xf32>
    tpu.vector_store %arg10[%c0_69, %c0_70, %c0_71], %66 {strides = array<i32>} : memref<18x32x4xf32, #tpu.memory_space<vmem>>, vector<18x8x4xf32>,
    %cst_72 = arith.constant 0.000000e+00 : f32
    %68 = vector.broadcast %cst_72 : f32 to vector<18x8x4xf32>
    %c0_73 = arith.constant 0 : index
    %c24_74 = arith.constant 24 : index
    %c0_75 = arith.constant 0 : index
    %69 = vector.load %arg10[%c0_73, %c24_74, %c0_75] : memref<18x32x4xf32, #tpu.memory_space<vmem>>, vector<18x8x4xf32>
    tpu.vector_store %arg10[%c0_73, %c24_74, %c0_75], %68 {strides = array<i32>} : memref<18x32x4xf32, #tpu.memory_space<vmem>>, vector<18x8x4xf32>,
    %70 = vector.extract_strided_slice %50 {offsets = [0, 0], sizes = [256, 4], strides = [1, 1]} : vector<256x12xf32> to vector<256x4xf32>
    %71 = vector.shape_cast %70 : vector<256x4xf32> to vector<16x16x4xf32>
    %c1_76 = arith.constant 1 : index
    %c8_77 = arith.constant 8 : index
    %c0_78 = arith.constant 0 : index
    %72 = vector.load %arg10[%c1_76, %c8_77, %c0_78] : memref<18x32x4xf32, #tpu.memory_space<vmem>>, vector<16x16x4xf32>
    tpu.vector_store %arg10[%c1_76, %c8_77, %c0_78], %71 {strides = array<i32>} : memref<18x32x4xf32, #tpu.memory_space<vmem>>, vector<16x16x4xf32>,
    %c0_79 = arith.constant 0 : index
    %c0_80 = arith.constant 0 : index
    %73 = vector.load %arg5[%c0_79, %c0_80] : memref<1x8xf32, #tpu.memory_space<vmem>>, vector<1x8xf32>
    %74 = vector.shape_cast %73 : vector<1x8xf32> to vector<1x8xf32>
    %75 = vector.broadcast %74 : vector<1x8xf32> to vector<256x8xf32>
    %c0_81 = arith.constant 0 : index
    %c7_82 = arith.constant 7 : index
    %c0_83 = arith.constant 0 : index
    %76 = vector.load %arg10[%c0_81, %c7_82, %c0_83] : memref<18x32x4xf32, #tpu.memory_space<vmem>>, vector<16x16x4xf32>
    %77 = vector.shape_cast %76 : vector<16x16x4xf32> to vector<256x4xf32>
    %c1_84 = arith.constant 1 : index
    %c7_85 = arith.constant 7 : index
    %c0_86 = arith.constant 0 : index
    %78 = vector.load %arg10[%c1_84, %c7_85, %c0_86] : memref<18x32x4xf32, #tpu.memory_space<vmem>>, vector<16x16x4xf32>
    %79 = vector.shape_cast %78 : vector<16x16x4xf32> to vector<256x4xf32>
    %c2_87 = arith.constant 2 : index
    %c7_88 = arith.constant 7 : index
    %c0_89 = arith.constant 0 : index
    %80 = vector.load %arg10[%c2_87, %c7_88, %c0_89] : memref<18x32x4xf32, #tpu.memory_space<vmem>>, vector<16x16x4xf32>
    %81 = vector.shape_cast %80 : vector<16x16x4xf32> to vector<256x4xf32>
    %82 = tpu.concatenate %77, %79, %81 in 1 : vector<256x4xf32>, vector<256x4xf32>, vector<256x4xf32> -> vector<256x12xf32>
    %c0_90 = arith.constant 0 : index
    %c0_91 = arith.constant 0 : index
    %c0_92 = arith.constant 0 : index
    %83 = vector.load %arg4[%c0_90, %c0_91, %c0_92] : memref<3x12x8xf32, #tpu.memory_space<vmem>>, vector<1x12x8xf32>
    %84 = vector.shape_cast %83 : vector<1x12x8xf32> to vector<12x8xf32>
    %cst_93 = arith.constant dense<0.000000e+00> : vector<256x8xf32>
    %85 = tpu.matmul %82, %84, %cst_93 {dimension_numbers = #tpu.dot_dimension_numbers<[1], [0], [0], [1], [0, 0, 1, 1], [], []>} : vector<256x12xf32>, vector<12x8xf32>, vector<256x8xf32> -> vector<256x8xf32>
    %86 = arith.addf %75, %85 : vector<256x8xf32>
    %c0_94 = arith.constant 0 : index
    %c8_95 = arith.constant 8 : index
    %c0_96 = arith.constant 0 : index
    %87 = vector.load %arg10[%c0_94, %c8_95, %c0_96] : memref<18x32x4xf32, #tpu.memory_space<vmem>>, vector<16x16x4xf32>
    %88 = vector.shape_cast %87 : vector<16x16x4xf32> to vector<256x4xf32>
    %c1_97 = arith.constant 1 : index
    %c8_98 = arith.constant 8 : index
    %c0_99 = arith.constant 0 : index
    %89 = vector.load %arg10[%c1_97, %c8_98, %c0_99] : memref<18x32x4xf32, #tpu.memory_space<vmem>>, vector<16x16x4xf32>
    %90 = vector.shape_cast %89 : vector<16x16x4xf32> to vector<256x4xf32>
    %c2_100 = arith.constant 2 : index
    %c8_101 = arith.constant 8 : index
    %c0_102 = arith.constant 0 : index
    %91 = vector.load %arg10[%c2_100, %c8_101, %c0_102] : memref<18x32x4xf32, #tpu.memory_space<vmem>>, vector<16x16x4xf32>
    %92 = vector.shape_cast %91 : vector<16x16x4xf32> to vector<256x4xf32>
    %93 = tpu.concatenate %88, %90, %92 in 1 : vector<256x4xf32>, vector<256x4xf32>, vector<256x4xf32> -> vector<256x12xf32>
    %c1_103 = arith.constant 1 : index
    %c0_104 = arith.constant 0 : index
    %c0_105 = arith.constant 0 : index
    %94 = vector.load %arg4[%c1_103, %c0_104, %c0_105] : memref<3x12x8xf32, #tpu.memory_space<vmem>>, vector<1x12x8xf32>
    %95 = vector.shape_cast %94 : vector<1x12x8xf32> to vector<12x8xf32>
    %cst_106 = arith.constant dense<0.000000e+00> : vector<256x8xf32>
    %96 = tpu.matmul %93, %95, %cst_106 {dimension_numbers = #tpu.dot_dimension_numbers<[1], [0], [0], [1], [0, 0, 1, 1], [], []>} : vector<256x12xf32>, vector<12x8xf32>, vector<256x8xf32> -> vector<256x8xf32>
    %97 = arith.addf %86, %96 : vector<256x8xf32>
    %c0_107 = arith.constant 0 : index
    %c9_108 = arith.constant 9 : index
    %c0_109 = arith.constant 0 : index
    %98 = vector.load %arg10[%c0_107, %c9_108, %c0_109] : memref<18x32x4xf32, #tpu.memory_space<vmem>>, vector<16x16x4xf32>
    %99 = vector.shape_cast %98 : vector<16x16x4xf32> to vector<256x4xf32>
    %c1_110 = arith.constant 1 : index
    %c9_111 = arith.constant 9 : index
    %c0_112 = arith.constant 0 : index
    %100 = vector.load %arg10[%c1_110, %c9_111, %c0_112] : memref<18x32x4xf32, #tpu.memory_space<vmem>>, vector<16x16x4xf32>
    %101 = vector.shape_cast %100 : vector<16x16x4xf32> to vector<256x4xf32>
    %c2_113 = arith.constant 2 : index
    %c9_114 = arith.constant 9 : index
    %c0_115 = arith.constant 0 : index
    %102 = vector.load %arg10[%c2_113, %c9_114, %c0_115] : memref<18x32x4xf32, #tpu.memory_space<vmem>>, vector<16x16x4xf32>
    %103 = vector.shape_cast %102 : vector<16x16x4xf32> to vector<256x4xf32>
    %104 = tpu.concatenate %99, %101, %103 in 1 : vector<256x4xf32>, vector<256x4xf32>, vector<256x4xf32> -> vector<256x12xf32>
    %c2_116 = arith.constant 2 : index
    %c0_117 = arith.constant 0 : index
    %c0_118 = arith.constant 0 : index
    %105 = vector.load %arg4[%c2_116, %c0_117, %c0_118] : memref<3x12x8xf32, #tpu.memory_space<vmem>>, vector<1x12x8xf32>
    %106 = vector.shape_cast %105 : vector<1x12x8xf32> to vector<12x8xf32>
    %cst_119 = arith.constant dense<0.000000e+00> : vector<256x8xf32>
    %107 = tpu.matmul %104, %106, %cst_119 {dimension_numbers = #tpu.dot_dimension_numbers<[1], [0], [0], [1], [0, 0, 1, 1], [], []>} : vector<256x12xf32>, vector<12x8xf32>, vector<256x8xf32> -> vector<256x8xf32>
    %108 = arith.addf %97, %107 : vector<256x8xf32>
    %109 = vector.extract_strided_slice %108 {offsets = [0, 4], sizes = [256, 4], strides = [1, 1]} : vector<256x8xf32> to vector<256x4xf32>
    %cst_120 = arith.constant 0.000000e+00 : f32
    %110 = vector.broadcast %cst_120 : f32 to vector<256x4xf32>
    %111 = arith.maximumf %109, %110 : vector<256x4xf32>
    %112 = vector.extract_strided_slice %108 {offsets = [0, 0], sizes = [256, 4], strides = [1, 1]} : vector<256x8xf32> to vector<256x4xf32>
    %113 = vector.shape_cast %112 : vector<256x4xf32> to vector<16x16x4xf32>
    %c1_121 = arith.constant 1 : index
    %c8_122 = arith.constant 8 : index
    %c0_123 = arith.constant 0 : index
    %114 = vector.load %arg10[%c1_121, %c8_122, %c0_123] : memref<18x32x4xf32, #tpu.memory_space<vmem>>, vector<16x16x4xf32>
    tpu.vector_store %arg10[%c1_121, %c8_122, %c0_123], %113 {strides = array<i32>} : memref<18x32x4xf32, #tpu.memory_space<vmem>>, vector<16x16x4xf32>,
    %c0_124 = arith.constant 0 : index
    %c0_125 = arith.constant 0 : index
    %115 = vector.load %arg7[%c0_124, %c0_125] : memref<1x4xf32, #tpu.memory_space<vmem>>, vector<1x4xf32>
    %116 = vector.shape_cast %115 : vector<1x4xf32> to vector<1x4xf32>
    %117 = vector.broadcast %116 : vector<1x4xf32> to vector<256x4xf32>
    %c0_126 = arith.constant 0 : index
    %c7_127 = arith.constant 7 : index
    %c0_128 = arith.constant 0 : index
    %118 = vector.load %arg10[%c0_126, %c7_127, %c0_128] : memref<18x32x4xf32, #tpu.memory_space<vmem>>, vector<16x16x4xf32>
    %119 = vector.shape_cast %118 : vector<16x16x4xf32> to vector<256x4xf32>
    %c1_129 = arith.constant 1 : index
    %c7_130 = arith.constant 7 : index
    %c0_131 = arith.constant 0 : index
    %120 = vector.load %arg10[%c1_129, %c7_130, %c0_131] : memref<18x32x4xf32, #tpu.memory_space<vmem>>, vector<16x16x4xf32>
    %121 = vector.shape_cast %120 : vector<16x16x4xf32> to vector<256x4xf32>
    %c2_132 = arith.constant 2 : index
    %c7_133 = arith.constant 7 : index
    %c0_134 = arith.constant 0 : index
    %122 = vector.load %arg10[%c2_132, %c7_133, %c0_134] : memref<18x32x4xf32, #tpu.memory_space<vmem>>, vector<16x16x4xf32>
    %123 = vector.shape_cast %122 : vector<16x16x4xf32> to vector<256x4xf32>
    %124 = tpu.concatenate %119, %121, %123 in 1 : vector<256x4xf32>, vector<256x4xf32>, vector<256x4xf32> -> vector<256x12xf32>
    %c0_135 = arith.constant 0 : index
    %c0_136 = arith.constant 0 : index
    %c0_137 = arith.constant 0 : index
    %125 = vector.load %arg6[%c0_135, %c0_136, %c0_137] : memref<3x12x4xf32, #tpu.memory_space<vmem>>, vector<1x12x4xf32>
    %126 = vector.shape_cast %125 : vector<1x12x4xf32> to vector<12x4xf32>
    %cst_138 = arith.constant dense<0.000000e+00> : vector<256x4xf32>
    %127 = tpu.matmul %124, %126, %cst_138 {dimension_numbers = #tpu.dot_dimension_numbers<[1], [0], [0], [1], [0, 0, 1, 1], [], []>} : vector<256x12xf32>, vector<12x4xf32>, vector<256x4xf32> -> vector<256x4xf32>
    %128 = arith.addf %117, %127 : vector<256x4xf32>
    %c0_139 = arith.constant 0 : index
    %c8_140 = arith.constant 8 : index
    %c0_141 = arith.constant 0 : index
    %129 = vector.load %arg10[%c0_139, %c8_140, %c0_141] : memref<18x32x4xf32, #tpu.memory_space<vmem>>, vector<16x16x4xf32>
    %130 = vector.shape_cast %129 : vector<16x16x4xf32> to vector<256x4xf32>
    %c1_142 = arith.constant 1 : index
    %c8_143 = arith.constant 8 : index
    %c0_144 = arith.constant 0 : index
    %131 = vector.load %arg10[%c1_142, %c8_143, %c0_144] : memref<18x32x4xf32, #tpu.memory_space<vmem>>, vector<16x16x4xf32>
    %132 = vector.shape_cast %131 : vector<16x16x4xf32> to vector<256x4xf32>
    %c2_145 = arith.constant 2 : index
    %c8_146 = arith.constant 8 : index
    %c0_147 = arith.constant 0 : index
    %133 = vector.load %arg10[%c2_145, %c8_146, %c0_147] : memref<18x32x4xf32, #tpu.memory_space<vmem>>, vector<16x16x4xf32>
    %134 = vector.shape_cast %133 : vector<16x16x4xf32> to vector<256x4xf32>
    %135 = tpu.concatenate %130, %132, %134 in 1 : vector<256x4xf32>, vector<256x4xf32>, vector<256x4xf32> -> vector<256x12xf32>
    %c1_148 = arith.constant 1 : index
    %c0_149 = arith.constant 0 : index
    %c0_150 = arith.constant 0 : index
    %136 = vector.load %arg6[%c1_148, %c0_149, %c0_150] : memref<3x12x4xf32, #tpu.memory_space<vmem>>, vector<1x12x4xf32>
    %137 = vector.shape_cast %136 : vector<1x12x4xf32> to vector<12x4xf32>
    %cst_151 = arith.constant dense<0.000000e+00> : vector<256x4xf32>
    %138 = tpu.matmul %135, %137, %cst_151 {dimension_numbers = #tpu.dot_dimension_numbers<[1], [0], [0], [1], [0, 0, 1, 1], [], []>} : vector<256x12xf32>, vector<12x4xf32>, vector<256x4xf32> -> vector<256x4xf32>
    %139 = arith.addf %128, %138 : vector<256x4xf32>
    %c0_152 = arith.constant 0 : index
    %c9_153 = arith.constant 9 : index
    %c0_154 = arith.constant 0 : index
    %140 = vector.load %arg10[%c0_152, %c9_153, %c0_154] : memref<18x32x4xf32, #tpu.memory_space<vmem>>, vector<16x16x4xf32>
    %141 = vector.shape_cast %140 : vector<16x16x4xf32> to vector<256x4xf32>
    %c1_155 = arith.constant 1 : index
    %c9_156 = arith.constant 9 : index
    %c0_157 = arith.constant 0 : index
    %142 = vector.load %arg10[%c1_155, %c9_156, %c0_157] : memref<18x32x4xf32, #tpu.memory_space<vmem>>, vector<16x16x4xf32>
    %143 = vector.shape_cast %142 : vector<16x16x4xf32> to vector<256x4xf32>
    %c2_158 = arith.constant 2 : index
    %c9_159 = arith.constant 9 : index
    %c0_160 = arith.constant 0 : index
    %144 = vector.load %arg10[%c2_158, %c9_159, %c0_160] : memref<18x32x4xf32, #tpu.memory_space<vmem>>, vector<16x16x4xf32>
    %145 = vector.shape_cast %144 : vector<16x16x4xf32> to vector<256x4xf32>
    %146 = tpu.concatenate %141, %143, %145 in 1 : vector<256x4xf32>, vector<256x4xf32>, vector<256x4xf32> -> vector<256x12xf32>
    %c2_161 = arith.constant 2 : index
    %c0_162 = arith.constant 0 : index
    %c0_163 = arith.constant 0 : index
    %147 = vector.load %arg6[%c2_161, %c0_162, %c0_163] : memref<3x12x4xf32, #tpu.memory_space<vmem>>, vector<1x12x4xf32>
    %148 = vector.shape_cast %147 : vector<1x12x4xf32> to vector<12x4xf32>
    %cst_164 = arith.constant dense<0.000000e+00> : vector<256x4xf32>
    %149 = tpu.matmul %146, %148, %cst_164 {dimension_numbers = #tpu.dot_dimension_numbers<[1], [0], [0], [1], [0, 0, 1, 1], [], []>} : vector<256x12xf32>, vector<12x4xf32>, vector<256x4xf32> -> vector<256x4xf32>
    %150 = arith.addf %139, %149 : vector<256x4xf32>
    %cst_165 = arith.constant 0.000000e+00 : f32
    %151 = vector.broadcast %cst_165 : f32 to vector<256x4xf32>
    %152 = arith.maximumf %150, %151 : vector<256x4xf32>
    %153 = tpu.concatenate %111, %152 in 1 : vector<256x4xf32>, vector<256x4xf32> -> vector<256x8xf32>
    %154 = vector.shape_cast %153 : vector<256x8xf32> to vector<16x16x8xf32>
    %c0_166 = arith.constant 0 : index
    %c0_167 = arith.constant 0 : index
    %c0_168 = arith.constant 0 : index
    %c8_169 = arith.constant 8 : index
    %155 = vector.load %arg8[%c0_166, %c0_167, %c0_168, %c8_169] : memref<1x16x16x16xf32, #tpu.memory_space<vmem>>, vector<1x16x16x8xf32>
    %156 = vector.shape_cast %155 : vector<1x16x16x8xf32> to vector<16x16x8xf32>
    %157 = vector.shape_cast %154 : vector<16x16x8xf32> to vector<1x16x16x8xf32>
    tpu.vector_store %arg8[%c0_166, %c0_167, %c0_168, %c8_169], %157 {strides = array<i32>} : memref<1x16x16x16xf32, #tpu.memory_space<vmem>>, vector<1x16x16x8xf32>,
    return
  }
  func.func @transform_0(%arg0: i32) -> (i32, i32, i32, i32) {
    %c0_i32 = arith.constant 0 : i32
    %c0_i32_0 = arith.constant 0 : i32
    %c0_i32_1 = arith.constant 0 : i32
    %c0_i32_2 = arith.constant 0 : i32
    return %arg0, %c0_i32, %c0_i32_0, %c0_i32_1 : i32, i32, i32, i32
  }
  func.func @transform_1(%arg0: i32) -> (i32, i32, i32) {
    %c0_i32 = arith.constant 0 : i32
    %c0_i32_0 = arith.constant 0 : i32
    %c0_i32_1 = arith.constant 0 : i32
    %c0_i32_2 = arith.constant 0 : i32
    return %c0_i32, %c0_i32_0, %c0_i32_1 : i32, i32, i32
  }
  func.func @transform_2(%arg0: i32) -> (i32, i32) {
    %c0_i32 = arith.constant 0 : i32
    %c0_i32_0 = arith.constant 0 : i32
    %c0_i32_1 = arith.constant 0 : i32
    return %c0_i32, %c0_i32_0 : i32, i32
  }
  func.func @transform_3(%arg0: i32) -> (i32, i32, i32) {
    %c0_i32 = arith.constant 0 : i32
    %c0_i32_0 = arith.constant 0 : i32
    %c0_i32_1 = arith.constant 0 : i32
    %c0_i32_2 = arith.constant 0 : i32
    return %c0_i32, %c0_i32_0, %c0_i32_1 : i32, i32, i32
  }
  func.func @transform_4(%arg0: i32) -> (i32, i32) {
    %c0_i32 = arith.constant 0 : i32
    %c0_i32_0 = arith.constant 0 : i32
    %c0_i32_1 = arith.constant 0 : i32
    return %c0_i32, %c0_i32_0 : i32, i32
  }
  func.func @transform_5(%arg0: i32) -> (i32, i32, i32) {
    %c0_i32 = arith.constant 0 : i32
    %c0_i32_0 = arith.constant 0 : i32
    %c0_i32_1 = arith.constant 0 : i32
    %c0_i32_2 = arith.constant 0 : i32
    return %c0_i32, %c0_i32_0, %c0_i32_1 : i32, i32, i32
  }
  func.func @transform_6(%arg0: i32) -> (i32, i32) {
    %c0_i32 = arith.constant 0 : i32
    %c0_i32_0 = arith.constant 0 : i32
    %c0_i32_1 = arith.constant 0 : i32
    return %c0_i32, %c0_i32_0 : i32, i32
  }
  func.func @transform_7(%arg0: i32) -> (i32, i32, i32, i32) {
    %c0_i32 = arith.constant 0 : i32
    %c0_i32_0 = arith.constant 0 : i32
    %c0_i32_1 = arith.constant 0 : i32
    %c0_i32_2 = arith.constant 0 : i32
    return %arg0, %c0_i32, %c0_i32_0, %c0_i32_1 : i32, i32, i32, i32
  }
}

</mosaic_0001>

<llo_original>
// kernel: ssh_forward.1
$region0: #{ssh_forward.1}
  #allocation0 [shape = 'u32[]', space=smem, size = 0x4, offset = 0x4, fixed_abs, tag = 'smem constant byte address 0x4 - core index']
  #allocation1 [shape = 'u32[144,128]{1,0:T(1,128)}', space=vmem, size = 0x12000, scoped, tag = 'internal scratch']
  #allocation2 [shape = 'f32[18,32,4]{2,1,0:T(8,128)}', space=vmem, size = 0x48000, scoped, tag = 'scratch operand']
  #allocation3 [shape = 'f32[18,32,4]{2,1,0:T(8,128)}', space=vmem, size = 0x48000, scoped, tag = 'scratch operand']
  %s0 = inlined_call_operand.vmem [shape: f32[2,16,16,4], index: 0, kind: input, shape index: {}]
  %s1 = inlined_call_operand.vmem [shape: f32[3,12,12], index: 1, kind: input, shape index: {}]
  %s2 = inlined_call_operand.vmem [shape: f32[1,12], index: 2, kind: input, shape index: {}]
  %s3 = inlined_call_operand.vmem [shape: f32[3,12,8], index: 3, kind: input, shape index: {}]
  %s4 = inlined_call_operand.vmem [shape: f32[1,8], index: 4, kind: input, shape index: {}]
  %s5 = inlined_call_operand.vmem [shape: f32[3,12,4], index: 5, kind: input, shape index: {}]
  %s6 = inlined_call_operand.vmem [shape: f32[1,4], index: 6, kind: input, shape index: {}]
  %s7 = inlined_call_operand.vmem [shape: f32[2,16,16,16], index: 7, kind: output, shape index: {}]
  %s8 = sld [smem:[#allocation0]]
  $region61: #{ssh_forward.1} parent=0
    _
  %s10 = ssub.s32 1, %s8
  %s11 = scalar_select 0, %s10, %s8
  loop: start=0, step=1, limit=4
  $region2: #{ssh_forward.1} parent=0 // loop_pre_header
    _
  $region3: #{ssh_forward.1} parent=0 // loop_header
    %s13 = sphi 0, %s17
    %p14 = scmp.ge.s32.totalorder %s13, 4
    %s23 = sphi 0, %s25
    %s26 = sphi 0, %s23
    %s27 = sphi 0, %s26
    %s43 = sphi 0, %s27
    %s47 = sphi 0, %s47
    %s49 = sphi 0, %s47
    %s50 = sphi 0, %s49
    %s64 = sphi 0, %s50
    %s68 = sphi 0, %s68
    %s70 = sphi 0, %s68
    %s71 = sphi 0, %s70
    %s85 = sphi 0, %s71
    %s89 = sphi 0, %s89
    %s91 = sphi 0, %s89
    %s92 = sphi 0, %s91
    %s106 = sphi 0, %s92
    %s110 = sphi 0, %s110
    %s112 = sphi 0, %s110
    %s113 = sphi 0, %s112
    %s127 = sphi 0, %s113
    %s131 = sphi 0, %s131
    %s133 = sphi 0, %s131
    %s134 = sphi 0, %s133
    %s148 = sphi 0, %s134
    %s152 = sphi 0, %s152
    %s154 = sphi 0, %s152
    %s155 = sphi 0, %s154
    %s169 = sphi 0, %s155
    %s175 = sphi 0, %s177
    %s178 = sphi 0, %s175
    %s179 = sphi 0, %s178
    %s195 = sphi 0, %s179
  $region4: #{ssh_forward.1} parent=0 // loop_header_branch
    %16 = sbr.rel (%p14) target = $region8
  $region5: #{ssh_forward.1} parent=0 // loop_body
    %s18 = ssub.s32 %s13, 1
    %s19 = ssub.s32 %s13, 2
    %s20 = sadd.s32 %s13, 1
    %s21 = ssub.s32 %s13, %s20
    %p22 = scmp.eq.s32.totalorder %s21, 0
    %s24 = sadd.s32 %s23, 1
    %s25 = scalar_select %p22, %s23, %s24
    %p28 = pneg %p22
    %p29 = scmp.eq.s32.totalorder %s13, 1
    %p30 = por %p28, %p29
    %p31 = scmp.ne.s32.totalorder %s23, %s26
    %p32 = scmp.eq.s32.totalorder %s13, 0
    %p33 = por %p31, %p32
    %p34 = scmp.ne.s32.totalorder %s23, %s26
    %p35 = scmp.eq.s32.totalorder %s18, 1
    %p36 = por %p34, %p35
    %p37 = scmp.ne.s32.totalorder %s26, %s27
    %p38 = scmp.eq.s32.totalorder %s18, 0
    %p39 = por %p37, %p38
    %p40 = scmp.ne.s32.totalorder %s26, %s27
    %p41 = scmp.eq.s32.totalorder %s19, 1
    %p42 = por %p40, %p41
    %p44 = scmp.ne.s32.totalorder %s27, %s43
    %p45 = scmp.eq.s32.totalorder %s19, 0
    %p46 = por %p44, %p45
    %s48 = sadd.s32 %s47, 1
    %p51 = scmp.eq.s32.totalorder %s13, 1
    %p52 = scmp.ne.s32.totalorder %s47, %s49
    %p53 = scmp.eq.s32.totalorder %s13, 0
    %p54 = por %p52, %p53
    %p55 = scmp.ne.s32.totalorder %s47, %s49
    %p56 = scmp.eq.s32.totalorder %s18, 1
    %p57 = por %p55, %p56
    %p58 = scmp.ne.s32.totalorder %s49, %s50
    %p59 = scmp.eq.s32.totalorder %s18, 0
    %p60 = por %p58, %p59
    %p61 = scmp.ne.s32.totalorder %s49, %s50
    %p62 = scmp.eq.s32.totalorder %s19, 1
    %p63 = por %p61, %p62
    %p65 = scmp.ne.s32.totalorder %s50, %s64
    %p66 = scmp.eq.s32.totalorder %s19, 0
    %p67 = por %p65, %p66
    %s69 = sadd.s32 %s68, 1
    %p72 = scmp.eq.s32.totalorder %s13, 1
    %p73 = scmp.ne.s32.totalorder %s68, %s70
    %p74 = scmp.eq.s32.totalorder %s13, 0
    %p75 = por %p73, %p74
    %p76 = scmp.ne.s32.totalorder %s68, %s70
    %p77 = scmp.eq.s32.totalorder %s18, 1
    %p78 = por %p76, %p77
    %p79 = scmp.ne.s32.totalorder %s70, %s71
    %p80 = scmp.eq.s32.totalorder %s18, 0
    %p81 = por %p79, %p80
    %p82 = scmp.ne.s32.totalorder %s70, %s71
    %p83 = scmp.eq.s32.totalorder %s19, 1
    %p84 = por %p82, %p83
    %p86 = scmp.ne.s32.totalorder %s71, %s85
    %p87 = scmp.eq.s32.totalorder %s19, 0
    %p88 = por %p86, %p87
    %s90 = sadd.s32 %s89, 1
    %p93 = scmp.eq.s32.totalorder %s13, 1
    %p94 = scmp.ne.s32.totalorder %s89, %s91
    %p95 = scmp.eq.s32.totalorder %s13, 0
    %p96 = por %p94, %p95
    %p97 = scmp.ne.s32.totalorder %s89, %s91
    %p98 = scmp.eq.s32.totalorder %s18, 1
    %p99 = por %p97, %p98
    %p100 = scmp.ne.s32.totalorder %s91, %s92
    %p101 = scmp.eq.s32.totalorder %s18, 0
    %p102 = por %p100, %p101
    %p103 = scmp.ne.s32.totalorder %s91, %s92
    %p104 = scmp.eq.s32.totalorder %s19, 1
    %p105 = por %p103, %p104
    %p107 = scmp.ne.s32.totalorder %s92, %s106
    %p108 = scmp.eq.s32.totalorder %s19, 0
    %p109 = por %p107, %p108
    %s111 = sadd.s32 %s110, 1
    %p114 = scmp.eq.s32.totalorder %s13, 1
    %p115 = scmp.ne.s32.totalorder %s110, %s112
    %p116 = scmp.eq.s32.totalorder %s13, 0
    %p117 = por %p115, %p116
    %p118 = scmp.ne.s32.totalorder %s110, %s112
    %p119 = scmp.eq.s32.totalorder %s18, 1
    %p120 = por %p118, %p119
    %p121 = scmp.ne.s32.totalorder %s112, %s113
    %p122 = scmp.eq.s32.totalorder %s18, 0
    %p123 = por %p121, %p122
    %p124 = scmp.ne.s32.totalorder %s112, %s113
    %p125 = scmp.eq.s32.totalorder %s19, 1
    %p126 = por %p124, %p125
    %p128 = scmp.ne.s32.totalorder %s113, %s127
    %p129 = scmp.eq.s32.totalorder %s19, 0
    %p130 = por %p128, %p129
    %s132 = sadd.s32 %s131, 1
    %p135 = scmp.eq.s32.totalorder %s13, 1
    %p136 = scmp.ne.s32.totalorder %s131, %s133
    %p137 = scmp.eq.s32.totalorder %s13, 0
    %p138 = por %p136, %p137
    %p139 = scmp.ne.s32.totalorder %s131, %s133
    %p140 = scmp.eq.s32.totalorder %s18, 1
    %p141 = por %p139, %p140
    %p142 = scmp.ne.s32.totalorder %s133, %s134
    %p143 = scmp.eq.s32.totalorder %s18, 0
    %p144 = por %p142, %p143
    %p145 = scmp.ne.s32.totalorder %s133, %s134
    %p146 = scmp.eq.s32.totalorder %s19, 1
    %p147 = por %p145, %p146
    %p149 = scmp.ne.s32.totalorder %s134, %s148
    %p150 = scmp.eq.s32.totalorder %s19, 0
    %p151 = por %p149, %p150
    %s153 = sadd.s32 %s152, 1
    %p156 = scmp.eq.s32.totalorder %s13, 1
    %p157 = scmp.ne.s32.totalorder %s152, %s154
    %p158 = scmp.eq.s32.totalorder %s13, 0
    %p159 = por %p157, %p158
    %p160 = scmp.ne.s32.totalorder %s152, %s154
    %p161 = scmp.eq.s32.totalorder %s18, 1
    %p162 = por %p160, %p161
    %p163 = scmp.ne.s32.totalorder %s154, %s155
    %p164 = scmp.eq.s32.totalorder %s18, 0
    %p165 = por %p163, %p164
    %p166 = scmp.ne.s32.totalorder %s154, %s155
    %p167 = scmp.eq.s32.totalorder %s19, 1
    %p168 = por %p166, %p167
    %p170 = scmp.ne.s32.totalorder %s155, %s169
    %p171 = scmp.eq.s32.totalorder %s19, 0
    %p172 = por %p170, %p171
    %s173 = ssub.s32 %s13, %s20
    %p174 = scmp.eq.s32.totalorder %s173, 0
    %s176 = sadd.s32 %s175, 1
    %s177 = scalar_select %p174, %s175, %s176
    %p180 = pneg %p174
    %p181 = scmp.eq.s32.totalorder %s13, 1
    %p182 = por %p180, %p181
    %p183 = scmp.ne.s32.totalorder %s175, %s178
    %p184 = scmp.eq.s32.totalorder %s13, 0
    %p185 = por %p183, %p184
    %p186 = scmp.ne.s32.totalorder %s175, %s178
    %p187 = scmp.eq.s32.totalorder %s18, 1
    %p188 = por %p186, %p187
    %p189 = scmp.ne.s32.totalorder %s178, %s179
    %p190 = scmp.eq.s32.totalorder %s18, 0
    %p191 = por %p189, %p190
    %p192 = scmp.ne.s32.totalorder %s178, %s179
    %p193 = scmp.eq.s32.totalorder %s19, 1
    %p194 = por %p192, %p193
    %p196 = scmp.ne.s32.totalorder %s179, %s195
    %p197 = scmp.eq.s32.totalorder %s19, 0
    %p198 = por %p196, %p197
    %p199 = scmp.le.s32.totalorder 1, %s13
    %p200 = scmp.lt.s32.totalorder %s13, 3
    %p201 = pnand %p199, %p200
    %p202 = pneg %p201
    // Predicated region
    $region9: #{ssh_forward.1} parent=5 // pred_check
      _
    $region10: #{ssh_forward.1} parent=5 // pred_check_branch
      %204 = sbr.rel (%p201) target = $region12
    $region11: #{ssh_forward.1} parent=5 // pred_region
      %s205 = ssub.s32 %s13, 1
      // Predicated region
      $region13: #{ssh_forward.1} parent=11 // pred_check
        %p206 = pneg %p60
      $region14: #{ssh_forward.1} parent=11 // pred_check_branch
        %208 = sbr.rel (%p206) target = $region16
      $region15: #{ssh_forward.1} parent=11 // pred_region
        _
      $region16: #{ssh_forward.1} parent=11 // pred_fallthru
        _
      // Predicated region
      $region17: #{ssh_forward.1} parent=11 // pred_check
        %p209 = pneg %p81
      $region18: #{ssh_forward.1} parent=11 // pred_check_branch
        %211 = sbr.rel (%p209) target = $region20
      $region19: #{ssh_forward.1} parent=11 // pred_region
        _
      $region20: #{ssh_forward.1} parent=11 // pred_fallthru
        _
      // Predicated region
      $region21: #{ssh_forward.1} parent=11 // pred_check
        %p212 = pneg %p102
      $region22: #{ssh_forward.1} parent=11 // pred_check_branch
        %214 = sbr.rel (%p212) target = $region24
      $region23: #{ssh_forward.1} parent=11 // pred_region
        _
      $region24: #{ssh_forward.1} parent=11 // pred_fallthru
        _
      // Predicated region
      $region25: #{ssh_forward.1} parent=11 // pred_check
        %p215 = pneg %p123
      $region26: #{ssh_forward.1} parent=11 // pred_check_branch
        %217 = sbr.rel (%p215) target = $region28
      $region27: #{ssh_forward.1} parent=11 // pred_region
        _
      $region28: #{ssh_forward.1} parent=11 // pred_fallthru
        _
      // Predicated region
      $region29: #{ssh_forward.1} parent=11 // pred_check
        %p218 = pneg %p144
      $region30: #{ssh_forward.1} parent=11 // pred_check_branch
        %220 = sbr.rel (%p218) target = $region32
      $region31: #{ssh_forward.1} parent=11 // pred_region
        _
      $region32: #{ssh_forward.1} parent=11 // pred_fallthru
        _
      // Predicated region
      $region33: #{ssh_forward.1} parent=11 // pred_check
        %p221 = pneg %p165
      $region34: #{ssh_forward.1} parent=11 // pred_check_branch
        %223 = sbr.rel (%p221) target = $region36
      $region35: #{ssh_forward.1} parent=11 // pred_region
        _
      $region36: #{ssh_forward.1} parent=11 // pred_fallthru
        _
    $region12: #{ssh_forward.1} parent=5 // pred_fallthru
      _
    %p224 = scmp.lt.s32.totalorder %s13, 2
    // Predicated region
    $region37: #{ssh_forward.1} parent=5 // pred_check
      %p225 = pneg %p224
    $region38: #{ssh_forward.1} parent=5 // pred_check_branch
      %227 = sbr.rel (%p225) target = $region40
    $region39: #{ssh_forward.1} parent=5 // pred_region
      // Predicated region
      $region41: #{ssh_forward.1} parent=39 // pred_check
        %p228 = pneg %p33
      $region42: #{ssh_forward.1} parent=39 // pred_check_branch
        %230 = sbr.rel (%p228) target = $region44
      $region43: #{ssh_forward.1} parent=39 // pred_region
        %p231 = scmp.lt.s32.totalorder %s13, 1
        %s232 = scalar_select %p231, %s13, 1
        %s233 = smul.addr %s232, 32
        %s234 = smul.addr %s233, 8
        %s235 = scalar_lea.vmem %s0, %s234
      $region44: #{ssh_forward.1} parent=39 // pred_fallthru
        _
    $region40: #{ssh_forward.1} parent=5 // pred_fallthru
      _
    %p236 = scmp.le.s32.totalorder 1, %s13
    %p237 = scmp.lt.s32.totalorder %s13, 3
    %p238 = pnand %p236, %p237
    %p239 = pneg %p238
    // Predicated region
    $region45: #{ssh_forward.1} parent=5 // pred_check
      _
    $region46: #{ssh_forward.1} parent=5 // pred_check_branch
      %241 = sbr.rel (%p238) target = $region48
    $region47: #{ssh_forward.1} parent=5 // pred_region
      %s242 = ssub.s32 %s13, 1
      %p243 = scmp.lt.s32.totalorder %s18, 1
      %s244 = scalar_select %p243, %s18, 1
      %s245 = smul.addr %s244, 32
      %s246 = smul.addr %s245, 8
      %s247 = scalar_lea.vmem %s0, %s246
      %p248 = pneg %p39
      %p249 = pneg %p36
      %p250 = pneg %p60
      %p251 = pneg %p57
      %p252 = pneg %p81
      %p253 = pneg %p78
      %p254 = pneg %p102
      %p255 = pneg %p99
      %p256 = pneg %p123
      %p257 = pneg %p120
      %p258 = pneg %p144
      %p259 = pneg %p141
      %p260 = pneg %p165
      %p261 = pneg %p162
      %p262 = pneg %p191
      %p263 = pneg %p188
      %p264 = scmp.lt.s32.totalorder %s18, 1
      %s265 = scalar_select %p264, %s18, 1
      %s266 = smul.addr %s265, 32
      %s267 = smul.addr %s266, 8
      %s268 = scalar_lea.vmem %s7, %s267
      %p269 = scmp.lt.s32.totalorder %s18, 1
      %s270 = scalar_select %p269, %s18, 1
      %s271 = smul.addr %s270, 32
      %s272 = smul.addr %s271, 8
      %s273 = scalar_lea.vmem %s0, %s272
      %p274 = scmp.lt.s32.totalorder %s18, 1
      %s275 = scalar_select %p274, %s18, 1
      %s276 = smul.addr %s275, 32
      %s277 = smul.addr %s276, 8
      %s278 = scalar_lea.vmem %s7, %s277
      %vm279 = vcmask 31744
      %280 = vst.msk [vmem:[#allocation2] sm:$0xff] %vm279, 0.0
      %281 = vst.msk [vmem:[#allocation2 + $0x8] sm:$0xff] %vm279, 0.0
      %282 = vst.msk [vmem:[#allocation2 + $0x10] sm:$0xff] %vm279, 0.0
      %283 = vst.msk [vmem:[#allocation2 + $0x18] sm:$0xff] %vm279, 0.0
      %s284 = scalar_lea.vmem [#allocation2], 544
      %285 = vst.msk [vmem:[%s284] sm:$0xff] %vm279, 0.0
      %286 = vst.msk [vmem:[%s284 + $0x8] sm:$0xff] %vm279, 0.0
      %287 = vst.msk [vmem:[%s284 + $0x10] sm:$0xff] %vm279, 0.0
      %288 = vst.msk [vmem:[%s284 + $0x18] sm:$0xff] %vm279, 0.0
      %289 = vst.msk [vmem:[#allocation2] sm:$0xff] %vm279, 0.0
      %290 = vst.msk [vmem:[#allocation2 + $0x20] sm:$0xff] %vm279, 0.0
      %291 = vst.msk [vmem:[#allocation2 + $0x40] sm:$0xff] %vm279, 0.0
      %292 = vst.msk [vmem:[#allocation2 + $0x60] sm:$0xff] %vm279, 0.0
      %293 = vst.msk [vmem:[#allocation2 + $0x80] sm:$0xff] %vm279, 0.0
      %294 = vst.msk [vmem:[#allocation2 + $0xa0] sm:$0xff] %vm279, 0.0
      %295 = vst.msk [vmem:[#allocation2 + $0xc0] sm:$0xff] %vm279, 0.0
      %296 = vst.msk [vmem:[#allocation2 + $0xe0] sm:$0xff] %vm279, 0.0
      %297 = vst.msk [vmem:[#allocation2 + $0x100] sm:$0xff] %vm279, 0.0
      %298 = vst.msk [vmem:[#allocation2 + $0x120] sm:$0xff] %vm279, 0.0
      %299 = vst.msk [vmem:[#allocation2 + $0x140] sm:$0xff] %vm279, 0.0
      %300 = vst.msk [vmem:[#allocation2 + $0x160] sm:$0xff] %vm279, 0.0
      %301 = vst.msk [vmem:[#allocation2 + $0x180] sm:$0xff] %vm279, 0.0
      %302 = vst.msk [vmem:[#allocation2 + $0x1a0] sm:$0xff] %vm279, 0.0
      %303 = vst.msk [vmem:[#allocation2 + $0x1c0] sm:$0xff] %vm279, 0.0
      %304 = vst.msk [vmem:[#allocation2 + $0x1e0] sm:$0xff] %vm279, 0.0
      %305 = vst.msk [vmem:[#allocation2 + $0x200] sm:$0xff] %vm279, 0.0
      %306 = vst.msk [vmem:[#allocation2 + $0x220] sm:$0xff] %vm279, 0.0
      %307 = vst.msk [vmem:[#allocation2 + $0x18] sm:$0xff] %vm279, 0.0
      %308 = vst.msk [vmem:[#allocation2 + $0x38] sm:$0xff] %vm279, 0.0
      %309 = vst.msk [vmem:[#allocation2 + $0x58] sm:$0xff] %vm279, 0.0
      %310 = vst.msk [vmem:[#allocation2 + $0x78] sm:$0xff] %vm279, 0.0
      %311 = vst.msk [vmem:[#allocation2 + $0x98] sm:$0xff] %vm279, 0.0
      %312 = vst.msk [vmem:[#allocation2 + $0xb8] sm:$0xff] %vm279, 0.0
      %313 = vst.msk [vmem:[#allocation2 + $0xd8] sm:$0xff] %vm279, 0.0
      %314 = vst.msk [vmem:[#allocation2 + $0xf8] sm:$0xff] %vm279, 0.0
      %315 = vst.msk [vmem:[#allocation2 + $0x118] sm:$0xff] %vm279, 0.0
      %316 = vst.msk [vmem:[#allocation2 + $0x138] sm:$0xff] %vm279, 0.0
      %317 = vst.msk [vmem:[#allocation2 + $0x158] sm:$0xff] %vm279, 0.0
      %318 = vst.msk [vmem:[#allocation2 + $0x178] sm:$0xff] %vm279, 0.0
      %319 = vst.msk [vmem:[#allocation2 + $0x198] sm:$0xff] %vm279, 0.0
      %320 = vst.msk [vmem:[#allocation2 + $0x1b8] sm:$0xff] %vm279, 0.0
      %321 = vst.msk [vmem:[#allocation2 + $0x1d8] sm:$0xff] %vm279, 0.0
      %322 = vst.msk [vmem:[#allocation2 + $0x1f8] sm:$0xff] %vm279, 0.0
      %323 = vst.msk [vmem:[#allocation2 + $0x218] sm:$0xff] %vm279, 0.0
      %324 = vst.msk [vmem:[#allocation2 + $0x238] sm:$0xff] %vm279, 0.0
      %v325 = vld [vmem:[%s273] sm:$0xff]
      %v326 = vld [vmem:[%s273 + $0x8] sm:$0xff]
      %v327 = vld [vmem:[%s273 + $0x10] sm:$0xff]
      %v328 = vld [vmem:[%s273 + $0x18] sm:$0xff]
      %v329 = vld [vmem:[%s273 + $0x20] sm:$0xff]
      %v330 = vld [vmem:[%s273 + $0x28] sm:$0xff]
      %v331 = vld [vmem:[%s273 + $0x30] sm:$0xff]
      %v332 = vld [vmem:[%s273 + $0x38] sm:$0xff]
      %v333 = vld [vmem:[%s273 + $0x40] sm:$0xff]
      %v334 = vld [vmem:[%s273 + $0x48] sm:$0xff]
      %v335 = vld [vmem:[%s273 + $0x50] sm:$0xff]
      %v336 = vld [vmem:[%s273 + $0x58] sm:$0xff]
      %v337 = vld [vmem:[%s273 + $0x60] sm:$0xff]
      %v338 = vld [vmem:[%s273 + $0x68] sm:$0xff]
      %v339 = vld [vmem:[%s273 + $0x70] sm:$0xff]
      %v340 = vld [vmem:[%s273 + $0x78] sm:$0xff]
      %v341 = vld [vmem:[%s273 + $0x80] sm:$0xff]
      %v342 = vld [vmem:[%s273 + $0x88] sm:$0xff]
      %v343 = vld [vmem:[%s273 + $0x90] sm:$0xff]
      %v344 = vld [vmem:[%s273 + $0x98] sm:$0xff]
      %v345 = vld [vmem:[%s273 + $0xa0] sm:$0xff]
      %v346 = vld [vmem:[%s273 + $0xa8] sm:$0xff]
      %v347 = vld [vmem:[%s273 + $0xb0] sm:$0xff]
      %v348 = vld [vmem:[%s273 + $0xb8] sm:$0xff]
      %v349 = vld [vmem:[%s273 + $0xc0] sm:$0xff]
      %v350 = vld [vmem:[%s273 + $0xc8] sm:$0xff]
      %v351 = vld [vmem:[%s273 + $0xd0] sm:$0xff]
      %v352 = vld [vmem:[%s273 + $0xd8] sm:$0xff]
      %v353 = vld [vmem:[%s273 + $0xe0] sm:$0xff]
      %v354 = vld [vmem:[%s273 + $0xe8] sm:$0xff]
      %v355 = vld [vmem:[%s273 + $0xf0] sm:$0xff]
      %v356 = vld [vmem:[%s273 + $0xf8] sm:$0xff]
      %s357 = scalar_lea.vmem [#allocation2], 32
      %358 = vst.msk [vmem:[%s357 + $0x8] sm:$0xff] %vm279, %v325
      %359 = vst.msk [vmem:[%s357 + $0x10] sm:$0xff] %vm279, %v326
      %360 = vst.msk [vmem:[%s357 + $0x28] sm:$0xff] %vm279, %v327
      %361 = vst.msk [vmem:[%s357 + $0x30] sm:$0xff] %vm279, %v328
      %362 = vst.msk [vmem:[%s357 + $0x48] sm:$0xff] %vm279, %v329
      %363 = vst.msk [vmem:[%s357 + $0x50] sm:$0xff] %vm279, %v330
      %364 = vst.msk [vmem:[%s357 + $0x68] sm:$0xff] %vm279, %v331
      %365 = vst.msk [vmem:[%s357 + $0x70] sm:$0xff] %vm279, %v332
      %366 = vst.msk [vmem:[%s357 + $0x88] sm:$0xff] %vm279, %v333
      %367 = vst.msk [vmem:[%s357 + $0x90] sm:$0xff] %vm279, %v334
      %368 = vst.msk [vmem:[%s357 + $0xa8] sm:$0xff] %vm279, %v335
      %369 = vst.msk [vmem:[%s357 + $0xb0] sm:$0xff] %vm279, %v336
      %370 = vst.msk [vmem:[%s357 + $0xc8] sm:$0xff] %vm279, %v337
      %371 = vst.msk [vmem:[%s357 + $0xd0] sm:$0xff] %vm279, %v338
      %372 = vst.msk [vmem:[%s357 + $0xe8] sm:$0xff] %vm279, %v339
      %373 = vst.msk [vmem:[%s357 + $0xf0] sm:$0xff] %vm279, %v340
      %374 = vst.msk [vmem:[%s357 + $0x108] sm:$0xff] %vm279, %v341
      %375 = vst.msk [vmem:[%s357 + $0x110] sm:$0xff] %vm279, %v342
      %376 = vst.msk [vmem:[%s357 + $0x128] sm:$0xff] %vm279, %v343
      %377 = vst.msk [vmem:[%s357 + $0x130] sm:$0xff] %vm279, %v344
      %378 = vst.msk [vmem:[%s357 + $0x148] sm:$0xff] %vm279, %v345
      %379 = vst.msk [vmem:[%s357 + $0x150] sm:$0xff] %vm279, %v346
      %380 = vst.msk [vmem:[%s357 + $0x168] sm:$0xff] %vm279, %v347
      %381 = vst.msk [vmem:[%s357 + $0x170] sm:$0xff] %vm279, %v348
      %382 = vst.msk [vmem:[%s357 + $0x188] sm:$0xff] %vm279, %v349
      %383 = vst.msk [vmem:[%s357 + $0x190] sm:$0xff] %vm279, %v350
      %384 = vst.msk [vmem:[%s357 + $0x1a8] sm:$0xff] %vm279, %v351
      %385 = vst.msk [vmem:[%s357 + $0x1b0] sm:$0xff] %vm279, %v352
      %386 = vst.msk [vmem:[%s357 + $0x1c8] sm:$0xff] %vm279, %v353
      %387 = vst.msk [vmem:[%s357 + $0x1d0] sm:$0xff] %vm279, %v354
      %388 = vst.msk [vmem:[%s357 + $0x1e8] sm:$0xff] %vm279, %v355
      %389 = vst.msk [vmem:[%s357 + $0x1f0] sm:$0xff] %vm279, %v356
      %v390 = vld [vmem:[%s2] sm:$0x1]
      %v392 = vlaneseq
      %v393 = vshrl.u32 %v392, 7
      %v394 = vsub.s32 0, %v393
      %v395 = vrot.slane %v390, %v394
      %v397 = vld [vmem:[#allocation2 + $0x7] sm:$0xff]
      %v398 = vld [vmem:[#allocation2 + $0xf] sm:$0xff]
      %v399 = vld [vmem:[#allocation2 + $0x27] sm:$0xff]
      %v400 = vld [vmem:[#allocation2 + $0x2f] sm:$0xff]
      %v401 = vld [vmem:[#allocation2 + $0x47] sm:$0xff]
      %v402 = vld [vmem:[#allocation2 + $0x4f] sm:$0xff]
      %v403 = vld [vmem:[#allocation2 + $0x67] sm:$0xff]
      %v404 = vld [vmem:[#allocation2 + $0x6f] sm:$0xff]
      %v405 = vld [vmem:[#allocation2 + $0x87] sm:$0xff]
      %v406 = vld [vmem:[#allocation2 + $0x8f] sm:$0xff]
      %v407 = vld [vmem:[#allocation2 + $0xa7] sm:$0xff]
      %v408 = vld [vmem:[#allocation2 + $0xaf] sm:$0xff]
      %v409 = vld [vmem:[#allocation2 + $0xc7] sm:$0xff]
      %v410 = vld [vmem:[#allocation2 + $0xcf] sm:$0xff]
      %v411 = vld [vmem:[#allocation2 + $0xe7] sm:$0xff]
      %v412 = vld [vmem:[#allocation2 + $0xef] sm:$0xff]
      %v413 = vld [vmem:[#allocation2 + $0x107] sm:$0xff]
      %v414 = vld [vmem:[#allocation2 + $0x10f] sm:$0xff]
      %v415 = vld [vmem:[#allocation2 + $0x127] sm:$0xff]
      %v416 = vld [vmem:[#allocation2 + $0x12f] sm:$0xff]
      %v417 = vld [vmem:[#allocation2 + $0x147] sm:$0xff]
      %v418 = vld [vmem:[#allocation2 + $0x14f] sm:$0xff]
      %v419 = vld [vmem:[#allocation2 + $0x167] sm:$0xff]
      %v420 = vld [vmem:[#allocation2 + $0x16f] sm:$0xff]
      %v421 = vld [vmem:[#allocation2 + $0x187] sm:$0xff]
      %v422 = vld [vmem:[#allocation2 + $0x18f] sm:$0xff]
      %v423 = vld [vmem:[#allocation2 + $0x1a7] sm:$0xff]
      %v424 = vld [vmem:[#allocation2 + $0x1af] sm:$0xff]
      %v425 = vld [vmem:[#allocation2 + $0x1c7] sm:$0xff]
      %v426 = vld [vmem:[#allocation2 + $0x1cf] sm:$0xff]
      %v427 = vld [vmem:[#allocation2 + $0x1e7] sm:$0xff]
      %v428 = vld [vmem:[#allocation2 + $0x1ef] sm:$0xff]
      %v429 = vld [vmem:[%s357 + $0x7] sm:$0xff]
      %v430 = vld [vmem:[%s357 + $0xf] sm:$0xff]
      %v431 = vld [vmem:[%s357 + $0x27] sm:$0xff]
      %v432 = vld [vmem:[%s357 + $0x2f] sm:$0xff]
      %v433 = vld [vmem:[%s357 + $0x47] sm:$0xff]
      %v434 = vld [vmem:[%s357 + $0x4f] sm:$0xff]
      %v435 = vld [vmem:[%s357 + $0x67] sm:$0xff]
      %v436 = vld [vmem:[%s357 + $0x6f] sm:$0xff]
      %v437 = vld [vmem:[%s357 + $0x87] sm:$0xff]
      %v438 = vld [vmem:[%s357 + $0x8f] sm:$0xff]
      %v439 = vld [vmem:[%s357 + $0xa7] sm:$0xff]
      %v440 = vld [vmem:[%s357 + $0xaf] sm:$0xff]
      %v441 = vld [vmem:[%s357 + $0xc7] sm:$0xff]
      %v442 = vld [vmem:[%s357 + $0xcf] sm:$0xff]
      %v443 = vld [vmem:[%s357 + $0xe7] sm:$0xff]
      %v444 = vld [vmem:[%s357 + $0xef] sm:$0xff]
      %v445 = vld [vmem:[%s357 + $0x107] sm:$0xff]
      %v446 = vld [vmem:[%s357 + $0x10f] sm:$0xff]
      %v447 = vld [vmem:[%s357 + $0x127] sm:$0xff]
      %v448 = vld [vmem:[%s357 + $0x12f] sm:$0xff]
      %v449 = vld [vmem:[%s357 + $0x147] sm:$0xff]
      %v450 = vld [vmem:[%s357 + $0x14f] sm:$0xff]
      %v451 = vld [vmem:[%s357 + $0x167] sm:$0xff]
      %v452 = vld [vmem:[%s357 + $0x16f] sm:$0xff]
      %v453 = vld [vmem:[%s357 + $0x187] sm:$0xff]
      %v454 = vld [vmem:[%s357 + $0x18f] sm:$0xff]
      %v455 = vld [vmem:[%s357 + $0x1a7] sm:$0xff]
      %v456 = vld [vmem:[%s357 + $0x1af] sm:$0xff]
      %v457 = vld [vmem:[%s357 + $0x1c7] sm:$0xff]
      %v458 = vld [vmem:[%s357 + $0x1cf] sm:$0xff]
      %v459 = vld [vmem:[%s357 + $0x1e7] sm:$0xff]
      %v460 = vld [vmem:[%s357 + $0x1ef] sm:$0xff]
      %s461 = scalar_lea.vmem [#allocation2], 64
      %v462 = vld [vmem:[%s461 + $0x7] sm:$0xff]
      %v463 = vld [vmem:[%s461 + $0xf] sm:$0xff]
      %v464 = vld [vmem:[%s461 + $0x27] sm:$0xff]
      %v465 = vld [vmem:[%s461 + $0x2f] sm:$0xff]
      %v466 = vld [vmem:[%s461 + $0x47] sm:$0xff]
      %v467 = vld [vmem:[%s461 + $0x4f] sm:$0xff]
      %v468 = vld [vmem:[%s461 + $0x67] sm:$0xff]
      %v469 = vld [vmem:[%s461 + $0x6f] sm:$0xff]
      %v470 = vld [vmem:[%s461 + $0x87] sm:$0xff]
      %v471 = vld [vmem:[%s461 + $0x8f] sm:$0xff]
      %v472 = vld [vmem:[%s461 + $0xa7] sm:$0xff]
      %v473 = vld [vmem:[%s461 + $0xaf] sm:$0xff]
      %v474 = vld [vmem:[%s461 + $0xc7] sm:$0xff]
      %v475 = vld [vmem:[%s461 + $0xcf] sm:$0xff]
      %v476 = vld [vmem:[%s461 + $0xe7] sm:$0xff]
      %v477 = vld [vmem:[%s461 + $0xef] sm:$0xff]
      %v478 = vld [vmem:[%s461 + $0x107] sm:$0xff]
      %v479 = vld [vmem:[%s461 + $0x10f] sm:$0xff]
      %v480 = vld [vmem:[%s461 + $0x127] sm:$0xff]
      %v481 = vld [vmem:[%s461 + $0x12f] sm:$0xff]
      %v482 = vld [vmem:[%s461 + $0x147] sm:$0xff]
      %v483 = vld [vmem:[%s461 + $0x14f] sm:$0xff]
      %v484 = vld [vmem:[%s461 + $0x167] sm:$0xff]
      %v485 = vld [vmem:[%s461 + $0x16f] sm:$0xff]
      %v486 = vld [vmem:[%s461 + $0x187] sm:$0xff]
      %v487 = vld [vmem:[%s461 + $0x18f] sm:$0xff]
      %v488 = vld [vmem:[%s461 + $0x1a7] sm:$0xff]
      %v489 = vld [vmem:[%s461 + $0x1af] sm:$0xff]
      %v490 = vld [vmem:[%s461 + $0x1c7] sm:$0xff]
      %v491 = vld [vmem:[%s461 + $0x1cf] sm:$0xff]
      %v492 = vld [vmem:[%s461 + $0x1e7] sm:$0xff]
      %v493 = vld [vmem:[%s461 + $0x1ef] sm:$0xff]
      %526 = vrot.lane.b32.xlu0 %v429, 4
      %v527 = vpop.permute.xlu0 %526
      %528 = vrot.lane.b32.xlu0 %v430, 4
      %v529 = vpop.permute.xlu0 %528
      %530 = vrot.lane.b32.xlu0 %v431, 4
      %v531 = vpop.permute.xlu0 %530
      %532 = vrot.lane.b32.xlu0 %v432, 4
      %v533 = vpop.permute.xlu0 %532
      %534 = vrot.lane.b32.xlu0 %v433, 4
      %v535 = vpop.permute.xlu0 %534
      %536 = vrot.lane.b32.xlu0 %v434, 4
      %v537 = vpop.permute.xlu0 %536
      %538 = vrot.lane.b32.xlu0 %v435, 4
      %v539 = vpop.permute.xlu0 %538
      %540 = vrot.lane.b32.xlu0 %v436, 4
      %v541 = vpop.permute.xlu0 %540
      %542 = vrot.lane.b32.xlu0 %v437, 4
      %v543 = vpop.permute.xlu0 %542
      %544 = vrot.lane.b32.xlu0 %v438, 4
      %v545 = vpop.permute.xlu0 %544
      %546 = vrot.lane.b32.xlu0 %v439, 4
      %v547 = vpop.permute.xlu0 %546
      %548 = vrot.lane.b32.xlu0 %v440, 4
      %v549 = vpop.permute.xlu0 %548
      %550 = vrot.lane.b32.xlu0 %v441, 4
      %v551 = vpop.permute.xlu0 %550
      %552 = vrot.lane.b32.xlu0 %v442, 4
      %v553 = vpop.permute.xlu0 %552
      %554 = vrot.lane.b32.xlu0 %v443, 4
      %v555 = vpop.permute.xlu0 %554
      %556 = vrot.lane.b32.xlu0 %v444, 4
      %v557 = vpop.permute.xlu0 %556
      %558 = vrot.lane.b32.xlu0 %v445, 4
      %v559 = vpop.permute.xlu0 %558
      %560 = vrot.lane.b32.xlu0 %v446, 4
      %v561 = vpop.permute.xlu0 %560
      %562 = vrot.lane.b32.xlu0 %v447, 4
      %v563 = vpop.permute.xlu0 %562
      %564 = vrot.lane.b32.xlu0 %v448, 4
      %v565 = vpop.permute.xlu0 %564
      %566 = vrot.lane.b32.xlu0 %v449, 4
      %v567 = vpop.permute.xlu0 %566
      %568 = vrot.lane.b32.xlu0 %v450, 4
      %v569 = vpop.permute.xlu0 %568
      %570 = vrot.lane.b32.xlu0 %v451, 4
      %v571 = vpop.permute.xlu0 %570
      %572 = vrot.lane.b32.xlu0 %v452, 4
      %v573 = vpop.permute.xlu0 %572
      %574 = vrot.lane.b32.xlu0 %v453, 4
      %v575 = vpop.permute.xlu0 %574
      %576 = vrot.lane.b32.xlu0 %v454, 4
      %v577 = vpop.permute.xlu0 %576
      %578 = vrot.lane.b32.xlu0 %v455, 4
      %v579 = vpop.permute.xlu0 %578
      %580 = vrot.lane.b32.xlu0 %v456, 4
      %v581 = vpop.permute.xlu0 %580
      %582 = vrot.lane.b32.xlu0 %v457, 4
      %v583 = vpop.permute.xlu0 %582
      %584 = vrot.lane.b32.xlu0 %v458, 4
      %v585 = vpop.permute.xlu0 %584
      %586 = vrot.lane.b32.xlu0 %v459, 4
      %v587 = vpop.permute.xlu0 %586
      %588 = vrot.lane.b32.xlu0 %v460, 4
      %v589 = vpop.permute.xlu0 %588
      %654 = vrot.lane.b32.xlu0 %v462, 8
      %v655 = vpop.permute.xlu0 %654
      %656 = vrot.lane.b32.xlu0 %v463, 8
      %v657 = vpop.permute.xlu0 %656
      %658 = vrot.lane.b32.xlu0 %v464, 8
      %v659 = vpop.permute.xlu0 %658
      %660 = vrot.lane.b32.xlu0 %v465, 8
      %v661 = vpop.permute.xlu0 %660
      %662 = vrot.lane.b32.xlu0 %v466, 8
      %v663 = vpop.permute.xlu0 %662
      %664 = vrot.lane.b32.xlu0 %v467, 8
      %v665 = vpop.permute.xlu0 %664
      %666 = vrot.lane.b32.xlu0 %v468, 8
      %v667 = vpop.permute.xlu0 %666
      %668 = vrot.lane.b32.xlu0 %v469, 8
      %v669 = vpop.permute.xlu0 %668
      %670 = vrot.lane.b32.xlu0 %v470, 8
      %v671 = vpop.permute.xlu0 %670
      %672 = vrot.lane.b32.xlu0 %v471, 8
      %v673 = vpop.permute.xlu0 %672
      %674 = vrot.lane.b32.xlu0 %v472, 8
      %v675 = vpop.permute.xlu0 %674
      %676 = vrot.lane.b32.xlu0 %v473, 8
      %v677 = vpop.permute.xlu0 %676
      %678 = vrot.lane.b32.xlu0 %v474, 8
      %v679 = vpop.permute.xlu0 %678
      %680 = vrot.lane.b32.xlu0 %v475, 8
      %v681 = vpop.permute.xlu0 %680
      %682 = vrot.lane.b32.xlu0 %v476, 8
      %v683 = vpop.permute.xlu0 %682
      %684 = vrot.lane.b32.xlu0 %v477, 8
      %v685 = vpop.permute.xlu0 %684
      %686 = vrot.lane.b32.xlu0 %v478, 8
      %v687 = vpop.permute.xlu0 %686
      %688 = vrot.lane.b32.xlu0 %v479, 8
      %v689 = vpop.permute.xlu0 %688
      %690 = vrot.lane.b32.xlu0 %v480, 8
      %v691 = vpop.permute.xlu0 %690
      %692 = vrot.lane.b32.xlu0 %v481, 8
      %v693 = vpop.permute.xlu0 %692
      %694 = vrot.lane.b32.xlu0 %v482, 8
      %v695 = vpop.permute.xlu0 %694
      %696 = vrot.lane.b32.xlu0 %v483, 8
      %v697 = vpop.permute.xlu0 %696
      %698 = vrot.lane.b32.xlu0 %v484, 8
      %v699 = vpop.permute.xlu0 %698
      %700 = vrot.lane.b32.xlu0 %v485, 8
      %v701 = vpop.permute.xlu0 %700
      %702 = vrot.lane.b32.xlu0 %v486, 8
      %v703 = vpop.permute.xlu0 %702
      %704 = vrot.lane.b32.xlu0 %v487, 8
      %v705 = vpop.permute.xlu0 %704
      %706 = vrot.lane.b32.xlu0 %v488, 8
      %v707 = vpop.permute.xlu0 %706
      %708 = vrot.lane.b32.xlu0 %v489, 8
      %v709 = vpop.permute.xlu0 %708
      %710 = vrot.lane.b32.xlu0 %v490, 8
      %v711 = vpop.permute.xlu0 %710
      %712 = vrot.lane.b32.xlu0 %v491, 8
      %v713 = vpop.permute.xlu0 %712
      %714 = vrot.lane.b32.xlu0 %v492, 8
      %v715 = vpop.permute.xlu0 %714
      %716 = vrot.lane.b32.xlu0 %v493, 8
      %v717 = vpop.permute.xlu0 %716
      %v750 = vsel %vm279, %v397, %v527
      %v751 = vsel %vm279, %v398, %v529
      %v752 = vsel %vm279, %v399, %v531
      %v753 = vsel %vm279, %v400, %v533
      %v754 = vsel %vm279, %v401, %v535
      %v755 = vsel %vm279, %v402, %v537
      %v756 = vsel %vm279, %v403, %v539
      %v757 = vsel %vm279, %v404, %v541
      %v758 = vsel %vm279, %v405, %v543
      %v759 = vsel %vm279, %v406, %v545
      %v760 = vsel %vm279, %v407, %v547
      %v761 = vsel %vm279, %v408, %v549
      %v762 = vsel %vm279, %v409, %v551
      %v763 = vsel %vm279, %v410, %v553
      %v764 = vsel %vm279, %v411, %v555
      %v765 = vsel %vm279, %v412, %v557
      %v766 = vsel %vm279, %v413, %v559
      %v767 = vsel %vm279, %v414, %v561
      %v768 = vsel %vm279, %v415, %v563
      %v769 = vsel %vm279, %v416, %v565
      %v770 = vsel %vm279, %v417, %v567
      %v771 = vsel %vm279, %v418, %v569
      %v772 = vsel %vm279, %v419, %v571
      %v773 = vsel %vm279, %v420, %v573
      %v774 = vsel %vm279, %v421, %v575
      %v775 = vsel %vm279, %v422, %v577
      %v776 = vsel %vm279, %v423, %v579
      %v777 = vsel %vm279, %v424, %v581
      %v778 = vsel %vm279, %v425, %v583
      %v779 = vsel %vm279, %v426, %v585
      %v780 = vsel %vm279, %v427, %v587
      %v781 = vsel %vm279, %v428, %v589
      %vm782 = vcmask 64512
      %v783 = vsel %vm782, %v750, %v655
      %v784 = vsel %vm782, %v751, %v657
      %v785 = vsel %vm782, %v752, %v659
      %v786 = vsel %vm782, %v753, %v661
      %v787 = vsel %vm782, %v754, %v663
      %v788 = vsel %vm782, %v755, %v665
      %v789 = vsel %vm782, %v756, %v667
      %v790 = vsel %vm782, %v757, %v669
      %v791 = vsel %vm782, %v758, %v671
      %v792 = vsel %vm782, %v759, %v673
      %v793 = vsel %vm782, %v760, %v675
      %v794 = vsel %vm782, %v761, %v677
      %v795 = vsel %vm782, %v762, %v679
      %v796 = vsel %vm782, %v763, %v681
      %v797 = vsel %vm782, %v764, %v683
      %v798 = vsel %vm782, %v765, %v685
      %v799 = vsel %vm782, %v766, %v687
      %v800 = vsel %vm782, %v767, %v689
      %v801 = vsel %vm782, %v768, %v691
      %v802 = vsel %vm782, %v769, %v693
      %v803 = vsel %vm782, %v770, %v695
      %v804 = vsel %vm782, %v771, %v697
      %v805 = vsel %vm782, %v772, %v699
      %v806 = vsel %vm782, %v773, %v701
      %v807 = vsel %vm782, %v774, %v703
      %v808 = vsel %vm782, %v775, %v705
      %v809 = vsel %vm782, %v776, %v707
      %v810 = vsel %vm782, %v777, %v709
      %v811 = vsel %vm782, %v778, %v711
      %v812 = vsel %vm782, %v779, %v713
      %v813 = vsel %vm782, %v780, %v715
      %v814 = vsel %vm782, %v781, %v717
      %v815 = vld [vmem:[%s1] sm:$0xff]
      %v816 = vld [vmem:[%s1 + $0x8] sm:$0xf]
      %vm817 = vcmask 97280
      %v819 = vsel %vm817, %v783, 0
      %v822 = vsel %vm817, %v784, 0
      %v825 = vsel %vm817, %v785, 0
      %v828 = vsel %vm817, %v786, 0
      %v831 = vsel %vm817, %v787, 0
      %v834 = vsel %vm817, %v788, 0
      %v837 = vsel %vm817, %v789, 0
      %v840 = vsel %vm817, %v790, 0
      %v843 = vsel %vm817, %v791, 0
      %v846 = vsel %vm817, %v792, 0
      %v849 = vsel %vm817, %v793, 0
      %v852 = vsel %vm817, %v794, 0
      %v855 = vsel %vm817, %v795, 0
      %v858 = vsel %vm817, %v796, 0
      %v861 = vsel %vm817, %v797, 0
      %v864 = vsel %vm817, %v798, 0
      %v867 = vsel %vm817, %v799, 0
      %v870 = vsel %vm817, %v800, 0
      %v873 = vsel %vm817, %v801, 0
      %v876 = vsel %vm817, %v802, 0
      %v879 = vsel %vm817, %v803, 0
      %v882 = vsel %vm817, %v804, 0
      %v885 = vsel %vm817, %v805, 0
      %v888 = vsel %vm817, %v806, 0
      %v891 = vsel %vm817, %v807, 0
      %v894 = vsel %vm817, %v808, 0
      %v897 = vsel %vm817, %v809, 0
      %v900 = vsel %vm817, %v810, 0
      %v903 = vsel %vm817, %v811, 0
      %v906 = vsel %vm817, %v812, 0
      %v909 = vsel %vm817, %v813, 0
      %v912 = vsel %vm817, %v814, 0
      %vm914 = vcmask 1043456
      %v916 = vsel %vm914, %v816, 0
      %918 = vmatprep.subr.mxu0 0.0
      %919 = vmatpush1.msra.mxu0 %v815
      %920 = vmatprep.subr.mxu0 0.0
      %921 = vmatpush1.msra.mxu0 %v916
      %922 = vmatprep.subr.mxu0 0.0
      %923 = vmatpush1.msra.mxu0 0.0
      %924 = vmatprep.subr.mxu0 0.0
      %925 = vmatpush1.msra.mxu0 0.0
      %926 = vmatprep.subr.mxu0 0.0
      %927 = vmatpush1.msra.mxu0 0.0
      %928 = vmatprep.subr.mxu0 0.0
      %929 = vmatpush1.msra.mxu0 0.0
      %930 = vmatprep.subr.mxu0 0.0
      %931 = vmatpush1.msra.mxu0 0.0
      %932 = vmatprep.subr.mxu0 0.0
      %933 = vmatpush1.msra.mxu0 0.0
      %934 = vmatprep.subr.mxu0 0.0
      %935 = vmatpush1.msra.mxu0 0.0
      %936 = vmatprep.subr.mxu0 0.0
      %937 = vmatpush1.msra.mxu0 0.0
      %938 = vmatprep.subr.mxu0 0.0
      %939 = vmatpush1.msra.mxu0 0.0
      %940 = vmatprep.subr.mxu0 0.0
      %941 = vmatpush1.msra.mxu0 0.0
      %942 = vmatprep.subr.mxu0 0.0
      %943 = vmatpush1.msra.mxu0 0.0
      %944 = vmatprep.subr.mxu0 0.0
      %945 = vmatpush1.msra.mxu0 0.0
      %946 = vmatprep.subr.mxu0 0.0
      %947 = vmatpush1.msra.mxu0 0.0
      %948 = vmatprep.subr.mxu0 0.0
      %949 = vmatpush1.msra.mxu0 0.0
      %950 = vmatprep.subr.mxu0 0.0
      %951 = vmatpush1.msra.mxu0 0.0
      %952 = vmatprep.subr.mxu0 0.0
      %953 = vmatpush1.msra.mxu0 0.0
      %954 = vmatprep.subr.mxu0 0.0
      %955 = vmatpush1.msra.mxu0 0.0
      %956 = vmatprep.subr.mxu0 0.0
      %957 = vmatpush1.msra.mxu0 0.0
      %958 = vmatprep.subr.mxu0 0.0
      %959 = vmatpush1.msra.mxu0 0.0
      %960 = vmatprep.subr.mxu0 0.0
      %961 = vmatpush1.msra.mxu0 0.0
      %962 = vmatprep.subr.mxu0 0.0
      %963 = vmatpush1.msra.mxu0 0.0
      %964 = vmatprep.subr.mxu0 0.0
      %965 = vmatpush1.msra.mxu0 0.0
      %966 = vmatprep.subr.mxu0 0.0
      %967 = vmatpush1.msra.mxu0 0.0
      %968 = vmatprep.subr.mxu0 0.0
      %969 = vmatpush1.msra.mxu0 0.0
      %970 = vmatprep.subr.mxu0 0.0
      %971 = vmatpush1.msra.mxu0 0.0
      %972 = vmatprep.subr.mxu0 0.0
      %973 = vmatpush1.msra.mxu0 0.0
      %974 = vmatprep.subr.mxu0 0.0
      %975 = vmatpush1.msra.mxu0 0.0
      %976 = vmatprep.subr.mxu0 0.0
      %977 = vmatpush1.msra.mxu0 0.0
      %978 = vmatprep.subr.mxu0 0.0
      %979 = vmatpush1.msra.mxu0 0.0
      %980 = vmatprep.subr.mxu0 0.0
      %981 = vmatpush1.msra.mxu0 0.0
      %982 = vmatprep.mubr.f32.mxu0 0.0
      %983 = vmatmul.mubr.f32.gmra.mrb[0].mxu0 %v819
      %v984 = vpop.f32.mrb[0].mxu0
      %v985 = vadd.f32 0.0, %v984
      %v986 = vpop.f32.mrb[0].mxu0
      %987 = vmatprep.mubr.f32.mxu0 0.0
      %988 = vmatmul.mubr.f32.gmra.mrb[0].mxu0 %v822
      %v989 = vpop.f32.mrb[0].mxu0
      %v990 = vadd.f32 0.0, %v989
      %v991 = vpop.f32.mrb[0].mxu0
      %992 = vmatprep.mubr.f32.mxu0 0.0
      %993 = vmatmul.mubr.f32.gmra.mrb[0].mxu0 %v825
      %v994 = vpop.f32.mrb[0].mxu0
      %v995 = vadd.f32 0.0, %v994
      %v996 = vpop.f32.mrb[0].mxu0
      %997 = vmatprep.mubr.f32.mxu0 0.0
      %998 = vmatmul.mubr.f32.gmra.mrb[0].mxu0 %v828
      %v999 = vpop.f32.mrb[0].mxu0
      %v1000 = vadd.f32 0.0, %v999
      %v1001 = vpop.f32.mrb[0].mxu0
      %1002 = vmatprep.mubr.f32.mxu0 0.0
      %1003 = vmatmul.mubr.f32.gmra.mrb[0].mxu0 %v831
      %v1004 = vpop.f32.mrb[0].mxu0
      %v1005 = vadd.f32 0.0, %v1004
      %v1006 = vpop.f32.mrb[0].mxu0
      %1007 = vmatprep.mubr.f32.mxu0 0.0
      %1008 = vmatmul.mubr.f32.gmra.mrb[0].mxu0 %v834
      %v1009 = vpop.f32.mrb[0].mxu0
      %v1010 = vadd.f32 0.0, %v1009
      %v1011 = vpop.f32.mrb[0].mxu0
      %1012 = vmatprep.mubr.f32.mxu0 0.0
      %1013 = vmatmul.mubr.f32.gmra.mrb[0].mxu0 %v837
      %v1014 = vpop.f32.mrb[0].mxu0
      %v1015 = vadd.f32 0.0, %v1014
      %v1016 = vpop.f32.mrb[0].mxu0
      %1017 = vmatprep.mubr.f32.mxu0 0.0
      %1018 = vmatmul.mubr.f32.gmra.mrb[0].mxu0 %v840
      %v1019 = vpop.f32.mrb[0].mxu0
      %v1020 = vadd.f32 0.0, %v1019
      %v1021 = vpop.f32.mrb[0].mxu0
      %1022 = vmatprep.mubr.f32.mxu0 0.0
      %1023 = vmatmul.mubr.f32.gmra.mrb[0].mxu0 %v843
      %v1024 = vpop.f32.mrb[0].mxu0
      %v1025 = vadd.f32 0.0, %v1024
      %v1026 = vpop.f32.mrb[0].mxu0
      %1027 = vmatprep.mubr.f32.mxu0 0.0
      %1028 = vmatmul.mubr.f32.gmra.mrb[0].mxu0 %v846
      %v1029 = vpop.f32.mrb[0].mxu0
      %v1030 = vadd.f32 0.0, %v1029
      %v1031 = vpop.f32.mrb[0].mxu0
      %1032 = vmatprep.mubr.f32.mxu0 0.0
      %1033 = vmatmul.mubr.f32.gmra.mrb[0].mxu0 %v849
      %v1034 = vpop.f32.mrb[0].mxu0
      %v1035 = vadd.f32 0.0, %v1034
      %v1036 = vpop.f32.mrb[0].mxu0
      %1037 = vmatprep.mubr.f32.mxu0 0.0
      %1038 = vmatmul.mubr.f32.gmra.mrb[0].mxu0 %v852
      %v1039 = vpop.f32.mrb[0].mxu0
      %v1040 = vadd.f32 0.0, %v1039
      %v1041 = vpop.f32.mrb[0].mxu0
      %1042 = vmatprep.mubr.f32.mxu0 0.0
      %1043 = vmatmul.mubr.f32.gmra.mrb[0].mxu0 %v855
      %v1044 = vpop.f32.mrb[0].mxu0
      %v1045 = vadd.f32 0.0, %v1044
      %v1046 = vpop.f32.mrb[0].mxu0
      %1047 = vmatprep.mubr.f32.mxu0 0.0
      %1048 = vmatmul.mubr.f32.gmra.mrb[0].mxu0 %v858
      %v1049 = vpop.f32.mrb[0].mxu0
      %v1050 = vadd.f32 0.0, %v1049
      %v1051 = vpop.f32.mrb[0].mxu0
      %1052 = vmatprep.mubr.f32.mxu0 0.0
      %1053 = vmatmul.mubr.f32.gmra.mrb[0].mxu0 %v861
      %v1054 = vpop.f32.mrb[0].mxu0
      %v1055 = vadd.f32 0.0, %v1054
      %v1056 = vpop.f32.mrb[0].mxu0
      %1057 = vmatprep.mubr.f32.mxu0 0.0
      %1058 = vmatmul.mubr.f32.gmra.mrb[0].mxu0 %v864
      %v1059 = vpop.f32.mrb[0].mxu0
      %v1060 = vadd.f32 0.0, %v1059
      %v1061 = vpop.f32.mrb[0].mxu0
      %1062 = vmatprep.mubr.f32.mxu0 0.0
      %1063 = vmatmul.mubr.f32.gmra.mrb[0].mxu0 %v867
      %v1064 = vpop.f32.mrb[0].mxu0
      %v1065 = vadd.f32 0.0, %v1064
      %v1066 = vpop.f32.mrb[0].mxu0
      %1067 = vmatprep.mubr.f32.mxu0 0.0
      %1068 = vmatmul.mubr.f32.gmra.mrb[0].mxu0 %v870
      %v1069 = vpop.f32.mrb[0].mxu0
      %v1070 = vadd.f32 0.0, %v1069
      %v1071 = vpop.f32.mrb[0].mxu0
      %1072 = vmatprep.mubr.f32.mxu0 0.0
      %1073 = vmatmul.mubr.f32.gmra.mrb[0].mxu0 %v873
      %v1074 = vpop.f32.mrb[0].mxu0
      %v1075 = vadd.f32 0.0, %v1074
      %v1076 = vpop.f32.mrb[0].mxu0
      %1077 = vmatprep.mubr.f32.mxu0 0.0
      %1078 = vmatmul.mubr.f32.gmra.mrb[0].mxu0 %v876
      %v1079 = vpop.f32.mrb[0].mxu0
      %v1080 = vadd.f32 0.0, %v1079
      %v1081 = vpop.f32.mrb[0].mxu0
      %1082 = vmatprep.mubr.f32.mxu0 0.0
      %1083 = vmatmul.mubr.f32.gmra.mrb[0].mxu0 %v879
      %v1084 = vpop.f32.mrb[0].mxu0
      %v1085 = vadd.f32 0.0, %v1084
      %v1086 = vpop.f32.mrb[0].mxu0
      %1087 = vmatprep.mubr.f32.mxu0 0.0
      %1088 = vmatmul.mubr.f32.gmra.mrb[0].mxu0 %v882
      %v1089 = vpop.f32.mrb[0].mxu0
      %v1090 = vadd.f32 0.0, %v1089
      %v1091 = vpop.f32.mrb[0].mxu0
      %1092 = vmatprep.mubr.f32.mxu0 0.0
      %1093 = vmatmul.mubr.f32.gmra.mrb[0].mxu0 %v885
      %v1094 = vpop.f32.mrb[0].mxu0
      %v1095 = vadd.f32 0.0, %v1094
      %v1096 = vpop.f32.mrb[0].mxu0
      %1097 = vmatprep.mubr.f32.mxu0 0.0
      %1098 = vmatmul.mubr.f32.gmra.mrb[0].mxu0 %v888
      %v1099 = vpop.f32.mrb[0].mxu0
      %v1100 = vadd.f32 0.0, %v1099
      %v1101 = vpop.f32.mrb[0].mxu0
      %1102 = vmatprep.mubr.f32.mxu0 0.0
      %1103 = vmatmul.mubr.f32.gmra.mrb[0].mxu0 %v891
      %v1104 = vpop.f32.mrb[0].mxu0
      %v1105 = vadd.f32 0.0, %v1104
      %v1106 = vpop.f32.mrb[0].mxu0
      %1107 = vmatprep.mubr.f32.mxu0 0.0
      %1108 = vmatmul.mubr.f32.gmra.mrb[0].mxu0 %v894
      %v1109 = vpop.f32.mrb[0].mxu0
      %v1110 = vadd.f32 0.0, %v1109
      %v1111 = vpop.f32.mrb[0].mxu0
      %1112 = vmatprep.mubr.f32.mxu0 0.0
      %1113 = vmatmul.mubr.f32.gmra.mrb[0].mxu0 %v897
      %v1114 = vpop.f32.mrb[0].mxu0
      %v1115 = vadd.f32 0.0, %v1114
      %v1116 = vpop.f32.mrb[0].mxu0
      %1117 = vmatprep.mubr.f32.mxu0 0.0
      %1118 = vmatmul.mubr.f32.gmra.mrb[0].mxu0 %v900
      %v1119 = vpop.f32.mrb[0].mxu0
      %v1120 = vadd.f32 0.0, %v1119
      %v1121 = vpop.f32.mrb[0].mxu0
      %1122 = vmatprep.mubr.f32.mxu0 0.0
      %1123 = vmatmul.mubr.f32.gmra.mrb[0].mxu0 %v903
      %v1124 = vpop.f32.mrb[0].mxu0
      %v1125 = vadd.f32 0.0, %v1124
      %v1126 = vpop.f32.mrb[0].mxu0
      %1127 = vmatprep.mubr.f32.mxu0 0.0
      %1128 = vmatmul.mubr.f32.gmra.mrb[0].mxu0 %v906
      %v1129 = vpop.f32.mrb[0].mxu0
      %v1130 = vadd.f32 0.0, %v1129
      %v1131 = vpop.f32.mrb[0].mxu0
      %1132 = vmatprep.mubr.f32.mxu0 0.0
      %1133 = vmatmul.mubr.f32.gmra.mrb[0].mxu0 %v909
      %v1134 = vpop.f32.mrb[0].mxu0
      %v1135 = vadd.f32 0.0, %v1134
      %v1136 = vpop.f32.mrb[0].mxu0
      %1137 = vmatprep.mubr.f32.mxu0 0.0
      %1138 = vmatmul.mubr.f32.gmra.mrb[0].mxu0 %v912
      %v1139 = vpop.f32.mrb[0].mxu0
      %v1140 = vadd.f32 0.0, %v1139
      %v1141 = vpop.f32.mrb[0].mxu0
      %1142 = vdwg.mxu0
      %v1143 = vadd.f32 %v395, %v985
      %v1144 = vadd.f32 %v395, %v990
      %v1145 = vadd.f32 %v395, %v995
      %v1146 = vadd.f32 %v395, %v1000
      %v1147 = vadd.f32 %v395, %v1005
      %v1148 = vadd.f32 %v395, %v1010
      %v1149 = vadd.f32 %v395, %v1015
      %v1150 = vadd.f32 %v395, %v1020
      %v1151 = vadd.f32 %v395, %v1025
      %v1152 = vadd.f32 %v395, %v1030
      %v1153 = vadd.f32 %v395, %v1035
      %v1154 = vadd.f32 %v395, %v1040
      %v1155 = vadd.f32 %v395, %v1045
      %v1156 = vadd.f32 %v395, %v1050
      %v1157 = vadd.f32 %v395, %v1055
      %v1158 = vadd.f32 %v395, %v1060
      %v1159 = vadd.f32 %v395, %v1065
      %v1160 = vadd.f32 %v395, %v1070
      %v1161 = vadd.f32 %v395, %v1075
      %v1162 = vadd.f32 %v395, %v1080
      %v1163 = vadd.f32 %v395, %v1085
      %v1164 = vadd.f32 %v395, %v1090
      %v1165 = vadd.f32 %v395, %v1095
      %v1166 = vadd.f32 %v395, %v1100
      %v1167 = vadd.f32 %v395, %v1105
      %v1168 = vadd.f32 %v395, %v1110
      %v1169 = vadd.f32 %v395, %v1115
      %v1170 = vadd.f32 %v395, %v1120
      %v1171 = vadd.f32 %v395, %v1125
      %v1172 = vadd.f32 %v395, %v1130
      %v1173 = vadd.f32 %v395, %v1135
      %v1174 = vadd.f32 %v395, %v1140
      %v1175 = vld [vmem:[#allocation2 + $0x8] sm:$0xff]
      %v1176 = vld [vmem:[#allocation2 + $0x10] sm:$0xff]
      %v1177 = vld [vmem:[#allocation2 + $0x28] sm:$0xff]
      %v1178 = vld [vmem:[#allocation2 + $0x30] sm:$0xff]
      %v1179 = vld [vmem:[#allocation2 + $0x48] sm:$0xff]
      %v1180 = vld [vmem:[#allocation2 + $0x50] sm:$0xff]
      %v1181 = vld [vmem:[#allocation2 + $0x68] sm:$0xff]
      %v1182 = vld [vmem:[#allocation2 + $0x70] sm:$0xff]
      %v1183 = vld [vmem:[#allocation2 + $0x88] sm:$0xff]
      %v1184 = vld [vmem:[#allocation2 + $0x90] sm:$0xff]
      %v1185 = vld [vmem:[#allocation2 + $0xa8] sm:$0xff]
      %v1186 = vld [vmem:[#allocation2 + $0xb0] sm:$0xff]
      %v1187 = vld [vmem:[#allocation2 + $0xc8] sm:$0xff]
      %v1188 = vld [vmem:[#allocation2 + $0xd0] sm:$0xff]
      %v1189 = vld [vmem:[#allocation2 + $0xe8] sm:$0xff]
      %v1190 = vld [vmem:[#allocation2 + $0xf0] sm:$0xff]
      %v1191 = vld [vmem:[#allocation2 + $0x108] sm:$0xff]
      %v1192 = vld [vmem:[#allocation2 + $0x110] sm:$0xff]
      %v1193 = vld [vmem:[#allocation2 + $0x128] sm:$0xff]
      %v1194 = vld [vmem:[#allocation2 + $0x130] sm:$0xff]
      %v1195 = vld [vmem:[#allocation2 + $0x148] sm:$0xff]
      %v1196 = vld [vmem:[#allocation2 + $0x150] sm:$0xff]
      %v1197 = vld [vmem:[#allocation2 + $0x168] sm:$0xff]
      %v1198 = vld [vmem:[#allocation2 + $0x170] sm:$0xff]
      %v1199 = vld [vmem:[#allocation2 + $0x188] sm:$0xff]
      %v1200 = vld [vmem:[#allocation2 + $0x190] sm:$0xff]
      %v1201 = vld [vmem:[#allocation2 + $0x1a8] sm:$0xff]
      %v1202 = vld [vmem:[#allocation2 + $0x1b0] sm:$0xff]
      %v1203 = vld [vmem:[#allocation2 + $0x1c8] sm:$0xff]
      %v1204 = vld [vmem:[#allocation2 + $0x1d0] sm:$0xff]
      %v1205 = vld [vmem:[#allocation2 + $0x1e8] sm:$0xff]
      %v1206 = vld [vmem:[#allocation2 + $0x1f0] sm:$0xff]
      %v1207 = vld [vmem:[%s357 + $0x8] sm:$0xff]
      %v1208 = vld [vmem:[%s357 + $0x10] sm:$0xff]
      %v1209 = vld [vmem:[%s357 + $0x28] sm:$0xff]
      %v1210 = vld [vmem:[%s357 + $0x30] sm:$0xff]
      %v1211 = vld [vmem:[%s357 + $0x48] sm:$0xff]
      %v1212 = vld [vmem:[%s357 + $0x50] sm:$0xff]
      %v1213 = vld [vmem:[%s357 + $0x68] sm:$0xff]
      %v1214 = vld [vmem:[%s357 + $0x70] sm:$0xff]
      %v1215 = vld [vmem:[%s357 + $0x88] sm:$0xff]
      %v1216 = vld [vmem:[%s357 + $0x90] sm:$0xff]
      %v1217 = vld [vmem:[%s357 + $0xa8] sm:$0xff]
      %v1218 = vld [vmem:[%s357 + $0xb0] sm:$0xff]
      %v1219 = vld [vmem:[%s357 + $0xc8] sm:$0xff]
      %v1220 = vld [vmem:[%s357 + $0xd0] sm:$0xff]
      %v1221 = vld [vmem:[%s357 + $0xe8] sm:$0xff]
      %v1222 = vld [vmem:[%s357 + $0xf0] sm:$0xff]
      %v1223 = vld [vmem:[%s357 + $0x108] sm:$0xff]
      %v1224 = vld [vmem:[%s357 + $0x110] sm:$0xff]
      %v1225 = vld [vmem:[%s357 + $0x128] sm:$0xff]
      %v1226 = vld [vmem:[%s357 + $0x130] sm:$0xff]
      %v1227 = vld [vmem:[%s357 + $0x148] sm:$0xff]
      %v1228 = vld [vmem:[%s357 + $0x150] sm:$0xff]
      %v1229 = vld [vmem:[%s357 + $0x168] sm:$0xff]
      %v1230 = vld [vmem:[%s357 + $0x170] sm:$0xff]
      %v1231 = vld [vmem:[%s357 + $0x188] sm:$0xff]
      %v1232 = vld [vmem:[%s357 + $0x190] sm:$0xff]
      %v1233 = vld [vmem:[%s357 + $0x1a8] sm:$0xff]
      %v1234 = vld [vmem:[%s357 + $0x1b0] sm:$0xff]
      %v1235 = vld [vmem:[%s357 + $0x1c8] sm:$0xff]
      %v1236 = vld [vmem:[%s357 + $0x1d0] sm:$0xff]
      %v1237 = vld [vmem:[%s357 + $0x1e8] sm:$0xff]
      %v1238 = vld [vmem:[%s357 + $0x1f0] sm:$0xff]
      %v1239 = vld [vmem:[%s461 + $0x8] sm:$0xff]
      %v1240 = vld [vmem:[%s461 + $0x10] sm:$0xff]
      %v1241 = vld [vmem:[%s461 + $0x28] sm:$0xff]
      %v1242 = vld [vmem:[%s461 + $0x30] sm:$0xff]
      %v1243 = vld [vmem:[%s461 + $0x48] sm:$0xff]
      %v1244 = vld [vmem:[%s461 + $0x50] sm:$0xff]
      %v1245 = vld [vmem:[%s461 + $0x68] sm:$0xff]
      %v1246 = vld [vmem:[%s461 + $0x70] sm:$0xff]
      %v1247 = vld [vmem:[%s461 + $0x88] sm:$0xff]
      %v1248 = vld [vmem:[%s461 + $0x90] sm:$0xff]
      %v1249 = vld [vmem:[%s461 + $0xa8] sm:$0xff]
      %v1250 = vld [vmem:[%s461 + $0xb0] sm:$0xff]
      %v1251 = vld [vmem:[%s461 + $0xc8] sm:$0xff]
      %v1252 = vld [vmem:[%s461 + $0xd0] sm:$0xff]
      %v1253 = vld [vmem:[%s461 + $0xe8] sm:$0xff]
      %v1254 = vld [vmem:[%s461 + $0xf0] sm:$0xff]
      %v1255 = vld [vmem:[%s461 + $0x108] sm:$0xff]
      %v1256 = vld [vmem:[%s461 + $0x110] sm:$0xff]
      %v1257 = vld [vmem:[%s461 + $0x128] sm:$0xff]
      %v1258 = vld [vmem:[%s461 + $0x130] sm:$0xff]
      %v1259 = vld [vmem:[%s461 + $0x148] sm:$0xff]
      %v1260 = vld [vmem:[%s461 + $0x150] sm:$0xff]
      %v1261 = vld [vmem:[%s461 + $0x168] sm:$0xff]
      %v1262 = vld [vmem:[%s461 + $0x170] sm:$0xff]
      %v1263 = vld [vmem:[%s461 + $0x188] sm:$0xff]
      %v1264 = vld [vmem:[%s461 + $0x190] sm:$0xff]
      %v1265 = vld [vmem:[%s461 + $0x1a8] sm:$0xff]
      %v1266 = vld [vmem:[%s461 + $0x1b0] sm:$0xff]
      %v1267 = vld [vmem:[%s461 + $0x1c8] sm:$0xff]
      %v1268 = vld [vmem:[%s461 + $0x1d0] sm:$0xff]
      %v1269 = vld [vmem:[%s461 + $0x1e8] sm:$0xff]
      %v1270 = vld [vmem:[%s461 + $0x1f0] sm:$0xff]
      %1303 = vrot.lane.b32.xlu0 %v1207, 4
      %v1304 = vpop.permute.xlu0 %1303
      %1305 = vrot.lane.b32.xlu0 %v1208, 4
      %v1306 = vpop.permute.xlu0 %1305
      %1307 = vrot.lane.b32.xlu0 %v1209, 4
      %v1308 = vpop.permute.xlu0 %1307
      %1309 = vrot.lane.b32.xlu0 %v1210, 4
      %v1310 = vpop.permute.xlu0 %1309
      %1311 = vrot.lane.b32.xlu0 %v1211, 4
      %v1312 = vpop.permute.xlu0 %1311
      %1313 = vrot.lane.b32.xlu0 %v1212, 4
      %v1314 = vpop.permute.xlu0 %1313
      %1315 = vrot.lane.b32.xlu0 %v1213, 4
      %v1316 = vpop.permute.xlu0 %1315
      %1317 = vrot.lane.b32.xlu0 %v1214, 4
      %v1318 = vpop.permute.xlu0 %1317
      %1319 = vrot.lane.b32.xlu0 %v1215, 4
      %v1320 = vpop.permute.xlu0 %1319
      %1321 = vrot.lane.b32.xlu0 %v1216, 4
      %v1322 = vpop.permute.xlu0 %1321
      %1323 = vrot.lane.b32.xlu0 %v1217, 4
      %v1324 = vpop.permute.xlu0 %1323
      %1325 = vrot.lane.b32.xlu0 %v1218, 4
      %v1326 = vpop.permute.xlu0 %1325
      %1327 = vrot.lane.b32.xlu0 %v1219, 4
      %v1328 = vpop.permute.xlu0 %1327
      %1329 = vrot.lane.b32.xlu0 %v1220, 4
      %v1330 = vpop.permute.xlu0 %1329
      %1331 = vrot.lane.b32.xlu0 %v1221, 4
      %v1332 = vpop.permute.xlu0 %1331
      %1333 = vrot.lane.b32.xlu0 %v1222, 4
      %v1334 = vpop.permute.xlu0 %1333
      %1335 = vrot.lane.b32.xlu0 %v1223, 4
      %v1336 = vpop.permute.xlu0 %1335
      %1337 = vrot.lane.b32.xlu0 %v1224, 4
      %v1338 = vpop.permute.xlu0 %1337
      %1339 = vrot.lane.b32.xlu0 %v1225, 4
      %v1340 = vpop.permute.xlu0 %1339
      %1341 = vrot.lane.b32.xlu0 %v1226, 4
      %v1342 = vpop.permute.xlu0 %1341
      %1343 = vrot.lane.b32.xlu0 %v1227, 4
      %v1344 = vpop.permute.xlu0 %1343
      %1345 = vrot.lane.b32.xlu0 %v1228, 4
      %v1346 = vpop.permute.xlu0 %1345
      %1347 = vrot.lane.b32.xlu0 %v1229, 4
      %v1348 = vpop.permute.xlu0 %1347
      %1349 = vrot.lane.b32.xlu0 %v1230, 4
      %v1350 = vpop.permute.xlu0 %1349
      %1351 = vrot.lane.b32.xlu0 %v1231, 4
      %v1352 = vpop.permute.xlu0 %1351
      %1353 = vrot.lane.b32.xlu0 %v1232, 4
      %v1354 = vpop.permute.xlu0 %1353
      %1355 = vrot.lane.b32.xlu0 %v1233, 4
      %v1356 = vpop.permute.xlu0 %1355
      %1357 = vrot.lane.b32.xlu0 %v1234, 4
      %v1358 = vpop.permute.xlu0 %1357
      %1359 = vrot.lane.b32.xlu0 %v1235, 4
      %v1360 = vpop.permute.xlu0 %1359
      %1361 = vrot.lane.b32.xlu0 %v1236, 4
      %v1362 = vpop.permute.xlu0 %1361
      %1363 = vrot.lane.b32.xlu0 %v1237, 4
      %v1364 = vpop.permute.xlu0 %1363
      %1365 = vrot.lane.b32.xlu0 %v1238, 4
      %v1366 = vpop.permute.xlu0 %1365
      %1431 = vrot.lane.b32.xlu0 %v1239, 8
      %v1432 = vpop.permute.xlu0 %1431
      %1433 = vrot.lane.b32.xlu0 %v1240, 8
      %v1434 = vpop.permute.xlu0 %1433
      %1435 = vrot.lane.b32.xlu0 %v1241, 8
      %v1436 = vpop.permute.xlu0 %1435
      %1437 = vrot.lane.b32.xlu0 %v1242, 8
      %v1438 = vpop.permute.xlu0 %1437
      %1439 = vrot.lane.b32.xlu0 %v1243, 8
      %v1440 = vpop.permute.xlu0 %1439
      %1441 = vrot.lane.b32.xlu0 %v1244, 8
      %v1442 = vpop.permute.xlu0 %1441
      %1443 = vrot.lane.b32.xlu0 %v1245, 8
      %v1444 = vpop.permute.xlu0 %1443
      %1445 = vrot.lane.b32.xlu0 %v1246, 8
      %v1446 = vpop.permute.xlu0 %1445
      %1447 = vrot.lane.b32.xlu0 %v1247, 8
      %v1448 = vpop.permute.xlu0 %1447
      %1449 = vrot.lane.b32.xlu0 %v1248, 8
      %v1450 = vpop.permute.xlu0 %1449
      %1451 = vrot.lane.b32.xlu0 %v1249, 8
      %v1452 = vpop.permute.xlu0 %1451
      %1453 = vrot.lane.b32.xlu0 %v1250, 8
      %v1454 = vpop.permute.xlu0 %1453
      %1455 = vrot.lane.b32.xlu0 %v1251, 8
      %v1456 = vpop.permute.xlu0 %1455
      %1457 = vrot.lane.b32.xlu0 %v1252, 8
      %v1458 = vpop.permute.xlu0 %1457
      %1459 = vrot.lane.b32.xlu0 %v1253, 8
      %v1460 = vpop.permute.xlu0 %1459
      %1461 = vrot.lane.b32.xlu0 %v1254, 8
      %v1462 = vpop.permute.xlu0 %1461
      %1463 = vrot.lane.b32.xlu0 %v1255, 8
      %v1464 = vpop.permute.xlu0 %1463
      %1465 = vrot.lane.b32.xlu0 %v1256, 8
      %v1466 = vpop.permute.xlu0 %1465
      %1467 = vrot.lane.b32.xlu0 %v1257, 8
      %v1468 = vpop.permute.xlu0 %1467
      %1469 = vrot.lane.b32.xlu0 %v1258, 8
      %v1470 = vpop.permute.xlu0 %1469
      %1471 = vrot.lane.b32.xlu0 %v1259, 8
      %v1472 = vpop.permute.xlu0 %1471
      %1473 = vrot.lane.b32.xlu0 %v1260, 8
      %v1474 = vpop.permute.xlu0 %1473
      %1475 = vrot.lane.b32.xlu0 %v1261, 8
      %v1476 = vpop.permute.xlu0 %1475
      %1477 = vrot.lane.b32.xlu0 %v1262, 8
      %v1478 = vpop.permute.xlu0 %1477
      %1479 = vrot.lane.b32.xlu0 %v1263, 8
      %v1480 = vpop.permute.xlu0 %1479
      %1481 = vrot.lane.b32.xlu0 %v1264, 8
      %v1482 = vpop.permute.xlu0 %1481
      %1483 = vrot.lane.b32.xlu0 %v1265, 8
      %v1484 = vpop.permute.xlu0 %1483
      %1485 = vrot.lane.b32.xlu0 %v1266, 8
      %v1486 = vpop.permute.xlu0 %1485
      %1487 = vrot.lane.b32.xlu0 %v1267, 8
      %v1488 = vpop.permute.xlu0 %1487
      %1489 = vrot.lane.b32.xlu0 %v1268, 8
      %v1490 = vpop.permute.xlu0 %1489
      %1491 = vrot.lane.b32.xlu0 %v1269, 8
      %v1492 = vpop.permute.xlu0 %1491
      %1493 = vrot.lane.b32.xlu0 %v1270, 8
      %v1494 = vpop.permute.xlu0 %1493
      %v1527 = vsel %vm279, %v1175, %v1304
      %v1528 = vsel %vm279, %v1176, %v1306
      %v1529 = vsel %vm279, %v1177, %v1308
      %v1530 = vsel %vm279, %v1178, %v1310
      %v1531 = vsel %vm279, %v1179, %v1312
      %v1532 = vsel %vm279, %v1180, %v1314
      %v1533 = vsel %vm279, %v1181, %v1316
      %v1534 = vsel %vm279, %v1182, %v1318
      %v1535 = vsel %vm279, %v1183, %v1320
      %v1536 = vsel %vm279, %v1184, %v1322
      %v1537 = vsel %vm279, %v1185, %v1324
      %v1538 = vsel %vm279, %v1186, %v1326
      %v1539 = vsel %vm279, %v1187, %v1328
      %v1540 = vsel %vm279, %v1188, %v1330
      %v1541 = vsel %vm279, %v1189, %v1332
      %v1542 = vsel %vm279, %v1190, %v1334
      %v1543 = vsel %vm279, %v1191, %v1336
      %v1544 = vsel %vm279, %v1192, %v1338
      %v1545 = vsel %vm279, %v1193, %v1340
      %v1546 = vsel %vm279, %v1194, %v1342
      %v1547 = vsel %vm279, %v1195, %v1344
      %v1548 = vsel %vm279, %v1196, %v1346
      %v1549 = vsel %vm279, %v1197, %v1348
      %v1550 = vsel %vm279, %v1198, %v1350
      %v1551 = vsel %vm279, %v1199, %v1352
      %v1552 = vsel %vm279, %v1200, %v1354
      %v1553 = vsel %vm279, %v1201, %v1356
      %v1554 = vsel %vm279, %v1202, %v1358
      %v1555 = vsel %vm279, %v1203, %v1360
      %v1556 = vsel %vm279, %v1204, %v1362
      %v1557 = vsel %vm279, %v1205, %v1364
      %v1558 = vsel %vm279, %v1206, %v1366
      %v1559 = vsel %vm782, %v1527, %v1432
      %v1560 = vsel %vm782, %v1528, %v1434
      %v1561 = vsel %vm782, %v1529, %v1436
      %v1562 = vsel %vm782, %v1530, %v1438
      %v1563 = vsel %vm782, %v1531, %v1440
      %v1564 = vsel %vm782, %v1532, %v1442
      %v1565 = vsel %vm782, %v1533, %v1444
      %v1566 = vsel %vm782, %v1534, %v1446
      %v1567 = vsel %vm782, %v1535, %v1448
      %v1568 = vsel %vm782, %v1536, %v1450
      %v1569 = vsel %vm782, %v1537, %v1452
      %v1570 = vsel %vm782, %v1538, %v1454
      %v1571 = vsel %vm782, %v1539, %v1456
      %v1572 = vsel %vm782, %v1540, %v1458
      %v1573 = vsel %vm782, %v1541, %v1460
      %v1574 = vsel %vm782, %v1542, %v1462
      %v1575 = vsel %vm782, %v1543, %v1464
      %v1576 = vsel %vm782, %v1544, %v1466
      %v1577 = vsel %vm782, %v1545, %v1468
      %v1578 = vsel %vm782, %v1546, %v1470
      %v1579 = vsel %vm782, %v1547, %v1472
      %v1580 = vsel %vm782, %v1548, %v1474
      %v1581 = vsel %vm782, %v1549, %v1476
      %v1582 = vsel %vm782, %v1550, %v1478
      %v1583 = vsel %vm782, %v1551, %v1480
      %v1584 = vsel %vm782, %v1552, %v1482
      %v1585 = vsel %vm782, %v1553, %v1484
      %v1586 = vsel %vm782, %v1554, %v1486
      %v1587 = vsel %vm782, %v1555, %v1488
      %v1588 = vsel %vm782, %v1556, %v1490
      %v1589 = vsel %vm782, %v1557, %v1492
      %v1590 = vsel %vm782, %v1558, %v1494
      %s1591 = scalar_lea.vmem %s1, 16
      %v1592 = vld [vmem:[%s1591] sm:$0xff]
      %v1593 = vld [vmem:[%s1591 + $0x8] sm:$0xf]
      %v1595 = vsel %vm817, %v1559, 0
      %v1598 = vsel %vm817, %v1560, 0
      %v1601 = vsel %vm817, %v1561, 0
      %v1604 = vsel %vm817, %v1562, 0
      %v1607 = vsel %vm817, %v1563, 0
      %v1610 = vsel %vm817, %v1564, 0
      %v1613 = vsel %vm817, %v1565, 0
      %v1616 = vsel %vm817, %v1566, 0
      %v1619 = vsel %vm817, %v1567, 0
      %v1622 = vsel %vm817, %v1568, 0
      %v1625 = vsel %vm817, %v1569, 0
      %v1628 = vsel %vm817, %v1570, 0
      %v1631 = vsel %vm817, %v1571, 0
      %v1634 = vsel %vm817, %v1572, 0
      %v1637 = vsel %vm817, %v1573, 0
      %v1640 = vsel %vm817, %v1574, 0
      %v1643 = vsel %vm817, %v1575, 0
      %v1646 = vsel %vm817, %v1576, 0
      %v1649 = vsel %vm817, %v1577, 0
      %v1652 = vsel %vm817, %v1578, 0
      %v1655 = vsel %vm817, %v1579, 0
      %v1658 = vsel %vm817, %v1580, 0
      %v1661 = vsel %vm817, %v1581, 0
      %v1664 = vsel %vm817, %v1582, 0
      %v1667 = vsel %vm817, %v1583, 0
      %v1670 = vsel %vm817, %v1584, 0
      %v1673 = vsel %vm817, %v1585, 0
      %v1676 = vsel %vm817, %v1586, 0
      %v1679 = vsel %vm817, %v1587, 0
      %v1682 = vsel %vm817, %v1588, 0
      %v1685 = vsel %vm817, %v1589, 0
      %v1688 = vsel %vm817, %v1590, 0
      %v1691 = vsel %vm914, %v1593, 0
      %1693 = vmatprep.subr.mxu0 0.0
      %1694 = vmatpush1.msra.mxu0 %v1592
      %1695 = vmatprep.subr.mxu0 0.0
      %1696 = vmatpush1.msra.mxu0 %v1691
      %1697 = vmatprep.subr.mxu0 0.0
      %1698 = vmatpush1.msra.mxu0 0.0
      %1699 = vmatprep.subr.mxu0 0.0
      %1700 = vmatpush1.msra.mxu0 0.0
      %1701 = vmatprep.subr.mxu0 0.0
      %1702 = vmatpush1.msra.mxu0 0.0
      %1703 = vmatprep.subr.mxu0 0.0
      %1704 = vmatpush1.msra.mxu0 0.0
      %1705 = vmatprep.subr.mxu0 0.0
      %1706 = vmatpush1.msra.mxu0 0.0
      %1707 = vmatprep.subr.mxu0 0.0
      %1708 = vmatpush1.msra.mxu0 0.0
      %1709 = vmatprep.subr.mxu0 0.0
      %1710 = vmatpush1.msra.mxu0 0.0
      %1711 = vmatprep.subr.mxu0 0.0
      %1712 = vmatpush1.msra.mxu0 0.0
      %1713 = vmatprep.subr.mxu0 0.0
      %1714 = vmatpush1.msra.mxu0 0.0
      %1715 = vmatprep.subr.mxu0 0.0
      %1716 = vmatpush1.msra.mxu0 0.0
      %1717 = vmatprep.subr.mxu0 0.0
      %1718 = vmatpush1.msra.mxu0 0.0
      %1719 = vmatprep.subr.mxu0 0.0
      %1720 = vmatpush1.msra.mxu0 0.0
      %1721 = vmatprep.subr.mxu0 0.0
      %1722 = vmatpush1.msra.mxu0 0.0
      %1723 = vmatprep.subr.mxu0 0.0
      %1724 = vmatpush1.msra.mxu0 0.0
      %1725 = vmatprep.subr.mxu0 0.0
      %1726 = vmatpush1.msra.mxu0 0.0
      %1727 = vmatprep.subr.mxu0 0.0
      %1728 = vmatpush1.msra.mxu0 0.0
      %1729 = vmatprep.subr.mxu0 0.0
      %1730 = vmatpush1.msra.mxu0 0.0
      %1731 = vmatprep.subr.mxu0 0.0
      %1732 = vmatpush1.msra.mxu0 0.0
      %1733 = vmatprep.subr.mxu0 0.0
      %1734 = vmatpush1.msra.mxu0 0.0
      %1735 = vmatprep.subr.mxu0 0.0
      %1736 = vmatpush1.msra.mxu0 0.0
      %1737 = vmatprep.subr.mxu0 0.0
      %1738 = vmatpush1.msra.mxu0 0.0
      %1739 = vmatprep.subr.mxu0 0.0
      %1740 = vmatpush1.msra.mxu0 0.0
      %1741 = vmatprep.subr.mxu0 0.0
      %1742 = vmatpush1.msra.mxu0 0.0
      %1743 = vmatprep.subr.mxu0 0.0
      %1744 = vmatpush1.msra.mxu0 0.0
      %1745 = vmatprep.subr.mxu0 0.0
      %1746 = vmatpush1.msra.mxu0 0.0
      %1747 = vmatprep.subr.mxu0 0.0
      %1748 = vmatpush1.msra.mxu0 0.0
      %1749 = vmatprep.subr.mxu0 0.0
      %1750 = vmatpush1.msra.mxu0 0.0
      %1751 = vmatprep.subr.mxu0 0.0
      %1752 = vmatpush1.msra.mxu0 0.0
      %1753 = vmatprep.subr.mxu0 0.0
      %1754 = vmatpush1.msra.mxu0 0.0
      %1755 = vmatprep.subr.mxu0 0.0
      %1756 = vmatpush1.msra.mxu0 0.0
      %1757 = vmatprep.mubr.f32.mxu0 0.0
      %1758 = vmatmul.mubr.f32.gmra.mrb[0].mxu0 %v1595
      %v1759 = vpop.f32.mrb[0].mxu0
      %v1760 = vadd.f32 0.0, %v1759
      %v1761 = vpop.f32.mrb[0].mxu0
      %1762 = vmatprep.mubr.f32.mxu0 0.0
      %1763 = vmatmul.mubr.f32.gmra.mrb[0].mxu0 %v1598
      %v1764 = vpop.f32.mrb[0].mxu0
      %v1765 = vadd.f32 0.0, %v1764
      %v1766 = vpop.f32.mrb[0].mxu0
      %1767 = vmatprep.mubr.f32.mxu0 0.0
      %1768 = vmatmul.mubr.f32.gmra.mrb[0].mxu0 %v1601
      %v1769 = vpop.f32.mrb[0].mxu0
      %v1770 = vadd.f32 0.0, %v1769
      %v1771 = vpop.f32.mrb[0].mxu0
      %1772 = vmatprep.mubr.f32.mxu0 0.0
      %1773 = vmatmul.mubr.f32.gmra.mrb[0].mxu0 %v1604
      %v1774 = vpop.f32.mrb[0].mxu0
      %v1775 = vadd.f32 0.0, %v1774
      %v1776 = vpop.f32.mrb[0].mxu0
      %1777 = vmatprep.mubr.f32.mxu0 0.0
      %1778 = vmatmul.mubr.f32.gmra.mrb[0].mxu0 %v1607
      %v1779 = vpop.f32.mrb[0].mxu0
      %v1780 = vadd.f32 0.0, %v1779
      %v1781 = vpop.f32.mrb[0].mxu0
      %1782 = vmatprep.mubr.f32.mxu0 0.0
      %1783 = vmatmul.mubr.f32.gmra.mrb[0].mxu0 %v1610
      %v1784 = vpop.f32.mrb[0].mxu0
      %v1785 = vadd.f32 0.0, %v1784
      %v1786 = vpop.f32.mrb[0].mxu0
      %1787 = vmatprep.mubr.f32.mxu0 0.0
      %1788 = vmatmul.mubr.f32.gmra.mrb[0].mxu0 %v1613
      %v1789 = vpop.f32.mrb[0].mxu0
      %v1790 = vadd.f32 0.0, %v1789
      %v1791 = vpop.f32.mrb[0].mxu0
      %1792 = vmatprep.mubr.f32.mxu0 0.0
      %1793 = vmatmul.mubr.f32.gmra.mrb[0].mxu0 %v1616
      %v1794 = vpop.f32.mrb[0].mxu0
      %v1795 = vadd.f32 0.0, %v1794
      %v1796 = vpop.f32.mrb[0].mxu0
      %1797 = vmatprep.mubr.f32.mxu0 0.0
      %1798 = vmatmul.mubr.f32.gmra.mrb[0].mxu0 %v1619
      %v1799 = vpop.f32.mrb[0].mxu0
      %v1800 = vadd.f32 0.0, %v1799
      %v1801 = vpop.f32.mrb[0].mxu0
      %1802 = vmatprep.mubr.f32.mxu0 0.0
      %1803 = vmatmul.mubr.f32.gmra.mrb[0].mxu0 %v1622
      %v1804 = vpop.f32.mrb[0].mxu0
      %v1805 = vadd.f32 0.0, %v1804
      %v1806 = vpop.f32.mrb[0].mxu0
      %1807 = vmatprep.mubr.f32.mxu0 0.0
      %1808 = vmatmul.mubr.f32.gmra.mrb[0].mxu0 %v1625
      %v1809 = vpop.f32.mrb[0].mxu0
      %v1810 = vadd.f32 0.0, %v1809
      %v1811 = vpop.f32.mrb[0].mxu0
      %1812 = vmatprep.mubr.f32.mxu0 0.0
      %1813 = vmatmul.mubr.f32.gmra.mrb[0].mxu0 %v1628
      %v1814 = vpop.f32.mrb[0].mxu0
      %v1815 = vadd.f32 0.0, %v1814
      %v1816 = vpop.f32.mrb[0].mxu0
      %1817 = vmatprep.mubr.f32.mxu0 0.0
      %1818 = vmatmul.mubr.f32.gmra.mrb[0].mxu0 %v1631
      %v1819 = vpop.f32.mrb[0].mxu0
      %v1820 = vadd.f32 0.0, %v1819
      %v1821 = vpop.f32.mrb[0].mxu0
      %1822 = vmatprep.mubr.f32.mxu0 0.0
      %1823 = vmatmul.mubr.f32.gmra.mrb[0].mxu0 %v1634
      %v1824 = vpop.f32.mrb[0].mxu0
      %v1825 = vadd.f32 0.0, %v1824
      %v1826 = vpop.f32.mrb[0].mxu0
      %1827 = vmatprep.mubr.f32.mxu0 0.0
      %1828 = vmatmul.mubr.f32.gmra.mrb[0].mxu0 %v1637
      %v1829 = vpop.f32.mrb[0].mxu0
      %v1830 = vadd.f32 0.0, %v1829
      %v1831 = vpop.f32.mrb[0].mxu0
      %1832 = vmatprep.mubr.f32.mxu0 0.0
      %1833 = vmatmul.mubr.f32.gmra.mrb[0].mxu0 %v1640
      %v1834 = vpop.f32.mrb[0].mxu0
      %v1835 = vadd.f32 0.0, %v1834
      %v1836 = vpop.f32.mrb[0].mxu0
      %1837 = vmatprep.mubr.f32.mxu0 0.0
      %1838 = vmatmul.mubr.f32.gmra.mrb[0].mxu0 %v1643
      %v1839 = vpop.f32.mrb[0].mxu0
      %v1840 = vadd.f32 0.0, %v1839
      %v1841 = vpop.f32.mrb[0].mxu0
      %1842 = vmatprep.mubr.f32.mxu0 0.0
      %1843 = vmatmul.mubr.f32.gmra.mrb[0].mxu0 %v1646
      %v1844 = vpop.f32.mrb[0].mxu0
      %v1845 = vadd.f32 0.0, %v1844
      %v1846 = vpop.f32.mrb[0].mxu0
      %1847 = vmatprep.mubr.f32.mxu0 0.0
      %1848 = vmatmul.mubr.f32.gmra.mrb[0].mxu0 %v1649
      %v1849 = vpop.f32.mrb[0].mxu0
      %v1850 = vadd.f32 0.0, %v1849
      %v1851 = vpop.f32.mrb[0].mxu0
      %1852 = vmatprep.mubr.f32.mxu0 0.0
      %1853 = vmatmul.mubr.f32.gmra.mrb[0].mxu0 %v1652
      %v1854 = vpop.f32.mrb[0].mxu0
      %v1855 = vadd.f32 0.0, %v1854
      %v1856 = vpop.f32.mrb[0].mxu0
      %1857 = vmatprep.mubr.f32.mxu0 0.0
      %1858 = vmatmul.mubr.f32.gmra.mrb[0].mxu0 %v1655
      %v1859 = vpop.f32.mrb[0].mxu0
      %v1860 = vadd.f32 0.0, %v1859
      %v1861 = vpop.f32.mrb[0].mxu0
      %1862 = vmatprep.mubr.f32.mxu0 0.0
      %1863 = vmatmul.mubr.f32.gmra.mrb[0].mxu0 %v1658
      %v1864 = vpop.f32.mrb[0].mxu0
      %v1865 = vadd.f32 0.0, %v1864
      %v1866 = vpop.f32.mrb[0].mxu0
      %1867 = vmatprep.mubr.f32.mxu0 0.0
      %1868 = vmatmul.mubr.f32.gmra.mrb[0].mxu0 %v1661
      %v1869 = vpop.f32.mrb[0].mxu0
      %v1870 = vadd.f32 0.0, %v1869
      %v1871 = vpop.f32.mrb[0].mxu0
      %1872 = vmatprep.mubr.f32.mxu0 0.0
      %1873 = vmatmul.mubr.f32.gmra.mrb[0].mxu0 %v1664
      %v1874 = vpop.f32.mrb[0].mxu0
      %v1875 = vadd.f32 0.0, %v1874
      %v1876 = vpop.f32.mrb[0].mxu0
      %1877 = vmatprep.mubr.f32.mxu0 0.0
      %1878 = vmatmul.mubr.f32.gmra.mrb[0].mxu0 %v1667
      %v1879 = vpop.f32.mrb[0].mxu0
      %v1880 = vadd.f32 0.0, %v1879
      %v1881 = vpop.f32.mrb[0].mxu0
      %1882 = vmatprep.mubr.f32.mxu0 0.0
      %1883 = vmatmul.mubr.f32.gmra.mrb[0].mxu0 %v1670
      %v1884 = vpop.f32.mrb[0].mxu0
      %v1885 = vadd.f32 0.0, %v1884
      %v1886 = vpop.f32.mrb[0].mxu0
      %1887 = vmatprep.mubr.f32.mxu0 0.0
      %1888 = vmatmul.mubr.f32.gmra.mrb[0].mxu0 %v1673
      %v1889 = vpop.f32.mrb[0].mxu0
      %v1890 = vadd.f32 0.0, %v1889
      %v1891 = vpop.f32.mrb[0].mxu0
      %1892 = vmatprep.mubr.f32.mxu0 0.0
      %1893 = vmatmul.mubr.f32.gmra.mrb[0].mxu0 %v1676
      %v1894 = vpop.f32.mrb[0].mxu0
      %v1895 = vadd.f32 0.0, %v1894
      %v1896 = vpop.f32.mrb[0].mxu0
      %1897 = vmatprep.mubr.f32.mxu0 0.0
      %1898 = vmatmul.mubr.f32.gmra.mrb[0].mxu0 %v1679
      %v1899 = vpop.f32.mrb[0].mxu0
      %v1900 = vadd.f32 0.0, %v1899
      %v1901 = vpop.f32.mrb[0].mxu0
      %1902 = vmatprep.mubr.f32.mxu0 0.0
      %1903 = vmatmul.mubr.f32.gmra.mrb[0].mxu0 %v1682
      %v1904 = vpop.f32.mrb[0].mxu0
      %v1905 = vadd.f32 0.0, %v1904
      %v1906 = vpop.f32.mrb[0].mxu0
      %1907 = vmatprep.mubr.f32.mxu0 0.0
      %1908 = vmatmul.mubr.f32.gmra.mrb[0].mxu0 %v1685
      %v1909 = vpop.f32.mrb[0].mxu0
      %v1910 = vadd.f32 0.0, %v1909
      %v1911 = vpop.f32.mrb[0].mxu0
      %1912 = vmatprep.mubr.f32.mxu0 0.0
      %1913 = vmatmul.mubr.f32.gmra.mrb[0].mxu0 %v1688
      %v1914 = vpop.f32.mrb[0].mxu0
      %v1915 = vadd.f32 0.0, %v1914
      %v1916 = vpop.f32.mrb[0].mxu0
      %1917 = vdwg.mxu0
      %v1918 = vadd.f32 %v1143, %v1760
      %v1919 = vadd.f32 %v1144, %v1765
      %v1920 = vadd.f32 %v1145, %v1770
      %v1921 = vadd.f32 %v1146, %v1775
      %v1922 = vadd.f32 %v1147, %v1780
      %v1923 = vadd.f32 %v1148, %v1785
      %v1924 = vadd.f32 %v1149, %v1790
      %v1925 = vadd.f32 %v1150, %v1795
      %v1926 = vadd.f32 %v1151, %v1800
      %v1927 = vadd.f32 %v1152, %v1805
      %v1928 = vadd.f32 %v1153, %v1810
      %v1929 = vadd.f32 %v1154, %v1815
      %v1930 = vadd.f32 %v1155, %v1820
      %v1931 = vadd.f32 %v1156, %v1825
      %v1932 = vadd.f32 %v1157, %v1830
      %v1933 = vadd.f32 %v1158, %v1835
      %v1934 = vadd.f32 %v1159, %v1840
      %v1935 = vadd.f32 %v1160, %v1845
      %v1936 = vadd.f32 %v1161, %v1850
      %v1937 = vadd.f32 %v1162, %v1855
      %v1938 = vadd.f32 %v1163, %v1860
      %v1939 = vadd.f32 %v1164, %v1865
      %v1940 = vadd.f32 %v1165, %v1870
      %v1941 = vadd.f32 %v1166, %v1875
      %v1942 = vadd.f32 %v1167, %v1880
      %v1943 = vadd.f32 %v1168, %v1885
      %v1944 = vadd.f32 %v1169, %v1890
      %v1945 = vadd.f32 %v1170, %v1895
      %v1946 = vadd.f32 %v1171, %v1900
      %v1947 = vadd.f32 %v1172, %v1905
      %v1948 = vadd.f32 %v1173, %v1910
      %v1949 = vadd.f32 %v1174, %v1915
      %v1950 = vld [vmem:[#allocation2 + $0x9] sm:$0xff]
      %v1951 = vld [vmem:[#allocation2 + $0x11] sm:$0xff]
      %v1952 = vld [vmem:[#allocation2 + $0x29] sm:$0xff]
      %v1953 = vld [vmem:[#allocation2 + $0x31] sm:$0xff]
      %v1954 = vld [vmem:[#allocation2 + $0x49] sm:$0xff]
      %v1955 = vld [vmem:[#allocation2 + $0x51] sm:$0xff]
      %v1956 = vld [vmem:[#allocation2 + $0x69] sm:$0xff]
      %v1957 = vld [vmem:[#allocation2 + $0x71] sm:$0xff]
      %v1958 = vld [vmem:[#allocation2 + $0x89] sm:$0xff]
      %v1959 = vld [vmem:[#allocation2 + $0x91] sm:$0xff]
      %v1960 = vld [vmem:[#allocation2 + $0xa9] sm:$0xff]
      %v1961 = vld [vmem:[#allocation2 + $0xb1] sm:$0xff]
      %v1962 = vld [vmem:[#allocation2 + $0xc9] sm:$0xff]
      %v1963 = vld [vmem:[#allocation2 + $0xd1] sm:$0xff]
      %v1964 = vld [vmem:[#allocation2 + $0xe9] sm:$0xff]
      %v1965 = vld [vmem:[#allocation2 + $0xf1] sm:$0xff]
      %v1966 = vld [vmem:[#allocation2 + $0x109] sm:$0xff]
      %v1967 = vld [vmem:[#allocation2 + $0x111] sm:$0xff]
      %v1968 = vld [vmem:[#allocation2 + $0x129] sm:$0xff]
      %v1969 = vld [vmem:[#allocation2 + $0x131] sm:$0xff]
      %v1970 = vld [vmem:[#allocation2 + $0x149] sm:$0xff]
      %v1971 = vld [vmem:[#allocation2 + $0x151] sm:$0xff]
      %v1972 = vld [vmem:[#allocation2 + $0x169] sm:$0xff]
      %v1973 = vld [vmem:[#allocation2 + $0x171] sm:$0xff]
      %v1974 = vld [vmem:[#allocation2 + $0x189] sm:$0xff]
      %v1975 = vld [vmem:[#allocation2 + $0x191] sm:$0xff]
      %v1976 = vld [vmem:[#allocation2 + $0x1a9] sm:$0xff]
      %v1977 = vld [vmem:[#allocation2 + $0x1b1] sm:$0xff]
      %v1978 = vld [vmem:[#allocation2 + $0x1c9] sm:$0xff]
      %v1979 = vld [vmem:[#allocation2 + $0x1d1] sm:$0xff]
      %v1980 = vld [vmem:[#allocation2 + $0x1e9] sm:$0xff]
      %v1981 = vld [vmem:[#allocation2 + $0x1f1] sm:$0xff]
      %v1982 = vld [vmem:[%s357 + $0x9] sm:$0xff]
      %v1983 = vld [vmem:[%s357 + $0x11] sm:$0xff]
      %v1984 = vld [vmem:[%s357 + $0x29] sm:$0xff]
      %v1985 = vld [vmem:[%s357 + $0x31] sm:$0xff]
      %v1986 = vld [vmem:[%s357 + $0x49] sm:$0xff]
      %v1987 = vld [vmem:[%s357 + $0x51] sm:$0xff]
      %v1988 = vld [vmem:[%s357 + $0x69] sm:$0xff]
      %v1989 = vld [vmem:[%s357 + $0x71] sm:$0xff]
      %v1990 = vld [vmem:[%s357 + $0x89] sm:$0xff]
      %v1991 = vld [vmem:[%s357 + $0x91] sm:$0xff]
      %v1992 = vld [vmem:[%s357 + $0xa9] sm:$0xff]
      %v1993 = vld [vmem:[%s357 + $0xb1] sm:$0xff]
      %v1994 = vld [vmem:[%s357 + $0xc9] sm:$0xff]
      %v1995 = vld [vmem:[%s357 + $0xd1] sm:$0xff]
      %v1996 = vld [vmem:[%s357 + $0xe9] sm:$0xff]
      %v1997 = vld [vmem:[%s357 + $0xf1] sm:$0xff]
      %v1998 = vld [vmem:[%s357 + $0x109] sm:$0xff]
      %v1999 = vld [vmem:[%s357 + $0x111] sm:$0xff]
      %v2000 = vld [vmem:[%s357 + $0x129] sm:$0xff]
      %v2001 = vld [vmem:[%s357 + $0x131] sm:$0xff]
      %v2002 = vld [vmem:[%s357 + $0x149] sm:$0xff]
      %v2003 = vld [vmem:[%s357 + $0x151] sm:$0xff]
      %v2004 = vld [vmem:[%s357 + $0x169] sm:$0xff]
      %v2005 = vld [vmem:[%s357 + $0x171] sm:$0xff]
      %v2006 = vld [vmem:[%s357 + $0x189] sm:$0xff]
      %v2007 = vld [vmem:[%s357 + $0x191] sm:$0xff]
      %v2008 = vld [vmem:[%s357 + $0x1a9] sm:$0xff]
      %v2009 = vld [vmem:[%s357 + $0x1b1] sm:$0xff]
      %v2010 = vld [vmem:[%s357 + $0x1c9] sm:$0xff]
      %v2011 = vld [vmem:[%s357 + $0x1d1] sm:$0xff]
      %v2012 = vld [vmem:[%s357 + $0x1e9] sm:$0xff]
      %v2013 = vld [vmem:[%s357 + $0x1f1] sm:$0xff]
      %v2014 = vld [vmem:[%s461 + $0x9] sm:$0xff]
      %v2015 = vld [vmem:[%s461 + $0x11] sm:$0xff]
      %v2016 = vld [vmem:[%s461 + $0x29] sm:$0xff]
      %v2017 = vld [vmem:[%s461 + $0x31] sm:$0xff]
      %v2018 = vld [vmem:[%s461 + $0x49] sm:$0xff]
      %v2019 = vld [vmem:[%s461 + $0x51] sm:$0xff]
      %v2020 = vld [vmem:[%s461 + $0x69] sm:$0xff]
      %v2021 = vld [vmem:[%s461 + $0x71] sm:$0xff]
      %v2022 = vld [vmem:[%s461 + $0x89] sm:$0xff]
      %v2023 = vld [vmem:[%s461 + $0x91] sm:$0xff]
      %v2024 = vld [vmem:[%s461 + $0xa9] sm:$0xff]
      %v2025 = vld [vmem:[%s461 + $0xb1] sm:$0xff]
      %v2026 = vld [vmem:[%s461 + $0xc9] sm:$0xff]
      %v2027 = vld [vmem:[%s461 + $0xd1] sm:$0xff]
      %v2028 = vld [vmem:[%s461 + $0xe9] sm:$0xff]
      %v2029 = vld [vmem:[%s461 + $0xf1] sm:$0xff]
      %v2030 = vld [vmem:[%s461 + $0x109] sm:$0xff]
      %v2031 = vld [vmem:[%s461 + $0x111] sm:$0xff]
      %v2032 = vld [vmem:[%s461 + $0x129] sm:$0xff]
      %v2033 = vld [vmem:[%s461 + $0x131] sm:$0xff]
      %v2034 = vld [vmem:[%s461 + $0x149] sm:$0xff]
      %v2035 = vld [vmem:[%s461 + $0x151] sm:$0xff]
      %v2036 = vld [vmem:[%s461 + $0x169] sm:$0xff]
      %v2037 = vld [vmem:[%s461 + $0x171] sm:$0xff]
      %v2038 = vld [vmem:[%s461 + $0x189] sm:$0xff]
      %v2039 = vld [vmem:[%s461 + $0x191] sm:$0xff]
      %v2040 = vld [vmem:[%s461 + $0x1a9] sm:$0xff]
      %v2041 = vld [vmem:[%s461 + $0x1b1] sm:$0xff]
      %v2042 = vld [vmem:[%s461 + $0x1c9] sm:$0xff]
      %v2043 = vld [vmem:[%s461 + $0x1d1] sm:$0xff]
      %v2044 = vld [vmem:[%s461 + $0x1e9] sm:$0xff]
      %v2045 = vld [vmem:[%s461 + $0x1f1] sm:$0xff]
      %2078 = vrot.lane.b32.xlu0 %v1982, 4
      %v2079 = vpop.permute.xlu0 %2078
      %2080 = vrot.lane.b32.xlu0 %v1983, 4
      %v2081 = vpop.permute.xlu0 %2080
      %2082 = vrot.lane.b32.xlu0 %v1984, 4
      %v2083 = vpop.permute.xlu0 %2082
      %2084 = vrot.lane.b32.xlu0 %v1985, 4
      %v2085 = vpop.permute.xlu0 %2084
      %2086 = vrot.lane.b32.xlu0 %v1986, 4
      %v2087 = vpop.permute.xlu0 %2086
      %2088 = vrot.lane.b32.xlu0 %v1987, 4
      %v2089 = vpop.permute.xlu0 %2088
      %2090 = vrot.lane.b32.xlu0 %v1988, 4
      %v2091 = vpop.permute.xlu0 %2090
      %2092 = vrot.lane.b32.xlu0 %v1989, 4
      %v2093 = vpop.permute.xlu0 %2092
      %2094 = vrot.lane.b32.xlu0 %v1990, 4
      %v2095 = vpop.permute.xlu0 %2094
      %2096 = vrot.lane.b32.xlu0 %v1991, 4
      %v2097 = vpop.permute.xlu0 %2096
      %2098 = vrot.lane.b32.xlu0 %v1992, 4
      %v2099 = vpop.permute.xlu0 %2098
      %2100 = vrot.lane.b32.xlu0 %v1993, 4
      %v2101 = vpop.permute.xlu0 %2100
      %2102 = vrot.lane.b32.xlu0 %v1994, 4
      %v2103 = vpop.permute.xlu0 %2102
      %2104 = vrot.lane.b32.xlu0 %v1995, 4
      %v2105 = vpop.permute.xlu0 %2104
      %2106 = vrot.lane.b32.xlu0 %v1996, 4
      %v2107 = vpop.permute.xlu0 %2106
      %2108 = vrot.lane.b32.xlu0 %v1997, 4
      %v2109 = vpop.permute.xlu0 %2108
      %2110 = vrot.lane.b32.xlu0 %v1998, 4
      %v2111 = vpop.permute.xlu0 %2110
      %2112 = vrot.lane.b32.xlu0 %v1999, 4
      %v2113 = vpop.permute.xlu0 %2112
      %2114 = vrot.lane.b32.xlu0 %v2000, 4
      %v2115 = vpop.permute.xlu0 %2114
      %2116 = vrot.lane.b32.xlu0 %v2001, 4
      %v2117 = vpop.permute.xlu0 %2116
      %2118 = vrot.lane.b32.xlu0 %v2002, 4
      %v2119 = vpop.permute.xlu0 %2118
      %2120 = vrot.lane.b32.xlu0 %v2003, 4
      %v2121 = vpop.permute.xlu0 %2120
      %2122 = vrot.lane.b32.xlu0 %v2004, 4
      %v2123 = vpop.permute.xlu0 %2122
      %2124 = vrot.lane.b32.xlu0 %v2005, 4
      %v2125 = vpop.permute.xlu0 %2124
      %2126 = vrot.lane.b32.xlu0 %v2006, 4
      %v2127 = vpop.permute.xlu0 %2126
      %2128 = vrot.lane.b32.xlu0 %v2007, 4
      %v2129 = vpop.permute.xlu0 %2128
      %2130 = vrot.lane.b32.xlu0 %v2008, 4
      %v2131 = vpop.permute.xlu0 %2130
      %2132 = vrot.lane.b32.xlu0 %v2009, 4
      %v2133 = vpop.permute.xlu0 %2132
      %2134 = vrot.lane.b32.xlu0 %v2010, 4
      %v2135 = vpop.permute.xlu0 %2134
      %2136 = vrot.lane.b32.xlu0 %v2011, 4
      %v2137 = vpop.permute.xlu0 %2136
      %2138 = vrot.lane.b32.xlu0 %v2012, 4
      %v2139 = vpop.permute.xlu0 %2138
      %2140 = vrot.lane.b32.xlu0 %v2013, 4
      %v2141 = vpop.permute.xlu0 %2140
      %2206 = vrot.lane.b32.xlu0 %v2014, 8
      %v2207 = vpop.permute.xlu0 %2206
      %2208 = vrot.lane.b32.xlu0 %v2015, 8
      %v2209 = vpop.permute.xlu0 %2208
      %2210 = vrot.lane.b32.xlu0 %v2016, 8
      %v2211 = vpop.permute.xlu0 %2210
      %2212 = vrot.lane.b32.xlu0 %v2017, 8
      %v2213 = vpop.permute.xlu0 %2212
      %2214 = vrot.lane.b32.xlu0 %v2018, 8
      %v2215 = vpop.permute.xlu0 %2214
      %2216 = vrot.lane.b32.xlu0 %v2019, 8
      %v2217 = vpop.permute.xlu0 %2216
      %2218 = vrot.lane.b32.xlu0 %v2020, 8
      %v2219 = vpop.permute.xlu0 %2218
      %2220 = vrot.lane.b32.xlu0 %v2021, 8
      %v2221 = vpop.permute.xlu0 %2220
      %2222 = vrot.lane.b32.xlu0 %v2022, 8
      %v2223 = vpop.permute.xlu0 %2222
      %2224 = vrot.lane.b32.xlu0 %v2023, 8
      %v2225 = vpop.permute.xlu0 %2224
      %2226 = vrot.lane.b32.xlu0 %v2024, 8
      %v2227 = vpop.permute.xlu0 %2226
      %2228 = vrot.lane.b32.xlu0 %v2025, 8
      %v2229 = vpop.permute.xlu0 %2228
      %2230 = vrot.lane.b32.xlu0 %v2026, 8
      %v2231 = vpop.permute.xlu0 %2230
      %2232 = vrot.lane.b32.xlu0 %v2027, 8
      %v2233 = vpop.permute.xlu0 %2232
      %2234 = vrot.lane.b32.xlu0 %v2028, 8
      %v2235 = vpop.permute.xlu0 %2234
      %2236 = vrot.lane.b32.xlu0 %v2029, 8
      %v2237 = vpop.permute.xlu0 %2236
      %2238 = vrot.lane.b32.xlu0 %v2030, 8
      %v2239 = vpop.permute.xlu0 %2238
      %2240 = vrot.lane.b32.xlu0 %v2031, 8
      %v2241 = vpop.permute.xlu0 %2240
      %2242 = vrot.lane.b32.xlu0 %v2032, 8
      %v2243 = vpop.permute.xlu0 %2242
      %2244 = vrot.lane.b32.xlu0 %v2033, 8
      %v2245 = vpop.permute.xlu0 %2244
      %2246 = vrot.lane.b32.xlu0 %v2034, 8
      %v2247 = vpop.permute.xlu0 %2246
      %2248 = vrot.lane.b32.xlu0 %v2035, 8
      %v2249 = vpop.permute.xlu0 %2248
      %2250 = vrot.lane.b32.xlu0 %v2036, 8
      %v2251 = vpop.permute.xlu0 %2250
      %2252 = vrot.lane.b32.xlu0 %v2037, 8
      %v2253 = vpop.permute.xlu0 %2252
      %2254 = vrot.lane.b32.xlu0 %v2038, 8
      %v2255 = vpop.permute.xlu0 %2254
      %2256 = vrot.lane.b32.xlu0 %v2039, 8
      %v2257 = vpop.permute.xlu0 %2256
      %2258 = vrot.lane.b32.xlu0 %v2040, 8
      %v2259 = vpop.permute.xlu0 %2258
      %2260 = vrot.lane.b32.xlu0 %v2041, 8
      %v2261 = vpop.permute.xlu0 %2260
      %2262 = vrot.lane.b32.xlu0 %v2042, 8
      %v2263 = vpop.permute.xlu0 %2262
      %2264 = vrot.lane.b32.xlu0 %v2043, 8
      %v2265 = vpop.permute.xlu0 %2264
      %2266 = vrot.lane.b32.xlu0 %v2044, 8
      %v2267 = vpop.permute.xlu0 %2266
      %2268 = vrot.lane.b32.xlu0 %v2045, 8
      %v2269 = vpop.permute.xlu0 %2268
      %v2302 = vsel %vm279, %v1950, %v2079
      %v2303 = vsel %vm279, %v1951, %v2081
      %v2304 = vsel %vm279, %v1952, %v2083
      %v2305 = vsel %vm279, %v1953, %v2085
      %v2306 = vsel %vm279, %v1954, %v2087
      %v2307 = vsel %vm279, %v1955, %v2089
      %v2308 = vsel %vm279, %v1956, %v2091
      %v2309 = vsel %vm279, %v1957, %v2093
      %v2310 = vsel %vm279, %v1958, %v2095
      %v2311 = vsel %vm279, %v1959, %v2097
      %v2312 = vsel %vm279, %v1960, %v2099
      %v2313 = vsel %vm279, %v1961, %v2101
      %v2314 = vsel %vm279, %v1962, %v2103
      %v2315 = vsel %vm279, %v1963, %v2105
      %v2316 = vsel %vm279, %v1964, %v2107
      %v2317 = vsel %vm279, %v1965, %v2109
      %v2318 = vsel %vm279, %v1966, %v2111
      %v2319 = vsel %vm279, %v1967, %v2113
      %v2320 = vsel %vm279, %v1968, %v2115
      %v2321 = vsel %vm279, %v1969, %v2117
      %v2322 = vsel %vm279, %v1970, %v2119
      %v2323 = vsel %vm279, %v1971, %v2121
      %v2324 = vsel %vm279, %v1972, %v2123
      %v2325 = vsel %vm279, %v1973, %v2125
      %v2326 = vsel %vm279, %v1974, %v2127
      %v2327 = vsel %vm279, %v1975, %v2129
      %v2328 = vsel %vm279, %v1976, %v2131
      %v2329 = vsel %vm279, %v1977, %v2133
      %v2330 = vsel %vm279, %v1978, %v2135
      %v2331 = vsel %vm279, %v1979, %v2137
      %v2332 = vsel %vm279, %v1980, %v2139
      %v2333 = vsel %vm279, %v1981, %v2141
      %v2334 = vsel %vm782, %v2302, %v2207
      %v2335 = vsel %vm782, %v2303, %v2209
      %v2336 = vsel %vm782, %v2304, %v2211
      %v2337 = vsel %vm782, %v2305, %v2213
      %v2338 = vsel %vm782, %v2306, %v2215
      %v2339 = vsel %vm782, %v2307, %v2217
      %v2340 = vsel %vm782, %v2308, %v2219
      %v2341 = vsel %vm782, %v2309, %v2221
      %v2342 = vsel %vm782, %v2310, %v2223
      %v2343 = vsel %vm782, %v2311, %v2225
      %v2344 = vsel %vm782, %v2312, %v2227
      %v2345 = vsel %vm782, %v2313, %v2229
      %v2346 = vsel %vm782, %v2314, %v2231
      %v2347 = vsel %vm782, %v2315, %v2233
      %v2348 = vsel %vm782, %v2316, %v2235
      %v2349 = vsel %vm782, %v2317, %v2237
      %v2350 = vsel %vm782, %v2318, %v2239
      %v2351 = vsel %vm782, %v2319, %v2241
      %v2352 = vsel %vm782, %v2320, %v2243
      %v2353 = vsel %vm782, %v2321, %v2245
      %v2354 = vsel %vm782, %v2322, %v2247
      %v2355 = vsel %vm782, %v2323, %v2249
      %v2356 = vsel %vm782, %v2324, %v2251
      %v2357 = vsel %vm782, %v2325, %v2253
      %v2358 = vsel %vm782, %v2326, %v2255
      %v2359 = vsel %vm782, %v2327, %v2257
      %v2360 = vsel %vm782, %v2328, %v2259
      %v2361 = vsel %vm782, %v2329, %v2261
      %v2362 = vsel %vm782, %v2330, %v2263
      %v2363 = vsel %vm782, %v2331, %v2265
      %v2364 = vsel %vm782, %v2332, %v2267
      %v2365 = vsel %vm782, %v2333, %v2269
      %s2366 = scalar_lea.vmem %s1, 32
      %v2367 = vld [vmem:[%s2366] sm:$0xff]
      %v2368 = vld [vmem:[%s2366 + $0x8] sm:$0xf]
      %v2370 = vsel %vm817, %v2334, 0
      %v2373 = vsel %vm817, %v2335, 0
      %v2376 = vsel %vm817, %v2336, 0
      %v2379 = vsel %vm817, %v2337, 0
      %v2382 = vsel %vm817, %v2338, 0
      %v2385 = vsel %vm817, %v2339, 0
      %v2388 = vsel %vm817, %v2340, 0
      %v2391 = vsel %vm817, %v2341, 0
      %v2394 = vsel %vm817, %v2342, 0
      %v2397 = vsel %vm817, %v2343, 0
      %v2400 = vsel %vm817, %v2344, 0
      %v2403 = vsel %vm817, %v2345, 0
      %v2406 = vsel %vm817, %v2346, 0
      %v2409 = vsel %vm817, %v2347, 0
      %v2412 = vsel %vm817, %v2348, 0
      %v2415 = vsel %vm817, %v2349, 0
      %v2418 = vsel %vm817, %v2350, 0
      %v2421 = vsel %vm817, %v2351, 0
      %v2424 = vsel %vm817, %v2352, 0
      %v2427 = vsel %vm817, %v2353, 0
      %v2430 = vsel %vm817, %v2354, 0
      %v2433 = vsel %vm817, %v2355, 0
      %v2436 = vsel %vm817, %v2356, 0
      %v2439 = vsel %vm817, %v2357, 0
      %v2442 = vsel %vm817, %v2358, 0
      %v2445 = vsel %vm817, %v2359, 0
      %v2448 = vsel %vm817, %v2360, 0
      %v2451 = vsel %vm817, %v2361, 0
      %v2454 = vsel %vm817, %v2362, 0
      %v2457 = vsel %vm817, %v2363, 0
      %v2460 = vsel %vm817, %v2364, 0
      %v2463 = vsel %vm817, %v2365, 0
      %v2466 = vsel %vm914, %v2368, 0
      %2468 = vmatprep.subr.mxu0 0.0
      %2469 = vmatpush1.msra.mxu0 %v2367
      %2470 = vmatprep.subr.mxu0 0.0
      %2471 = vmatpush1.msra.mxu0 %v2466
      %2472 = vmatprep.subr.mxu0 0.0
      %2473 = vmatpush1.msra.mxu0 0.0
      %2474 = vmatprep.subr.mxu0 0.0
      %2475 = vmatpush1.msra.mxu0 0.0
      %2476 = vmatprep.subr.mxu0 0.0
      %2477 = vmatpush1.msra.mxu0 0.0
      %2478 = vmatprep.subr.mxu0 0.0
      %2479 = vmatpush1.msra.mxu0 0.0
      %2480 = vmatprep.subr.mxu0 0.0
      %2481 = vmatpush1.msra.mxu0 0.0
      %2482 = vmatprep.subr.mxu0 0.0
      %2483 = vmatpush1.msra.mxu0 0.0
      %2484 = vmatprep.subr.mxu0 0.0
      %2485 = vmatpush1.msra.mxu0 0.0
      %2486 = vmatprep.subr.mxu0 0.0
      %2487 = vmatpush1.msra.mxu0 0.0
      %2488 = vmatprep.subr.mxu0 0.0
      %2489 = vmatpush1.msra.mxu0 0.0
      %2490 = vmatprep.subr.mxu0 0.0
      %2491 = vmatpush1.msra.mxu0 0.0
      %2492 = vmatprep.subr.mxu0 0.0
      %2493 = vmatpush1.msra.mxu0 0.0
      %2494 = vmatprep.subr.mxu0 0.0
      %2495 = vmatpush1.msra.mxu0 0.0
      %2496 = vmatprep.subr.mxu0 0.0
      %2497 = vmatpush1.msra.mxu0 0.0
      %2498 = vmatprep.subr.mxu0 0.0
      %2499 = vmatpush1.msra.mxu0 0.0
      %2500 = vmatprep.subr.mxu0 0.0
      %2501 = vmatpush1.msra.mxu0 0.0
      %2502 = vmatprep.subr.mxu0 0.0
      %2503 = vmatpush1.msra.mxu0 0.0
      %2504 = vmatprep.subr.mxu0 0.0
      %2505 = vmatpush1.msra.mxu0 0.0
      %2506 = vmatprep.subr.mxu0 0.0
      %2507 = vmatpush1.msra.mxu0 0.0
      %2508 = vmatprep.subr.mxu0 0.0
      %2509 = vmatpush1.msra.mxu0 0.0
      %2510 = vmatprep.subr.mxu0 0.0
      %2511 = vmatpush1.msra.mxu0 0.0
      %2512 = vmatprep.subr.mxu0 0.0
      %2513 = vmatpush1.msra.mxu0 0.0
      %2514 = vmatprep.subr.mxu0 0.0
      %2515 = vmatpush1.msra.mxu0 0.0
      %2516 = vmatprep.subr.mxu0 0.0
      %2517 = vmatpush1.msra.mxu0 0.0
      %2518 = vmatprep.subr.mxu0 0.0
      %2519 = vmatpush1.msra.mxu0 0.0
      %2520 = vmatprep.subr.mxu0 0.0
      %2521 = vmatpush1.msra.mxu0 0.0
      %2522 = vmatprep.subr.mxu0 0.0
      %2523 = vmatpush1.msra.mxu0 0.0
      %2524 = vmatprep.subr.mxu0 0.0
      %2525 = vmatpush1.msra.mxu0 0.0
      %2526 = vmatprep.subr.mxu0 0.0
      %2527 = vmatpush1.msra.mxu0 0.0
      %2528 = vmatprep.subr.mxu0 0.0
      %2529 = vmatpush1.msra.mxu0 0.0
      %2530 = vmatprep.subr.mxu0 0.0
      %2531 = vmatpush1.msra.mxu0 0.0
      %2532 = vmatprep.mubr.f32.mxu0 0.0
      %2533 = vmatmul.mubr.f32.gmra.mrb[0].mxu0 %v2370
      %v2534 = vpop.f32.mrb[0].mxu0
      %v2535 = vadd.f32 0.0, %v2534
      %v2536 = vpop.f32.mrb[0].mxu0
      %2537 = vmatprep.mubr.f32.mxu0 0.0
      %2538 = vmatmul.mubr.f32.gmra.mrb[0].mxu0 %v2373
      %v2539 = vpop.f32.mrb[0].mxu0
      %v2540 = vadd.f32 0.0, %v2539
      %v2541 = vpop.f32.mrb[0].mxu0
      %2542 = vmatprep.mubr.f32.mxu0 0.0
      %2543 = vmatmul.mubr.f32.gmra.mrb[0].mxu0 %v2376
      %v2544 = vpop.f32.mrb[0].mxu0
      %v2545 = vadd.f32 0.0, %v2544
      %v2546 = vpop.f32.mrb[0].mxu0
      %2547 = vmatprep.mubr.f32.mxu0 0.0
      %2548 = vmatmul.mubr.f32.gmra.mrb[0].mxu0 %v2379
      %v2549 = vpop.f32.mrb[0].mxu0
      %v2550 = vadd.f32 0.0, %v2549
      %v2551 = vpop.f32.mrb[0].mxu0
      %2552 = vmatprep.mubr.f32.mxu0 0.0
      %2553 = vmatmul.mubr.f32.gmra.mrb[0].mxu0 %v2382
      %v2554 = vpop.f32.mrb[0].mxu0
      %v2555 = vadd.f32 0.0, %v2554
      %v2556 = vpop.f32.mrb[0].mxu0
      %2557 = vmatprep.mubr.f32.mxu0 0.0
      %2558 = vmatmul.mubr.f32.gmra.mrb[0].mxu0 %v2385
      %v2559 = vpop.f32.mrb[0].mxu0
      %v2560 = vadd.f32 0.0, %v2559
      %v2561 = vpop.f32.mrb[0].mxu0
      %2562 = vmatprep.mubr.f32.mxu0 0.0
      %2563 = vmatmul.mubr.f32.gmra.mrb[0].mxu0 %v2388
      %v2564 = vpop.f32.mrb[0].mxu0
      %v2565 = vadd.f32 0.0, %v2564
      %v2566 = vpop.f32.mrb[0].mxu0
      %2567 = vmatprep.mubr.f32.mxu0 0.0
      %2568 = vmatmul.mubr.f32.gmra.mrb[0].mxu0 %v2391
      %v2569 = vpop.f32.mrb[0].mxu0
      %v2570 = vadd.f32 0.0, %v2569
      %v2571 = vpop.f32.mrb[0].mxu0
      %2572 = vmatprep.mubr.f32.mxu0 0.0
      %2573 = vmatmul.mubr.f32.gmra.mrb[0].mxu0 %v2394
      %v2574 = vpop.f32.mrb[0].mxu0
      %v2575 = vadd.f32 0.0, %v2574
      %v2576 = vpop.f32.mrb[0].mxu0
      %2577 = vmatprep.mubr.f32.mxu0 0.0
      %2578 = vmatmul.mubr.f32.gmra.mrb[0].mxu0 %v2397
      %v2579 = vpop.f32.mrb[0].mxu0
      %v2580 = vadd.f32 0.0, %v2579
      %v2581 = vpop.f32.mrb[0].mxu0
      %2582 = vmatprep.mubr.f32.mxu0 0.0
      %2583 = vmatmul.mubr.f32.gmra.mrb[0].mxu0 %v2400
      %v2584 = vpop.f32.mrb[0].mxu0
      %v2585 = vadd.f32 0.0, %v2584
      %v2586 = vpop.f32.mrb[0].mxu0
      %2587 = vmatprep.mubr.f32.mxu0 0.0
      %2588 = vmatmul.mubr.f32.gmra.mrb[0].mxu0 %v2403
      %v2589 = vpop.f32.mrb[0].mxu0
      %v2590 = vadd.f32 0.0, %v2589
      %v2591 = vpop.f32.mrb[0].mxu0
      %2592 = vmatprep.mubr.f32.mxu0 0.0
      %2593 = vmatmul.mubr.f32.gmra.mrb[0].mxu0 %v2406
      %v2594 = vpop.f32.mrb[0].mxu0
      %v2595 = vadd.f32 0.0, %v2594
      %v2596 = vpop.f32.mrb[0].mxu0
      %2597 = vmatprep.mubr.f32.mxu0 0.0
      %2598 = vmatmul.mubr.f32.gmra.mrb[0].mxu0 %v2409
      %v2599 = vpop.f32.mrb[0].mxu0
      %v2600 = vadd.f32 0.0, %v2599
      %v2601 = vpop.f32.mrb[0].mxu0
      %2602 = vmatprep.mubr.f32.mxu0 0.0
      %2603 = vmatmul.mubr.f32.gmra.mrb[0].mxu0 %v2412
      %v2604 = vpop.f32.mrb[0].mxu0
      %v2605 = vadd.f32 0.0, %v2604
      %v2606 = vpop.f32.mrb[0].mxu0
      %2607 = vmatprep.mubr.f32.mxu0 0.0
      %2608 = vmatmul.mubr.f32.gmra.mrb[0].mxu0 %v2415
      %v2609 = vpop.f32.mrb[0].mxu0
      %v2610 = vadd.f32 0.0, %v2609
      %v2611 = vpop.f32.mrb[0].mxu0
      %2612 = vmatprep.mubr.f32.mxu0 0.0
      %2613 = vmatmul.mubr.f32.gmra.mrb[0].mxu0 %v2418
      %v2614 = vpop.f32.mrb[0].mxu0
      %v2615 = vadd.f32 0.0, %v2614
      %v2616 = vpop.f32.mrb[0].mxu0
      %2617 = vmatprep.mubr.f32.mxu0 0.0
      %2618 = vmatmul.mubr.f32.gmra.mrb[0].mxu0 %v2421
      %v2619 = vpop.f32.mrb[0].mxu0
      %v2620 = vadd.f32 0.0, %v2619
      %v2621 = vpop.f32.mrb[0].mxu0
      %2622 = vmatprep.mubr.f32.mxu0 0.0
      %2623 = vmatmul.mubr.f32.gmra.mrb[0].mxu0 %v2424
      %v2624 = vpop.f32.mrb[0].mxu0
      %v2625 = vadd.f32 0.0, %v2624
      %v2626 = vpop.f32.mrb[0].mxu0
      %2627 = vmatprep.mubr.f32.mxu0 0.0
      %2628 = vmatmul.mubr.f32.gmra.mrb[0].mxu0 %v2427
      %v2629 = vpop.f32.mrb[0].mxu0
      %v2630 = vadd.f32 0.0, %v2629
      %v2631 = vpop.f32.mrb[0].mxu0
      %2632 = vmatprep.mubr.f32.mxu0 0.0
      %2633 = vmatmul.mubr.f32.gmra.mrb[0].mxu0 %v2430
      %v2634 = vpop.f32.mrb[0].mxu0
      %v2635 = vadd.f32 0.0, %v2634
      %v2636 = vpop.f32.mrb[0].mxu0
      %2637 = vmatprep.mubr.f32.mxu0 0.0
      %2638 = vmatmul.mubr.f32.gmra.mrb[0].mxu0 %v2433
      %v2639 = vpop.f32.mrb[0].mxu0
      %v2640 = vadd.f32 0.0, %v2639
      %v2641 = vpop.f32.mrb[0].mxu0
      %2642 = vmatprep.mubr.f32.mxu0 0.0
      %2643 = vmatmul.mubr.f32.gmra.mrb[0].mxu0 %v2436
      %v2644 = vpop.f32.mrb[0].mxu0
      %v2645 = vadd.f32 0.0, %v2644
      %v2646 = vpop.f32.mrb[0].mxu0
      %2647 = vmatprep.mubr.f32.mxu0 0.0
      %2648 = vmatmul.mubr.f32.gmra.mrb[0].mxu0 %v2439
      %v2649 = vpop.f32.mrb[0].mxu0
      %v2650 = vadd.f32 0.0, %v2649
      %v2651 = vpop.f32.mrb[0].mxu0
      %2652 = vmatprep.mubr.f32.mxu0 0.0
      %2653 = vmatmul.mubr.f32.gmra.mrb[0].mxu0 %v2442
      %v2654 = vpop.f32.mrb[0].mxu0
      %v2655 = vadd.f32 0.0, %v2654
      %v2656 = vpop.f32.mrb[0].mxu0
      %2657 = vmatprep.mubr.f32.mxu0 0.0
      %2658 = vmatmul.mubr.f32.gmra.mrb[0].mxu0 %v2445
      %v2659 = vpop.f32.mrb[0].mxu0
      %v2660 = vadd.f32 0.0, %v2659
      %v2661 = vpop.f32.mrb[0].mxu0
      %2662 = vmatprep.mubr.f32.mxu0 0.0
      %2663 = vmatmul.mubr.f32.gmra.mrb[0].mxu0 %v2448
      %v2664 = vpop.f32.mrb[0].mxu0
      %v2665 = vadd.f32 0.0, %v2664
      %v2666 = vpop.f32.mrb[0].mxu0
      %2667 = vmatprep.mubr.f32.mxu0 0.0
      %2668 = vmatmul.mubr.f32.gmra.mrb[0].mxu0 %v2451
      %v2669 = vpop.f32.mrb[0].mxu0
      %v2670 = vadd.f32 0.0, %v2669
      %v2671 = vpop.f32.mrb[0].mxu0
      %2672 = vmatprep.mubr.f32.mxu0 0.0
      %2673 = vmatmul.mubr.f32.gmra.mrb[0].mxu0 %v2454
      %v2674 = vpop.f32.mrb[0].mxu0
      %v2675 = vadd.f32 0.0, %v2674
      %v2676 = vpop.f32.mrb[0].mxu0
      %2677 = vmatprep.mubr.f32.mxu0 0.0
      %2678 = vmatmul.mubr.f32.gmra.mrb[0].mxu0 %v2457
      %v2679 = vpop.f32.mrb[0].mxu0
      %v2680 = vadd.f32 0.0, %v2679
      %v2681 = vpop.f32.mrb[0].mxu0
      %2682 = vmatprep.mubr.f32.mxu0 0.0
      %2683 = vmatmul.mubr.f32.gmra.mrb[0].mxu0 %v2460
      %v2684 = vpop.f32.mrb[0].mxu0
      %v2685 = vadd.f32 0.0, %v2684
      %v2686 = vpop.f32.mrb[0].mxu0
      %2687 = vmatprep.mubr.f32.mxu0 0.0
      %2688 = vmatmul.mubr.f32.gmra.mrb[0].mxu0 %v2463
      %v2689 = vpop.f32.mrb[0].mxu0
      %v2690 = vadd.f32 0.0, %v2689
      %v2691 = vpop.f32.mrb[0].mxu0
      %2692 = vdwg.mxu0
      %v2693 = vadd.f32 %v1918, %v2535
      %v2694 = vadd.f32 %v1919, %v2540
      %v2695 = vadd.f32 %v1920, %v2545
      %v2696 = vadd.f32 %v1921, %v2550
      %v2697 = vadd.f32 %v1922, %v2555
      %v2698 = vadd.f32 %v1923, %v2560
      %v2699 = vadd.f32 %v1924, %v2565
      %v2700 = vadd.f32 %v1925, %v2570
      %v2701 = vadd.f32 %v1926, %v2575
      %v2702 = vadd.f32 %v1927, %v2580
      %v2703 = vadd.f32 %v1928, %v2585
      %v2704 = vadd.f32 %v1929, %v2590
      %v2705 = vadd.f32 %v1930, %v2595
      %v2706 = vadd.f32 %v1931, %v2600
      %v2707 = vadd.f32 %v1932, %v2605
      %v2708 = vadd.f32 %v1933, %v2610
      %v2709 = vadd.f32 %v1934, %v2615
      %v2710 = vadd.f32 %v1935, %v2620
      %v2711 = vadd.f32 %v1936, %v2625
      %v2712 = vadd.f32 %v1937, %v2630
      %v2713 = vadd.f32 %v1938, %v2635
      %v2714 = vadd.f32 %v1939, %v2640
      %v2715 = vadd.f32 %v1940, %v2645
      %v2716 = vadd.f32 %v1941, %v2650
      %v2717 = vadd.f32 %v1942, %v2655
      %v2718 = vadd.f32 %v1943, %v2660
      %v2719 = vadd.f32 %v1944, %v2665
      %v2720 = vadd.f32 %v1945, %v2670
      %v2721 = vadd.f32 %v1946, %v2675
      %v2722 = vadd.f32 %v1947, %v2680
      %v2723 = vadd.f32 %v1948, %v2685
      %v2724 = vadd.f32 %v1949, %v2690
      %v2725 = vmax.f32 %v2693, 0.0
      %v2726 = vmax.f32 %v2694, 0.0
      %v2727 = vmax.f32 %v2695, 0.0
      %v2728 = vmax.f32 %v2696, 0.0
      %v2729 = vmax.f32 %v2697, 0.0
      %v2730 = vmax.f32 %v2698, 0.0
      %v2731 = vmax.f32 %v2699, 0.0
      %v2732 = vmax.f32 %v2700, 0.0
      %v2733 = vmax.f32 %v2701, 0.0
      %v2734 = vmax.f32 %v2702, 0.0
      %v2735 = vmax.f32 %v2703, 0.0
      %v2736 = vmax.f32 %v2704, 0.0
      %v2737 = vmax.f32 %v2705, 0.0
      %v2738 = vmax.f32 %v2706, 0.0
      %v2739 = vmax.f32 %v2707, 0.0
      %v2740 = vmax.f32 %v2708, 0.0
      %v2741 = vmax.f32 %v2709, 0.0
      %v2742 = vmax.f32 %v2710, 0.0
      %v2743 = vmax.f32 %v2711, 0.0
      %v2744 = vmax.f32 %v2712, 0.0
      %v2745 = vmax.f32 %v2713, 0.0
      %v2746 = vmax.f32 %v2714, 0.0
      %v2747 = vmax.f32 %v2715, 0.0
      %v2748 = vmax.f32 %v2716, 0.0
      %v2749 = vmax.f32 %v2717, 0.0
      %v2750 = vmax.f32 %v2718, 0.0
      %v2751 = vmax.f32 %v2719, 0.0
      %v2752 = vmax.f32 %v2720, 0.0
      %v2753 = vmax.f32 %v2721, 0.0
      %v2754 = vmax.f32 %v2722, 0.0
      %v2755 = vmax.f32 %v2723, 0.0
      %v2756 = vmax.f32 %v2724, 0.0
      %2789 = vrot.lane.b32.xlu0 %v2725, 124
      %v2790 = vpop.permute.xlu0 %2789
      %2791 = vrot.lane.b32.xlu0 %v2726, 124
      %v2792 = vpop.permute.xlu0 %2791
      %2793 = vrot.lane.b32.xlu0 %v2727, 124
      %v2794 = vpop.permute.xlu0 %2793
      %2795 = vrot.lane.b32.xlu0 %v2728, 124
      %v2796 = vpop.permute.xlu0 %2795
      %2797 = vrot.lane.b32.xlu0 %v2729, 124
      %v2798 = vpop.permute.xlu0 %2797
      %2799 = vrot.lane.b32.xlu0 %v2730, 124
      %v2800 = vpop.permute.xlu0 %2799
      %2801 = vrot.lane.b32.xlu0 %v2731, 124
      %v2802 = vpop.permute.xlu0 %2801
      %2803 = vrot.lane.b32.xlu0 %v2732, 124
      %v2804 = vpop.permute.xlu0 %2803
      %2805 = vrot.lane.b32.xlu0 %v2733, 124
      %v2806 = vpop.permute.xlu0 %2805
      %2807 = vrot.lane.b32.xlu0 %v2734, 124
      %v2808 = vpop.permute.xlu0 %2807
      %2809 = vrot.lane.b32.xlu0 %v2735, 124
      %v2810 = vpop.permute.xlu0 %2809
      %2811 = vrot.lane.b32.xlu0 %v2736, 124
      %v2812 = vpop.permute.xlu0 %2811
      %2813 = vrot.lane.b32.xlu0 %v2737, 124
      %v2814 = vpop.permute.xlu0 %2813
      %2815 = vrot.lane.b32.xlu0 %v2738, 124
      %v2816 = vpop.permute.xlu0 %2815
      %2817 = vrot.lane.b32.xlu0 %v2739, 124
      %v2818 = vpop.permute.xlu0 %2817
      %2819 = vrot.lane.b32.xlu0 %v2740, 124
      %v2820 = vpop.permute.xlu0 %2819
      %2821 = vrot.lane.b32.xlu0 %v2741, 124
      %v2822 = vpop.permute.xlu0 %2821
      %2823 = vrot.lane.b32.xlu0 %v2742, 124
      %v2824 = vpop.permute.xlu0 %2823
      %2825 = vrot.lane.b32.xlu0 %v2743, 124
      %v2826 = vpop.permute.xlu0 %2825
      %2827 = vrot.lane.b32.xlu0 %v2744, 124
      %v2828 = vpop.permute.xlu0 %2827
      %2829 = vrot.lane.b32.xlu0 %v2745, 124
      %v2830 = vpop.permute.xlu0 %2829
      %2831 = vrot.lane.b32.xlu0 %v2746, 124
      %v2832 = vpop.permute.xlu0 %2831
      %2833 = vrot.lane.b32.xlu0 %v2747, 124
      %v2834 = vpop.permute.xlu0 %2833
      %2835 = vrot.lane.b32.xlu0 %v2748, 124
      %v2836 = vpop.permute.xlu0 %2835
      %2837 = vrot.lane.b32.xlu0 %v2749, 124
      %v2838 = vpop.permute.xlu0 %2837
      %2839 = vrot.lane.b32.xlu0 %v2750, 124
      %v2840 = vpop.permute.xlu0 %2839
      %2841 = vrot.lane.b32.xlu0 %v2751, 124
      %v2842 = vpop.permute.xlu0 %2841
      %2843 = vrot.lane.b32.xlu0 %v2752, 124
      %v2844 = vpop.permute.xlu0 %2843
      %2845 = vrot.lane.b32.xlu0 %v2753, 124
      %v2846 = vpop.permute.xlu0 %2845
      %2847 = vrot.lane.b32.xlu0 %v2754, 124
      %v2848 = vpop.permute.xlu0 %2847
      %2849 = vrot.lane.b32.xlu0 %v2755, 124
      %v2850 = vpop.permute.xlu0 %2849
      %2851 = vrot.lane.b32.xlu0 %v2756, 124
      %v2852 = vpop.permute.xlu0 %2851
      %2885 = vst.msk [vmem:[%s278] sm:$0xff] %vm782, %v2790
      %2886 = vst.msk [vmem:[%s278 + $0x8] sm:$0xff] %vm782, %v2792
      %2887 = vst.msk [vmem:[%s278 + $0x10] sm:$0xff] %vm782, %v2794
      %2888 = vst.msk [vmem:[%s278 + $0x18] sm:$0xff] %vm782, %v2796
      %2889 = vst.msk [vmem:[%s278 + $0x20] sm:$0xff] %vm782, %v2798
      %2890 = vst.msk [vmem:[%s278 + $0x28] sm:$0xff] %vm782, %v2800
      %2891 = vst.msk [vmem:[%s278 + $0x30] sm:$0xff] %vm782, %v2802
      %2892 = vst.msk [vmem:[%s278 + $0x38] sm:$0xff] %vm782, %v2804
      %2893 = vst.msk [vmem:[%s278 + $0x40] sm:$0xff] %vm782, %v2806
      %2894 = vst.msk [vmem:[%s278 + $0x48] sm:$0xff] %vm782, %v2808
      %2895 = vst.msk [vmem:[%s278 + $0x50] sm:$0xff] %vm782, %v2810
      %2896 = vst.msk [vmem:[%s278 + $0x58] sm:$0xff] %vm782, %v2812
      %2897 = vst.msk [vmem:[%s278 + $0x60] sm:$0xff] %vm782, %v2814
      %2898 = vst.msk [vmem:[%s278 + $0x68] sm:$0xff] %vm782, %v2816
      %2899 = vst.msk [vmem:[%s278 + $0x70] sm:$0xff] %vm782, %v2818
      %2900 = vst.msk [vmem:[%s278 + $0x78] sm:$0xff] %vm782, %v2820
      %2901 = vst.msk [vmem:[%s278 + $0x80] sm:$0xff] %vm782, %v2822
      %2902 = vst.msk [vmem:[%s278 + $0x88] sm:$0xff] %vm782, %v2824
      %2903 = vst.msk [vmem:[%s278 + $0x90] sm:$0xff] %vm782, %v2826
      %2904 = vst.msk [vmem:[%s278 + $0x98] sm:$0xff] %vm782, %v2828
      %2905 = vst.msk [vmem:[%s278 + $0xa0] sm:$0xff] %vm782, %v2830
      %2906 = vst.msk [vmem:[%s278 + $0xa8] sm:$0xff] %vm782, %v2832
      %2907 = vst.msk [vmem:[%s278 + $0xb0] sm:$0xff] %vm782, %v2834
      %2908 = vst.msk [vmem:[%s278 + $0xb8] sm:$0xff] %vm782, %v2836
      %2909 = vst.msk [vmem:[%s278 + $0xc0] sm:$0xff] %vm782, %v2838
      %2910 = vst.msk [vmem:[%s278 + $0xc8] sm:$0xff] %vm782, %v2840
      %2911 = vst.msk [vmem:[%s278 + $0xd0] sm:$0xff] %vm782, %v2842
      %2912 = vst.msk [vmem:[%s278 + $0xd8] sm:$0xff] %vm782, %v2844
      %2913 = vst.msk [vmem:[%s278 + $0xe0] sm:$0xff] %vm782, %v2846
      %2914 = vst.msk [vmem:[%s278 + $0xe8] sm:$0xff] %vm782, %v2848
      %2915 = vst.msk [vmem:[%s278 + $0xf0] sm:$0xff] %vm782, %v2850
      %2916 = vst.msk [vmem:[%s278 + $0xf8] sm:$0xff] %vm782, %v2852
      %2917 = vst.msk [vmem:[#allocation3] sm:$0xff] %vm279, 0.0
      %2918 = vst.msk [vmem:[#allocation3 + $0x8] sm:$0xff] %vm279, 0.0
      %2919 = vst.msk [vmem:[#allocation3 + $0x10] sm:$0xff] %vm279, 0.0
      %2920 = vst.msk [vmem:[#allocation3 + $0x18] sm:$0xff] %vm279, 0.0
      %s2921 = scalar_lea.vmem [#allocation3], 544
      %2922 = vst.msk [vmem:[%s2921] sm:$0xff] %vm279, 0.0
      %2923 = vst.msk [vmem:[%s2921 + $0x8] sm:$0xff] %vm279, 0.0
      %2924 = vst.msk [vmem:[%s2921 + $0x10] sm:$0xff] %vm279, 0.0
      %2925 = vst.msk [vmem:[%s2921 + $0x18] sm:$0xff] %vm279, 0.0
      %2926 = vst.msk [vmem:[#allocation3] sm:$0xff] %vm279, 0.0
      %2927 = vst.msk [vmem:[#allocation3 + $0x20] sm:$0xff] %vm279, 0.0
      %2928 = vst.msk [vmem:[#allocation3 + $0x40] sm:$0xff] %vm279, 0.0
      %2929 = vst.msk [vmem:[#allocation3 + $0x60] sm:$0xff] %vm279, 0.0
      %2930 = vst.msk [vmem:[#allocation3 + $0x80] sm:$0xff] %vm279, 0.0
      %2931 = vst.msk [vmem:[#allocation3 + $0xa0] sm:$0xff] %vm279, 0.0
      %2932 = vst.msk [vmem:[#allocation3 + $0xc0] sm:$0xff] %vm279, 0.0
      %2933 = vst.msk [vmem:[#allocation3 + $0xe0] sm:$0xff] %vm279, 0.0
      %2934 = vst.msk [vmem:[#allocation3 + $0x100] sm:$0xff] %vm279, 0.0
      %2935 = vst.msk [vmem:[#allocation3 + $0x120] sm:$0xff] %vm279, 0.0
      %2936 = vst.msk [vmem:[#allocation3 + $0x140] sm:$0xff] %vm279, 0.0
      %2937 = vst.msk [vmem:[#allocation3 + $0x160] sm:$0xff] %vm279, 0.0
      %2938 = vst.msk [vmem:[#allocation3 + $0x180] sm:$0xff] %vm279, 0.0
      %2939 = vst.msk [vmem:[#allocation3 + $0x1a0] sm:$0xff] %vm279, 0.0
      %2940 = vst.msk [vmem:[#allocation3 + $0x1c0] sm:$0xff] %vm279, 0.0
      %2941 = vst.msk [vmem:[#allocation3 + $0x1e0] sm:$0xff] %vm279, 0.0
      %2942 = vst.msk [vmem:[#allocation3 + $0x200] sm:$0xff] %vm279, 0.0
      %2943 = vst.msk [vmem:[#allocation3 + $0x220] sm:$0xff] %vm279, 0.0
      %2944 = vst.msk [vmem:[#allocation3 + $0x18] sm:$0xff] %vm279, 0.0
      %2945 = vst.msk [vmem:[#allocation3 + $0x38] sm:$0xff] %vm279, 0.0
      %2946 = vst.msk [vmem:[#allocation3 + $0x58] sm:$0xff] %vm279, 0.0
      %2947 = vst.msk [vmem:[#allocation3 + $0x78] sm:$0xff] %vm279, 0.0
      %2948 = vst.msk [vmem:[#allocation3 + $0x98] sm:$0xff] %vm279, 0.0
      %2949 = vst.msk [vmem:[#allocation3 + $0xb8] sm:$0xff] %vm279, 0.0
      %2950 = vst.msk [vmem:[#allocation3 + $0xd8] sm:$0xff] %vm279, 0.0
      %2951 = vst.msk [vmem:[#allocation3 + $0xf8] sm:$0xff] %vm279, 0.0
      %2952 = vst.msk [vmem:[#allocation3 + $0x118] sm:$0xff] %vm279, 0.0
      %2953 = vst.msk [vmem:[#allocation3 + $0x138] sm:$0xff] %vm279, 0.0
      %2954 = vst.msk [vmem:[#allocation3 + $0x158] sm:$0xff] %vm279, 0.0
      %2955 = vst.msk [vmem:[#allocation3 + $0x178] sm:$0xff] %vm279, 0.0
      %2956 = vst.msk [vmem:[#allocation3 + $0x198] sm:$0xff] %vm279, 0.0
      %2957 = vst.msk [vmem:[#allocation3 + $0x1b8] sm:$0xff] %vm279, 0.0
      %2958 = vst.msk [vmem:[#allocation3 + $0x1d8] sm:$0xff] %vm279, 0.0
      %2959 = vst.msk [vmem:[#allocation3 + $0x1f8] sm:$0xff] %vm279, 0.0
      %2960 = vst.msk [vmem:[#allocation3 + $0x218] sm:$0xff] %vm279, 0.0
      %2961 = vst.msk [vmem:[#allocation3 + $0x238] sm:$0xff] %vm279, 0.0
      %s2962 = scalar_lea.vmem [#allocation3], 32
      %2963 = vst.msk [vmem:[%s2962 + $0x8] sm:$0xff] %vm279, %v2693
      %2964 = vst.msk [vmem:[%s2962 + $0x10] sm:$0xff] %vm279, %v2694
      %2965 = vst.msk [vmem:[%s2962 + $0x28] sm:$0xff] %vm279, %v2695
      %2966 = vst.msk [vmem:[%s2962 + $0x30] sm:$0xff] %vm279, %v2696
      %2967 = vst.msk [vmem:[%s2962 + $0x48] sm:$0xff] %vm279, %v2697
      %2968 = vst.msk [vmem:[%s2962 + $0x50] sm:$0xff] %vm279, %v2698
      %2969 = vst.msk [vmem:[%s2962 + $0x68] sm:$0xff] %vm279, %v2699
      %2970 = vst.msk [vmem:[%s2962 + $0x70] sm:$0xff] %vm279, %v2700
      %2971 = vst.msk [vmem:[%s2962 + $0x88] sm:$0xff] %vm279, %v2701
      %2972 = vst.msk [vmem:[%s2962 + $0x90] sm:$0xff] %vm279, %v2702
      %2973 = vst.msk [vmem:[%s2962 + $0xa8] sm:$0xff] %vm279, %v2703
      %2974 = vst.msk [vmem:[%s2962 + $0xb0] sm:$0xff] %vm279, %v2704
      %2975 = vst.msk [vmem:[%s2962 + $0xc8] sm:$0xff] %vm279, %v2705
      %2976 = vst.msk [vmem:[%s2962 + $0xd0] sm:$0xff] %vm279, %v2706
      %2977 = vst.msk [vmem:[%s2962 + $0xe8] sm:$0xff] %vm279, %v2707
      %2978 = vst.msk [vmem:[%s2962 + $0xf0] sm:$0xff] %vm279, %v2708
      %2979 = vst.msk [vmem:[%s2962 + $0x108] sm:$0xff] %vm279, %v2709
      %2980 = vst.msk [vmem:[%s2962 + $0x110] sm:$0xff] %vm279, %v2710
      %2981 = vst.msk [vmem:[%s2962 + $0x128] sm:$0xff] %vm279, %v2711
      %2982 = vst.msk [vmem:[%s2962 + $0x130] sm:$0xff] %vm279, %v2712
      %2983 = vst.msk [vmem:[%s2962 + $0x148] sm:$0xff] %vm279, %v2713
      %2984 = vst.msk [vmem:[%s2962 + $0x150] sm:$0xff] %vm279, %v2714
      %2985 = vst.msk [vmem:[%s2962 + $0x168] sm:$0xff] %vm279, %v2715
      %2986 = vst.msk [vmem:[%s2962 + $0x170] sm:$0xff] %vm279, %v2716
      %2987 = vst.msk [vmem:[%s2962 + $0x188] sm:$0xff] %vm279, %v2717
      %2988 = vst.msk [vmem:[%s2962 + $0x190] sm:$0xff] %vm279, %v2718
      %2989 = vst.msk [vmem:[%s2962 + $0x1a8] sm:$0xff] %vm279, %v2719
      %2990 = vst.msk [vmem:[%s2962 + $0x1b0] sm:$0xff] %vm279, %v2720
      %2991 = vst.msk [vmem:[%s2962 + $0x1c8] sm:$0xff] %vm279, %v2721
      %2992 = vst.msk [vmem:[%s2962 + $0x1d0] sm:$0xff] %vm279, %v2722
      %2993 = vst.msk [vmem:[%s2962 + $0x1e8] sm:$0xff] %vm279, %v2723
      %2994 = vst.msk [vmem:[%s2962 + $0x1f0] sm:$0xff] %vm279, %v2724
      %v2995 = vld [vmem:[%s4] sm:$0x1]
      %v2997 = vlaneseq
      %v2998 = vshrl.u32 %v2997, 7
      %v2999 = vsub.s32 0, %v2998
      %v3000 = vrot.slane %v2995, %v2999
      %v3002 = vld [vmem:[#allocation3 + $0x7] sm:$0xff]
      %v3003 = vld [vmem:[#allocation3 + $0xf] sm:$0xff]
      %v3004 = vld [vmem:[#allocation3 + $0x27] sm:$0xff]
      %v3005 = vld [vmem:[#allocation3 + $0x2f] sm:$0xff]
      %v3006 = vld [vmem:[#allocation3 + $0x47] sm:$0xff]
      %v3007 = vld [vmem:[#allocation3 + $0x4f] sm:$0xff]
      %v3008 = vld [vmem:[#allocation3 + $0x67] sm:$0xff]
      %v3009 = vld [vmem:[#allocation3 + $0x6f] sm:$0xff]
      %v3010 = vld [vmem:[#allocation3 + $0x87] sm:$0xff]
      %v3011 = vld [vmem:[#allocation3 + $0x8f] sm:$0xff]
      %v3012 = vld [vmem:[#allocation3 + $0xa7] sm:$0xff]
      %v3013 = vld [vmem:[#allocation3 + $0xaf] sm:$0xff]
      %v3014 = vld [vmem:[#allocation3 + $0xc7] sm:$0xff]
      %v3015 = vld [vmem:[#allocation3 + $0xcf] sm:$0xff]
      %v3016 = vld [vmem:[#allocation3 + $0xe7] sm:$0xff]
      %v3017 = vld [vmem:[#allocation3 + $0xef] sm:$0xff]
      %v3018 = vld [vmem:[#allocation3 + $0x107] sm:$0xff]
      %v3019 = vld [vmem:[#allocation3 + $0x10f] sm:$0xff]
      %v3020 = vld [vmem:[#allocation3 + $0x127] sm:$0xff]
      %v3021 = vld [vmem:[#allocation3 + $0x12f] sm:$0xff]
      %v3022 = vld [vmem:[#allocation3 + $0x147] sm:$0xff]
      %v3023 = vld [vmem:[#allocation3 + $0x14f] sm:$0xff]
      %v3024 = vld [vmem:[#allocation3 + $0x167] sm:$0xff]
      %v3025 = vld [vmem:[#allocation3 + $0x16f] sm:$0xff]
      %v3026 = vld [vmem:[#allocation3 + $0x187] sm:$0xff]
      %v3027 = vld [vmem:[#allocation3 + $0x18f] sm:$0xff]
      %v3028 = vld [vmem:[#allocation3 + $0x1a7] sm:$0xff]
      %v3029 = vld [vmem:[#allocation3 + $0x1af] sm:$0xff]
      %v3030 = vld [vmem:[#allocation3 + $0x1c7] sm:$0xff]
      %v3031 = vld [vmem:[#allocation3 + $0x1cf] sm:$0xff]
      %v3032 = vld [vmem:[#allocation3 + $0x1e7] sm:$0xff]
      %v3033 = vld [vmem:[#allocation3 + $0x1ef] sm:$0xff]
      %v3034 = vld [vmem:[%s2962 + $0x7] sm:$0xff]
      %v3035 = vld [vmem:[%s2962 + $0xf] sm:$0xff]
      %v3036 = vld [vmem:[%s2962 + $0x27] sm:$0xff]
      %v3037 = vld [vmem:[%s2962 + $0x2f] sm:$0xff]
      %v3038 = vld [vmem:[%s2962 + $0x47] sm:$0xff]
      %v3039 = vld [vmem:[%s2962 + $0x4f] sm:$0xff]
      %v3040 = vld [vmem:[%s2962 + $0x67] sm:$0xff]
      %v3041 = vld [vmem:[%s2962 + $0x6f] sm:$0xff]
      %v3042 = vld [vmem:[%s2962 + $0x87] sm:$0xff]
      %v3043 = vld [vmem:[%s2962 + $0x8f] sm:$0xff]
      %v3044 = vld [vmem:[%s2962 + $0xa7] sm:$0xff]
      %v3045 = vld [vmem:[%s2962 + $0xaf] sm:$0xff]
      %v3046 = vld [vmem:[%s2962 + $0xc7] sm:$0xff]
      %v3047 = vld [vmem:[%s2962 + $0xcf] sm:$0xff]
      %v3048 = vld [vmem:[%s2962 + $0xe7] sm:$0xff]
      %v3049 = vld [vmem:[%s2962 + $0xef] sm:$0xff]
      %v3050 = vld [vmem:[%s2962 + $0x107] sm:$0xff]
      %v3051 = vld [vmem:[%s2962 + $0x10f] sm:$0xff]
      %v3052 = vld [vmem:[%s2962 + $0x127] sm:$0xff]
      %v3053 = vld [vmem:[%s2962 + $0x12f] sm:$0xff]
      %v3054 = vld [vmem:[%s2962 + $0x147] sm:$0xff]
      %v3055 = vld [vmem:[%s2962 + $0x14f] sm:$0xff]
      %v3056 = vld [vmem:[%s2962 + $0x167] sm:$0xff]
      %v3057 = vld [vmem:[%s2962 + $0x16f] sm:$0xff]
      %v3058 = vld [vmem:[%s2962 + $0x187] sm:$0xff]
      %v3059 = vld [vmem:[%s2962 + $0x18f] sm:$0xff]
      %v3060 = vld [vmem:[%s2962 + $0x1a7] sm:$0xff]
      %v3061 = vld [vmem:[%s2962 + $0x1af] sm:$0xff]
      %v3062 = vld [vmem:[%s2962 + $0x1c7] sm:$0xff]
      %v3063 = vld [vmem:[%s2962 + $0x1cf] sm:$0xff]
      %v3064 = vld [vmem:[%s2962 + $0x1e7] sm:$0xff]
      %v3065 = vld [vmem:[%s2962 + $0x1ef] sm:$0xff]
      %s3066 = scalar_lea.vmem [#allocation3], 64
      %v3067 = vld [vmem:[%s3066 + $0x7] sm:$0xff]
      %v3068 = vld [vmem:[%s3066 + $0xf] sm:$0xff]
      %v3069 = vld [vmem:[%s3066 + $0x27] sm:$0xff]
      %v3070 = vld [vmem:[%s3066 + $0x2f] sm:$0xff]
      %v3071 = vld [vmem:[%s3066 + $0x47] sm:$0xff]
      %v3072 = vld [vmem:[%s3066 + $0x4f] sm:$0xff]
      %v3073 = vld [vmem:[%s3066 + $0x67] sm:$0xff]
      %v3074 = vld [vmem:[%s3066 + $0x6f] sm:$0xff]
      %v3075 = vld [vmem:[%s3066 + $0x87] sm:$0xff]
      %v3076 = vld [vmem:[%s3066 + $0x8f] sm:$0xff]
      %v3077 = vld [vmem:[%s3066 + $0xa7] sm:$0xff]
      %v3078 = vld [vmem:[%s3066 + $0xaf] sm:$0xff]
      %v3079 = vld [vmem:[%s3066 + $0xc7] sm:$0xff]
      %v3080 = vld [vmem:[%s3066 + $0xcf] sm:$0xff]
      %v3081 = vld [vmem:[%s3066 + $0xe7] sm:$0xff]
      %v3082 = vld [vmem:[%s3066 + $0xef] sm:$0xff]
      %v3083 = vld [vmem:[%s3066 + $0x107] sm:$0xff]
      %v3084 = vld [vmem:[%s3066 + $0x10f] sm:$0xff]
      %v3085 = vld [vmem:[%s3066 + $0x127] sm:$0xff]
      %v3086 = vld [vmem:[%s3066 + $0x12f] sm:$0xff]
      %v3087 = vld [vmem:[%s3066 + $0x147] sm:$0xff]
      %v3088 = vld [vmem:[%s3066 + $0x14f] sm:$0xff]
      %v3089 = vld [vmem:[%s3066 + $0x167] sm:$0xff]
      %v3090 = vld [vmem:[%s3066 + $0x16f] sm:$0xff]
      %v3091 = vld [vmem:[%s3066 + $0x187] sm:$0xff]
      %v3092 = vld [vmem:[%s3066 + $0x18f] sm:$0xff]
      %v3093 = vld [vmem:[%s3066 + $0x1a7] sm:$0xff]
      %v3094 = vld [vmem:[%s3066 + $0x1af] sm:$0xff]
      %v3095 = vld [vmem:[%s3066 + $0x1c7] sm:$0xff]
      %v3096 = vld [vmem:[%s3066 + $0x1cf] sm:$0xff]
      %v3097 = vld [vmem:[%s3066 + $0x1e7] sm:$0xff]
      %v3098 = vld [vmem:[%s3066 + $0x1ef] sm:$0xff]
      %3131 = vrot.lane.b32.xlu0 %v3034, 4
      %v3132 = vpop.permute.xlu0 %3131
      %3133 = vrot.lane.b32.xlu0 %v3035, 4
      %v3134 = vpop.permute.xlu0 %3133
      %3135 = vrot.lane.b32.xlu0 %v3036, 4
      %v3136 = vpop.permute.xlu0 %3135
      %3137 = vrot.lane.b32.xlu0 %v3037, 4
      %v3138 = vpop.permute.xlu0 %3137
      %3139 = vrot.lane.b32.xlu0 %v3038, 4
      %v3140 = vpop.permute.xlu0 %3139
      %3141 = vrot.lane.b32.xlu0 %v3039, 4
      %v3142 = vpop.permute.xlu0 %3141
      %3143 = vrot.lane.b32.xlu0 %v3040, 4
      %v3144 = vpop.permute.xlu0 %3143
      %3145 = vrot.lane.b32.xlu0 %v3041, 4
      %v3146 = vpop.permute.xlu0 %3145
      %3147 = vrot.lane.b32.xlu0 %v3042, 4
      %v3148 = vpop.permute.xlu0 %3147
      %3149 = vrot.lane.b32.xlu0 %v3043, 4
      %v3150 = vpop.permute.xlu0 %3149
      %3151 = vrot.lane.b32.xlu0 %v3044, 4
      %v3152 = vpop.permute.xlu0 %3151
      %3153 = vrot.lane.b32.xlu0 %v3045, 4
      %v3154 = vpop.permute.xlu0 %3153
      %3155 = vrot.lane.b32.xlu0 %v3046, 4
      %v3156 = vpop.permute.xlu0 %3155
      %3157 = vrot.lane.b32.xlu0 %v3047, 4
      %v3158 = vpop.permute.xlu0 %3157
      %3159 = vrot.lane.b32.xlu0 %v3048, 4
      %v3160 = vpop.permute.xlu0 %3159
      %3161 = vrot.lane.b32.xlu0 %v3049, 4
      %v3162 = vpop.permute.xlu0 %3161
      %3163 = vrot.lane.b32.xlu0 %v3050, 4
      %v3164 = vpop.permute.xlu0 %3163
      %3165 = vrot.lane.b32.xlu0 %v3051, 4
      %v3166 = vpop.permute.xlu0 %3165
      %3167 = vrot.lane.b32.xlu0 %v3052, 4
      %v3168 = vpop.permute.xlu0 %3167
      %3169 = vrot.lane.b32.xlu0 %v3053, 4
      %v3170 = vpop.permute.xlu0 %3169
      %3171 = vrot.lane.b32.xlu0 %v3054, 4
      %v3172 = vpop.permute.xlu0 %3171
      %3173 = vrot.lane.b32.xlu0 %v3055, 4
      %v3174 = vpop.permute.xlu0 %3173
      %3175 = vrot.lane.b32.xlu0 %v3056, 4
      %v3176 = vpop.permute.xlu0 %3175
      %3177 = vrot.lane.b32.xlu0 %v3057, 4
      %v3178 = vpop.permute.xlu0 %3177
      %3179 = vrot.lane.b32.xlu0 %v3058, 4
      %v3180 = vpop.permute.xlu0 %3179
      %3181 = vrot.lane.b32.xlu0 %v3059, 4
      %v3182 = vpop.permute.xlu0 %3181
      %3183 = vrot.lane.b32.xlu0 %v3060, 4
      %v3184 = vpop.permute.xlu0 %3183
      %3185 = vrot.lane.b32.xlu0 %v3061, 4
      %v3186 = vpop.permute.xlu0 %3185
      %3187 = vrot.lane.b32.xlu0 %v3062, 4
      %v3188 = vpop.permute.xlu0 %3187
      %3189 = vrot.lane.b32.xlu0 %v3063, 4
      %v3190 = vpop.permute.xlu0 %3189
      %3191 = vrot.lane.b32.xlu0 %v3064, 4
      %v3192 = vpop.permute.xlu0 %3191
      %3193 = vrot.lane.b32.xlu0 %v3065, 4
      %v3194 = vpop.permute.xlu0 %3193
      %3259 = vrot.lane.b32.xlu0 %v3067, 8
      %v3260 = vpop.permute.xlu0 %3259
      %3261 = vrot.lane.b32.xlu0 %v3068, 8
      %v3262 = vpop.permute.xlu0 %3261
      %3263 = vrot.lane.b32.xlu0 %v3069, 8
      %v3264 = vpop.permute.xlu0 %3263
      %3265 = vrot.lane.b32.xlu0 %v3070, 8
      %v3266 = vpop.permute.xlu0 %3265
      %3267 = vrot.lane.b32.xlu0 %v3071, 8
      %v3268 = vpop.permute.xlu0 %3267
      %3269 = vrot.lane.b32.xlu0 %v3072, 8
      %v3270 = vpop.permute.xlu0 %3269
      %3271 = vrot.lane.b32.xlu0 %v3073, 8
      %v3272 = vpop.permute.xlu0 %3271
      %3273 = vrot.lane.b32.xlu0 %v3074, 8
      %v3274 = vpop.permute.xlu0 %3273
      %3275 = vrot.lane.b32.xlu0 %v3075, 8
      %v3276 = vpop.permute.xlu0 %3275
      %3277 = vrot.lane.b32.xlu0 %v3076, 8
      %v3278 = vpop.permute.xlu0 %3277
      %3279 = vrot.lane.b32.xlu0 %v3077, 8
      %v3280 = vpop.permute.xlu0 %3279
      %3281 = vrot.lane.b32.xlu0 %v3078, 8
      %v3282 = vpop.permute.xlu0 %3281
      %3283 = vrot.lane.b32.xlu0 %v3079, 8
      %v3284 = vpop.permute.xlu0 %3283
      %3285 = vrot.lane.b32.xlu0 %v3080, 8
      %v3286 = vpop.permute.xlu0 %3285
      %3287 = vrot.lane.b32.xlu0 %v3081, 8
      %v3288 = vpop.permute.xlu0 %3287
      %3289 = vrot.lane.b32.xlu0 %v3082, 8
      %v3290 = vpop.permute.xlu0 %3289
      %3291 = vrot.lane.b32.xlu0 %v3083, 8
      %v3292 = vpop.permute.xlu0 %3291
      %3293 = vrot.lane.b32.xlu0 %v3084, 8
      %v3294 = vpop.permute.xlu0 %3293
      %3295 = vrot.lane.b32.xlu0 %v3085, 8
      %v3296 = vpop.permute.xlu0 %3295
      %3297 = vrot.lane.b32.xlu0 %v3086, 8
      %v3298 = vpop.permute.xlu0 %3297
      %3299 = vrot.lane.b32.xlu0 %v3087, 8
      %v3300 = vpop.permute.xlu0 %3299
      %3301 = vrot.lane.b32.xlu0 %v3088, 8
      %v3302 = vpop.permute.xlu0 %3301
      %3303 = vrot.lane.b32.xlu0 %v3089, 8
      %v3304 = vpop.permute.xlu0 %3303
      %3305 = vrot.lane.b32.xlu0 %v3090, 8
      %v3306 = vpop.permute.xlu0 %3305
      %3307 = vrot.lane.b32.xlu0 %v3091, 8
      %v3308 = vpop.permute.xlu0 %3307
      %3309 = vrot.lane.b32.xlu0 %v3092, 8
      %v3310 = vpop.permute.xlu0 %3309
      %3311 = vrot.lane.b32.xlu0 %v3093, 8
      %v3312 = vpop.permute.xlu0 %3311
      %3313 = vrot.lane.b32.xlu0 %v3094, 8
      %v3314 = vpop.permute.xlu0 %3313
      %3315 = vrot.lane.b32.xlu0 %v3095, 8
      %v3316 = vpop.permute.xlu0 %3315
      %3317 = vrot.lane.b32.xlu0 %v3096, 8
      %v3318 = vpop.permute.xlu0 %3317
      %3319 = vrot.lane.b32.xlu0 %v3097, 8
      %v3320 = vpop.permute.xlu0 %3319
      %3321 = vrot.lane.b32.xlu0 %v3098, 8
      %v3322 = vpop.permute.xlu0 %3321
      %v3355 = vsel %vm279, %v3002, %v3132
      %v3356 = vsel %vm279, %v3003, %v3134
      %v3357 = vsel %vm279, %v3004, %v3136
      %v3358 = vsel %vm279, %v3005, %v3138
      %v3359 = vsel %vm279, %v3006, %v3140
      %v3360 = vsel %vm279, %v3007, %v3142
      %v3361 = vsel %vm279, %v3008, %v3144
      %v3362 = vsel %vm279, %v3009, %v3146
      %v3363 = vsel %vm279, %v3010, %v3148
      %v3364 = vsel %vm279, %v3011, %v3150
      %v3365 = vsel %vm279, %v3012, %v3152
      %v3366 = vsel %vm279, %v3013, %v3154
      %v3367 = vsel %vm279, %v3014, %v3156
      %v3368 = vsel %vm279, %v3015, %v3158
      %v3369 = vsel %vm279, %v3016, %v3160
      %v3370 = vsel %vm279, %v3017, %v3162
      %v3371 = vsel %vm279, %v3018, %v3164
      %v3372 = vsel %vm279, %v3019, %v3166
      %v3373 = vsel %vm279, %v3020, %v3168
      %v3374 = vsel %vm279, %v3021, %v3170
      %v3375 = vsel %vm279, %v3022, %v3172
      %v3376 = vsel %vm279, %v3023, %v3174
      %v3377 = vsel %vm279, %v3024, %v3176
      %v3378 = vsel %vm279, %v3025, %v3178
      %v3379 = vsel %vm279, %v3026, %v3180
      %v3380 = vsel %vm279, %v3027, %v3182
      %v3381 = vsel %vm279, %v3028, %v3184
      %v3382 = vsel %vm279, %v3029, %v3186
      %v3383 = vsel %vm279, %v3030, %v3188
      %v3384 = vsel %vm279, %v3031, %v3190
      %v3385 = vsel %vm279, %v3032, %v3192
      %v3386 = vsel %vm279, %v3033, %v3194
      %v3387 = vsel %vm782, %v3355, %v3260
      %v3388 = vsel %vm782, %v3356, %v3262
      %v3389 = vsel %vm782, %v3357, %v3264
      %v3390 = vsel %vm782, %v3358, %v3266
      %v3391 = vsel %vm782, %v3359, %v3268
      %v3392 = vsel %vm782, %v3360, %v3270
      %v3393 = vsel %vm782, %v3361, %v3272
      %v3394 = vsel %vm782, %v3362, %v3274
      %v3395 = vsel %vm782, %v3363, %v3276
      %v3396 = vsel %vm782, %v3364, %v3278
      %v3397 = vsel %vm782, %v3365, %v3280
      %v3398 = vsel %vm782, %v3366, %v3282
      %v3399 = vsel %vm782, %v3367, %v3284
      %v3400 = vsel %vm782, %v3368, %v3286
      %v3401 = vsel %vm782, %v3369, %v3288
      %v3402 = vsel %vm782, %v3370, %v3290
      %v3403 = vsel %vm782, %v3371, %v3292
      %v3404 = vsel %vm782, %v3372, %v3294
      %v3405 = vsel %vm782, %v3373, %v3296
      %v3406 = vsel %vm782, %v3374, %v3298
      %v3407 = vsel %vm782, %v3375, %v3300
      %v3408 = vsel %vm782, %v3376, %v3302
      %v3409 = vsel %vm782, %v3377, %v3304
      %v3410 = vsel %vm782, %v3378, %v3306
      %v3411 = vsel %vm782, %v3379, %v3308
      %v3412 = vsel %vm782, %v3380, %v3310
      %v3413 = vsel %vm782, %v3381, %v3312
      %v3414 = vsel %vm782, %v3382, %v3314
      %v3415 = vsel %vm782, %v3383, %v3316
      %v3416 = vsel %vm782, %v3384, %v3318
      %v3417 = vsel %vm782, %v3385, %v3320
      %v3418 = vsel %vm782, %v3386, %v3322
      %v3419 = vld [vmem:[%s3] sm:$0xff]
      %v3420 = vld [vmem:[%s3 + $0x8] sm:$0xf]
      %v3422 = vsel %vm817, %v3387, 0
      %v3425 = vsel %vm817, %v3388, 0
      %v3428 = vsel %vm817, %v3389, 0
      %v3431 = vsel %vm817, %v3390, 0
      %v3434 = vsel %vm817, %v3391, 0
      %v3437 = vsel %vm817, %v3392, 0
      %v3440 = vsel %vm817, %v3393, 0
      %v3443 = vsel %vm817, %v3394, 0
      %v3446 = vsel %vm817, %v3395, 0
      %v3449 = vsel %vm817, %v3396, 0
      %v3452 = vsel %vm817, %v3397, 0
      %v3455 = vsel %vm817, %v3398, 0
      %v3458 = vsel %vm817, %v3399, 0
      %v3461 = vsel %vm817, %v3400, 0
      %v3464 = vsel %vm817, %v3401, 0
      %v3467 = vsel %vm817, %v3402, 0
      %v3470 = vsel %vm817, %v3403, 0
      %v3473 = vsel %vm817, %v3404, 0
      %v3476 = vsel %vm817, %v3405, 0
      %v3479 = vsel %vm817, %v3406, 0
      %v3482 = vsel %vm817, %v3407, 0
      %v3485 = vsel %vm817, %v3408, 0
      %v3488 = vsel %vm817, %v3409, 0
      %v3491 = vsel %vm817, %v3410, 0
      %v3494 = vsel %vm817, %v3411, 0
      %v3497 = vsel %vm817, %v3412, 0
      %v3500 = vsel %vm817, %v3413, 0
      %v3503 = vsel %vm817, %v3414, 0
      %v3506 = vsel %vm817, %v3415, 0
      %v3509 = vsel %vm817, %v3416, 0
      %v3512 = vsel %vm817, %v3417, 0
      %v3515 = vsel %vm817, %v3418, 0
      %v3518 = vsel %vm914, %v3420, 0
      %3520 = vmatprep.subr.mxu0 0.0
      %3521 = vmatpush1.msra.mxu0 %v3419
      %3522 = vmatprep.subr.mxu0 0.0
      %3523 = vmatpush1.msra.mxu0 %v3518
      %3524 = vmatprep.subr.mxu0 0.0
      %3525 = vmatpush1.msra.mxu0 0.0
      %3526 = vmatprep.subr.mxu0 0.0
      %3527 = vmatpush1.msra.mxu0 0.0
      %3528 = vmatprep.subr.mxu0 0.0
      %3529 = vmatpush1.msra.mxu0 0.0
      %3530 = vmatprep.subr.mxu0 0.0
      %3531 = vmatpush1.msra.mxu0 0.0
      %3532 = vmatprep.subr.mxu0 0.0
      %3533 = vmatpush1.msra.mxu0 0.0
      %3534 = vmatprep.subr.mxu0 0.0
      %3535 = vmatpush1.msra.mxu0 0.0
      %3536 = vmatprep.subr.mxu0 0.0
      %3537 = vmatpush1.msra.mxu0 0.0
      %3538 = vmatprep.subr.mxu0 0.0
      %3539 = vmatpush1.msra.mxu0 0.0
      %3540 = vmatprep.subr.mxu0 0.0
      %3541 = vmatpush1.msra.mxu0 0.0
      %3542 = vmatprep.subr.mxu0 0.0
      %3543 = vmatpush1.msra.mxu0 0.0
      %3544 = vmatprep.subr.mxu0 0.0
      %3545 = vmatpush1.msra.mxu0 0.0
      %3546 = vmatprep.subr.mxu0 0.0
      %3547 = vmatpush1.msra.mxu0 0.0
      %3548 = vmatprep.subr.mxu0 0.0
      %3549 = vmatpush1.msra.mxu0 0.0
      %3550 = vmatprep.subr.mxu0 0.0
      %3551 = vmatpush1.msra.mxu0 0.0
      %3552 = vmatprep.subr.mxu0 0.0
      %3553 = vmatpush1.msra.mxu0 0.0
      %3554 = vmatprep.subr.mxu0 0.0
      %3555 = vmatpush1.msra.mxu0 0.0
      %3556 = vmatprep.subr.mxu0 0.0
      %3557 = vmatpush1.msra.mxu0 0.0
      %3558 = vmatprep.subr.mxu0 0.0
      %3559 = vmatpush1.msra.mxu0 0.0
      %3560 = vmatprep.subr.mxu0 0.0
      %3561 = vmatpush1.msra.mxu0 0.0
      %3562 = vmatprep.subr.mxu0 0.0
      %3563 = vmatpush1.msra.mxu0 0.0
      %3564 = vmatprep.subr.mxu0 0.0
      %3565 = vmatpush1.msra.mxu0 0.0
      %3566 = vmatprep.subr.mxu0 0.0
      %3567 = vmatpush1.msra.mxu0 0.0
      %3568 = vmatprep.subr.mxu0 0.0
      %3569 = vmatpush1.msra.mxu0 0.0
      %3570 = vmatprep.subr.mxu0 0.0
      %3571 = vmatpush1.msra.mxu0 0.0
      %3572 = vmatprep.subr.mxu0 0.0
      %3573 = vmatpush1.msra.mxu0 0.0
      %3574 = vmatprep.subr.mxu0 0.0
      %3575 = vmatpush1.msra.mxu0 0.0
      %3576 = vmatprep.subr.mxu0 0.0
      %3577 = vmatpush1.msra.mxu0 0.0
      %3578 = vmatprep.subr.mxu0 0.0
      %3579 = vmatpush1.msra.mxu0 0.0
      %3580 = vmatprep.subr.mxu0 0.0
      %3581 = vmatpush1.msra.mxu0 0.0
      %3582 = vmatprep.subr.mxu0 0.0
      %3583 = vmatpush1.msra.mxu0 0.0
      %3584 = vmatprep.mubr.f32.mxu0 0.0
      %3585 = vmatmul.mubr.f32.gmra.mrb[0].mxu0 %v3422
      %v3586 = vpop.f32.mrb[0].mxu0
      %v3587 = vadd.f32 0.0, %v3586
      %v3588 = vpop.f32.mrb[0].mxu0
      %3589 = vmatprep.mubr.f32.mxu0 0.0
      %3590 = vmatmul.mubr.f32.gmra.mrb[0].mxu0 %v3425
      %v3591 = vpop.f32.mrb[0].mxu0
      %v3592 = vadd.f32 0.0, %v3591
      %v3593 = vpop.f32.mrb[0].mxu0
      %3594 = vmatprep.mubr.f32.mxu0 0.0
      %3595 = vmatmul.mubr.f32.gmra.mrb[0].mxu0 %v3428
      %v3596 = vpop.f32.mrb[0].mxu0
      %v3597 = vadd.f32 0.0, %v3596
      %v3598 = vpop.f32.mrb[0].mxu0
      %3599 = vmatprep.mubr.f32.mxu0 0.0
      %3600 = vmatmul.mubr.f32.gmra.mrb[0].mxu0 %v3431
      %v3601 = vpop.f32.mrb[0].mxu0
      %v3602 = vadd.f32 0.0, %v3601
      %v3603 = vpop.f32.mrb[0].mxu0
      %3604 = vmatprep.mubr.f32.mxu0 0.0
      %3605 = vmatmul.mubr.f32.gmra.mrb[0].mxu0 %v3434
      %v3606 = vpop.f32.mrb[0].mxu0
      %v3607 = vadd.f32 0.0, %v3606
      %v3608 = vpop.f32.mrb[0].mxu0
      %3609 = vmatprep.mubr.f32.mxu0 0.0
      %3610 = vmatmul.mubr.f32.gmra.mrb[0].mxu0 %v3437
      %v3611 = vpop.f32.mrb[0].mxu0
      %v3612 = vadd.f32 0.0, %v3611
      %v3613 = vpop.f32.mrb[0].mxu0
      %3614 = vmatprep.mubr.f32.mxu0 0.0
      %3615 = vmatmul.mubr.f32.gmra.mrb[0].mxu0 %v3440
      %v3616 = vpop.f32.mrb[0].mxu0
      %v3617 = vadd.f32 0.0, %v3616
      %v3618 = vpop.f32.mrb[0].mxu0
      %3619 = vmatprep.mubr.f32.mxu0 0.0
      %3620 = vmatmul.mubr.f32.gmra.mrb[0].mxu0 %v3443
      %v3621 = vpop.f32.mrb[0].mxu0
      %v3622 = vadd.f32 0.0, %v3621
      %v3623 = vpop.f32.mrb[0].mxu0
      %3624 = vmatprep.mubr.f32.mxu0 0.0
      %3625 = vmatmul.mubr.f32.gmra.mrb[0].mxu0 %v3446
      %v3626 = vpop.f32.mrb[0].mxu0
      %v3627 = vadd.f32 0.0, %v3626
      %v3628 = vpop.f32.mrb[0].mxu0
      %3629 = vmatprep.mubr.f32.mxu0 0.0
      %3630 = vmatmul.mubr.f32.gmra.mrb[0].mxu0 %v3449
      %v3631 = vpop.f32.mrb[0].mxu0
      %v3632 = vadd.f32 0.0, %v3631
      %v3633 = vpop.f32.mrb[0].mxu0
      %3634 = vmatprep.mubr.f32.mxu0 0.0
      %3635 = vmatmul.mubr.f32.gmra.mrb[0].mxu0 %v3452
      %v3636 = vpop.f32.mrb[0].mxu0
      %v3637 = vadd.f32 0.0, %v3636
      %v3638 = vpop.f32.mrb[0].mxu0
      %3639 = vmatprep.mubr.f32.mxu0 0.0
      %3640 = vmatmul.mubr.f32.gmra.mrb[0].mxu0 %v3455
      %v3641 = vpop.f32.mrb[0].mxu0
      %v3642 = vadd.f32 0.0, %v3641
      %v3643 = vpop.f32.mrb[0].mxu0
      %3644 = vmatprep.mubr.f32.mxu0 0.0
      %3645 = vmatmul.mubr.f32.gmra.mrb[0].mxu0 %v3458
      %v3646 = vpop.f32.mrb[0].mxu0
      %v3647 = vadd.f32 0.0, %v3646
      %v3648 = vpop.f32.mrb[0].mxu0
      %3649 = vmatprep.mubr.f32.mxu0 0.0
      %3650 = vmatmul.mubr.f32.gmra.mrb[0].mxu0 %v3461
      %v3651 = vpop.f32.mrb[0].mxu0
      %v3652 = vadd.f32 0.0, %v3651
      %v3653 = vpop.f32.mrb[0].mxu0
      %3654 = vmatprep.mubr.f32.mxu0 0.0
      %3655 = vmatmul.mubr.f32.gmra.mrb[0].mxu0 %v3464
      %v3656 = vpop.f32.mrb[0].mxu0
      %v3657 = vadd.f32 0.0, %v3656
      %v3658 = vpop.f32.mrb[0].mxu0
      %3659 = vmatprep.mubr.f32.mxu0 0.0
      %3660 = vmatmul.mubr.f32.gmra.mrb[0].mxu0 %v3467
      %v3661 = vpop.f32.mrb[0].mxu0
      %v3662 = vadd.f32 0.0, %v3661
      %v3663 = vpop.f32.mrb[0].mxu0
      %3664 = vmatprep.mubr.f32.mxu0 0.0
      %3665 = vmatmul.mubr.f32.gmra.mrb[0].mxu0 %v3470
      %v3666 = vpop.f32.mrb[0].mxu0
      %v3667 = vadd.f32 0.0, %v3666
      %v3668 = vpop.f32.mrb[0].mxu0
      %3669 = vmatprep.mubr.f32.mxu0 0.0
      %3670 = vmatmul.mubr.f32.gmra.mrb[0].mxu0 %v3473
      %v3671 = vpop.f32.mrb[0].mxu0
      %v3672 = vadd.f32 0.0, %v3671
      %v3673 = vpop.f32.mrb[0].mxu0
      %3674 = vmatprep.mubr.f32.mxu0 0.0
      %3675 = vmatmul.mubr.f32.gmra.mrb[0].mxu0 %v3476
      %v3676 = vpop.f32.mrb[0].mxu0
      %v3677 = vadd.f32 0.0, %v3676
      %v3678 = vpop.f32.mrb[0].mxu0
      %3679 = vmatprep.mubr.f32.mxu0 0.0
      %3680 = vmatmul.mubr.f32.gmra.mrb[0].mxu0 %v3479
      %v3681 = vpop.f32.mrb[0].mxu0
      %v3682 = vadd.f32 0.0, %v3681
      %v3683 = vpop.f32.mrb[0].mxu0
      %3684 = vmatprep.mubr.f32.mxu0 0.0
      %3685 = vmatmul.mubr.f32.gmra.mrb[0].mxu0 %v3482
      %v3686 = vpop.f32.mrb[0].mxu0
      %v3687 = vadd.f32 0.0, %v3686
      %v3688 = vpop.f32.mrb[0].mxu0
      %3689 = vmatprep.mubr.f32.mxu0 0.0
      %3690 = vmatmul.mubr.f32.gmra.mrb[0].mxu0 %v3485
      %v3691 = vpop.f32.mrb[0].mxu0
      %v3692 = vadd.f32 0.0, %v3691
      %v3693 = vpop.f32.mrb[0].mxu0
      %3694 = vmatprep.mubr.f32.mxu0 0.0
      %3695 = vmatmul.mubr.f32.gmra.mrb[0].mxu0 %v3488
      %v3696 = vpop.f32.mrb[0].mxu0
      %v3697 = vadd.f32 0.0, %v3696
      %v3698 = vpop.f32.mrb[0].mxu0
      %3699 = vmatprep.mubr.f32.mxu0 0.0
      %3700 = vmatmul.mubr.f32.gmra.mrb[0].mxu0 %v3491
      %v3701 = vpop.f32.mrb[0].mxu0
      %v3702 = vadd.f32 0.0, %v3701
      %v3703 = vpop.f32.mrb[0].mxu0
      %3704 = vmatprep.mubr.f32.mxu0 0.0
      %3705 = vmatmul.mubr.f32.gmra.mrb[0].mxu0 %v3494
      %v3706 = vpop.f32.mrb[0].mxu0
      %v3707 = vadd.f32 0.0, %v3706
      %v3708 = vpop.f32.mrb[0].mxu0
      %3709 = vmatprep.mubr.f32.mxu0 0.0
      %3710 = vmatmul.mubr.f32.gmra.mrb[0].mxu0 %v3497
      %v3711 = vpop.f32.mrb[0].mxu0
      %v3712 = vadd.f32 0.0, %v3711
      %v3713 = vpop.f32.mrb[0].mxu0
      %3714 = vmatprep.mubr.f32.mxu0 0.0
      %3715 = vmatmul.mubr.f32.gmra.mrb[0].mxu0 %v3500
      %v3716 = vpop.f32.mrb[0].mxu0
      %v3717 = vadd.f32 0.0, %v3716
      %v3718 = vpop.f32.mrb[0].mxu0
      %3719 = vmatprep.mubr.f32.mxu0 0.0
      %3720 = vmatmul.mubr.f32.gmra.mrb[0].mxu0 %v3503
      %v3721 = vpop.f32.mrb[0].mxu0
      %v3722 = vadd.f32 0.0, %v3721
      %v3723 = vpop.f32.mrb[0].mxu0
      %3724 = vmatprep.mubr.f32.mxu0 0.0
      %3725 = vmatmul.mubr.f32.gmra.mrb[0].mxu0 %v3506
      %v3726 = vpop.f32.mrb[0].mxu0
      %v3727 = vadd.f32 0.0, %v3726
      %v3728 = vpop.f32.mrb[0].mxu0
      %3729 = vmatprep.mubr.f32.mxu0 0.0
      %3730 = vmatmul.mubr.f32.gmra.mrb[0].mxu0 %v3509
      %v3731 = vpop.f32.mrb[0].mxu0
      %v3732 = vadd.f32 0.0, %v3731
      %v3733 = vpop.f32.mrb[0].mxu0
      %3734 = vmatprep.mubr.f32.mxu0 0.0
      %3735 = vmatmul.mubr.f32.gmra.mrb[0].mxu0 %v3512
      %v3736 = vpop.f32.mrb[0].mxu0
      %v3737 = vadd.f32 0.0, %v3736
      %v3738 = vpop.f32.mrb[0].mxu0
      %3739 = vmatprep.mubr.f32.mxu0 0.0
      %3740 = vmatmul.mubr.f32.gmra.mrb[0].mxu0 %v3515
      %v3741 = vpop.f32.mrb[0].mxu0
      %v3742 = vadd.f32 0.0, %v3741
      %v3743 = vpop.f32.mrb[0].mxu0
      %3744 = vdwg.mxu0
      %v3745 = vadd.f32 %v3000, %v3587
      %v3746 = vadd.f32 %v3000, %v3592
      %v3747 = vadd.f32 %v3000, %v3597
      %v3748 = vadd.f32 %v3000, %v3602
      %v3749 = vadd.f32 %v3000, %v3607
      %v3750 = vadd.f32 %v3000, %v3612
      %v3751 = vadd.f32 %v3000, %v3617
      %v3752 = vadd.f32 %v3000, %v3622
      %v3753 = vadd.f32 %v3000, %v3627
      %v3754 = vadd.f32 %v3000, %v3632
      %v3755 = vadd.f32 %v3000, %v3637
      %v3756 = vadd.f32 %v3000, %v3642
      %v3757 = vadd.f32 %v3000, %v3647
      %v3758 = vadd.f32 %v3000, %v3652
      %v3759 = vadd.f32 %v3000, %v3657
      %v3760 = vadd.f32 %v3000, %v3662
      %v3761 = vadd.f32 %v3000, %v3667
      %v3762 = vadd.f32 %v3000, %v3672
      %v3763 = vadd.f32 %v3000, %v3677
      %v3764 = vadd.f32 %v3000, %v3682
      %v3765 = vadd.f32 %v3000, %v3687
      %v3766 = vadd.f32 %v3000, %v3692
      %v3767 = vadd.f32 %v3000, %v3697
      %v3768 = vadd.f32 %v3000, %v3702
      %v3769 = vadd.f32 %v3000, %v3707
      %v3770 = vadd.f32 %v3000, %v3712
      %v3771 = vadd.f32 %v3000, %v3717
      %v3772 = vadd.f32 %v3000, %v3722
      %v3773 = vadd.f32 %v3000, %v3727
      %v3774 = vadd.f32 %v3000, %v3732
      %v3775 = vadd.f32 %v3000, %v3737
      %v3776 = vadd.f32 %v3000, %v3742
      %v3777 = vld [vmem:[#allocation3 + $0x8] sm:$0xff]
      %v3778 = vld [vmem:[#allocation3 + $0x10] sm:$0xff]
      %v3779 = vld [vmem:[#allocation3 + $0x28] sm:$0xff]
      %v3780 = vld [vmem:[#allocation3 + $0x30] sm:$0xff]
      %v3781 = vld [vmem:[#allocation3 + $0x48] sm:$0xff]
      %v3782 = vld [vmem:[#allocation3 + $0x50] sm:$0xff]
      %v3783 = vld [vmem:[#allocation3 + $0x68] sm:$0xff]
      %v3784 = vld [vmem:[#allocation3 + $0x70] sm:$0xff]
      %v3785 = vld [vmem:[#allocation3 + $0x88] sm:$0xff]
      %v3786 = vld [vmem:[#allocation3 + $0x90] sm:$0xff]
      %v3787 = vld [vmem:[#allocation3 + $0xa8] sm:$0xff]
      %v3788 = vld [vmem:[#allocation3 + $0xb0] sm:$0xff]
      %v3789 = vld [vmem:[#allocation3 + $0xc8] sm:$0xff]
      %v3790 = vld [vmem:[#allocation3 + $0xd0] sm:$0xff]
      %v3791 = vld [vmem:[#allocation3 + $0xe8] sm:$0xff]
      %v3792 = vld [vmem:[#allocation3 + $0xf0] sm:$0xff]
      %v3793 = vld [vmem:[#allocation3 + $0x108] sm:$0xff]
      %v3794 = vld [vmem:[#allocation3 + $0x110] sm:$0xff]
      %v3795 = vld [vmem:[#allocation3 + $0x128] sm:$0xff]
      %v3796 = vld [vmem:[#allocation3 + $0x130] sm:$0xff]
      %v3797 = vld [vmem:[#allocation3 + $0x148] sm:$0xff]
      %v3798 = vld [vmem:[#allocation3 + $0x150] sm:$0xff]
      %v3799 = vld [vmem:[#allocation3 + $0x168] sm:$0xff]
      %v3800 = vld [vmem:[#allocation3 + $0x170] sm:$0xff]
      %v3801 = vld [vmem:[#allocation3 + $0x188] sm:$0xff]
      %v3802 = vld [vmem:[#allocation3 + $0x190] sm:$0xff]
      %v3803 = vld [vmem:[#allocation3 + $0x1a8] sm:$0xff]
      %v3804 = vld [vmem:[#allocation3 + $0x1b0] sm:$0xff]
      %v3805 = vld [vmem:[#allocation3 + $0x1c8] sm:$0xff]
      %v3806 = vld [vmem:[#allocation3 + $0x1d0] sm:$0xff]
      %v3807 = vld [vmem:[#allocation3 + $0x1e8] sm:$0xff]
      %v3808 = vld [vmem:[#allocation3 + $0x1f0] sm:$0xff]
      %v3809 = vld [vmem:[%s2962 + $0x8] sm:$0xff]
      %v3810 = vld [vmem:[%s2962 + $0x10] sm:$0xff]
      %v3811 = vld [vmem:[%s2962 + $0x28] sm:$0xff]
      %v3812 = vld [vmem:[%s2962 + $0x30] sm:$0xff]
      %v3813 = vld [vmem:[%s2962 + $0x48] sm:$0xff]
      %v3814 = vld [vmem:[%s2962 + $0x50] sm:$0xff]
      %v3815 = vld [vmem:[%s2962 + $0x68] sm:$0xff]
      %v3816 = vld [vmem:[%s2962 + $0x70] sm:$0xff]
      %v3817 = vld [vmem:[%s2962 + $0x88] sm:$0xff]
      %v3818 = vld [vmem:[%s2962 + $0x90] sm:$0xff]
      %v3819 = vld [vmem:[%s2962 + $0xa8] sm:$0xff]
      %v3820 = vld [vmem:[%s2962 + $0xb0] sm:$0xff]
      %v3821 = vld [vmem:[%s2962 + $0xc8] sm:$0xff]
      %v3822 = vld [vmem:[%s2962 + $0xd0] sm:$0xff]
      %v3823 = vld [vmem:[%s2962 + $0xe8] sm:$0xff]
      %v3824 = vld [vmem:[%s2962 + $0xf0] sm:$0xff]
      %v3825 = vld [vmem:[%s2962 + $0x108] sm:$0xff]
      %v3826 = vld [vmem:[%s2962 + $0x110] sm:$0xff]
      %v3827 = vld [vmem:[%s2962 + $0x128] sm:$0xff]
      %v3828 = vld [vmem:[%s2962 + $0x130] sm:$0xff]
      %v3829 = vld [vmem:[%s2962 + $0x148] sm:$0xff]
      %v3830 = vld [vmem:[%s2962 + $0x150] sm:$0xff]
      %v3831 = vld [vmem:[%s2962 + $0x168] sm:$0xff]
      %v3832 = vld [vmem:[%s2962 + $0x170] sm:$0xff]
      %v3833 = vld [vmem:[%s2962 + $0x188] sm:$0xff]
      %v3834 = vld [vmem:[%s2962 + $0x190] sm:$0xff]
      %v3835 = vld [vmem:[%s2962 + $0x1a8] sm:$0xff]
      %v3836 = vld [vmem:[%s2962 + $0x1b0] sm:$0xff]
      %v3837 = vld [vmem:[%s2962 + $0x1c8] sm:$0xff]
      %v3838 = vld [vmem:[%s2962 + $0x1d0] sm:$0xff]
      %v3839 = vld [vmem:[%s2962 + $0x1e8] sm:$0xff]
      %v3840 = vld [vmem:[%s2962 + $0x1f0] sm:$0xff]
      %v3841 = vld [vmem:[%s3066 + $0x8] sm:$0xff]
      %v3842 = vld [vmem:[%s3066 + $0x10] sm:$0xff]
      %v3843 = vld [vmem:[%s3066 + $0x28] sm:$0xff]
      %v3844 = vld [vmem:[%s3066 + $0x30] sm:$0xff]
      %v3845 = vld [vmem:[%s3066 + $0x48] sm:$0xff]
      %v3846 = vld [vmem:[%s3066 + $0x50] sm:$0xff]
      %v3847 = vld [vmem:[%s3066 + $0x68] sm:$0xff]
      %v3848 = vld [vmem:[%s3066 + $0x70] sm:$0xff]
      %v3849 = vld [vmem:[%s3066 + $0x88] sm:$0xff]
      %v3850 = vld [vmem:[%s3066 + $0x90] sm:$0xff]
      %v3851 = vld [vmem:[%s3066 + $0xa8] sm:$0xff]
      %v3852 = vld [vmem:[%s3066 + $0xb0] sm:$0xff]
      %v3853 = vld [vmem:[%s3066 + $0xc8] sm:$0xff]
      %v3854 = vld [vmem:[%s3066 + $0xd0] sm:$0xff]
      %v3855 = vld [vmem:[%s3066 + $0xe8] sm:$0xff]
      %v3856 = vld [vmem:[%s3066 + $0xf0] sm:$0xff]
      %v3857 = vld [vmem:[%s3066 + $0x108] sm:$0xff]
      %v3858 = vld [vmem:[%s3066 + $0x110] sm:$0xff]
      %v3859 = vld [vmem:[%s3066 + $0x128] sm:$0xff]
      %v3860 = vld [vmem:[%s3066 + $0x130] sm:$0xff]
      %v3861 = vld [vmem:[%s3066 + $0x148] sm:$0xff]
      %v3862 = vld [vmem:[%s3066 + $0x150] sm:$0xff]
      %v3863 = vld [vmem:[%s3066 + $0x168] sm:$0xff]
      %v3864 = vld [vmem:[%s3066 + $0x170] sm:$0xff]
      %v3865 = vld [vmem:[%s3066 + $0x188] sm:$0xff]
      %v3866 = vld [vmem:[%s3066 + $0x190] sm:$0xff]
      %v3867 = vld [vmem:[%s3066 + $0x1a8] sm:$0xff]
      %v3868 = vld [vmem:[%s3066 + $0x1b0] sm:$0xff]
      %v3869 = vld [vmem:[%s3066 + $0x1c8] sm:$0xff]
      %v3870 = vld [vmem:[%s3066 + $0x1d0] sm:$0xff]
      %v3871 = vld [vmem:[%s3066 + $0x1e8] sm:$0xff]
      %v3872 = vld [vmem:[%s3066 + $0x1f0] sm:$0xff]
      %3905 = vrot.lane.b32.xlu0 %v3809, 4
      %v3906 = vpop.permute.xlu0 %3905
      %3907 = vrot.lane.b32.xlu0 %v3810, 4
      %v3908 = vpop.permute.xlu0 %3907
      %3909 = vrot.lane.b32.xlu0 %v3811, 4
      %v3910 = vpop.permute.xlu0 %3909
      %3911 = vrot.lane.b32.xlu0 %v3812, 4
      %v3912 = vpop.permute.xlu0 %3911
      %3913 = vrot.lane.b32.xlu0 %v3813, 4
      %v3914 = vpop.permute.xlu0 %3913
      %3915 = vrot.lane.b32.xlu0 %v3814, 4
      %v3916 = vpop.permute.xlu0 %3915
      %3917 = vrot.lane.b32.xlu0 %v3815, 4
      %v3918 = vpop.permute.xlu0 %3917
      %3919 = vrot.lane.b32.xlu0 %v3816, 4
      %v3920 = vpop.permute.xlu0 %3919
      %3921 = vrot.lane.b32.xlu0 %v3817, 4
      %v3922 = vpop.permute.xlu0 %3921
      %3923 = vrot.lane.b32.xlu0 %v3818, 4
      %v3924 = vpop.permute.xlu0 %3923
      %3925 = vrot.lane.b32.xlu0 %v3819, 4
      %v3926 = vpop.permute.xlu0 %3925
      %3927 = vrot.lane.b32.xlu0 %v3820, 4
      %v3928 = vpop.permute.xlu0 %3927
      %3929 = vrot.lane.b32.xlu0 %v3821, 4
      %v3930 = vpop.permute.xlu0 %3929
      %3931 = vrot.lane.b32.xlu0 %v3822, 4
      %v3932 = vpop.permute.xlu0 %3931
      %3933 = vrot.lane.b32.xlu0 %v3823, 4
      %v3934 = vpop.permute.xlu0 %3933
      %3935 = vrot.lane.b32.xlu0 %v3824, 4
      %v3936 = vpop.permute.xlu0 %3935
      %3937 = vrot.lane.b32.xlu0 %v3825, 4
      %v3938 = vpop.permute.xlu0 %3937
      %3939 = vrot.lane.b32.xlu0 %v3826, 4
      %v3940 = vpop.permute.xlu0 %3939
      %3941 = vrot.lane.b32.xlu0 %v3827, 4
      %v3942 = vpop.permute.xlu0 %3941
      %3943 = vrot.lane.b32.xlu0 %v3828, 4
      %v3944 = vpop.permute.xlu0 %3943
      %3945 = vrot.lane.b32.xlu0 %v3829, 4
      %v3946 = vpop.permute.xlu0 %3945
      %3947 = vrot.lane.b32.xlu0 %v3830, 4
      %v3948 = vpop.permute.xlu0 %3947
      %3949 = vrot.lane.b32.xlu0 %v3831, 4
      %v3950 = vpop.permute.xlu0 %3949
      %3951 = vrot.lane.b32.xlu0 %v3832, 4
      %v3952 = vpop.permute.xlu0 %3951
      %3953 = vrot.lane.b32.xlu0 %v3833, 4
      %v3954 = vpop.permute.xlu0 %3953
      %3955 = vrot.lane.b32.xlu0 %v3834, 4
      %v3956 = vpop.permute.xlu0 %3955
      %3957 = vrot.lane.b32.xlu0 %v3835, 4
      %v3958 = vpop.permute.xlu0 %3957
      %3959 = vrot.lane.b32.xlu0 %v3836, 4
      %v3960 = vpop.permute.xlu0 %3959
      %3961 = vrot.lane.b32.xlu0 %v3837, 4
      %v3962 = vpop.permute.xlu0 %3961
      %3963 = vrot.lane.b32.xlu0 %v3838, 4
      %v3964 = vpop.permute.xlu0 %3963
      %3965 = vrot.lane.b32.xlu0 %v3839, 4
      %v3966 = vpop.permute.xlu0 %3965
      %3967 = vrot.lane.b32.xlu0 %v3840, 4
      %v3968 = vpop.permute.xlu0 %3967
      %4033 = vrot.lane.b32.xlu0 %v3841, 8
      %v4034 = vpop.permute.xlu0 %4033
      %4035 = vrot.lane.b32.xlu0 %v3842, 8
      %v4036 = vpop.permute.xlu0 %4035
      %4037 = vrot.lane.b32.xlu0 %v3843, 8
      %v4038 = vpop.permute.xlu0 %4037
      %4039 = vrot.lane.b32.xlu0 %v3844, 8
      %v4040 = vpop.permute.xlu0 %4039
      %4041 = vrot.lane.b32.xlu0 %v3845, 8
      %v4042 = vpop.permute.xlu0 %4041
      %4043 = vrot.lane.b32.xlu0 %v3846, 8
      %v4044 = vpop.permute.xlu0 %4043
      %4045 = vrot.lane.b32.xlu0 %v3847, 8
      %v4046 = vpop.permute.xlu0 %4045
      %4047 = vrot.lane.b32.xlu0 %v3848, 8
      %v4048 = vpop.permute.xlu0 %4047
      %4049 = vrot.lane.b32.xlu0 %v3849, 8
      %v4050 = vpop.permute.xlu0 %4049
      %4051 = vrot.lane.b32.xlu0 %v3850, 8
      %v4052 = vpop.permute.xlu0 %4051
      %4053 = vrot.lane.b32.xlu0 %v3851, 8
      %v4054 = vpop.permute.xlu0 %4053
      %4055 = vrot.lane.b32.xlu0 %v3852, 8
      %v4056 = vpop.permute.xlu0 %4055
      %4057 = vrot.lane.b32.xlu0 %v3853, 8
      %v4058 = vpop.permute.xlu0 %4057
      %4059 = vrot.lane.b32.xlu0 %v3854, 8
      %v4060 = vpop.permute.xlu0 %4059
      %4061 = vrot.lane.b32.xlu0 %v3855, 8
      %v4062 = vpop.permute.xlu0 %4061
      %4063 = vrot.lane.b32.xlu0 %v3856, 8
      %v4064 = vpop.permute.xlu0 %4063
      %4065 = vrot.lane.b32.xlu0 %v3857, 8
      %v4066 = vpop.permute.xlu0 %4065
      %4067 = vrot.lane.b32.xlu0 %v3858, 8
      %v4068 = vpop.permute.xlu0 %4067
      %4069 = vrot.lane.b32.xlu0 %v3859, 8
      %v4070 = vpop.permute.xlu0 %4069
      %4071 = vrot.lane.b32.xlu0 %v3860, 8
      %v4072 = vpop.permute.xlu0 %4071
      %4073 = vrot.lane.b32.xlu0 %v3861, 8
      %v4074 = vpop.permute.xlu0 %4073
      %4075 = vrot.lane.b32.xlu0 %v3862, 8
      %v4076 = vpop.permute.xlu0 %4075
      %4077 = vrot.lane.b32.xlu0 %v3863, 8
      %v4078 = vpop.permute.xlu0 %4077
      %4079 = vrot.lane.b32.xlu0 %v3864, 8
      %v4080 = vpop.permute.xlu0 %4079
      %4081 = vrot.lane.b32.xlu0 %v3865, 8
      %v4082 = vpop.permute.xlu0 %4081
      %4083 = vrot.lane.b32.xlu0 %v3866, 8
      %v4084 = vpop.permute.xlu0 %4083
      %4085 = vrot.lane.b32.xlu0 %v3867, 8
      %v4086 = vpop.permute.xlu0 %4085
      %4087 = vrot.lane.b32.xlu0 %v3868, 8
      %v4088 = vpop.permute.xlu0 %4087
      %4089 = vrot.lane.b32.xlu0 %v3869, 8
      %v4090 = vpop.permute.xlu0 %4089
      %4091 = vrot.lane.b32.xlu0 %v3870, 8
      %v4092 = vpop.permute.xlu0 %4091
      %4093 = vrot.lane.b32.xlu0 %v3871, 8
      %v4094 = vpop.permute.xlu0 %4093
      %4095 = vrot.lane.b32.xlu0 %v3872, 8
      %v4096 = vpop.permute.xlu0 %4095
      %v4129 = vsel %vm279, %v3777, %v3906
      %v4130 = vsel %vm279, %v3778, %v3908
      %v4131 = vsel %vm279, %v3779, %v3910
      %v4132 = vsel %vm279, %v3780, %v3912
      %v4133 = vsel %vm279, %v3781, %v3914
      %v4134 = vsel %vm279, %v3782, %v3916
      %v4135 = vsel %vm279, %v3783, %v3918
      %v4136 = vsel %vm279, %v3784, %v3920
      %v4137 = vsel %vm279, %v3785, %v3922
      %v4138 = vsel %vm279, %v3786, %v3924
      %v4139 = vsel %vm279, %v3787, %v3926
      %v4140 = vsel %vm279, %v3788, %v3928
      %v4141 = vsel %vm279, %v3789, %v3930
      %v4142 = vsel %vm279, %v3790, %v3932
      %v4143 = vsel %vm279, %v3791, %v3934
      %v4144 = vsel %vm279, %v3792, %v3936
      %v4145 = vsel %vm279, %v3793, %v3938
      %v4146 = vsel %vm279, %v3794, %v3940
      %v4147 = vsel %vm279, %v3795, %v3942
      %v4148 = vsel %vm279, %v3796, %v3944
      %v4149 = vsel %vm279, %v3797, %v3946
      %v4150 = vsel %vm279, %v3798, %v3948
      %v4151 = vsel %vm279, %v3799, %v3950
      %v4152 = vsel %vm279, %v3800, %v3952
      %v4153 = vsel %vm279, %v3801, %v3954
      %v4154 = vsel %vm279, %v3802, %v3956
      %v4155 = vsel %vm279, %v3803, %v3958
      %v4156 = vsel %vm279, %v3804, %v3960
      %v4157 = vsel %vm279, %v3805, %v3962
      %v4158 = vsel %vm279, %v3806, %v3964
      %v4159 = vsel %vm279, %v3807, %v3966
      %v4160 = vsel %vm279, %v3808, %v3968
      %v4161 = vsel %vm782, %v4129, %v4034
      %v4162 = vsel %vm782, %v4130, %v4036
      %v4163 = vsel %vm782, %v4131, %v4038
      %v4164 = vsel %vm782, %v4132, %v4040
      %v4165 = vsel %vm782, %v4133, %v4042
      %v4166 = vsel %vm782, %v4134, %v4044
      %v4167 = vsel %vm782, %v4135, %v4046
      %v4168 = vsel %vm782, %v4136, %v4048
      %v4169 = vsel %vm782, %v4137, %v4050
      %v4170 = vsel %vm782, %v4138, %v4052
      %v4171 = vsel %vm782, %v4139, %v4054
      %v4172 = vsel %vm782, %v4140, %v4056
      %v4173 = vsel %vm782, %v4141, %v4058
      %v4174 = vsel %vm782, %v4142, %v4060
      %v4175 = vsel %vm782, %v4143, %v4062
      %v4176 = vsel %vm782, %v4144, %v4064
      %v4177 = vsel %vm782, %v4145, %v4066
      %v4178 = vsel %vm782, %v4146, %v4068
      %v4179 = vsel %vm782, %v4147, %v4070
      %v4180 = vsel %vm782, %v4148, %v4072
      %v4181 = vsel %vm782, %v4149, %v4074
      %v4182 = vsel %vm782, %v4150, %v4076
      %v4183 = vsel %vm782, %v4151, %v4078
      %v4184 = vsel %vm782, %v4152, %v4080
      %v4185 = vsel %vm782, %v4153, %v4082
      %v4186 = vsel %vm782, %v4154, %v4084
      %v4187 = vsel %vm782, %v4155, %v4086
      %v4188 = vsel %vm782, %v4156, %v4088
      %v4189 = vsel %vm782, %v4157, %v4090
      %v4190 = vsel %vm782, %v4158, %v4092
      %v4191 = vsel %vm782, %v4159, %v4094
      %v4192 = vsel %vm782, %v4160, %v4096
      %s4193 = scalar_lea.vmem %s3, 16
      %v4194 = vld [vmem:[%s4193] sm:$0xff]
      %v4195 = vld [vmem:[%s4193 + $0x8] sm:$0xf]
      %v4197 = vsel %vm817, %v4161, 0
      %v4200 = vsel %vm817, %v4162, 0
      %v4203 = vsel %vm817, %v4163, 0
      %v4206 = vsel %vm817, %v4164, 0
      %v4209 = vsel %vm817, %v4165, 0
      %v4212 = vsel %vm817, %v4166, 0
      %v4215 = vsel %vm817, %v4167, 0
      %v4218 = vsel %vm817, %v4168, 0
      %v4221 = vsel %vm817, %v4169, 0
      %v4224 = vsel %vm817, %v4170, 0
      %v4227 = vsel %vm817, %v4171, 0
      %v4230 = vsel %vm817, %v4172, 0
      %v4233 = vsel %vm817, %v4173, 0
      %v4236 = vsel %vm817, %v4174, 0
      %v4239 = vsel %vm817, %v4175, 0
      %v4242 = vsel %vm817, %v4176, 0
      %v4245 = vsel %vm817, %v4177, 0
      %v4248 = vsel %vm817, %v4178, 0
      %v4251 = vsel %vm817, %v4179, 0
      %v4254 = vsel %vm817, %v4180, 0
      %v4257 = vsel %vm817, %v4181, 0
      %v4260 = vsel %vm817, %v4182, 0
      %v4263 = vsel %vm817, %v4183, 0
      %v4266 = vsel %vm817, %v4184, 0
      %v4269 = vsel %vm817, %v4185, 0
      %v4272 = vsel %vm817, %v4186, 0
      %v4275 = vsel %vm817, %v4187, 0
      %v4278 = vsel %vm817, %v4188, 0
      %v4281 = vsel %vm817, %v4189, 0
      %v4284 = vsel %vm817, %v4190, 0
      %v4287 = vsel %vm817, %v4191, 0
      %v4290 = vsel %vm817, %v4192, 0
      %v4293 = vsel %vm914, %v4195, 0
      %4295 = vmatprep.subr.mxu0 0.0
      %4296 = vmatpush1.msra.mxu0 %v4194
      %4297 = vmatprep.subr.mxu0 0.0
      %4298 = vmatpush1.msra.mxu0 %v4293
      %4299 = vmatprep.subr.mxu0 0.0
      %4300 = vmatpush1.msra.mxu0 0.0
      %4301 = vmatprep.subr.mxu0 0.0
      %4302 = vmatpush1.msra.mxu0 0.0
      %4303 = vmatprep.subr.mxu0 0.0
      %4304 = vmatpush1.msra.mxu0 0.0
      %4305 = vmatprep.subr.mxu0 0.0
      %4306 = vmatpush1.msra.mxu0 0.0
      %4307 = vmatprep.subr.mxu0 0.0
      %4308 = vmatpush1.msra.mxu0 0.0
      %4309 = vmatprep.subr.mxu0 0.0
      %4310 = vmatpush1.msra.mxu0 0.0
      %4311 = vmatprep.subr.mxu0 0.0
      %4312 = vmatpush1.msra.mxu0 0.0
      %4313 = vmatprep.subr.mxu0 0.0
      %4314 = vmatpush1.msra.mxu0 0.0
      %4315 = vmatprep.subr.mxu0 0.0
      %4316 = vmatpush1.msra.mxu0 0.0
      %4317 = vmatprep.subr.mxu0 0.0
      %4318 = vmatpush1.msra.mxu0 0.0
      %4319 = vmatprep.subr.mxu0 0.0
      %4320 = vmatpush1.msra.mxu0 0.0
      %4321 = vmatprep.subr.mxu0 0.0
      %4322 = vmatpush1.msra.mxu0 0.0
      %4323 = vmatprep.subr.mxu0 0.0
      %4324 = vmatpush1.msra.mxu0 0.0
      %4325 = vmatprep.subr.mxu0 0.0
      %4326 = vmatpush1.msra.mxu0 0.0
      %4327 = vmatprep.subr.mxu0 0.0
      %4328 = vmatpush1.msra.mxu0 0.0
      %4329 = vmatprep.subr.mxu0 0.0
      %4330 = vmatpush1.msra.mxu0 0.0
      %4331 = vmatprep.subr.mxu0 0.0
      %4332 = vmatpush1.msra.mxu0 0.0
      %4333 = vmatprep.subr.mxu0 0.0
      %4334 = vmatpush1.msra.mxu0 0.0
      %4335 = vmatprep.subr.mxu0 0.0
      %4336 = vmatpush1.msra.mxu0 0.0
      %4337 = vmatprep.subr.mxu0 0.0
      %4338 = vmatpush1.msra.mxu0 0.0
      %4339 = vmatprep.subr.mxu0 0.0
      %4340 = vmatpush1.msra.mxu0 0.0
      %4341 = vmatprep.subr.mxu0 0.0
      %4342 = vmatpush1.msra.mxu0 0.0
      %4343 = vmatprep.subr.mxu0 0.0
      %4344 = vmatpush1.msra.mxu0 0.0
      %4345 = vmatprep.subr.mxu0 0.0
      %4346 = vmatpush1.msra.mxu0 0.0
      %4347 = vmatprep.subr.mxu0 0.0
      %4348 = vmatpush1.msra.mxu0 0.0
      %4349 = vmatprep.subr.mxu0 0.0
      %4350 = vmatpush1.msra.mxu0 0.0
      %4351 = vmatprep.subr.mxu0 0.0
      %4352 = vmatpush1.msra.mxu0 0.0
      %4353 = vmatprep.subr.mxu0 0.0
      %4354 = vmatpush1.msra.mxu0 0.0
      %4355 = vmatprep.subr.mxu0 0.0
      %4356 = vmatpush1.msra.mxu0 0.0
      %4357 = vmatprep.subr.mxu0 0.0
      %4358 = vmatpush1.msra.mxu0 0.0
      %4359 = vmatprep.mubr.f32.mxu0 0.0
      %4360 = vmatmul.mubr.f32.gmra.mrb[0].mxu0 %v4197
      %v4361 = vpop.f32.mrb[0].mxu0
      %v4362 = vadd.f32 0.0, %v4361
      %v4363 = vpop.f32.mrb[0].mxu0
      %4364 = vmatprep.mubr.f32.mxu0 0.0
      %4365 = vmatmul.mubr.f32.gmra.mrb[0].mxu0 %v4200
      %v4366 = vpop.f32.mrb[0].mxu0
      %v4367 = vadd.f32 0.0, %v4366
      %v4368 = vpop.f32.mrb[0].mxu0
      %4369 = vmatprep.mubr.f32.mxu0 0.0
      %4370 = vmatmul.mubr.f32.gmra.mrb[0].mxu0 %v4203
      %v4371 = vpop.f32.mrb[0].mxu0
      %v4372 = vadd.f32 0.0, %v4371
      %v4373 = vpop.f32.mrb[0].mxu0
      %4374 = vmatprep.mubr.f32.mxu0 0.0
      %4375 = vmatmul.mubr.f32.gmra.mrb[0].mxu0 %v4206
      %v4376 = vpop.f32.mrb[0].mxu0
      %v4377 = vadd.f32 0.0, %v4376
      %v4378 = vpop.f32.mrb[0].mxu0
      %4379 = vmatprep.mubr.f32.mxu0 0.0
      %4380 = vmatmul.mubr.f32.gmra.mrb[0].mxu0 %v4209
      %v4381 = vpop.f32.mrb[0].mxu0
      %v4382 = vadd.f32 0.0, %v4381
      %v4383 = vpop.f32.mrb[0].mxu0
      %4384 = vmatprep.mubr.f32.mxu0 0.0
      %4385 = vmatmul.mubr.f32.gmra.mrb[0].mxu0 %v4212
      %v4386 = vpop.f32.mrb[0].mxu0
      %v4387 = vadd.f32 0.0, %v4386
      %v4388 = vpop.f32.mrb[0].mxu0
      %4389 = vmatprep.mubr.f32.mxu0 0.0
      %4390 = vmatmul.mubr.f32.gmra.mrb[0].mxu0 %v4215
      %v4391 = vpop.f32.mrb[0].mxu0
      %v4392 = vadd.f32 0.0, %v4391
      %v4393 = vpop.f32.mrb[0].mxu0
      %4394 = vmatprep.mubr.f32.mxu0 0.0
      %4395 = vmatmul.mubr.f32.gmra.mrb[0].mxu0 %v4218
      %v4396 = vpop.f32.mrb[0].mxu0
      %v4397 = vadd.f32 0.0, %v4396
      %v4398 = vpop.f32.mrb[0].mxu0
      %4399 = vmatprep.mubr.f32.mxu0 0.0
      %4400 = vmatmul.mubr.f32.gmra.mrb[0].mxu0 %v4221
      %v4401 = vpop.f32.mrb[0].mxu0
      %v4402 = vadd.f32 0.0, %v4401
      %v4403 = vpop.f32.mrb[0].mxu0
      %4404 = vmatprep.mubr.f32.mxu0 0.0
      %4405 = vmatmul.mubr.f32.gmra.mrb[0].mxu0 %v4224
      %v4406 = vpop.f32.mrb[0].mxu0
      %v4407 = vadd.f32 0.0, %v4406
      %v4408 = vpop.f32.mrb[0].mxu0
      %4409 = vmatprep.mubr.f32.mxu0 0.0
      %4410 = vmatmul.mubr.f32.gmra.mrb[0].mxu0 %v4227
      %v4411 = vpop.f32.mrb[0].mxu0
      %v4412 = vadd.f32 0.0, %v4411
      %v4413 = vpop.f32.mrb[0].mxu0
      %4414 = vmatprep.mubr.f32.mxu0 0.0
      %4415 = vmatmul.mubr.f32.gmra.mrb[0].mxu0 %v4230
      %v4416 = vpop.f32.mrb[0].mxu0
      %v4417 = vadd.f32 0.0, %v4416
      %v4418 = vpop.f32.mrb[0].mxu0
      %4419 = vmatprep.mubr.f32.mxu0 0.0
      %4420 = vmatmul.mubr.f32.gmra.mrb[0].mxu0 %v4233
      %v4421 = vpop.f32.mrb[0].mxu0
      %v4422 = vadd.f32 0.0, %v4421
      %v4423 = vpop.f32.mrb[0].mxu0
      %4424 = vmatprep.mubr.f32.mxu0 0.0
      %4425 = vmatmul.mubr.f32.gmra.mrb[0].mxu0 %v4236
      %v4426 = vpop.f32.mrb[0].mxu0
      %v4427 = vadd.f32 0.0, %v4426
      %v4428 = vpop.f32.mrb[0].mxu0
      %4429 = vmatprep.mubr.f32.mxu0 0.0
      %4430 = vmatmul.mubr.f32.gmra.mrb[0].mxu0 %v4239
      %v4431 = vpop.f32.mrb[0].mxu0
      %v4432 = vadd.f32 0.0, %v4431
      %v4433 = vpop.f32.mrb[0].mxu0
      %4434 = vmatprep.mubr.f32.mxu0 0.0
      %4435 = vmatmul.mubr.f32.gmra.mrb[0].mxu0 %v4242
      %v4436 = vpop.f32.mrb[0].mxu0
      %v4437 = vadd.f32 0.0, %v4436
      %v4438 = vpop.f32.mrb[0].mxu0
      %4439 = vmatprep.mubr.f32.mxu0 0.0
      %4440 = vmatmul.mubr.f32.gmra.mrb[0].mxu0 %v4245
      %v4441 = vpop.f32.mrb[0].mxu0
      %v4442 = vadd.f32 0.0, %v4441
      %v4443 = vpop.f32.mrb[0].mxu0
      %4444 = vmatprep.mubr.f32.mxu0 0.0
      %4445 = vmatmul.mubr.f32.gmra.mrb[0].mxu0 %v4248
      %v4446 = vpop.f32.mrb[0].mxu0
      %v4447 = vadd.f32 0.0, %v4446
      %v4448 = vpop.f32.mrb[0].mxu0
      %4449 = vmatprep.mubr.f32.mxu0 0.0
      %4450 = vmatmul.mubr.f32.gmra.mrb[0].mxu0 %v4251
      %v4451 = vpop.f32.mrb[0].mxu0
      %v4452 = vadd.f32 0.0, %v4451
      %v4453 = vpop.f32.mrb[0].mxu0
      %4454 = vmatprep.mubr.f32.mxu0 0.0
      %4455 = vmatmul.mubr.f32.gmra.mrb[0].mxu0 %v4254
      %v4456 = vpop.f32.mrb[0].mxu0
      %v4457 = vadd.f32 0.0, %v4456
      %v4458 = vpop.f32.mrb[0].mxu0
      %4459 = vmatprep.mubr.f32.mxu0 0.0
      %4460 = vmatmul.mubr.f32.gmra.mrb[0].mxu0 %v4257
      %v4461 = vpop.f32.mrb[0].mxu0
      %v4462 = vadd.f32 0.0, %v4461
      %v4463 = vpop.f32.mrb[0].mxu0
      %4464 = vmatprep.mubr.f32.mxu0 0.0
      %4465 = vmatmul.mubr.f32.gmra.mrb[0].mxu0 %v4260
      %v4466 = vpop.f32.mrb[0].mxu0
      %v4467 = vadd.f32 0.0, %v4466
      %v4468 = vpop.f32.mrb[0].mxu0
      %4469 = vmatprep.mubr.f32.mxu0 0.0
      %4470 = vmatmul.mubr.f32.gmra.mrb[0].mxu0 %v4263
      %v4471 = vpop.f32.mrb[0].mxu0
      %v4472 = vadd.f32 0.0, %v4471
      %v4473 = vpop.f32.mrb[0].mxu0
      %4474 = vmatprep.mubr.f32.mxu0 0.0
      %4475 = vmatmul.mubr.f32.gmra.mrb[0].mxu0 %v4266
      %v4476 = vpop.f32.mrb[0].mxu0
      %v4477 = vadd.f32 0.0, %v4476
      %v4478 = vpop.f32.mrb[0].mxu0
      %4479 = vmatprep.mubr.f32.mxu0 0.0
      %4480 = vmatmul.mubr.f32.gmra.mrb[0].mxu0 %v4269
      %v4481 = vpop.f32.mrb[0].mxu0
      %v4482 = vadd.f32 0.0, %v4481
      %v4483 = vpop.f32.mrb[0].mxu0
      %4484 = vmatprep.mubr.f32.mxu0 0.0
      %4485 = vmatmul.mubr.f32.gmra.mrb[0].mxu0 %v4272
      %v4486 = vpop.f32.mrb[0].mxu0
      %v4487 = vadd.f32 0.0, %v4486
      %v4488 = vpop.f32.mrb[0].mxu0
      %4489 = vmatprep.mubr.f32.mxu0 0.0
      %4490 = vmatmul.mubr.f32.gmra.mrb[0].mxu0 %v4275
      %v4491 = vpop.f32.mrb[0].mxu0
      %v4492 = vadd.f32 0.0, %v4491
      %v4493 = vpop.f32.mrb[0].mxu0
      %4494 = vmatprep.mubr.f32.mxu0 0.0
      %4495 = vmatmul.mubr.f32.gmra.mrb[0].mxu0 %v4278
      %v4496 = vpop.f32.mrb[0].mxu0
      %v4497 = vadd.f32 0.0, %v4496
      %v4498 = vpop.f32.mrb[0].mxu0
      %4499 = vmatprep.mubr.f32.mxu0 0.0
      %4500 = vmatmul.mubr.f32.gmra.mrb[0].mxu0 %v4281
      %v4501 = vpop.f32.mrb[0].mxu0
      %v4502 = vadd.f32 0.0, %v4501
      %v4503 = vpop.f32.mrb[0].mxu0
      %4504 = vmatprep.mubr.f32.mxu0 0.0
      %4505 = vmatmul.mubr.f32.gmra.mrb[0].mxu0 %v4284
      %v4506 = vpop.f32.mrb[0].mxu0
      %v4507 = vadd.f32 0.0, %v4506
      %v4508 = vpop.f32.mrb[0].mxu0
      %4509 = vmatprep.mubr.f32.mxu0 0.0
      %4510 = vmatmul.mubr.f32.gmra.mrb[0].mxu0 %v4287
      %v4511 = vpop.f32.mrb[0].mxu0
      %v4512 = vadd.f32 0.0, %v4511
      %v4513 = vpop.f32.mrb[0].mxu0
      %4514 = vmatprep.mubr.f32.mxu0 0.0
      %4515 = vmatmul.mubr.f32.gmra.mrb[0].mxu0 %v4290
      %v4516 = vpop.f32.mrb[0].mxu0
      %v4517 = vadd.f32 0.0, %v4516
      %v4518 = vpop.f32.mrb[0].mxu0
      %4519 = vdwg.mxu0
      %v4520 = vadd.f32 %v3745, %v4362
      %v4521 = vadd.f32 %v3746, %v4367
      %v4522 = vadd.f32 %v3747, %v4372
      %v4523 = vadd.f32 %v3748, %v4377
      %v4524 = vadd.f32 %v3749, %v4382
      %v4525 = vadd.f32 %v3750, %v4387
      %v4526 = vadd.f32 %v3751, %v4392
      %v4527 = vadd.f32 %v3752, %v4397
      %v4528 = vadd.f32 %v3753, %v4402
      %v4529 = vadd.f32 %v3754, %v4407
      %v4530 = vadd.f32 %v3755, %v4412
      %v4531 = vadd.f32 %v3756, %v4417
      %v4532 = vadd.f32 %v3757, %v4422
      %v4533 = vadd.f32 %v3758, %v4427
      %v4534 = vadd.f32 %v3759, %v4432
      %v4535 = vadd.f32 %v3760, %v4437
      %v4536 = vadd.f32 %v3761, %v4442
      %v4537 = vadd.f32 %v3762, %v4447
      %v4538 = vadd.f32 %v3763, %v4452
      %v4539 = vadd.f32 %v3764, %v4457
      %v4540 = vadd.f32 %v3765, %v4462
      %v4541 = vadd.f32 %v3766, %v4467
      %v4542 = vadd.f32 %v3767, %v4472
      %v4543 = vadd.f32 %v3768, %v4477
      %v4544 = vadd.f32 %v3769, %v4482
      %v4545 = vadd.f32 %v3770, %v4487
      %v4546 = vadd.f32 %v3771, %v4492
      %v4547 = vadd.f32 %v3772, %v4497
      %v4548 = vadd.f32 %v3773, %v4502
      %v4549 = vadd.f32 %v3774, %v4507
      %v4550 = vadd.f32 %v3775, %v4512
      %v4551 = vadd.f32 %v3776, %v4517
      %v4552 = vld [vmem:[#allocation3 + $0x9] sm:$0xff]
      %v4553 = vld [vmem:[#allocation3 + $0x11] sm:$0xff]
      %v4554 = vld [vmem:[#allocation3 + $0x29] sm:$0xff]
      %v4555 = vld [vmem:[#allocation3 + $0x31] sm:$0xff]
      %v4556 = vld [vmem:[#allocation3 + $0x49] sm:$0xff]
      %v4557 = vld [vmem:[#allocation3 + $0x51] sm:$0xff]
      %v4558 = vld [vmem:[#allocation3 + $0x69] sm:$0xff]
      %v4559 = vld [vmem:[#allocation3 + $0x71] sm:$0xff]
      %v4560 = vld [vmem:[#allocation3 + $0x89] sm:$0xff]
      %v4561 = vld [vmem:[#allocation3 + $0x91] sm:$0xff]
      %v4562 = vld [vmem:[#allocation3 + $0xa9] sm:$0xff]
      %v4563 = vld [vmem:[#allocation3 + $0xb1] sm:$0xff]
      %v4564 = vld [vmem:[#allocation3 + $0xc9] sm:$0xff]
      %v4565 = vld [vmem:[#allocation3 + $0xd1] sm:$0xff]
      %v4566 = vld [vmem:[#allocation3 + $0xe9] sm:$0xff]
      %v4567 = vld [vmem:[#allocation3 + $0xf1] sm:$0xff]
      %v4568 = vld [vmem:[#allocation3 + $0x109] sm:$0xff]
      %v4569 = vld [vmem:[#allocation3 + $0x111] sm:$0xff]
      %v4570 = vld [vmem:[#allocation3 + $0x129] sm:$0xff]
      %v4571 = vld [vmem:[#allocation3 + $0x131] sm:$0xff]
      %v4572 = vld [vmem:[#allocation3 + $0x149] sm:$0xff]
      %v4573 = vld [vmem:[#allocation3 + $0x151] sm:$0xff]
      %v4574 = vld [vmem:[#allocation3 + $0x169] sm:$0xff]
      %v4575 = vld [vmem:[#allocation3 + $0x171] sm:$0xff]
      %v4576 = vld [vmem:[#allocation3 + $0x189] sm:$0xff]
      %v4577 = vld [vmem:[#allocation3 + $0x191] sm:$0xff]
      %v4578 = vld [vmem:[#allocation3 + $0x1a9] sm:$0xff]
      %v4579 = vld [vmem:[#allocation3 + $0x1b1] sm:$0xff]
      %v4580 = vld [vmem:[#allocation3 + $0x1c9] sm:$0xff]
      %v4581 = vld [vmem:[#allocation3 + $0x1d1] sm:$0xff]
      %v4582 = vld [vmem:[#allocation3 + $0x1e9] sm:$0xff]
      %v4583 = vld [vmem:[#allocation3 + $0x1f1] sm:$0xff]
      %v4584 = vld [vmem:[%s2962 + $0x9] sm:$0xff]
      %v4585 = vld [vmem:[%s2962 + $0x11] sm:$0xff]
      %v4586 = vld [vmem:[%s2962 + $0x29] sm:$0xff]
      %v4587 = vld [vmem:[%s2962 + $0x31] sm:$0xff]
      %v4588 = vld [vmem:[%s2962 + $0x49] sm:$0xff]
      %v4589 = vld [vmem:[%s2962 + $0x51] sm:$0xff]
      %v4590 = vld [vmem:[%s2962 + $0x69] sm:$0xff]
      %v4591 = vld [vmem:[%s2962 + $0x71] sm:$0xff]
      %v4592 = vld [vmem:[%s2962 + $0x89] sm:$0xff]
      %v4593 = vld [vmem:[%s2962 + $0x91] sm:$0xff]
      %v4594 = vld [vmem:[%s2962 + $0xa9] sm:$0xff]
      %v4595 = vld [vmem:[%s2962 + $0xb1] sm:$0xff]
      %v4596 = vld [vmem:[%s2962 + $0xc9] sm:$0xff]
      %v4597 = vld [vmem:[%s2962 + $0xd1] sm:$0xff]
      %v4598 = vld [vmem:[%s2962 + $0xe9] sm:$0xff]
      %v4599 = vld [vmem:[%s2962 + $0xf1] sm:$0xff]
      %v4600 = vld [vmem:[%s2962 + $0x109] sm:$0xff]
      %v4601 = vld [vmem:[%s2962 + $0x111] sm:$0xff]
      %v4602 = vld [vmem:[%s2962 + $0x129] sm:$0xff]
      %v4603 = vld [vmem:[%s2962 + $0x131] sm:$0xff]
      %v4604 = vld [vmem:[%s2962 + $0x149] sm:$0xff]
      %v4605 = vld [vmem:[%s2962 + $0x151] sm:$0xff]
      %v4606 = vld [vmem:[%s2962 + $0x169] sm:$0xff]
      %v4607 = vld [vmem:[%s2962 + $0x171] sm:$0xff]
      %v4608 = vld [vmem:[%s2962 + $0x189] sm:$0xff]
      %v4609 = vld [vmem:[%s2962 + $0x191] sm:$0xff]
      %v4610 = vld [vmem:[%s2962 + $0x1a9] sm:$0xff]
      %v4611 = vld [vmem:[%s2962 + $0x1b1] sm:$0xff]
      %v4612 = vld [vmem:[%s2962 + $0x1c9] sm:$0xff]
      %v4613 = vld [vmem:[%s2962 + $0x1d1] sm:$0xff]
      %v4614 = vld [vmem:[%s2962 + $0x1e9] sm:$0xff]
      %v4615 = vld [vmem:[%s2962 + $0x1f1] sm:$0xff]
      %v4616 = vld [vmem:[%s3066 + $0x9] sm:$0xff]
      %v4617 = vld [vmem:[%s3066 + $0x11] sm:$0xff]
      %v4618 = vld [vmem:[%s3066 + $0x29] sm:$0xff]
      %v4619 = vld [vmem:[%s3066 + $0x31] sm:$0xff]
      %v4620 = vld [vmem:[%s3066 + $0x49] sm:$0xff]
      %v4621 = vld [vmem:[%s3066 + $0x51] sm:$0xff]
      %v4622 = vld [vmem:[%s3066 + $0x69] sm:$0xff]
      %v4623 = vld [vmem:[%s3066 + $0x71] sm:$0xff]
      %v4624 = vld [vmem:[%s3066 + $0x89] sm:$0xff]
      %v4625 = vld [vmem:[%s3066 + $0x91] sm:$0xff]
      %v4626 = vld [vmem:[%s3066 + $0xa9] sm:$0xff]
      %v4627 = vld [vmem:[%s3066 + $0xb1] sm:$0xff]
      %v4628 = vld [vmem:[%s3066 + $0xc9] sm:$0xff]
      %v4629 = vld [vmem:[%s3066 + $0xd1] sm:$0xff]
      %v4630 = vld [vmem:[%s3066 + $0xe9] sm:$0xff]
      %v4631 = vld [vmem:[%s3066 + $0xf1] sm:$0xff]
      %v4632 = vld [vmem:[%s3066 + $0x109] sm:$0xff]
      %v4633 = vld [vmem:[%s3066 + $0x111] sm:$0xff]
      %v4634 = vld [vmem:[%s3066 + $0x129] sm:$0xff]
      %v4635 = vld [vmem:[%s3066 + $0x131] sm:$0xff]
      %v4636 = vld [vmem:[%s3066 + $0x149] sm:$0xff]
      %v4637 = vld [vmem:[%s3066 + $0x151] sm:$0xff]
      %v4638 = vld [vmem:[%s3066 + $0x169] sm:$0xff]
      %v4639 = vld [vmem:[%s3066 + $0x171] sm:$0xff]
      %v4640 = vld [vmem:[%s3066 + $0x189] sm:$0xff]
      %v4641 = vld [vmem:[%s3066 + $0x191] sm:$0xff]
      %v4642 = vld [vmem:[%s3066 + $0x1a9] sm:$0xff]
      %v4643 = vld [vmem:[%s3066 + $0x1b1] sm:$0xff]
      %v4644 = vld [vmem:[%s3066 + $0x1c9] sm:$0xff]
      %v4645 = vld [vmem:[%s3066 + $0x1d1] sm:$0xff]
      %v4646 = vld [vmem:[%s3066 + $0x1e9] sm:$0xff]
      %v4647 = vld [vmem:[%s3066 + $0x1f1] sm:$0xff]
      %4680 = vrot.lane.b32.xlu0 %v4584, 4
      %v4681 = vpop.permute.xlu0 %4680
      %4682 = vrot.lane.b32.xlu0 %v4585, 4
      %v4683 = vpop.permute.xlu0 %4682
      %4684 = vrot.lane.b32.xlu0 %v4586, 4
      %v4685 = vpop.permute.xlu0 %4684
      %4686 = vrot.lane.b32.xlu0 %v4587, 4
      %v4687 = vpop.permute.xlu0 %4686
      %4688 = vrot.lane.b32.xlu0 %v4588, 4
      %v4689 = vpop.permute.xlu0 %4688
      %4690 = vrot.lane.b32.xlu0 %v4589, 4
      %v4691 = vpop.permute.xlu0 %4690
      %4692 = vrot.lane.b32.xlu0 %v4590, 4
      %v4693 = vpop.permute.xlu0 %4692
      %4694 = vrot.lane.b32.xlu0 %v4591, 4
      %v4695 = vpop.permute.xlu0 %4694
      %4696 = vrot.lane.b32.xlu0 %v4592, 4
      %v4697 = vpop.permute.xlu0 %4696
      %4698 = vrot.lane.b32.xlu0 %v4593, 4
      %v4699 = vpop.permute.xlu0 %4698
      %4700 = vrot.lane.b32.xlu0 %v4594, 4
      %v4701 = vpop.permute.xlu0 %4700
      %4702 = vrot.lane.b32.xlu0 %v4595, 4
      %v4703 = vpop.permute.xlu0 %4702
      %4704 = vrot.lane.b32.xlu0 %v4596, 4
      %v4705 = vpop.permute.xlu0 %4704
      %4706 = vrot.lane.b32.xlu0 %v4597, 4
      %v4707 = vpop.permute.xlu0 %4706
      %4708 = vrot.lane.b32.xlu0 %v4598, 4
      %v4709 = vpop.permute.xlu0 %4708
      %4710 = vrot.lane.b32.xlu0 %v4599, 4
      %v4711 = vpop.permute.xlu0 %4710
      %4712 = vrot.lane.b32.xlu0 %v4600, 4
      %v4713 = vpop.permute.xlu0 %4712
      %4714 = vrot.lane.b32.xlu0 %v4601, 4
      %v4715 = vpop.permute.xlu0 %4714
      %4716 = vrot.lane.b32.xlu0 %v4602, 4
      %v4717 = vpop.permute.xlu0 %4716
      %4718 = vrot.lane.b32.xlu0 %v4603, 4
      %v4719 = vpop.permute.xlu0 %4718
      %4720 = vrot.lane.b32.xlu0 %v4604, 4
      %v4721 = vpop.permute.xlu0 %4720
      %4722 = vrot.lane.b32.xlu0 %v4605, 4
      %v4723 = vpop.permute.xlu0 %4722
      %4724 = vrot.lane.b32.xlu0 %v4606, 4
      %v4725 = vpop.permute.xlu0 %4724
      %4726 = vrot.lane.b32.xlu0 %v4607, 4
      %v4727 = vpop.permute.xlu0 %4726
      %4728 = vrot.lane.b32.xlu0 %v4608, 4
      %v4729 = vpop.permute.xlu0 %4728
      %4730 = vrot.lane.b32.xlu0 %v4609, 4
      %v4731 = vpop.permute.xlu0 %4730
      %4732 = vrot.lane.b32.xlu0 %v4610, 4
      %v4733 = vpop.permute.xlu0 %4732
      %4734 = vrot.lane.b32.xlu0 %v4611, 4
      %v4735 = vpop.permute.xlu0 %4734
      %4736 = vrot.lane.b32.xlu0 %v4612, 4
      %v4737 = vpop.permute.xlu0 %4736
      %4738 = vrot.lane.b32.xlu0 %v4613, 4
      %v4739 = vpop.permute.xlu0 %4738
      %4740 = vrot.lane.b32.xlu0 %v4614, 4
      %v4741 = vpop.permute.xlu0 %4740
      %4742 = vrot.lane.b32.xlu0 %v4615, 4
      %v4743 = vpop.permute.xlu0 %4742
      %4808 = vrot.lane.b32.xlu0 %v4616, 8
      %v4809 = vpop.permute.xlu0 %4808
      %4810 = vrot.lane.b32.xlu0 %v4617, 8
      %v4811 = vpop.permute.xlu0 %4810
      %4812 = vrot.lane.b32.xlu0 %v4618, 8
      %v4813 = vpop.permute.xlu0 %4812
      %4814 = vrot.lane.b32.xlu0 %v4619, 8
      %v4815 = vpop.permute.xlu0 %4814
      %4816 = vrot.lane.b32.xlu0 %v4620, 8
      %v4817 = vpop.permute.xlu0 %4816
      %4818 = vrot.lane.b32.xlu0 %v4621, 8
      %v4819 = vpop.permute.xlu0 %4818
      %4820 = vrot.lane.b32.xlu0 %v4622, 8
      %v4821 = vpop.permute.xlu0 %4820
      %4822 = vrot.lane.b32.xlu0 %v4623, 8
      %v4823 = vpop.permute.xlu0 %4822
      %4824 = vrot.lane.b32.xlu0 %v4624, 8
      %v4825 = vpop.permute.xlu0 %4824
      %4826 = vrot.lane.b32.xlu0 %v4625, 8
      %v4827 = vpop.permute.xlu0 %4826
      %4828 = vrot.lane.b32.xlu0 %v4626, 8
      %v4829 = vpop.permute.xlu0 %4828
      %4830 = vrot.lane.b32.xlu0 %v4627, 8
      %v4831 = vpop.permute.xlu0 %4830
      %4832 = vrot.lane.b32.xlu0 %v4628, 8
      %v4833 = vpop.permute.xlu0 %4832
      %4834 = vrot.lane.b32.xlu0 %v4629, 8
      %v4835 = vpop.permute.xlu0 %4834
      %4836 = vrot.lane.b32.xlu0 %v4630, 8
      %v4837 = vpop.permute.xlu0 %4836
      %4838 = vrot.lane.b32.xlu0 %v4631, 8
      %v4839 = vpop.permute.xlu0 %4838
      %4840 = vrot.lane.b32.xlu0 %v4632, 8
      %v4841 = vpop.permute.xlu0 %4840
      %4842 = vrot.lane.b32.xlu0 %v4633, 8
      %v4843 = vpop.permute.xlu0 %4842
      %4844 = vrot.lane.b32.xlu0 %v4634, 8
      %v4845 = vpop.permute.xlu0 %4844
      %4846 = vrot.lane.b32.xlu0 %v4635, 8
      %v4847 = vpop.permute.xlu0 %4846
      %4848 = vrot.lane.b32.xlu0 %v4636, 8
      %v4849 = vpop.permute.xlu0 %4848
      %4850 = vrot.lane.b32.xlu0 %v4637, 8
      %v4851 = vpop.permute.xlu0 %4850
      %4852 = vrot.lane.b32.xlu0 %v4638, 8
      %v4853 = vpop.permute.xlu0 %4852
      %4854 = vrot.lane.b32.xlu0 %v4639, 8
      %v4855 = vpop.permute.xlu0 %4854
      %4856 = vrot.lane.b32.xlu0 %v4640, 8
      %v4857 = vpop.permute.xlu0 %4856
      %4858 = vrot.lane.b32.xlu0 %v4641, 8
      %v4859 = vpop.permute.xlu0 %4858
      %4860 = vrot.lane.b32.xlu0 %v4642, 8
      %v4861 = vpop.permute.xlu0 %4860
      %4862 = vrot.lane.b32.xlu0 %v4643, 8
      %v4863 = vpop.permute.xlu0 %4862
      %4864 = vrot.lane.b32.xlu0 %v4644, 8
      %v4865 = vpop.permute.xlu0 %4864
      %4866 = vrot.lane.b32.xlu0 %v4645, 8
      %v4867 = vpop.permute.xlu0 %4866
      %4868 = vrot.lane.b32.xlu0 %v4646, 8
      %v4869 = vpop.permute.xlu0 %4868
      %4870 = vrot.lane.b32.xlu0 %v4647, 8
      %v4871 = vpop.permute.xlu0 %4870
      %v4904 = vsel %vm279, %v4552, %v4681
      %v4905 = vsel %vm279, %v4553, %v4683
      %v4906 = vsel %vm279, %v4554, %v4685
      %v4907 = vsel %vm279, %v4555, %v4687
      %v4908 = vsel %vm279, %v4556, %v4689
      %v4909 = vsel %vm279, %v4557, %v4691
      %v4910 = vsel %vm279, %v4558, %v4693
      %v4911 = vsel %vm279, %v4559, %v4695
      %v4912 = vsel %vm279, %v4560, %v4697
      %v4913 = vsel %vm279, %v4561, %v4699
      %v4914 = vsel %vm279, %v4562, %v4701
      %v4915 = vsel %vm279, %v4563, %v4703
      %v4916 = vsel %vm279, %v4564, %v4705
      %v4917 = vsel %vm279, %v4565, %v4707
      %v4918 = vsel %vm279, %v4566, %v4709
      %v4919 = vsel %vm279, %v4567, %v4711
      %v4920 = vsel %vm279, %v4568, %v4713
      %v4921 = vsel %vm279, %v4569, %v4715
      %v4922 = vsel %vm279, %v4570, %v4717
      %v4923 = vsel %vm279, %v4571, %v4719
      %v4924 = vsel %vm279, %v4572, %v4721
      %v4925 = vsel %vm279, %v4573, %v4723
      %v4926 = vsel %vm279, %v4574, %v4725
      %v4927 = vsel %vm279, %v4575, %v4727
      %v4928 = vsel %vm279, %v4576, %v4729
      %v4929 = vsel %vm279, %v4577, %v4731
      %v4930 = vsel %vm279, %v4578, %v4733
      %v4931 = vsel %vm279, %v4579, %v4735
      %v4932 = vsel %vm279, %v4580, %v4737
      %v4933 = vsel %vm279, %v4581, %v4739
      %v4934 = vsel %vm279, %v4582, %v4741
      %v4935 = vsel %vm279, %v4583, %v4743
      %v4936 = vsel %vm782, %v4904, %v4809
      %v4937 = vsel %vm782, %v4905, %v4811
      %v4938 = vsel %vm782, %v4906, %v4813
      %v4939 = vsel %vm782, %v4907, %v4815
      %v4940 = vsel %vm782, %v4908, %v4817
      %v4941 = vsel %vm782, %v4909, %v4819
      %v4942 = vsel %vm782, %v4910, %v4821
      %v4943 = vsel %vm782, %v4911, %v4823
      %v4944 = vsel %vm782, %v4912, %v4825
      %v4945 = vsel %vm782, %v4913, %v4827
      %v4946 = vsel %vm782, %v4914, %v4829
      %v4947 = vsel %vm782, %v4915, %v4831
      %v4948 = vsel %vm782, %v4916, %v4833
      %v4949 = vsel %vm782, %v4917, %v4835
      %v4950 = vsel %vm782, %v4918, %v4837
      %v4951 = vsel %vm782, %v4919, %v4839
      %v4952 = vsel %vm782, %v4920, %v4841
      %v4953 = vsel %vm782, %v4921, %v4843
      %v4954 = vsel %vm782, %v4922, %v4845
      %v4955 = vsel %vm782, %v4923, %v4847
      %v4956 = vsel %vm782, %v4924, %v4849
      %v4957 = vsel %vm782, %v4925, %v4851
      %v4958 = vsel %vm782, %v4926, %v4853
      %v4959 = vsel %vm782, %v4927, %v4855
      %v4960 = vsel %vm782, %v4928, %v4857
      %v4961 = vsel %vm782, %v4929, %v4859
      %v4962 = vsel %vm782, %v4930, %v4861
      %v4963 = vsel %vm782, %v4931, %v4863
      %v4964 = vsel %vm782, %v4932, %v4865
      %v4965 = vsel %vm782, %v4933, %v4867
      %v4966 = vsel %vm782, %v4934, %v4869
      %v4967 = vsel %vm782, %v4935, %v4871
      %s4968 = scalar_lea.vmem %s3, 32
      %v4969 = vld [vmem:[%s4968] sm:$0xff]
      %v4970 = vld [vmem:[%s4968 + $0x8] sm:$0xf]
      %v4972 = vsel %vm817, %v4936, 0
      %v4975 = vsel %vm817, %v4937, 0
      %v4978 = vsel %vm817, %v4938, 0
      %v4981 = vsel %vm817, %v4939, 0
      %v4984 = vsel %vm817, %v4940, 0
      %v4987 = vsel %vm817, %v4941, 0
      %v4990 = vsel %vm817, %v4942, 0
      %v4993 = vsel %vm817, %v4943, 0
      %v4996 = vsel %vm817, %v4944, 0
      %v4999 = vsel %vm817, %v4945, 0
      %v5002 = vsel %vm817, %v4946, 0
      %v5005 = vsel %vm817, %v4947, 0
      %v5008 = vsel %vm817, %v4948, 0
      %v5011 = vsel %vm817, %v4949, 0
      %v5014 = vsel %vm817, %v4950, 0
      %v5017 = vsel %vm817, %v4951, 0
      %v5020 = vsel %vm817, %v4952, 0
      %v5023 = vsel %vm817, %v4953, 0
      %v5026 = vsel %vm817, %v4954, 0
      %v5029 = vsel %vm817, %v4955, 0
      %v5032 = vsel %vm817, %v4956, 0
      %v5035 = vsel %vm817, %v4957, 0
      %v5038 = vsel %vm817, %v4958, 0
      %v5041 = vsel %vm817, %v4959, 0
      %v5044 = vsel %vm817, %v4960, 0
      %v5047 = vsel %vm817, %v4961, 0
      %v5050 = vsel %vm817, %v4962, 0
      %v5053 = vsel %vm817, %v4963, 0
      %v5056 = vsel %vm817, %v4964, 0
      %v5059 = vsel %vm817, %v4965, 0
      %v5062 = vsel %vm817, %v4966, 0
      %v5065 = vsel %vm817, %v4967, 0
      %v5068 = vsel %vm914, %v4970, 0
      %5070 = vmatprep.subr.mxu0 0.0
      %5071 = vmatpush1.msra.mxu0 %v4969
      %5072 = vmatprep.subr.mxu0 0.0
      %5073 = vmatpush1.msra.mxu0 %v5068
      %5074 = vmatprep.subr.mxu0 0.0
      %5075 = vmatpush1.msra.mxu0 0.0
      %5076 = vmatprep.subr.mxu0 0.0
      %5077 = vmatpush1.msra.mxu0 0.0
      %5078 = vmatprep.subr.mxu0 0.0
      %5079 = vmatpush1.msra.mxu0 0.0
      %5080 = vmatprep.subr.mxu0 0.0
      %5081 = vmatpush1.msra.mxu0 0.0
      %5082 = vmatprep.subr.mxu0 0.0
      %5083 = vmatpush1.msra.mxu0 0.0
      %5084 = vmatprep.subr.mxu0 0.0
      %5085 = vmatpush1.msra.mxu0 0.0
      %5086 = vmatprep.subr.mxu0 0.0
      %5087 = vmatpush1.msra.mxu0 0.0
      %5088 = vmatprep.subr.mxu0 0.0
      %5089 = vmatpush1.msra.mxu0 0.0
      %5090 = vmatprep.subr.mxu0 0.0
      %5091 = vmatpush1.msra.mxu0 0.0
      %5092 = vmatprep.subr.mxu0 0.0
      %5093 = vmatpush1.msra.mxu0 0.0
      %5094 = vmatprep.subr.mxu0 0.0
      %5095 = vmatpush1.msra.mxu0 0.0
      %5096 = vmatprep.subr.mxu0 0.0
      %5097 = vmatpush1.msra.mxu0 0.0
      %5098 = vmatprep.subr.mxu0 0.0
      %5099 = vmatpush1.msra.mxu0 0.0
      %5100 = vmatprep.subr.mxu0 0.0
      %5101 = vmatpush1.msra.mxu0 0.0
      %5102 = vmatprep.subr.mxu0 0.0
      %5103 = vmatpush1.msra.mxu0 0.0
      %5104 = vmatprep.subr.mxu0 0.0
      %5105 = vmatpush1.msra.mxu0 0.0
      %5106 = vmatprep.subr.mxu0 0.0
      %5107 = vmatpush1.msra.mxu0 0.0
      %5108 = vmatprep.subr.mxu0 0.0
      %5109 = vmatpush1.msra.mxu0 0.0
      %5110 = vmatprep.subr.mxu0 0.0
      %5111 = vmatpush1.msra.mxu0 0.0
      %5112 = vmatprep.subr.mxu0 0.0
      %5113 = vmatpush1.msra.mxu0 0.0
      %5114 = vmatprep.subr.mxu0 0.0
      %5115 = vmatpush1.msra.mxu0 0.0
      %5116 = vmatprep.subr.mxu0 0.0
      %5117 = vmatpush1.msra.mxu0 0.0
      %5118 = vmatprep.subr.mxu0 0.0
      %5119 = vmatpush1.msra.mxu0 0.0
      %5120 = vmatprep.subr.mxu0 0.0
      %5121 = vmatpush1.msra.mxu0 0.0
      %5122 = vmatprep.subr.mxu0 0.0
      %5123 = vmatpush1.msra.mxu0 0.0
      %5124 = vmatprep.subr.mxu0 0.0
      %5125 = vmatpush1.msra.mxu0 0.0
      %5126 = vmatprep.subr.mxu0 0.0
      %5127 = vmatpush1.msra.mxu0 0.0
      %5128 = vmatprep.subr.mxu0 0.0
      %5129 = vmatpush1.msra.mxu0 0.0
      %5130 = vmatprep.subr.mxu0 0.0
      %5131 = vmatpush1.msra.mxu0 0.0
      %5132 = vmatprep.subr.mxu0 0.0
      %5133 = vmatpush1.msra.mxu0 0.0
      %5134 = vmatprep.mubr.f32.mxu0 0.0
      %5135 = vmatmul.mubr.f32.gmra.mrb[0].mxu0 %v4972
      %v5136 = vpop.f32.mrb[0].mxu0
      %v5137 = vadd.f32 0.0, %v5136
      %v5138 = vpop.f32.mrb[0].mxu0
      %5139 = vmatprep.mubr.f32.mxu0 0.0
      %5140 = vmatmul.mubr.f32.gmra.mrb[0].mxu0 %v4975
      %v5141 = vpop.f32.mrb[0].mxu0
      %v5142 = vadd.f32 0.0, %v5141
      %v5143 = vpop.f32.mrb[0].mxu0
      %5144 = vmatprep.mubr.f32.mxu0 0.0
      %5145 = vmatmul.mubr.f32.gmra.mrb[0].mxu0 %v4978
      %v5146 = vpop.f32.mrb[0].mxu0
      %v5147 = vadd.f32 0.0, %v5146
      %v5148 = vpop.f32.mrb[0].mxu0
      %5149 = vmatprep.mubr.f32.mxu0 0.0
      %5150 = vmatmul.mubr.f32.gmra.mrb[0].mxu0 %v4981
      %v5151 = vpop.f32.mrb[0].mxu0
      %v5152 = vadd.f32 0.0, %v5151
      %v5153 = vpop.f32.mrb[0].mxu0
      %5154 = vmatprep.mubr.f32.mxu0 0.0
      %5155 = vmatmul.mubr.f32.gmra.mrb[0].mxu0 %v4984
      %v5156 = vpop.f32.mrb[0].mxu0
      %v5157 = vadd.f32 0.0, %v5156
      %v5158 = vpop.f32.mrb[0].mxu0
      %5159 = vmatprep.mubr.f32.mxu0 0.0
      %5160 = vmatmul.mubr.f32.gmra.mrb[0].mxu0 %v4987
      %v5161 = vpop.f32.mrb[0].mxu0
      %v5162 = vadd.f32 0.0, %v5161
      %v5163 = vpop.f32.mrb[0].mxu0
      %5164 = vmatprep.mubr.f32.mxu0 0.0
      %5165 = vmatmul.mubr.f32.gmra.mrb[0].mxu0 %v4990
      %v5166 = vpop.f32.mrb[0].mxu0
      %v5167 = vadd.f32 0.0, %v5166
      %v5168 = vpop.f32.mrb[0].mxu0
      %5169 = vmatprep.mubr.f32.mxu0 0.0
      %5170 = vmatmul.mubr.f32.gmra.mrb[0].mxu0 %v4993
      %v5171 = vpop.f32.mrb[0].mxu0
      %v5172 = vadd.f32 0.0, %v5171
      %v5173 = vpop.f32.mrb[0].mxu0
      %5174 = vmatprep.mubr.f32.mxu0 0.0
      %5175 = vmatmul.mubr.f32.gmra.mrb[0].mxu0 %v4996
      %v5176 = vpop.f32.mrb[0].mxu0
      %v5177 = vadd.f32 0.0, %v5176
      %v5178 = vpop.f32.mrb[0].mxu0
      %5179 = vmatprep.mubr.f32.mxu0 0.0
      %5180 = vmatmul.mubr.f32.gmra.mrb[0].mxu0 %v4999
      %v5181 = vpop.f32.mrb[0].mxu0
      %v5182 = vadd.f32 0.0, %v5181
      %v5183 = vpop.f32.mrb[0].mxu0
      %5184 = vmatprep.mubr.f32.mxu0 0.0
      %5185 = vmatmul.mubr.f32.gmra.mrb[0].mxu0 %v5002
      %v5186 = vpop.f32.mrb[0].mxu0
      %v5187 = vadd.f32 0.0, %v5186
      %v5188 = vpop.f32.mrb[0].mxu0
      %5189 = vmatprep.mubr.f32.mxu0 0.0
      %5190 = vmatmul.mubr.f32.gmra.mrb[0].mxu0 %v5005
      %v5191 = vpop.f32.mrb[0].mxu0
      %v5192 = vadd.f32 0.0, %v5191
      %v5193 = vpop.f32.mrb[0].mxu0
      %5194 = vmatprep.mubr.f32.mxu0 0.0
      %5195 = vmatmul.mubr.f32.gmra.mrb[0].mxu0 %v5008
      %v5196 = vpop.f32.mrb[0].mxu0
      %v5197 = vadd.f32 0.0, %v5196
      %v5198 = vpop.f32.mrb[0].mxu0
      %5199 = vmatprep.mubr.f32.mxu0 0.0
      %5200 = vmatmul.mubr.f32.gmra.mrb[0].mxu0 %v5011
      %v5201 = vpop.f32.mrb[0].mxu0
      %v5202 = vadd.f32 0.0, %v5201
      %v5203 = vpop.f32.mrb[0].mxu0
      %5204 = vmatprep.mubr.f32.mxu0 0.0
      %5205 = vmatmul.mubr.f32.gmra.mrb[0].mxu0 %v5014
      %v5206 = vpop.f32.mrb[0].mxu0
      %v5207 = vadd.f32 0.0, %v5206
      %v5208 = vpop.f32.mrb[0].mxu0
      %5209 = vmatprep.mubr.f32.mxu0 0.0
      %5210 = vmatmul.mubr.f32.gmra.mrb[0].mxu0 %v5017
      %v5211 = vpop.f32.mrb[0].mxu0
      %v5212 = vadd.f32 0.0, %v5211
      %v5213 = vpop.f32.mrb[0].mxu0
      %5214 = vmatprep.mubr.f32.mxu0 0.0
      %5215 = vmatmul.mubr.f32.gmra.mrb[0].mxu0 %v5020
      %v5216 = vpop.f32.mrb[0].mxu0
      %v5217 = vadd.f32 0.0, %v5216
      %v5218 = vpop.f32.mrb[0].mxu0
      %5219 = vmatprep.mubr.f32.mxu0 0.0
      %5220 = vmatmul.mubr.f32.gmra.mrb[0].mxu0 %v5023
      %v5221 = vpop.f32.mrb[0].mxu0
      %v5222 = vadd.f32 0.0, %v5221
      %v5223 = vpop.f32.mrb[0].mxu0
      %5224 = vmatprep.mubr.f32.mxu0 0.0
      %5225 = vmatmul.mubr.f32.gmra.mrb[0].mxu0 %v5026
      %v5226 = vpop.f32.mrb[0].mxu0
      %v5227 = vadd.f32 0.0, %v5226
      %v5228 = vpop.f32.mrb[0].mxu0
      %5229 = vmatprep.mubr.f32.mxu0 0.0
      %5230 = vmatmul.mubr.f32.gmra.mrb[0].mxu0 %v5029
      %v5231 = vpop.f32.mrb[0].mxu0
      %v5232 = vadd.f32 0.0, %v5231
      %v5233 = vpop.f32.mrb[0].mxu0
      %5234 = vmatprep.mubr.f32.mxu0 0.0
      %5235 = vmatmul.mubr.f32.gmra.mrb[0].mxu0 %v5032
      %v5236 = vpop.f32.mrb[0].mxu0
      %v5237 = vadd.f32 0.0, %v5236
      %v5238 = vpop.f32.mrb[0].mxu0
      %5239 = vmatprep.mubr.f32.mxu0 0.0
      %5240 = vmatmul.mubr.f32.gmra.mrb[0].mxu0 %v5035
      %v5241 = vpop.f32.mrb[0].mxu0
      %v5242 = vadd.f32 0.0, %v5241
      %v5243 = vpop.f32.mrb[0].mxu0
      %5244 = vmatprep.mubr.f32.mxu0 0.0
      %5245 = vmatmul.mubr.f32.gmra.mrb[0].mxu0 %v5038
      %v5246 = vpop.f32.mrb[0].mxu0
      %v5247 = vadd.f32 0.0, %v5246
      %v5248 = vpop.f32.mrb[0].mxu0
      %5249 = vmatprep.mubr.f32.mxu0 0.0
      %5250 = vmatmul.mubr.f32.gmra.mrb[0].mxu0 %v5041
      %v5251 = vpop.f32.mrb[0].mxu0
      %v5252 = vadd.f32 0.0, %v5251
      %v5253 = vpop.f32.mrb[0].mxu0
      %5254 = vmatprep.mubr.f32.mxu0 0.0
      %5255 = vmatmul.mubr.f32.gmra.mrb[0].mxu0 %v5044
      %v5256 = vpop.f32.mrb[0].mxu0
      %v5257 = vadd.f32 0.0, %v5256
      %v5258 = vpop.f32.mrb[0].mxu0
      %5259 = vmatprep.mubr.f32.mxu0 0.0
      %5260 = vmatmul.mubr.f32.gmra.mrb[0].mxu0 %v5047
      %v5261 = vpop.f32.mrb[0].mxu0
      %v5262 = vadd.f32 0.0, %v5261
      %v5263 = vpop.f32.mrb[0].mxu0
      %5264 = vmatprep.mubr.f32.mxu0 0.0
      %5265 = vmatmul.mubr.f32.gmra.mrb[0].mxu0 %v5050
      %v5266 = vpop.f32.mrb[0].mxu0
      %v5267 = vadd.f32 0.0, %v5266
      %v5268 = vpop.f32.mrb[0].mxu0
      %5269 = vmatprep.mubr.f32.mxu0 0.0
      %5270 = vmatmul.mubr.f32.gmra.mrb[0].mxu0 %v5053
      %v5271 = vpop.f32.mrb[0].mxu0
      %v5272 = vadd.f32 0.0, %v5271
      %v5273 = vpop.f32.mrb[0].mxu0
      %5274 = vmatprep.mubr.f32.mxu0 0.0
      %5275 = vmatmul.mubr.f32.gmra.mrb[0].mxu0 %v5056
      %v5276 = vpop.f32.mrb[0].mxu0
      %v5277 = vadd.f32 0.0, %v5276
      %v5278 = vpop.f32.mrb[0].mxu0
      %5279 = vmatprep.mubr.f32.mxu0 0.0
      %5280 = vmatmul.mubr.f32.gmra.mrb[0].mxu0 %v5059
      %v5281 = vpop.f32.mrb[0].mxu0
      %v5282 = vadd.f32 0.0, %v5281
      %v5283 = vpop.f32.mrb[0].mxu0
      %5284 = vmatprep.mubr.f32.mxu0 0.0
      %5285 = vmatmul.mubr.f32.gmra.mrb[0].mxu0 %v5062
      %v5286 = vpop.f32.mrb[0].mxu0
      %v5287 = vadd.f32 0.0, %v5286
      %v5288 = vpop.f32.mrb[0].mxu0
      %5289 = vmatprep.mubr.f32.mxu0 0.0
      %5290 = vmatmul.mubr.f32.gmra.mrb[0].mxu0 %v5065
      %v5291 = vpop.f32.mrb[0].mxu0
      %v5292 = vadd.f32 0.0, %v5291
      %v5293 = vpop.f32.mrb[0].mxu0
      %5294 = vdwg.mxu0
      %v5295 = vadd.f32 %v4520, %v5137
      %v5296 = vadd.f32 %v4521, %v5142
      %v5297 = vadd.f32 %v4522, %v5147
      %v5298 = vadd.f32 %v4523, %v5152
      %v5299 = vadd.f32 %v4524, %v5157
      %v5300 = vadd.f32 %v4525, %v5162
      %v5301 = vadd.f32 %v4526, %v5167
      %v5302 = vadd.f32 %v4527, %v5172
      %v5303 = vadd.f32 %v4528, %v5177
      %v5304 = vadd.f32 %v4529, %v5182
      %v5305 = vadd.f32 %v4530, %v5187
      %v5306 = vadd.f32 %v4531, %v5192
      %v5307 = vadd.f32 %v4532, %v5197
      %v5308 = vadd.f32 %v4533, %v5202
      %v5309 = vadd.f32 %v4534, %v5207
      %v5310 = vadd.f32 %v4535, %v5212
      %v5311 = vadd.f32 %v4536, %v5217
      %v5312 = vadd.f32 %v4537, %v5222
      %v5313 = vadd.f32 %v4538, %v5227
      %v5314 = vadd.f32 %v4539, %v5232
      %v5315 = vadd.f32 %v4540, %v5237
      %v5316 = vadd.f32 %v4541, %v5242
      %v5317 = vadd.f32 %v4542, %v5247
      %v5318 = vadd.f32 %v4543, %v5252
      %v5319 = vadd.f32 %v4544, %v5257
      %v5320 = vadd.f32 %v4545, %v5262
      %v5321 = vadd.f32 %v4546, %v5267
      %v5322 = vadd.f32 %v4547, %v5272
      %v5323 = vadd.f32 %v4548, %v5277
      %v5324 = vadd.f32 %v4549, %v5282
      %v5325 = vadd.f32 %v4550, %v5287
      %v5326 = vadd.f32 %v4551, %v5292
      %v5327 = vmax.f32 %v5295, 0.0
      %v5328 = vmax.f32 %v5296, 0.0
      %v5329 = vmax.f32 %v5297, 0.0
      %v5330 = vmax.f32 %v5298, 0.0
      %v5331 = vmax.f32 %v5299, 0.0
      %v5332 = vmax.f32 %v5300, 0.0
      %v5333 = vmax.f32 %v5301, 0.0
      %v5334 = vmax.f32 %v5302, 0.0
      %v5335 = vmax.f32 %v5303, 0.0
      %v5336 = vmax.f32 %v5304, 0.0
      %v5337 = vmax.f32 %v5305, 0.0
      %v5338 = vmax.f32 %v5306, 0.0
      %v5339 = vmax.f32 %v5307, 0.0
      %v5340 = vmax.f32 %v5308, 0.0
      %v5341 = vmax.f32 %v5309, 0.0
      %v5342 = vmax.f32 %v5310, 0.0
      %v5343 = vmax.f32 %v5311, 0.0
      %v5344 = vmax.f32 %v5312, 0.0
      %v5345 = vmax.f32 %v5313, 0.0
      %v5346 = vmax.f32 %v5314, 0.0
      %v5347 = vmax.f32 %v5315, 0.0
      %v5348 = vmax.f32 %v5316, 0.0
      %v5349 = vmax.f32 %v5317, 0.0
      %v5350 = vmax.f32 %v5318, 0.0
      %v5351 = vmax.f32 %v5319, 0.0
      %v5352 = vmax.f32 %v5320, 0.0
      %v5353 = vmax.f32 %v5321, 0.0
      %v5354 = vmax.f32 %v5322, 0.0
      %v5355 = vmax.f32 %v5323, 0.0
      %v5356 = vmax.f32 %v5324, 0.0
      %v5357 = vmax.f32 %v5325, 0.0
      %v5358 = vmax.f32 %v5326, 0.0
      %5359 = vst.msk [vmem:[%s2962 + $0x8] sm:$0xff] %vm279, %v5295
      %5360 = vst.msk [vmem:[%s2962 + $0x10] sm:$0xff] %vm279, %v5296
      %5361 = vst.msk [vmem:[%s2962 + $0x28] sm:$0xff] %vm279, %v5297
      %5362 = vst.msk [vmem:[%s2962 + $0x30] sm:$0xff] %vm279, %v5298
      %5363 = vst.msk [vmem:[%s2962 + $0x48] sm:$0xff] %vm279, %v5299
      %5364 = vst.msk [vmem:[%s2962 + $0x50] sm:$0xff] %vm279, %v5300
      %5365 = vst.msk [vmem:[%s2962 + $0x68] sm:$0xff] %vm279, %v5301
      %5366 = vst.msk [vmem:[%s2962 + $0x70] sm:$0xff] %vm279, %v5302
      %5367 = vst.msk [vmem:[%s2962 + $0x88] sm:$0xff] %vm279, %v5303
      %5368 = vst.msk [vmem:[%s2962 + $0x90] sm:$0xff] %vm279, %v5304
      %5369 = vst.msk [vmem:[%s2962 + $0xa8] sm:$0xff] %vm279, %v5305
      %5370 = vst.msk [vmem:[%s2962 + $0xb0] sm:$0xff] %vm279, %v5306
      %5371 = vst.msk [vmem:[%s2962 + $0xc8] sm:$0xff] %vm279, %v5307
      %5372 = vst.msk [vmem:[%s2962 + $0xd0] sm:$0xff] %vm279, %v5308
      %5373 = vst.msk [vmem:[%s2962 + $0xe8] sm:$0xff] %vm279, %v5309
      %5374 = vst.msk [vmem:[%s2962 + $0xf0] sm:$0xff] %vm279, %v5310
      %5375 = vst.msk [vmem:[%s2962 + $0x108] sm:$0xff] %vm279, %v5311
      %5376 = vst.msk [vmem:[%s2962 + $0x110] sm:$0xff] %vm279, %v5312
      %5377 = vst.msk [vmem:[%s2962 + $0x128] sm:$0xff] %vm279, %v5313
      %5378 = vst.msk [vmem:[%s2962 + $0x130] sm:$0xff] %vm279, %v5314
      %5379 = vst.msk [vmem:[%s2962 + $0x148] sm:$0xff] %vm279, %v5315
      %5380 = vst.msk [vmem:[%s2962 + $0x150] sm:$0xff] %vm279, %v5316
      %5381 = vst.msk [vmem:[%s2962 + $0x168] sm:$0xff] %vm279, %v5317
      %5382 = vst.msk [vmem:[%s2962 + $0x170] sm:$0xff] %vm279, %v5318
      %5383 = vst.msk [vmem:[%s2962 + $0x188] sm:$0xff] %vm279, %v5319
      %5384 = vst.msk [vmem:[%s2962 + $0x190] sm:$0xff] %vm279, %v5320
      %5385 = vst.msk [vmem:[%s2962 + $0x1a8] sm:$0xff] %vm279, %v5321
      %5386 = vst.msk [vmem:[%s2962 + $0x1b0] sm:$0xff] %vm279, %v5322
      %5387 = vst.msk [vmem:[%s2962 + $0x1c8] sm:$0xff] %vm279, %v5323
      %5388 = vst.msk [vmem:[%s2962 + $0x1d0] sm:$0xff] %vm279, %v5324
      %5389 = vst.msk [vmem:[%s2962 + $0x1e8] sm:$0xff] %vm279, %v5325
      %5390 = vst.msk [vmem:[%s2962 + $0x1f0] sm:$0xff] %vm279, %v5326
      %v5391 = vld [vmem:[%s6] sm:$0x1]
      %v5393 = vlaneseq
      %v5394 = vshrl.u32 %v5393, 7
      %v5395 = vsub.s32 0, %v5394
      %v5396 = vrot.slane %v5391, %v5395
      %v5398 = vld [vmem:[#allocation3 + $0x7] sm:$0xff]
      %v5399 = vld [vmem:[#allocation3 + $0xf] sm:$0xff]
      %v5400 = vld [vmem:[#allocation3 + $0x27] sm:$0xff]
      %v5401 = vld [vmem:[#allocation3 + $0x2f] sm:$0xff]
      %v5402 = vld [vmem:[#allocation3 + $0x47] sm:$0xff]
      %v5403 = vld [vmem:[#allocation3 + $0x4f] sm:$0xff]
      %v5404 = vld [vmem:[#allocation3 + $0x67] sm:$0xff]
      %v5405 = vld [vmem:[#allocation3 + $0x6f] sm:$0xff]
      %v5406 = vld [vmem:[#allocation3 + $0x87] sm:$0xff]
      %v5407 = vld [vmem:[#allocation3 + $0x8f] sm:$0xff]
      %v5408 = vld [vmem:[#allocation3 + $0xa7] sm:$0xff]
      %v5409 = vld [vmem:[#allocation3 + $0xaf] sm:$0xff]
      %v5410 = vld [vmem:[#allocation3 + $0xc7] sm:$0xff]
      %v5411 = vld [vmem:[#allocation3 + $0xcf] sm:$0xff]
      %v5412 = vld [vmem:[#allocation3 + $0xe7] sm:$0xff]
      %v5413 = vld [vmem:[#allocation3 + $0xef] sm:$0xff]
      %v5414 = vld [vmem:[#allocation3 + $0x107] sm:$0xff]
      %v5415 = vld [vmem:[#allocation3 + $0x10f] sm:$0xff]
      %v5416 = vld [vmem:[#allocation3 + $0x127] sm:$0xff]
      %v5417 = vld [vmem:[#allocation3 + $0x12f] sm:$0xff]
      %v5418 = vld [vmem:[#allocation3 + $0x147] sm:$0xff]
      %v5419 = vld [vmem:[#allocation3 + $0x14f] sm:$0xff]
      %v5420 = vld [vmem:[#allocation3 + $0x167] sm:$0xff]
      %v5421 = vld [vmem:[#allocation3 + $0x16f] sm:$0xff]
      %v5422 = vld [vmem:[#allocation3 + $0x187] sm:$0xff]
      %v5423 = vld [vmem:[#allocation3 + $0x18f] sm:$0xff]
      %v5424 = vld [vmem:[#allocation3 + $0x1a7] sm:$0xff]
      %v5425 = vld [vmem:[#allocation3 + $0x1af] sm:$0xff]
      %v5426 = vld [vmem:[#allocation3 + $0x1c7] sm:$0xff]
      %v5427 = vld [vmem:[#allocation3 + $0x1cf] sm:$0xff]
      %v5428 = vld [vmem:[#allocation3 + $0x1e7] sm:$0xff]
      %v5429 = vld [vmem:[#allocation3 + $0x1ef] sm:$0xff]
      %v5430 = vld [vmem:[%s2962 + $0x7] sm:$0xff]
      %v5431 = vld [vmem:[%s2962 + $0xf] sm:$0xff]
      %v5432 = vld [vmem:[%s2962 + $0x27] sm:$0xff]
      %v5433 = vld [vmem:[%s2962 + $0x2f] sm:$0xff]
      %v5434 = vld [vmem:[%s2962 + $0x47] sm:$0xff]
      %v5435 = vld [vmem:[%s2962 + $0x4f] sm:$0xff]
      %v5436 = vld [vmem:[%s2962 + $0x67] sm:$0xff]
      %v5437 = vld [vmem:[%s2962 + $0x6f] sm:$0xff]
      %v5438 = vld [vmem:[%s2962 + $0x87] sm:$0xff]
      %v5439 = vld [vmem:[%s2962 + $0x8f] sm:$0xff]
      %v5440 = vld [vmem:[%s2962 + $0xa7] sm:$0xff]
      %v5441 = vld [vmem:[%s2962 + $0xaf] sm:$0xff]
      %v5442 = vld [vmem:[%s2962 + $0xc7] sm:$0xff]
      %v5443 = vld [vmem:[%s2962 + $0xcf] sm:$0xff]
      %v5444 = vld [vmem:[%s2962 + $0xe7] sm:$0xff]
      %v5445 = vld [vmem:[%s2962 + $0xef] sm:$0xff]
      %v5446 = vld [vmem:[%s2962 + $0x107] sm:$0xff]
      %v5447 = vld [vmem:[%s2962 + $0x10f] sm:$0xff]
      %v5448 = vld [vmem:[%s2962 + $0x127] sm:$0xff]
      %v5449 = vld [vmem:[%s2962 + $0x12f] sm:$0xff]
      %v5450 = vld [vmem:[%s2962 + $0x147] sm:$0xff]
      %v5451 = vld [vmem:[%s2962 + $0x14f] sm:$0xff]
      %v5452 = vld [vmem:[%s2962 + $0x167] sm:$0xff]
      %v5453 = vld [vmem:[%s2962 + $0x16f] sm:$0xff]
      %v5454 = vld [vmem:[%s2962 + $0x187] sm:$0xff]
      %v5455 = vld [vmem:[%s2962 + $0x18f] sm:$0xff]
      %v5456 = vld [vmem:[%s2962 + $0x1a7] sm:$0xff]
      %v5457 = vld [vmem:[%s2962 + $0x1af] sm:$0xff]
      %v5458 = vld [vmem:[%s2962 + $0x1c7] sm:$0xff]
      %v5459 = vld [vmem:[%s2962 + $0x1cf] sm:$0xff]
      %v5460 = vld [vmem:[%s2962 + $0x1e7] sm:$0xff]
      %v5461 = vld [vmem:[%s2962 + $0x1ef] sm:$0xff]
      %v5462 = vld [vmem:[%s3066 + $0x7] sm:$0xff]
      %v5463 = vld [vmem:[%s3066 + $0xf] sm:$0xff]
      %v5464 = vld [vmem:[%s3066 + $0x27] sm:$0xff]
      %v5465 = vld [vmem:[%s3066 + $0x2f] sm:$0xff]
      %v5466 = vld [vmem:[%s3066 + $0x47] sm:$0xff]
      %v5467 = vld [vmem:[%s3066 + $0x4f] sm:$0xff]
      %v5468 = vld [vmem:[%s3066 + $0x67] sm:$0xff]
      %v5469 = vld [vmem:[%s3066 + $0x6f] sm:$0xff]
      %v5470 = vld [vmem:[%s3066 + $0x87] sm:$0xff]
      %v5471 = vld [vmem:[%s3066 + $0x8f] sm:$0xff]
      %v5472 = vld [vmem:[%s3066 + $0xa7] sm:$0xff]
      %v5473 = vld [vmem:[%s3066 + $0xaf] sm:$0xff]
      %v5474 = vld [vmem:[%s3066 + $0xc7] sm:$0xff]
      %v5475 = vld [vmem:[%s3066 + $0xcf] sm:$0xff]
      %v5476 = vld [vmem:[%s3066 + $0xe7] sm:$0xff]
      %v5477 = vld [vmem:[%s3066 + $0xef] sm:$0xff]
      %v5478 = vld [vmem:[%s3066 + $0x107] sm:$0xff]
      %v5479 = vld [vmem:[%s3066 + $0x10f] sm:$0xff]
      %v5480 = vld [vmem:[%s3066 + $0x127] sm:$0xff]
      %v5481 = vld [vmem:[%s3066 + $0x12f] sm:$0xff]
      %v5482 = vld [vmem:[%s3066 + $0x147] sm:$0xff]
      %v5483 = vld [vmem:[%s3066 + $0x14f] sm:$0xff]
      %v5484 = vld [vmem:[%s3066 + $0x167] sm:$0xff]
      %v5485 = vld [vmem:[%s3066 + $0x16f] sm:$0xff]
      %v5486 = vld [vmem:[%s3066 + $0x187] sm:$0xff]
      %v5487 = vld [vmem:[%s3066 + $0x18f] sm:$0xff]
      %v5488 = vld [vmem:[%s3066 + $0x1a7] sm:$0xff]
      %v5489 = vld [vmem:[%s3066 + $0x1af] sm:$0xff]
      %v5490 = vld [vmem:[%s3066 + $0x1c7] sm:$0xff]
      %v5491 = vld [vmem:[%s3066 + $0x1cf] sm:$0xff]
      %v5492 = vld [vmem:[%s3066 + $0x1e7] sm:$0xff]
      %v5493 = vld [vmem:[%s3066 + $0x1ef] sm:$0xff]
      %5526 = vrot.lane.b32.xlu0 %v5430, 4
      %v5527 = vpop.permute.xlu0 %5526
      %5528 = vrot.lane.b32.xlu0 %v5431, 4
      %v5529 = vpop.permute.xlu0 %5528
      %5530 = vrot.lane.b32.xlu0 %v5432, 4
      %v5531 = vpop.permute.xlu0 %5530
      %5532 = vrot.lane.b32.xlu0 %v5433, 4
      %v5533 = vpop.permute.xlu0 %5532
      %5534 = vrot.lane.b32.xlu0 %v5434, 4
      %v5535 = vpop.permute.xlu0 %5534
      %5536 = vrot.lane.b32.xlu0 %v5435, 4
      %v5537 = vpop.permute.xlu0 %5536
      %5538 = vrot.lane.b32.xlu0 %v5436, 4
      %v5539 = vpop.permute.xlu0 %5538
      %5540 = vrot.lane.b32.xlu0 %v5437, 4
      %v5541 = vpop.permute.xlu0 %5540
      %5542 = vrot.lane.b32.xlu0 %v5438, 4
      %v5543 = vpop.permute.xlu0 %5542
      %5544 = vrot.lane.b32.xlu0 %v5439, 4
      %v5545 = vpop.permute.xlu0 %5544
      %5546 = vrot.lane.b32.xlu0 %v5440, 4
      %v5547 = vpop.permute.xlu0 %5546
      %5548 = vrot.lane.b32.xlu0 %v5441, 4
      %v5549 = vpop.permute.xlu0 %5548
      %5550 = vrot.lane.b32.xlu0 %v5442, 4
      %v5551 = vpop.permute.xlu0 %5550
      %5552 = vrot.lane.b32.xlu0 %v5443, 4
      %v5553 = vpop.permute.xlu0 %5552
      %5554 = vrot.lane.b32.xlu0 %v5444, 4
      %v5555 = vpop.permute.xlu0 %5554
      %5556 = vrot.lane.b32.xlu0 %v5445, 4
      %v5557 = vpop.permute.xlu0 %5556
      %5558 = vrot.lane.b32.xlu0 %v5446, 4
      %v5559 = vpop.permute.xlu0 %5558
      %5560 = vrot.lane.b32.xlu0 %v5447, 4
      %v5561 = vpop.permute.xlu0 %5560
      %5562 = vrot.lane.b32.xlu0 %v5448, 4
      %v5563 = vpop.permute.xlu0 %5562
      %5564 = vrot.lane.b32.xlu0 %v5449, 4
      %v5565 = vpop.permute.xlu0 %5564
      %5566 = vrot.lane.b32.xlu0 %v5450, 4
      %v5567 = vpop.permute.xlu0 %5566
      %5568 = vrot.lane.b32.xlu0 %v5451, 4
      %v5569 = vpop.permute.xlu0 %5568
      %5570 = vrot.lane.b32.xlu0 %v5452, 4
      %v5571 = vpop.permute.xlu0 %5570
      %5572 = vrot.lane.b32.xlu0 %v5453, 4
      %v5573 = vpop.permute.xlu0 %5572
      %5574 = vrot.lane.b32.xlu0 %v5454, 4
      %v5575 = vpop.permute.xlu0 %5574
      %5576 = vrot.lane.b32.xlu0 %v5455, 4
      %v5577 = vpop.permute.xlu0 %5576
      %5578 = vrot.lane.b32.xlu0 %v5456, 4
      %v5579 = vpop.permute.xlu0 %5578
      %5580 = vrot.lane.b32.xlu0 %v5457, 4
      %v5581 = vpop.permute.xlu0 %5580
      %5582 = vrot.lane.b32.xlu0 %v5458, 4
      %v5583 = vpop.permute.xlu0 %5582
      %5584 = vrot.lane.b32.xlu0 %v5459, 4
      %v5585 = vpop.permute.xlu0 %5584
      %5586 = vrot.lane.b32.xlu0 %v5460, 4
      %v5587 = vpop.permute.xlu0 %5586
      %5588 = vrot.lane.b32.xlu0 %v5461, 4
      %v5589 = vpop.permute.xlu0 %5588
      %5654 = vrot.lane.b32.xlu0 %v5462, 8
      %v5655 = vpop.permute.xlu0 %5654
      %5656 = vrot.lane.b32.xlu0 %v5463, 8
      %v5657 = vpop.permute.xlu0 %5656
      %5658 = vrot.lane.b32.xlu0 %v5464, 8
      %v5659 = vpop.permute.xlu0 %5658
      %5660 = vrot.lane.b32.xlu0 %v5465, 8
      %v5661 = vpop.permute.xlu0 %5660
      %5662 = vrot.lane.b32.xlu0 %v5466, 8
      %v5663 = vpop.permute.xlu0 %5662
      %5664 = vrot.lane.b32.xlu0 %v5467, 8
      %v5665 = vpop.permute.xlu0 %5664
      %5666 = vrot.lane.b32.xlu0 %v5468, 8
      %v5667 = vpop.permute.xlu0 %5666
      %5668 = vrot.lane.b32.xlu0 %v5469, 8
      %v5669 = vpop.permute.xlu0 %5668
      %5670 = vrot.lane.b32.xlu0 %v5470, 8
      %v5671 = vpop.permute.xlu0 %5670
      %5672 = vrot.lane.b32.xlu0 %v5471, 8
      %v5673 = vpop.permute.xlu0 %5672
      %5674 = vrot.lane.b32.xlu0 %v5472, 8
      %v5675 = vpop.permute.xlu0 %5674
      %5676 = vrot.lane.b32.xlu0 %v5473, 8
      %v5677 = vpop.permute.xlu0 %5676
      %5678 = vrot.lane.b32.xlu0 %v5474, 8
      %v5679 = vpop.permute.xlu0 %5678
      %5680 = vrot.lane.b32.xlu0 %v5475, 8
      %v5681 = vpop.permute.xlu0 %5680
      %5682 = vrot.lane.b32.xlu0 %v5476, 8
      %v5683 = vpop.permute.xlu0 %5682
      %5684 = vrot.lane.b32.xlu0 %v5477, 8
      %v5685 = vpop.permute.xlu0 %5684
      %5686 = vrot.lane.b32.xlu0 %v5478, 8
      %v5687 = vpop.permute.xlu0 %5686
      %5688 = vrot.lane.b32.xlu0 %v5479, 8
      %v5689 = vpop.permute.xlu0 %5688
      %5690 = vrot.lane.b32.xlu0 %v5480, 8
      %v5691 = vpop.permute.xlu0 %5690
      %5692 = vrot.lane.b32.xlu0 %v5481, 8
      %v5693 = vpop.permute.xlu0 %5692
      %5694 = vrot.lane.b32.xlu0 %v5482, 8
      %v5695 = vpop.permute.xlu0 %5694
      %5696 = vrot.lane.b32.xlu0 %v5483, 8
      %v5697 = vpop.permute.xlu0 %5696
      %5698 = vrot.lane.b32.xlu0 %v5484, 8
      %v5699 = vpop.permute.xlu0 %5698
      %5700 = vrot.lane.b32.xlu0 %v5485, 8
      %v5701 = vpop.permute.xlu0 %5700
      %5702 = vrot.lane.b32.xlu0 %v5486, 8
      %v5703 = vpop.permute.xlu0 %5702
      %5704 = vrot.lane.b32.xlu0 %v5487, 8
      %v5705 = vpop.permute.xlu0 %5704
      %5706 = vrot.lane.b32.xlu0 %v5488, 8
      %v5707 = vpop.permute.xlu0 %5706
      %5708 = vrot.lane.b32.xlu0 %v5489, 8
      %v5709 = vpop.permute.xlu0 %5708
      %5710 = vrot.lane.b32.xlu0 %v5490, 8
      %v5711 = vpop.permute.xlu0 %5710
      %5712 = vrot.lane.b32.xlu0 %v5491, 8
      %v5713 = vpop.permute.xlu0 %5712
      %5714 = vrot.lane.b32.xlu0 %v5492, 8
      %v5715 = vpop.permute.xlu0 %5714
      %5716 = vrot.lane.b32.xlu0 %v5493, 8
      %v5717 = vpop.permute.xlu0 %5716
      %v5750 = vsel %vm279, %v5398, %v5527
      %v5751 = vsel %vm279, %v5399, %v5529
      %v5752 = vsel %vm279, %v5400, %v5531
      %v5753 = vsel %vm279, %v5401, %v5533
      %v5754 = vsel %vm279, %v5402, %v5535
      %v5755 = vsel %vm279, %v5403, %v5537
      %v5756 = vsel %vm279, %v5404, %v5539
      %v5757 = vsel %vm279, %v5405, %v5541
      %v5758 = vsel %vm279, %v5406, %v5543
      %v5759 = vsel %vm279, %v5407, %v5545
      %v5760 = vsel %vm279, %v5408, %v5547
      %v5761 = vsel %vm279, %v5409, %v5549
      %v5762 = vsel %vm279, %v5410, %v5551
      %v5763 = vsel %vm279, %v5411, %v5553
      %v5764 = vsel %vm279, %v5412, %v5555
      %v5765 = vsel %vm279, %v5413, %v5557
      %v5766 = vsel %vm279, %v5414, %v5559
      %v5767 = vsel %vm279, %v5415, %v5561
      %v5768 = vsel %vm279, %v5416, %v5563
      %v5769 = vsel %vm279, %v5417, %v5565
      %v5770 = vsel %vm279, %v5418, %v5567
      %v5771 = vsel %vm279, %v5419, %v5569
      %v5772 = vsel %vm279, %v5420, %v5571
      %v5773 = vsel %vm279, %v5421, %v5573
      %v5774 = vsel %vm279, %v5422, %v5575
      %v5775 = vsel %vm279, %v5423, %v5577
      %v5776 = vsel %vm279, %v5424, %v5579
      %v5777 = vsel %vm279, %v5425, %v5581
      %v5778 = vsel %vm279, %v5426, %v5583
      %v5779 = vsel %vm279, %v5427, %v5585
      %v5780 = vsel %vm279, %v5428, %v5587
      %v5781 = vsel %vm279, %v5429, %v5589
      %v5782 = vsel %vm782, %v5750, %v5655
      %v5783 = vsel %vm782, %v5751, %v5657
      %v5784 = vsel %vm782, %v5752, %v5659
      %v5785 = vsel %vm782, %v5753, %v5661
      %v5786 = vsel %vm782, %v5754, %v5663
      %v5787 = vsel %vm782, %v5755, %v5665
      %v5788 = vsel %vm782, %v5756, %v5667
      %v5789 = vsel %vm782, %v5757, %v5669
      %v5790 = vsel %vm782, %v5758, %v5671
      %v5791 = vsel %vm782, %v5759, %v5673
      %v5792 = vsel %vm782, %v5760, %v5675
      %v5793 = vsel %vm782, %v5761, %v5677
      %v5794 = vsel %vm782, %v5762, %v5679
      %v5795 = vsel %vm782, %v5763, %v5681
      %v5796 = vsel %vm782, %v5764, %v5683
      %v5797 = vsel %vm782, %v5765, %v5685
      %v5798 = vsel %vm782, %v5766, %v5687
      %v5799 = vsel %vm782, %v5767, %v5689
      %v5800 = vsel %vm782, %v5768, %v5691
      %v5801 = vsel %vm782, %v5769, %v5693
      %v5802 = vsel %vm782, %v5770, %v5695
      %v5803 = vsel %vm782, %v5771, %v5697
      %v5804 = vsel %vm782, %v5772, %v5699
      %v5805 = vsel %vm782, %v5773, %v5701
      %v5806 = vsel %vm782, %v5774, %v5703
      %v5807 = vsel %vm782, %v5775, %v5705
      %v5808 = vsel %vm782, %v5776, %v5707
      %v5809 = vsel %vm782, %v5777, %v5709
      %v5810 = vsel %vm782, %v5778, %v5711
      %v5811 = vsel %vm782, %v5779, %v5713
      %v5812 = vsel %vm782, %v5780, %v5715
      %v5813 = vsel %vm782, %v5781, %v5717
      %v5814 = vld [vmem:[%s5] sm:$0xff]
      %v5815 = vld [vmem:[%s5 + $0x8] sm:$0xf]
      %v5817 = vsel %vm817, %v5782, 0
      %v5820 = vsel %vm817, %v5783, 0
      %v5823 = vsel %vm817, %v5784, 0
      %v5826 = vsel %vm817, %v5785, 0
      %v5829 = vsel %vm817, %v5786, 0
      %v5832 = vsel %vm817, %v5787, 0
      %v5835 = vsel %vm817, %v5788, 0
      %v5838 = vsel %vm817, %v5789, 0
      %v5841 = vsel %vm817, %v5790, 0
      %v5844 = vsel %vm817, %v5791, 0
      %v5847 = vsel %vm817, %v5792, 0
      %v5850 = vsel %vm817, %v5793, 0
      %v5853 = vsel %vm817, %v5794, 0
      %v5856 = vsel %vm817, %v5795, 0
      %v5859 = vsel %vm817, %v5796, 0
      %v5862 = vsel %vm817, %v5797, 0
      %v5865 = vsel %vm817, %v5798, 0
      %v5868 = vsel %vm817, %v5799, 0
      %v5871 = vsel %vm817, %v5800, 0
      %v5874 = vsel %vm817, %v5801, 0
      %v5877 = vsel %vm817, %v5802, 0
      %v5880 = vsel %vm817, %v5803, 0
      %v5883 = vsel %vm817, %v5804, 0
      %v5886 = vsel %vm817, %v5805, 0
      %v5889 = vsel %vm817, %v5806, 0
      %v5892 = vsel %vm817, %v5807, 0
      %v5895 = vsel %vm817, %v5808, 0
      %v5898 = vsel %vm817, %v5809, 0
      %v5901 = vsel %vm817, %v5810, 0
      %v5904 = vsel %vm817, %v5811, 0
      %v5907 = vsel %vm817, %v5812, 0
      %v5910 = vsel %vm817, %v5813, 0
      %v5913 = vsel %vm914, %v5815, 0
      %5915 = vmatprep.subr.mxu0 0.0
      %5916 = vmatpush1.msra.mxu0 %v5814
      %5917 = vmatprep.subr.mxu0 0.0
      %5918 = vmatpush1.msra.mxu0 %v5913
      %5919 = vmatprep.subr.mxu0 0.0
      %5920 = vmatpush1.msra.mxu0 0.0
      %5921 = vmatprep.subr.mxu0 0.0
      %5922 = vmatpush1.msra.mxu0 0.0
      %5923 = vmatprep.subr.mxu0 0.0
      %5924 = vmatpush1.msra.mxu0 0.0
      %5925 = vmatprep.subr.mxu0 0.0
      %5926 = vmatpush1.msra.mxu0 0.0
      %5927 = vmatprep.subr.mxu0 0.0
      %5928 = vmatpush1.msra.mxu0 0.0
      %5929 = vmatprep.subr.mxu0 0.0
      %5930 = vmatpush1.msra.mxu0 0.0
      %5931 = vmatprep.subr.mxu0 0.0
      %5932 = vmatpush1.msra.mxu0 0.0
      %5933 = vmatprep.subr.mxu0 0.0
      %5934 = vmatpush1.msra.mxu0 0.0
      %5935 = vmatprep.subr.mxu0 0.0
      %5936 = vmatpush1.msra.mxu0 0.0
      %5937 = vmatprep.subr.mxu0 0.0
      %5938 = vmatpush1.msra.mxu0 0.0
      %5939 = vmatprep.subr.mxu0 0.0
      %5940 = vmatpush1.msra.mxu0 0.0
      %5941 = vmatprep.subr.mxu0 0.0
      %5942 = vmatpush1.msra.mxu0 0.0
      %5943 = vmatprep.subr.mxu0 0.0
      %5944 = vmatpush1.msra.mxu0 0.0
      %5945 = vmatprep.subr.mxu0 0.0
      %5946 = vmatpush1.msra.mxu0 0.0
      %5947 = vmatprep.subr.mxu0 0.0
      %5948 = vmatpush1.msra.mxu0 0.0
      %5949 = vmatprep.subr.mxu0 0.0
      %5950 = vmatpush1.msra.mxu0 0.0
      %5951 = vmatprep.subr.mxu0 0.0
      %5952 = vmatpush1.msra.mxu0 0.0
      %5953 = vmatprep.subr.mxu0 0.0
      %5954 = vmatpush1.msra.mxu0 0.0
      %5955 = vmatprep.subr.mxu0 0.0
      %5956 = vmatpush1.msra.mxu0 0.0
      %5957 = vmatprep.subr.mxu0 0.0
      %5958 = vmatpush1.msra.mxu0 0.0
      %5959 = vmatprep.subr.mxu0 0.0
      %5960 = vmatpush1.msra.mxu0 0.0
      %5961 = vmatprep.subr.mxu0 0.0
      %5962 = vmatpush1.msra.mxu0 0.0
      %5963 = vmatprep.subr.mxu0 0.0
      %5964 = vmatpush1.msra.mxu0 0.0
      %5965 = vmatprep.subr.mxu0 0.0
      %5966 = vmatpush1.msra.mxu0 0.0
      %5967 = vmatprep.subr.mxu0 0.0
      %5968 = vmatpush1.msra.mxu0 0.0
      %5969 = vmatprep.subr.mxu0 0.0
      %5970 = vmatpush1.msra.mxu0 0.0
      %5971 = vmatprep.subr.mxu0 0.0
      %5972 = vmatpush1.msra.mxu0 0.0
      %5973 = vmatprep.subr.mxu0 0.0
      %5974 = vmatpush1.msra.mxu0 0.0
      %5975 = vmatprep.subr.mxu0 0.0
      %5976 = vmatpush1.msra.mxu0 0.0
      %5977 = vmatprep.subr.mxu0 0.0
      %5978 = vmatpush1.msra.mxu0 0.0
      %5979 = vmatprep.mubr.f32.mxu0 0.0
      %5980 = vmatmul.mubr.f32.gmra.mrb[0].mxu0 %v5817
      %v5981 = vpop.f32.mrb[0].mxu0
      %v5982 = vadd.f32 0.0, %v5981
      %v5983 = vpop.f32.mrb[0].mxu0
      %5984 = vmatprep.mubr.f32.mxu0 0.0
      %5985 = vmatmul.mubr.f32.gmra.mrb[0].mxu0 %v5820
      %v5986 = vpop.f32.mrb[0].mxu0
      %v5987 = vadd.f32 0.0, %v5986
      %v5988 = vpop.f32.mrb[0].mxu0
      %5989 = vmatprep.mubr.f32.mxu0 0.0
      %5990 = vmatmul.mubr.f32.gmra.mrb[0].mxu0 %v5823
      %v5991 = vpop.f32.mrb[0].mxu0
      %v5992 = vadd.f32 0.0, %v5991
      %v5993 = vpop.f32.mrb[0].mxu0
      %5994 = vmatprep.mubr.f32.mxu0 0.0
      %5995 = vmatmul.mubr.f32.gmra.mrb[0].mxu0 %v5826
      %v5996 = vpop.f32.mrb[0].mxu0
      %v5997 = vadd.f32 0.0, %v5996
      %v5998 = vpop.f32.mrb[0].mxu0
      %5999 = vmatprep.mubr.f32.mxu0 0.0
      %6000 = vmatmul.mubr.f32.gmra.mrb[0].mxu0 %v5829
      %v6001 = vpop.f32.mrb[0].mxu0
      %v6002 = vadd.f32 0.0, %v6001
      %v6003 = vpop.f32.mrb[0].mxu0
      %6004 = vmatprep.mubr.f32.mxu0 0.0
      %6005 = vmatmul.mubr.f32.gmra.mrb[0].mxu0 %v5832
      %v6006 = vpop.f32.mrb[0].mxu0
      %v6007 = vadd.f32 0.0, %v6006
      %v6008 = vpop.f32.mrb[0].mxu0
      %6009 = vmatprep.mubr.f32.mxu0 0.0
      %6010 = vmatmul.mubr.f32.gmra.mrb[0].mxu0 %v5835
      %v6011 = vpop.f32.mrb[0].mxu0
      %v6012 = vadd.f32 0.0, %v6011
      %v6013 = vpop.f32.mrb[0].mxu0
      %6014 = vmatprep.mubr.f32.mxu0 0.0
      %6015 = vmatmul.mubr.f32.gmra.mrb[0].mxu0 %v5838
      %v6016 = vpop.f32.mrb[0].mxu0
      %v6017 = vadd.f32 0.0, %v6016
      %v6018 = vpop.f32.mrb[0].mxu0
      %6019 = vmatprep.mubr.f32.mxu0 0.0
      %6020 = vmatmul.mubr.f32.gmra.mrb[0].mxu0 %v5841
      %v6021 = vpop.f32.mrb[0].mxu0
      %v6022 = vadd.f32 0.0, %v6021
      %v6023 = vpop.f32.mrb[0].mxu0
      %6024 = vmatprep.mubr.f32.mxu0 0.0
      %6025 = vmatmul.mubr.f32.gmra.mrb[0].mxu0 %v5844
      %v6026 = vpop.f32.mrb[0].mxu0
      %v6027 = vadd.f32 0.0, %v6026
      %v6028 = vpop.f32.mrb[0].mxu0
      %6029 = vmatprep.mubr.f32.mxu0 0.0
      %6030 = vmatmul.mubr.f32.gmra.mrb[0].mxu0 %v5847
      %v6031 = vpop.f32.mrb[0].mxu0
      %v6032 = vadd.f32 0.0, %v6031
      %v6033 = vpop.f32.mrb[0].mxu0
      %6034 = vmatprep.mubr.f32.mxu0 0.0
      %6035 = vmatmul.mubr.f32.gmra.mrb[0].mxu0 %v5850
      %v6036 = vpop.f32.mrb[0].mxu0
      %v6037 = vadd.f32 0.0, %v6036
      %v6038 = vpop.f32.mrb[0].mxu0
      %6039 = vmatprep.mubr.f32.mxu0 0.0
      %6040 = vmatmul.mubr.f32.gmra.mrb[0].mxu0 %v5853
      %v6041 = vpop.f32.mrb[0].mxu0
      %v6042 = vadd.f32 0.0, %v6041
      %v6043 = vpop.f32.mrb[0].mxu0
      %6044 = vmatprep.mubr.f32.mxu0 0.0
      %6045 = vmatmul.mubr.f32.gmra.mrb[0].mxu0 %v5856
      %v6046 = vpop.f32.mrb[0].mxu0
      %v6047 = vadd.f32 0.0, %v6046
      %v6048 = vpop.f32.mrb[0].mxu0
      %6049 = vmatprep.mubr.f32.mxu0 0.0
      %6050 = vmatmul.mubr.f32.gmra.mrb[0].mxu0 %v5859
      %v6051 = vpop.f32.mrb[0].mxu0
      %v6052 = vadd.f32 0.0, %v6051
      %v6053 = vpop.f32.mrb[0].mxu0
      %6054 = vmatprep.mubr.f32.mxu0 0.0
      %6055 = vmatmul.mubr.f32.gmra.mrb[0].mxu0 %v5862
      %v6056 = vpop.f32.mrb[0].mxu0
      %v6057 = vadd.f32 0.0, %v6056
      %v6058 = vpop.f32.mrb[0].mxu0
      %6059 = vmatprep.mubr.f32.mxu0 0.0
      %6060 = vmatmul.mubr.f32.gmra.mrb[0].mxu0 %v5865
      %v6061 = vpop.f32.mrb[0].mxu0
      %v6062 = vadd.f32 0.0, %v6061
      %v6063 = vpop.f32.mrb[0].mxu0
      %6064 = vmatprep.mubr.f32.mxu0 0.0
      %6065 = vmatmul.mubr.f32.gmra.mrb[0].mxu0 %v5868
      %v6066 = vpop.f32.mrb[0].mxu0
      %v6067 = vadd.f32 0.0, %v6066
      %v6068 = vpop.f32.mrb[0].mxu0
      %6069 = vmatprep.mubr.f32.mxu0 0.0
      %6070 = vmatmul.mubr.f32.gmra.mrb[0].mxu0 %v5871
      %v6071 = vpop.f32.mrb[0].mxu0
      %v6072 = vadd.f32 0.0, %v6071
      %v6073 = vpop.f32.mrb[0].mxu0
      %6074 = vmatprep.mubr.f32.mxu0 0.0
      %6075 = vmatmul.mubr.f32.gmra.mrb[0].mxu0 %v5874
      %v6076 = vpop.f32.mrb[0].mxu0
      %v6077 = vadd.f32 0.0, %v6076
      %v6078 = vpop.f32.mrb[0].mxu0
      %6079 = vmatprep.mubr.f32.mxu0 0.0
      %6080 = vmatmul.mubr.f32.gmra.mrb[0].mxu0 %v5877
      %v6081 = vpop.f32.mrb[0].mxu0
      %v6082 = vadd.f32 0.0, %v6081
      %v6083 = vpop.f32.mrb[0].mxu0
      %6084 = vmatprep.mubr.f32.mxu0 0.0
      %6085 = vmatmul.mubr.f32.gmra.mrb[0].mxu0 %v5880
      %v6086 = vpop.f32.mrb[0].mxu0
      %v6087 = vadd.f32 0.0, %v6086
      %v6088 = vpop.f32.mrb[0].mxu0
      %6089 = vmatprep.mubr.f32.mxu0 0.0
      %6090 = vmatmul.mubr.f32.gmra.mrb[0].mxu0 %v5883
      %v6091 = vpop.f32.mrb[0].mxu0
      %v6092 = vadd.f32 0.0, %v6091
      %v6093 = vpop.f32.mrb[0].mxu0
      %6094 = vmatprep.mubr.f32.mxu0 0.0
      %6095 = vmatmul.mubr.f32.gmra.mrb[0].mxu0 %v5886
      %v6096 = vpop.f32.mrb[0].mxu0
      %v6097 = vadd.f32 0.0, %v6096
      %v6098 = vpop.f32.mrb[0].mxu0
      %6099 = vmatprep.mubr.f32.mxu0 0.0
      %6100 = vmatmul.mubr.f32.gmra.mrb[0].mxu0 %v5889
      %v6101 = vpop.f32.mrb[0].mxu0
      %v6102 = vadd.f32 0.0, %v6101
      %v6103 = vpop.f32.mrb[0].mxu0
      %6104 = vmatprep.mubr.f32.mxu0 0.0
      %6105 = vmatmul.mubr.f32.gmra.mrb[0].mxu0 %v5892
      %v6106 = vpop.f32.mrb[0].mxu0
      %v6107 = vadd.f32 0.0, %v6106
      %v6108 = vpop.f32.mrb[0].mxu0
      %6109 = vmatprep.mubr.f32.mxu0 0.0
      %6110 = vmatmul.mubr.f32.gmra.mrb[0].mxu0 %v5895
      %v6111 = vpop.f32.mrb[0].mxu0
      %v6112 = vadd.f32 0.0, %v6111
      %v6113 = vpop.f32.mrb[0].mxu0
      %6114 = vmatprep.mubr.f32.mxu0 0.0
      %6115 = vmatmul.mubr.f32.gmra.mrb[0].mxu0 %v5898
      %v6116 = vpop.f32.mrb[0].mxu0
      %v6117 = vadd.f32 0.0, %v6116
      %v6118 = vpop.f32.mrb[0].mxu0
      %6119 = vmatprep.mubr.f32.mxu0 0.0
      %6120 = vmatmul.mubr.f32.gmra.mrb[0].mxu0 %v5901
      %v6121 = vpop.f32.mrb[0].mxu0
      %v6122 = vadd.f32 0.0, %v6121
      %v6123 = vpop.f32.mrb[0].mxu0
      %6124 = vmatprep.mubr.f32.mxu0 0.0
      %6125 = vmatmul.mubr.f32.gmra.mrb[0].mxu0 %v5904
      %v6126 = vpop.f32.mrb[0].mxu0
      %v6127 = vadd.f32 0.0, %v6126
      %v6128 = vpop.f32.mrb[0].mxu0
      %6129 = vmatprep.mubr.f32.mxu0 0.0
      %6130 = vmatmul.mubr.f32.gmra.mrb[0].mxu0 %v5907
      %v6131 = vpop.f32.mrb[0].mxu0
      %v6132 = vadd.f32 0.0, %v6131
      %v6133 = vpop.f32.mrb[0].mxu0
      %6134 = vmatprep.mubr.f32.mxu0 0.0
      %6135 = vmatmul.mubr.f32.gmra.mrb[0].mxu0 %v5910
      %v6136 = vpop.f32.mrb[0].mxu0
      %v6137 = vadd.f32 0.0, %v6136
      %v6138 = vpop.f32.mrb[0].mxu0
      %6139 = vdwg.mxu0
      %v6140 = vadd.f32 %v5396, %v5982
      %v6141 = vadd.f32 %v5396, %v5987
      %v6142 = vadd.f32 %v5396, %v5992
      %v6143 = vadd.f32 %v5396, %v5997
      %v6144 = vadd.f32 %v5396, %v6002
      %v6145 = vadd.f32 %v5396, %v6007
      %v6146 = vadd.f32 %v5396, %v6012
      %v6147 = vadd.f32 %v5396, %v6017
      %v6148 = vadd.f32 %v5396, %v6022
      %v6149 = vadd.f32 %v5396, %v6027
      %v6150 = vadd.f32 %v5396, %v6032
      %v6151 = vadd.f32 %v5396, %v6037
      %v6152 = vadd.f32 %v5396, %v6042
      %v6153 = vadd.f32 %v5396, %v6047
      %v6154 = vadd.f32 %v5396, %v6052
      %v6155 = vadd.f32 %v5396, %v6057
      %v6156 = vadd.f32 %v5396, %v6062
      %v6157 = vadd.f32 %v5396, %v6067
      %v6158 = vadd.f32 %v5396, %v6072
      %v6159 = vadd.f32 %v5396, %v6077
      %v6160 = vadd.f32 %v5396, %v6082
      %v6161 = vadd.f32 %v5396, %v6087
      %v6162 = vadd.f32 %v5396, %v6092
      %v6163 = vadd.f32 %v5396, %v6097
      %v6164 = vadd.f32 %v5396, %v6102
      %v6165 = vadd.f32 %v5396, %v6107
      %v6166 = vadd.f32 %v5396, %v6112
      %v6167 = vadd.f32 %v5396, %v6117
      %v6168 = vadd.f32 %v5396, %v6122
      %v6169 = vadd.f32 %v5396, %v6127
      %v6170 = vadd.f32 %v5396, %v6132
      %v6171 = vadd.f32 %v5396, %v6137
      %v6172 = vld [vmem:[#allocation3 + $0x8] sm:$0xff]
      %v6173 = vld [vmem:[#allocation3 + $0x10] sm:$0xff]
      %v6174 = vld [vmem:[#allocation3 + $0x28] sm:$0xff]
      %v6175 = vld [vmem:[#allocation3 + $0x30] sm:$0xff]
      %v6176 = vld [vmem:[#allocation3 + $0x48] sm:$0xff]
      %v6177 = vld [vmem:[#allocation3 + $0x50] sm:$0xff]
      %v6178 = vld [vmem:[#allocation3 + $0x68] sm:$0xff]
      %v6179 = vld [vmem:[#allocation3 + $0x70] sm:$0xff]
      %v6180 = vld [vmem:[#allocation3 + $0x88] sm:$0xff]
      %v6181 = vld [vmem:[#allocation3 + $0x90] sm:$0xff]
      %v6182 = vld [vmem:[#allocation3 + $0xa8] sm:$0xff]
      %v6183 = vld [vmem:[#allocation3 + $0xb0] sm:$0xff]
      %v6184 = vld [vmem:[#allocation3 + $0xc8] sm:$0xff]
      %v6185 = vld [vmem:[#allocation3 + $0xd0] sm:$0xff]
      %v6186 = vld [vmem:[#allocation3 + $0xe8] sm:$0xff]
      %v6187 = vld [vmem:[#allocation3 + $0xf0] sm:$0xff]
      %v6188 = vld [vmem:[#allocation3 + $0x108] sm:$0xff]
      %v6189 = vld [vmem:[#allocation3 + $0x110] sm:$0xff]
      %v6190 = vld [vmem:[#allocation3 + $0x128] sm:$0xff]
      %v6191 = vld [vmem:[#allocation3 + $0x130] sm:$0xff]
      %v6192 = vld [vmem:[#allocation3 + $0x148] sm:$0xff]
      %v6193 = vld [vmem:[#allocation3 + $0x150] sm:$0xff]
      %v6194 = vld [vmem:[#allocation3 + $0x168] sm:$0xff]
      %v6195 = vld [vmem:[#allocation3 + $0x170] sm:$0xff]
      %v6196 = vld [vmem:[#allocation3 + $0x188] sm:$0xff]
      %v6197 = vld [vmem:[#allocation3 + $0x190] sm:$0xff]
      %v6198 = vld [vmem:[#allocation3 + $0x1a8] sm:$0xff]
      %v6199 = vld [vmem:[#allocation3 + $0x1b0] sm:$0xff]
      %v6200 = vld [vmem:[#allocation3 + $0x1c8] sm:$0xff]
      %v6201 = vld [vmem:[#allocation3 + $0x1d0] sm:$0xff]
      %v6202 = vld [vmem:[#allocation3 + $0x1e8] sm:$0xff]
      %v6203 = vld [vmem:[#allocation3 + $0x1f0] sm:$0xff]
      %v6204 = vld [vmem:[%s2962 + $0x8] sm:$0xff]
      %v6205 = vld [vmem:[%s2962 + $0x10] sm:$0xff]
      %v6206 = vld [vmem:[%s2962 + $0x28] sm:$0xff]
      %v6207 = vld [vmem:[%s2962 + $0x30] sm:$0xff]
      %v6208 = vld [vmem:[%s2962 + $0x48] sm:$0xff]
      %v6209 = vld [vmem:[%s2962 + $0x50] sm:$0xff]
      %v6210 = vld [vmem:[%s2962 + $0x68] sm:$0xff]
      %v6211 = vld [vmem:[%s2962 + $0x70] sm:$0xff]
      %v6212 = vld [vmem:[%s2962 + $0x88] sm:$0xff]
      %v6213 = vld [vmem:[%s2962 + $0x90] sm:$0xff]
      %v6214 = vld [vmem:[%s2962 + $0xa8] sm:$0xff]
      %v6215 = vld [vmem:[%s2962 + $0xb0] sm:$0xff]
      %v6216 = vld [vmem:[%s2962 + $0xc8] sm:$0xff]
      %v6217 = vld [vmem:[%s2962 + $0xd0] sm:$0xff]
      %v6218 = vld [vmem:[%s2962 + $0xe8] sm:$0xff]
      %v6219 = vld [vmem:[%s2962 + $0xf0] sm:$0xff]
      %v6220 = vld [vmem:[%s2962 + $0x108] sm:$0xff]
      %v6221 = vld [vmem:[%s2962 + $0x110] sm:$0xff]
      %v6222 = vld [vmem:[%s2962 + $0x128] sm:$0xff]
      %v6223 = vld [vmem:[%s2962 + $0x130] sm:$0xff]
      %v6224 = vld [vmem:[%s2962 + $0x148] sm:$0xff]
      %v6225 = vld [vmem:[%s2962 + $0x150] sm:$0xff]
      %v6226 = vld [vmem:[%s2962 + $0x168] sm:$0xff]
      %v6227 = vld [vmem:[%s2962 + $0x170] sm:$0xff]
      %v6228 = vld [vmem:[%s2962 + $0x188] sm:$0xff]
      %v6229 = vld [vmem:[%s2962 + $0x190] sm:$0xff]
      %v6230 = vld [vmem:[%s2962 + $0x1a8] sm:$0xff]
      %v6231 = vld [vmem:[%s2962 + $0x1b0] sm:$0xff]
      %v6232 = vld [vmem:[%s2962 + $0x1c8] sm:$0xff]
      %v6233 = vld [vmem:[%s2962 + $0x1d0] sm:$0xff]
      %v6234 = vld [vmem:[%s2962 + $0x1e8] sm:$0xff]
      %v6235 = vld [vmem:[%s2962 + $0x1f0] sm:$0xff]
      %v6236 = vld [vmem:[%s3066 + $0x8] sm:$0xff]
      %v6237 = vld [vmem:[%s3066 + $0x10] sm:$0xff]
      %v6238 = vld [vmem:[%s3066 + $0x28] sm:$0xff]
      %v6239 = vld [vmem:[%s3066 + $0x30] sm:$0xff]
      %v6240 = vld [vmem:[%s3066 + $0x48] sm:$0xff]
      %v6241 = vld [vmem:[%s3066 + $0x50] sm:$0xff]
      %v6242 = vld [vmem:[%s3066 + $0x68] sm:$0xff]
      %v6243 = vld [vmem:[%s3066 + $0x70] sm:$0xff]
      %v6244 = vld [vmem:[%s3066 + $0x88] sm:$0xff]
      %v6245 = vld [vmem:[%s3066 + $0x90] sm:$0xff]
      %v6246 = vld [vmem:[%s3066 + $0xa8] sm:$0xff]
      %v6247 = vld [vmem:[%s3066 + $0xb0] sm:$0xff]
      %v6248 = vld [vmem:[%s3066 + $0xc8] sm:$0xff]
      %v6249 = vld [vmem:[%s3066 + $0xd0] sm:$0xff]
      %v6250 = vld [vmem:[%s3066 + $0xe8] sm:$0xff]
      %v6251 = vld [vmem:[%s3066 + $0xf0] sm:$0xff]
      %v6252 = vld [vmem:[%s3066 + $0x108] sm:$0xff]
      %v6253 = vld [vmem:[%s3066 + $0x110] sm:$0xff]
      %v6254 = vld [vmem:[%s3066 + $0x128] sm:$0xff]
      %v6255 = vld [vmem:[%s3066 + $0x130] sm:$0xff]
      %v6256 = vld [vmem:[%s3066 + $0x148] sm:$0xff]
      %v6257 = vld [vmem:[%s3066 + $0x150] sm:$0xff]
      %v6258 = vld [vmem:[%s3066 + $0x168] sm:$0xff]
      %v6259 = vld [vmem:[%s3066 + $0x170] sm:$0xff]
      %v6260 = vld [vmem:[%s3066 + $0x188] sm:$0xff]
      %v6261 = vld [vmem:[%s3066 + $0x190] sm:$0xff]
      %v6262 = vld [vmem:[%s3066 + $0x1a8] sm:$0xff]
      %v6263 = vld [vmem:[%s3066 + $0x1b0] sm:$0xff]
      %v6264 = vld [vmem:[%s3066 + $0x1c8] sm:$0xff]
      %v6265 = vld [vmem:[%s3066 + $0x1d0] sm:$0xff]
      %v6266 = vld [vmem:[%s3066 + $0x1e8] sm:$0xff]
      %v6267 = vld [vmem:[%s3066 + $0x1f0] sm:$0xff]
      %6300 = vrot.lane.b32.xlu0 %v6204, 4
      %v6301 = vpop.permute.xlu0 %6300
      %6302 = vrot.lane.b32.xlu0 %v6205, 4
      %v6303 = vpop.permute.xlu0 %6302
      %6304 = vrot.lane.b32.xlu0 %v6206, 4
      %v6305 = vpop.permute.xlu0 %6304
      %6306 = vrot.lane.b32.xlu0 %v6207, 4
      %v6307 = vpop.permute.xlu0 %6306
      %6308 = vrot.lane.b32.xlu0 %v6208, 4
      %v6309 = vpop.permute.xlu0 %6308
      %6310 = vrot.lane.b32.xlu0 %v6209, 4
      %v6311 = vpop.permute.xlu0 %6310
      %6312 = vrot.lane.b32.xlu0 %v6210, 4
      %v6313 = vpop.permute.xlu0 %6312
      %6314 = vrot.lane.b32.xlu0 %v6211, 4
      %v6315 = vpop.permute.xlu0 %6314
      %6316 = vrot.lane.b32.xlu0 %v6212, 4
      %v6317 = vpop.permute.xlu0 %6316
      %6318 = vrot.lane.b32.xlu0 %v6213, 4
      %v6319 = vpop.permute.xlu0 %6318
      %6320 = vrot.lane.b32.xlu0 %v6214, 4
      %v6321 = vpop.permute.xlu0 %6320
      %6322 = vrot.lane.b32.xlu0 %v6215, 4
      %v6323 = vpop.permute.xlu0 %6322
      %6324 = vrot.lane.b32.xlu0 %v6216, 4
      %v6325 = vpop.permute.xlu0 %6324
      %6326 = vrot.lane.b32.xlu0 %v6217, 4
      %v6327 = vpop.permute.xlu0 %6326
      %6328 = vrot.lane.b32.xlu0 %v6218, 4
      %v6329 = vpop.permute.xlu0 %6328
      %6330 = vrot.lane.b32.xlu0 %v6219, 4
      %v6331 = vpop.permute.xlu0 %6330
      %6332 = vrot.lane.b32.xlu0 %v6220, 4
      %v6333 = vpop.permute.xlu0 %6332
      %6334 = vrot.lane.b32.xlu0 %v6221, 4
      %v6335 = vpop.permute.xlu0 %6334
      %6336 = vrot.lane.b32.xlu0 %v6222, 4
      %v6337 = vpop.permute.xlu0 %6336
      %6338 = vrot.lane.b32.xlu0 %v6223, 4
      %v6339 = vpop.permute.xlu0 %6338
      %6340 = vrot.lane.b32.xlu0 %v6224, 4
      %v6341 = vpop.permute.xlu0 %6340
      %6342 = vrot.lane.b32.xlu0 %v6225, 4
      %v6343 = vpop.permute.xlu0 %6342
      %6344 = vrot.lane.b32.xlu0 %v6226, 4
      %v6345 = vpop.permute.xlu0 %6344
      %6346 = vrot.lane.b32.xlu0 %v6227, 4
      %v6347 = vpop.permute.xlu0 %6346
      %6348 = vrot.lane.b32.xlu0 %v6228, 4
      %v6349 = vpop.permute.xlu0 %6348
      %6350 = vrot.lane.b32.xlu0 %v6229, 4
      %v6351 = vpop.permute.xlu0 %6350
      %6352 = vrot.lane.b32.xlu0 %v6230, 4
      %v6353 = vpop.permute.xlu0 %6352
      %6354 = vrot.lane.b32.xlu0 %v6231, 4
      %v6355 = vpop.permute.xlu0 %6354
      %6356 = vrot.lane.b32.xlu0 %v6232, 4
      %v6357 = vpop.permute.xlu0 %6356
      %6358 = vrot.lane.b32.xlu0 %v6233, 4
      %v6359 = vpop.permute.xlu0 %6358
      %6360 = vrot.lane.b32.xlu0 %v6234, 4
      %v6361 = vpop.permute.xlu0 %6360
      %6362 = vrot.lane.b32.xlu0 %v6235, 4
      %v6363 = vpop.permute.xlu0 %6362
      %6428 = vrot.lane.b32.xlu0 %v6236, 8
      %v6429 = vpop.permute.xlu0 %6428
      %6430 = vrot.lane.b32.xlu0 %v6237, 8
      %v6431 = vpop.permute.xlu0 %6430
      %6432 = vrot.lane.b32.xlu0 %v6238, 8
      %v6433 = vpop.permute.xlu0 %6432
      %6434 = vrot.lane.b32.xlu0 %v6239, 8
      %v6435 = vpop.permute.xlu0 %6434
      %6436 = vrot.lane.b32.xlu0 %v6240, 8
      %v6437 = vpop.permute.xlu0 %6436
      %6438 = vrot.lane.b32.xlu0 %v6241, 8
      %v6439 = vpop.permute.xlu0 %6438
      %6440 = vrot.lane.b32.xlu0 %v6242, 8
      %v6441 = vpop.permute.xlu0 %6440
      %6442 = vrot.lane.b32.xlu0 %v6243, 8
      %v6443 = vpop.permute.xlu0 %6442
      %6444 = vrot.lane.b32.xlu0 %v6244, 8
      %v6445 = vpop.permute.xlu0 %6444
      %6446 = vrot.lane.b32.xlu0 %v6245, 8
      %v6447 = vpop.permute.xlu0 %6446
      %6448 = vrot.lane.b32.xlu0 %v6246, 8
      %v6449 = vpop.permute.xlu0 %6448
      %6450 = vrot.lane.b32.xlu0 %v6247, 8
      %v6451 = vpop.permute.xlu0 %6450
      %6452 = vrot.lane.b32.xlu0 %v6248, 8
      %v6453 = vpop.permute.xlu0 %6452
      %6454 = vrot.lane.b32.xlu0 %v6249, 8
      %v6455 = vpop.permute.xlu0 %6454
      %6456 = vrot.lane.b32.xlu0 %v6250, 8
      %v6457 = vpop.permute.xlu0 %6456
      %6458 = vrot.lane.b32.xlu0 %v6251, 8
      %v6459 = vpop.permute.xlu0 %6458
      %6460 = vrot.lane.b32.xlu0 %v6252, 8
      %v6461 = vpop.permute.xlu0 %6460
      %6462 = vrot.lane.b32.xlu0 %v6253, 8
      %v6463 = vpop.permute.xlu0 %6462
      %6464 = vrot.lane.b32.xlu0 %v6254, 8
      %v6465 = vpop.permute.xlu0 %6464
      %6466 = vrot.lane.b32.xlu0 %v6255, 8
      %v6467 = vpop.permute.xlu0 %6466
      %6468 = vrot.lane.b32.xlu0 %v6256, 8
      %v6469 = vpop.permute.xlu0 %6468
      %6470 = vrot.lane.b32.xlu0 %v6257, 8
      %v6471 = vpop.permute.xlu0 %6470
      %6472 = vrot.lane.b32.xlu0 %v6258, 8
      %v6473 = vpop.permute.xlu0 %6472
      %6474 = vrot.lane.b32.xlu0 %v6259, 8
      %v6475 = vpop.permute.xlu0 %6474
      %6476 = vrot.lane.b32.xlu0 %v6260, 8
      %v6477 = vpop.permute.xlu0 %6476
      %6478 = vrot.lane.b32.xlu0 %v6261, 8
      %v6479 = vpop.permute.xlu0 %6478
      %6480 = vrot.lane.b32.xlu0 %v6262, 8
      %v6481 = vpop.permute.xlu0 %6480
      %6482 = vrot.lane.b32.xlu0 %v6263, 8
      %v6483 = vpop.permute.xlu0 %6482
      %6484 = vrot.lane.b32.xlu0 %v6264, 8
      %v6485 = vpop.permute.xlu0 %6484
      %6486 = vrot.lane.b32.xlu0 %v6265, 8
      %v6487 = vpop.permute.xlu0 %6486
      %6488 = vrot.lane.b32.xlu0 %v6266, 8
      %v6489 = vpop.permute.xlu0 %6488
      %6490 = vrot.lane.b32.xlu0 %v6267, 8
      %v6491 = vpop.permute.xlu0 %6490
      %v6524 = vsel %vm279, %v6172, %v6301
      %v6525 = vsel %vm279, %v6173, %v6303
      %v6526 = vsel %vm279, %v6174, %v6305
      %v6527 = vsel %vm279, %v6175, %v6307
      %v6528 = vsel %vm279, %v6176, %v6309
      %v6529 = vsel %vm279, %v6177, %v6311
      %v6530 = vsel %vm279, %v6178, %v6313
      %v6531 = vsel %vm279, %v6179, %v6315
      %v6532 = vsel %vm279, %v6180, %v6317
      %v6533 = vsel %vm279, %v6181, %v6319
      %v6534 = vsel %vm279, %v6182, %v6321
      %v6535 = vsel %vm279, %v6183, %v6323
      %v6536 = vsel %vm279, %v6184, %v6325
      %v6537 = vsel %vm279, %v6185, %v6327
      %v6538 = vsel %vm279, %v6186, %v6329
      %v6539 = vsel %vm279, %v6187, %v6331
      %v6540 = vsel %vm279, %v6188, %v6333
      %v6541 = vsel %vm279, %v6189, %v6335
      %v6542 = vsel %vm279, %v6190, %v6337
      %v6543 = vsel %vm279, %v6191, %v6339
      %v6544 = vsel %vm279, %v6192, %v6341
      %v6545 = vsel %vm279, %v6193, %v6343
      %v6546 = vsel %vm279, %v6194, %v6345
      %v6547 = vsel %vm279, %v6195, %v6347
      %v6548 = vsel %vm279, %v6196, %v6349
      %v6549 = vsel %vm279, %v6197, %v6351
      %v6550 = vsel %vm279, %v6198, %v6353
      %v6551 = vsel %vm279, %v6199, %v6355
      %v6552 = vsel %vm279, %v6200, %v6357
      %v6553 = vsel %vm279, %v6201, %v6359
      %v6554 = vsel %vm279, %v6202, %v6361
      %v6555 = vsel %vm279, %v6203, %v6363
      %v6556 = vsel %vm782, %v6524, %v6429
      %v6557 = vsel %vm782, %v6525, %v6431
      %v6558 = vsel %vm782, %v6526, %v6433
      %v6559 = vsel %vm782, %v6527, %v6435
      %v6560 = vsel %vm782, %v6528, %v6437
      %v6561 = vsel %vm782, %v6529, %v6439
      %v6562 = vsel %vm782, %v6530, %v6441
      %v6563 = vsel %vm782, %v6531, %v6443
      %v6564 = vsel %vm782, %v6532, %v6445
      %v6565 = vsel %vm782, %v6533, %v6447
      %v6566 = vsel %vm782, %v6534, %v6449
      %v6567 = vsel %vm782, %v6535, %v6451
      %v6568 = vsel %vm782, %v6536, %v6453
      %v6569 = vsel %vm782, %v6537, %v6455
      %v6570 = vsel %vm782, %v6538, %v6457
      %v6571 = vsel %vm782, %v6539, %v6459
      %v6572 = vsel %vm782, %v6540, %v6461
      %v6573 = vsel %vm782, %v6541, %v6463
      %v6574 = vsel %vm782, %v6542, %v6465
      %v6575 = vsel %vm782, %v6543, %v6467
      %v6576 = vsel %vm782, %v6544, %v6469
      %v6577 = vsel %vm782, %v6545, %v6471
      %v6578 = vsel %vm782, %v6546, %v6473
      %v6579 = vsel %vm782, %v6547, %v6475
      %v6580 = vsel %vm782, %v6548, %v6477
      %v6581 = vsel %vm782, %v6549, %v6479
      %v6582 = vsel %vm782, %v6550, %v6481
      %v6583 = vsel %vm782, %v6551, %v6483
      %v6584 = vsel %vm782, %v6552, %v6485
      %v6585 = vsel %vm782, %v6553, %v6487
      %v6586 = vsel %vm782, %v6554, %v6489
      %v6587 = vsel %vm782, %v6555, %v6491
      %s6588 = scalar_lea.vmem %s5, 16
      %v6589 = vld [vmem:[%s6588] sm:$0xff]
      %v6590 = vld [vmem:[%s6588 + $0x8] sm:$0xf]
      %v6592 = vsel %vm817, %v6556, 0
      %v6595 = vsel %vm817, %v6557, 0
      %v6598 = vsel %vm817, %v6558, 0
      %v6601 = vsel %vm817, %v6559, 0
      %v6604 = vsel %vm817, %v6560, 0
      %v6607 = vsel %vm817, %v6561, 0
      %v6610 = vsel %vm817, %v6562, 0
      %v6613 = vsel %vm817, %v6563, 0
      %v6616 = vsel %vm817, %v6564, 0
      %v6619 = vsel %vm817, %v6565, 0
      %v6622 = vsel %vm817, %v6566, 0
      %v6625 = vsel %vm817, %v6567, 0
      %v6628 = vsel %vm817, %v6568, 0
      %v6631 = vsel %vm817, %v6569, 0
      %v6634 = vsel %vm817, %v6570, 0
      %v6637 = vsel %vm817, %v6571, 0
      %v6640 = vsel %vm817, %v6572, 0
      %v6643 = vsel %vm817, %v6573, 0
      %v6646 = vsel %vm817, %v6574, 0
      %v6649 = vsel %vm817, %v6575, 0
      %v6652 = vsel %vm817, %v6576, 0
      %v6655 = vsel %vm817, %v6577, 0
      %v6658 = vsel %vm817, %v6578, 0
      %v6661 = vsel %vm817, %v6579, 0
      %v6664 = vsel %vm817, %v6580, 0
      %v6667 = vsel %vm817, %v6581, 0
      %v6670 = vsel %vm817, %v6582, 0
      %v6673 = vsel %vm817, %v6583, 0
      %v6676 = vsel %vm817, %v6584, 0
      %v6679 = vsel %vm817, %v6585, 0
      %v6682 = vsel %vm817, %v6586, 0
      %v6685 = vsel %vm817, %v6587, 0
      %v6688 = vsel %vm914, %v6590, 0
      %6690 = vmatprep.subr.mxu0 0.0
      %6691 = vmatpush1.msra.mxu0 %v6589
      %6692 = vmatprep.subr.mxu0 0.0
      %6693 = vmatpush1.msra.mxu0 %v6688
      %6694 = vmatprep.subr.mxu0 0.0
      %6695 = vmatpush1.msra.mxu0 0.0
      %6696 = vmatprep.subr.mxu0 0.0
      %6697 = vmatpush1.msra.mxu0 0.0
      %6698 = vmatprep.subr.mxu0 0.0
      %6699 = vmatpush1.msra.mxu0 0.0
      %6700 = vmatprep.subr.mxu0 0.0
      %6701 = vmatpush1.msra.mxu0 0.0
      %6702 = vmatprep.subr.mxu0 0.0
      %6703 = vmatpush1.msra.mxu0 0.0
      %6704 = vmatprep.subr.mxu0 0.0
      %6705 = vmatpush1.msra.mxu0 0.0
      %6706 = vmatprep.subr.mxu0 0.0
      %6707 = vmatpush1.msra.mxu0 0.0
      %6708 = vmatprep.subr.mxu0 0.0
      %6709 = vmatpush1.msra.mxu0 0.0
      %6710 = vmatprep.subr.mxu0 0.0
      %6711 = vmatpush1.msra.mxu0 0.0
      %6712 = vmatprep.subr.mxu0 0.0
      %6713 = vmatpush1.msra.mxu0 0.0
      %6714 = vmatprep.subr.mxu0 0.0
      %6715 = vmatpush1.msra.mxu0 0.0
      %6716 = vmatprep.subr.mxu0 0.0
      %6717 = vmatpush1.msra.mxu0 0.0
      %6718 = vmatprep.subr.mxu0 0.0
      %6719 = vmatpush1.msra.mxu0 0.0
      %6720 = vmatprep.subr.mxu0 0.0
      %6721 = vmatpush1.msra.mxu0 0.0
      %6722 = vmatprep.subr.mxu0 0.0
      %6723 = vmatpush1.msra.mxu0 0.0
      %6724 = vmatprep.subr.mxu0 0.0
      %6725 = vmatpush1.msra.mxu0 0.0
      %6726 = vmatprep.subr.mxu0 0.0
      %6727 = vmatpush1.msra.mxu0 0.0
      %6728 = vmatprep.subr.mxu0 0.0
      %6729 = vmatpush1.msra.mxu0 0.0
      %6730 = vmatprep.subr.mxu0 0.0
      %6731 = vmatpush1.msra.mxu0 0.0
      %6732 = vmatprep.subr.mxu0 0.0
      %6733 = vmatpush1.msra.mxu0 0.0
      %6734 = vmatprep.subr.mxu0 0.0
      %6735 = vmatpush1.msra.mxu0 0.0
      %6736 = vmatprep.subr.mxu0 0.0
      %6737 = vmatpush1.msra.mxu0 0.0
      %6738 = vmatprep.subr.mxu0 0.0
      %6739 = vmatpush1.msra.mxu0 0.0
      %6740 = vmatprep.subr.mxu0 0.0
      %6741 = vmatpush1.msra.mxu0 0.0
      %6742 = vmatprep.subr.mxu0 0.0
      %6743 = vmatpush1.msra.mxu0 0.0
      %6744 = vmatprep.subr.mxu0 0.0
      %6745 = vmatpush1.msra.mxu0 0.0
      %6746 = vmatprep.subr.mxu0 0.0
      %6747 = vmatpush1.msra.mxu0 0.0
      %6748 = vmatprep.subr.mxu0 0.0
      %6749 = vmatpush1.msra.mxu0 0.0
      %6750 = vmatprep.subr.mxu0 0.0
      %6751 = vmatpush1.msra.mxu0 0.0
      %6752 = vmatprep.subr.mxu0 0.0
      %6753 = vmatpush1.msra.mxu0 0.0
      %6754 = vmatprep.mubr.f32.mxu0 0.0
      %6755 = vmatmul.mubr.f32.gmra.mrb[0].mxu0 %v6592
      %v6756 = vpop.f32.mrb[0].mxu0
      %v6757 = vadd.f32 0.0, %v6756
      %v6758 = vpop.f32.mrb[0].mxu0
      %6759 = vmatprep.mubr.f32.mxu0 0.0
      %6760 = vmatmul.mubr.f32.gmra.mrb[0].mxu0 %v6595
      %v6761 = vpop.f32.mrb[0].mxu0
      %v6762 = vadd.f32 0.0, %v6761
      %v6763 = vpop.f32.mrb[0].mxu0
      %6764 = vmatprep.mubr.f32.mxu0 0.0
      %6765 = vmatmul.mubr.f32.gmra.mrb[0].mxu0 %v6598
      %v6766 = vpop.f32.mrb[0].mxu0
      %v6767 = vadd.f32 0.0, %v6766
      %v6768 = vpop.f32.mrb[0].mxu0
      %6769 = vmatprep.mubr.f32.mxu0 0.0
      %6770 = vmatmul.mubr.f32.gmra.mrb[0].mxu0 %v6601
      %v6771 = vpop.f32.mrb[0].mxu0
      %v6772 = vadd.f32 0.0, %v6771
      %v6773 = vpop.f32.mrb[0].mxu0
      %6774 = vmatprep.mubr.f32.mxu0 0.0
      %6775 = vmatmul.mubr.f32.gmra.mrb[0].mxu0 %v6604
      %v6776 = vpop.f32.mrb[0].mxu0
      %v6777 = vadd.f32 0.0, %v6776
      %v6778 = vpop.f32.mrb[0].mxu0
      %6779 = vmatprep.mubr.f32.mxu0 0.0
      %6780 = vmatmul.mubr.f32.gmra.mrb[0].mxu0 %v6607
      %v6781 = vpop.f32.mrb[0].mxu0
      %v6782 = vadd.f32 0.0, %v6781
      %v6783 = vpop.f32.mrb[0].mxu0
      %6784 = vmatprep.mubr.f32.mxu0 0.0
      %6785 = vmatmul.mubr.f32.gmra.mrb[0].mxu0 %v6610
      %v6786 = vpop.f32.mrb[0].mxu0
      %v6787 = vadd.f32 0.0, %v6786
      %v6788 = vpop.f32.mrb[0].mxu0
      %6789 = vmatprep.mubr.f32.mxu0 0.0
      %6790 = vmatmul.mubr.f32.gmra.mrb[0].mxu0 %v6613
      %v6791 = vpop.f32.mrb[0].mxu0
      %v6792 = vadd.f32 0.0, %v6791
      %v6793 = vpop.f32.mrb[0].mxu0
      %6794 = vmatprep.mubr.f32.mxu0 0.0
      %6795 = vmatmul.mubr.f32.gmra.mrb[0].mxu0 %v6616
      %v6796 = vpop.f32.mrb[0].mxu0
      %v6797 = vadd.f32 0.0, %v6796
      %v6798 = vpop.f32.mrb[0].mxu0
      %6799 = vmatprep.mubr.f32.mxu0 0.0
      %6800 = vmatmul.mubr.f32.gmra.mrb[0].mxu0 %v6619
      %v6801 = vpop.f32.mrb[0].mxu0
      %v6802 = vadd.f32 0.0, %v6801
      %v6803 = vpop.f32.mrb[0].mxu0
      %6804 = vmatprep.mubr.f32.mxu0 0.0
      %6805 = vmatmul.mubr.f32.gmra.mrb[0].mxu0 %v6622
      %v6806 = vpop.f32.mrb[0].mxu0
      %v6807 = vadd.f32 0.0, %v6806
      %v6808 = vpop.f32.mrb[0].mxu0
      %6809 = vmatprep.mubr.f32.mxu0 0.0
      %6810 = vmatmul.mubr.f32.gmra.mrb[0].mxu0 %v6625
      %v6811 = vpop.f32.mrb[0].mxu0
      %v6812 = vadd.f32 0.0, %v6811
      %v6813 = vpop.f32.mrb[0].mxu0
      %6814 = vmatprep.mubr.f32.mxu0 0.0
      %6815 = vmatmul.mubr.f32.gmra.mrb[0].mxu0 %v6628
      %v6816 = vpop.f32.mrb[0].mxu0
      %v6817 = vadd.f32 0.0, %v6816
      %v6818 = vpop.f32.mrb[0].mxu0
      %6819 = vmatprep.mubr.f32.mxu0 0.0
      %6820 = vmatmul.mubr.f32.gmra.mrb[0].mxu0 %v6631
      %v6821 = vpop.f32.mrb[0].mxu0
      %v6822 = vadd.f32 0.0, %v6821
      %v6823 = vpop.f32.mrb[0].mxu0
      %6824 = vmatprep.mubr.f32.mxu0 0.0
      %6825 = vmatmul.mubr.f32.gmra.mrb[0].mxu0 %v6634
      %v6826 = vpop.f32.mrb[0].mxu0
      %v6827 = vadd.f32 0.0, %v6826
      %v6828 = vpop.f32.mrb[0].mxu0
      %6829 = vmatprep.mubr.f32.mxu0 0.0
      %6830 = vmatmul.mubr.f32.gmra.mrb[0].mxu0 %v6637
      %v6831 = vpop.f32.mrb[0].mxu0
      %v6832 = vadd.f32 0.0, %v6831
      %v6833 = vpop.f32.mrb[0].mxu0
      %6834 = vmatprep.mubr.f32.mxu0 0.0
      %6835 = vmatmul.mubr.f32.gmra.mrb[0].mxu0 %v6640
      %v6836 = vpop.f32.mrb[0].mxu0
      %v6837 = vadd.f32 0.0, %v6836
      %v6838 = vpop.f32.mrb[0].mxu0
      %6839 = vmatprep.mubr.f32.mxu0 0.0
      %6840 = vmatmul.mubr.f32.gmra.mrb[0].mxu0 %v6643
      %v6841 = vpop.f32.mrb[0].mxu0
      %v6842 = vadd.f32 0.0, %v6841
      %v6843 = vpop.f32.mrb[0].mxu0
      %6844 = vmatprep.mubr.f32.mxu0 0.0
      %6845 = vmatmul.mubr.f32.gmra.mrb[0].mxu0 %v6646
      %v6846 = vpop.f32.mrb[0].mxu0
      %v6847 = vadd.f32 0.0, %v6846
      %v6848 = vpop.f32.mrb[0].mxu0
      %6849 = vmatprep.mubr.f32.mxu0 0.0
      %6850 = vmatmul.mubr.f32.gmra.mrb[0].mxu0 %v6649
      %v6851 = vpop.f32.mrb[0].mxu0
      %v6852 = vadd.f32 0.0, %v6851
      %v6853 = vpop.f32.mrb[0].mxu0
      %6854 = vmatprep.mubr.f32.mxu0 0.0
      %6855 = vmatmul.mubr.f32.gmra.mrb[0].mxu0 %v6652
      %v6856 = vpop.f32.mrb[0].mxu0
      %v6857 = vadd.f32 0.0, %v6856
      %v6858 = vpop.f32.mrb[0].mxu0
      %6859 = vmatprep.mubr.f32.mxu0 0.0
      %6860 = vmatmul.mubr.f32.gmra.mrb[0].mxu0 %v6655
      %v6861 = vpop.f32.mrb[0].mxu0
      %v6862 = vadd.f32 0.0, %v6861
      %v6863 = vpop.f32.mrb[0].mxu0
      %6864 = vmatprep.mubr.f32.mxu0 0.0
      %6865 = vmatmul.mubr.f32.gmra.mrb[0].mxu0 %v6658
      %v6866 = vpop.f32.mrb[0].mxu0
      %v6867 = vadd.f32 0.0, %v6866
      %v6868 = vpop.f32.mrb[0].mxu0
      %6869 = vmatprep.mubr.f32.mxu0 0.0
      %6870 = vmatmul.mubr.f32.gmra.mrb[0].mxu0 %v6661
      %v6871 = vpop.f32.mrb[0].mxu0
      %v6872 = vadd.f32 0.0, %v6871
      %v6873 = vpop.f32.mrb[0].mxu0
      %6874 = vmatprep.mubr.f32.mxu0 0.0
      %6875 = vmatmul.mubr.f32.gmra.mrb[0].mxu0 %v6664
      %v6876 = vpop.f32.mrb[0].mxu0
      %v6877 = vadd.f32 0.0, %v6876
      %v6878 = vpop.f32.mrb[0].mxu0
      %6879 = vmatprep.mubr.f32.mxu0 0.0
      %6880 = vmatmul.mubr.f32.gmra.mrb[0].mxu0 %v6667
      %v6881 = vpop.f32.mrb[0].mxu0
      %v6882 = vadd.f32 0.0, %v6881
      %v6883 = vpop.f32.mrb[0].mxu0
      %6884 = vmatprep.mubr.f32.mxu0 0.0
      %6885 = vmatmul.mubr.f32.gmra.mrb[0].mxu0 %v6670
      %v6886 = vpop.f32.mrb[0].mxu0
      %v6887 = vadd.f32 0.0, %v6886
      %v6888 = vpop.f32.mrb[0].mxu0
      %6889 = vmatprep.mubr.f32.mxu0 0.0
      %6890 = vmatmul.mubr.f32.gmra.mrb[0].mxu0 %v6673
      %v6891 = vpop.f32.mrb[0].mxu0
      %v6892 = vadd.f32 0.0, %v6891
      %v6893 = vpop.f32.mrb[0].mxu0
      %6894 = vmatprep.mubr.f32.mxu0 0.0
      %6895 = vmatmul.mubr.f32.gmra.mrb[0].mxu0 %v6676
      %v6896 = vpop.f32.mrb[0].mxu0
      %v6897 = vadd.f32 0.0, %v6896
      %v6898 = vpop.f32.mrb[0].mxu0
      %6899 = vmatprep.mubr.f32.mxu0 0.0
      %6900 = vmatmul.mubr.f32.gmra.mrb[0].mxu0 %v6679
      %v6901 = vpop.f32.mrb[0].mxu0
      %v6902 = vadd.f32 0.0, %v6901
      %v6903 = vpop.f32.mrb[0].mxu0
      %6904 = vmatprep.mubr.f32.mxu0 0.0
      %6905 = vmatmul.mubr.f32.gmra.mrb[0].mxu0 %v6682
      %v6906 = vpop.f32.mrb[0].mxu0
      %v6907 = vadd.f32 0.0, %v6906
      %v6908 = vpop.f32.mrb[0].mxu0
      %6909 = vmatprep.mubr.f32.mxu0 0.0
      %6910 = vmatmul.mubr.f32.gmra.mrb[0].mxu0 %v6685
      %v6911 = vpop.f32.mrb[0].mxu0
      %v6912 = vadd.f32 0.0, %v6911
      %v6913 = vpop.f32.mrb[0].mxu0
      %6914 = vdwg.mxu0
      %v6915 = vadd.f32 %v6140, %v6757
      %v6916 = vadd.f32 %v6141, %v6762
      %v6917 = vadd.f32 %v6142, %v6767
      %v6918 = vadd.f32 %v6143, %v6772
      %v6919 = vadd.f32 %v6144, %v6777
      %v6920 = vadd.f32 %v6145, %v6782
      %v6921 = vadd.f32 %v6146, %v6787
      %v6922 = vadd.f32 %v6147, %v6792
      %v6923 = vadd.f32 %v6148, %v6797
      %v6924 = vadd.f32 %v6149, %v6802
      %v6925 = vadd.f32 %v6150, %v6807
      %v6926 = vadd.f32 %v6151, %v6812
      %v6927 = vadd.f32 %v6152, %v6817
      %v6928 = vadd.f32 %v6153, %v6822
      %v6929 = vadd.f32 %v6154, %v6827
      %v6930 = vadd.f32 %v6155, %v6832
      %v6931 = vadd.f32 %v6156, %v6837
      %v6932 = vadd.f32 %v6157, %v6842
      %v6933 = vadd.f32 %v6158, %v6847
      %v6934 = vadd.f32 %v6159, %v6852
      %v6935 = vadd.f32 %v6160, %v6857
      %v6936 = vadd.f32 %v6161, %v6862
      %v6937 = vadd.f32 %v6162, %v6867
      %v6938 = vadd.f32 %v6163, %v6872
      %v6939 = vadd.f32 %v6164, %v6877
      %v6940 = vadd.f32 %v6165, %v6882
      %v6941 = vadd.f32 %v6166, %v6887
      %v6942 = vadd.f32 %v6167, %v6892
      %v6943 = vadd.f32 %v6168, %v6897
      %v6944 = vadd.f32 %v6169, %v6902
      %v6945 = vadd.f32 %v6170, %v6907
      %v6946 = vadd.f32 %v6171, %v6912
      %v6947 = vld [vmem:[#allocation3 + $0x9] sm:$0xff]
      %v6948 = vld [vmem:[#allocation3 + $0x11] sm:$0xff]
      %v6949 = vld [vmem:[#allocation3 + $0x29] sm:$0xff]
      %v6950 = vld [vmem:[#allocation3 + $0x31] sm:$0xff]
      %v6951 = vld [vmem:[#allocation3 + $0x49] sm:$0xff]
      %v6952 = vld [vmem:[#allocation3 + $0x51] sm:$0xff]
      %v6953 = vld [vmem:[#allocation3 + $0x69] sm:$0xff]
      %v6954 = vld [vmem:[#allocation3 + $0x71] sm:$0xff]
      %v6955 = vld [vmem:[#allocation3 + $0x89] sm:$0xff]
      %v6956 = vld [vmem:[#allocation3 + $0x91] sm:$0xff]
      %v6957 = vld [vmem:[#allocation3 + $0xa9] sm:$0xff]
      %v6958 = vld [vmem:[#allocation3 + $0xb1] sm:$0xff]
      %v6959 = vld [vmem:[#allocation3 + $0xc9] sm:$0xff]
      %v6960 = vld [vmem:[#allocation3 + $0xd1] sm:$0xff]
      %v6961 = vld [vmem:[#allocation3 + $0xe9] sm:$0xff]
      %v6962 = vld [vmem:[#allocation3 + $0xf1] sm:$0xff]
      %v6963 = vld [vmem:[#allocation3 + $0x109] sm:$0xff]
      %v6964 = vld [vmem:[#allocation3 + $0x111] sm:$0xff]
      %v6965 = vld [vmem:[#allocation3 + $0x129] sm:$0xff]
      %v6966 = vld [vmem:[#allocation3 + $0x131] sm:$0xff]
      %v6967 = vld [vmem:[#allocation3 + $0x149] sm:$0xff]
      %v6968 = vld [vmem:[#allocation3 + $0x151] sm:$0xff]
      %v6969 = vld [vmem:[#allocation3 + $0x169] sm:$0xff]
      %v6970 = vld [vmem:[#allocation3 + $0x171] sm:$0xff]
      %v6971 = vld [vmem:[#allocation3 + $0x189] sm:$0xff]
      %v6972 = vld [vmem:[#allocation3 + $0x191] sm:$0xff]
      %v6973 = vld [vmem:[#allocation3 + $0x1a9] sm:$0xff]
      %v6974 = vld [vmem:[#allocation3 + $0x1b1] sm:$0xff]
      %v6975 = vld [vmem:[#allocation3 + $0x1c9] sm:$0xff]
      %v6976 = vld [vmem:[#allocation3 + $0x1d1] sm:$0xff]
      %v6977 = vld [vmem:[#allocation3 + $0x1e9] sm:$0xff]
      %v6978 = vld [vmem:[#allocation3 + $0x1f1] sm:$0xff]
      %v6979 = vld [vmem:[%s2962 + $0x9] sm:$0xff]
      %v6980 = vld [vmem:[%s2962 + $0x11] sm:$0xff]
      %v6981 = vld [vmem:[%s2962 + $0x29] sm:$0xff]
      %v6982 = vld [vmem:[%s2962 + $0x31] sm:$0xff]
      %v6983 = vld [vmem:[%s2962 + $0x49] sm:$0xff]
      %v6984 = vld [vmem:[%s2962 + $0x51] sm:$0xff]
      %v6985 = vld [vmem:[%s2962 + $0x69] sm:$0xff]
      %v6986 = vld [vmem:[%s2962 + $0x71] sm:$0xff]
      %v6987 = vld [vmem:[%s2962 + $0x89] sm:$0xff]
      %v6988 = vld [vmem:[%s2962 + $0x91] sm:$0xff]
      %v6989 = vld [vmem:[%s2962 + $0xa9] sm:$0xff]
      %v6990 = vld [vmem:[%s2962 + $0xb1] sm:$0xff]
      %v6991 = vld [vmem:[%s2962 + $0xc9] sm:$0xff]
      %v6992 = vld [vmem:[%s2962 + $0xd1] sm:$0xff]
      %v6993 = vld [vmem:[%s2962 + $0xe9] sm:$0xff]
      %v6994 = vld [vmem:[%s2962 + $0xf1] sm:$0xff]
      %v6995 = vld [vmem:[%s2962 + $0x109] sm:$0xff]
      %v6996 = vld [vmem:[%s2962 + $0x111] sm:$0xff]
      %v6997 = vld [vmem:[%s2962 + $0x129] sm:$0xff]
      %v6998 = vld [vmem:[%s2962 + $0x131] sm:$0xff]
      %v6999 = vld [vmem:[%s2962 + $0x149] sm:$0xff]
      %v7000 = vld [vmem:[%s2962 + $0x151] sm:$0xff]
      %v7001 = vld [vmem:[%s2962 + $0x169] sm:$0xff]
      %v7002 = vld [vmem:[%s2962 + $0x171] sm:$0xff]
      %v7003 = vld [vmem:[%s2962 + $0x189] sm:$0xff]
      %v7004 = vld [vmem:[%s2962 + $0x191] sm:$0xff]
      %v7005 = vld [vmem:[%s2962 + $0x1a9] sm:$0xff]
      %v7006 = vld [vmem:[%s2962 + $0x1b1] sm:$0xff]
      %v7007 = vld [vmem:[%s2962 + $0x1c9] sm:$0xff]
      %v7008 = vld [vmem:[%s2962 + $0x1d1] sm:$0xff]
      %v7009 = vld [vmem:[%s2962 + $0x1e9] sm:$0xff]
      %v7010 = vld [vmem:[%s2962 + $0x1f1] sm:$0xff]
      %v7011 = vld [vmem:[%s3066 + $0x9] sm:$0xff]
      %v7012 = vld [vmem:[%s3066 + $0x11] sm:$0xff]
      %v7013 = vld [vmem:[%s3066 + $0x29] sm:$0xff]
      %v7014 = vld [vmem:[%s3066 + $0x31] sm:$0xff]
      %v7015 = vld [vmem:[%s3066 + $0x49] sm:$0xff]
      %v7016 = vld [vmem:[%s3066 + $0x51] sm:$0xff]
      %v7017 = vld [vmem:[%s3066 + $0x69] sm:$0xff]
      %v7018 = vld [vmem:[%s3066 + $0x71] sm:$0xff]
      %v7019 = vld [vmem:[%s3066 + $0x89] sm:$0xff]
      %v7020 = vld [vmem:[%s3066 + $0x91] sm:$0xff]
      %v7021 = vld [vmem:[%s3066 + $0xa9] sm:$0xff]
      %v7022 = vld [vmem:[%s3066 + $0xb1] sm:$0xff]
      %v7023 = vld [vmem:[%s3066 + $0xc9] sm:$0xff]
      %v7024 = vld [vmem:[%s3066 + $0xd1] sm:$0xff]
      %v7025 = vld [vmem:[%s3066 + $0xe9] sm:$0xff]
      %v7026 = vld [vmem:[%s3066 + $0xf1] sm:$0xff]
      %v7027 = vld [vmem:[%s3066 + $0x109] sm:$0xff]
      %v7028 = vld [vmem:[%s3066 + $0x111] sm:$0xff]
      %v7029 = vld [vmem:[%s3066 + $0x129] sm:$0xff]
      %v7030 = vld [vmem:[%s3066 + $0x131] sm:$0xff]
      %v7031 = vld [vmem:[%s3066 + $0x149] sm:$0xff]
      %v7032 = vld [vmem:[%s3066 + $0x151] sm:$0xff]
      %v7033 = vld [vmem:[%s3066 + $0x169] sm:$0xff]
      %v7034 = vld [vmem:[%s3066 + $0x171] sm:$0xff]
      %v7035 = vld [vmem:[%s3066 + $0x189] sm:$0xff]
      %v7036 = vld [vmem:[%s3066 + $0x191] sm:$0xff]
      %v7037 = vld [vmem:[%s3066 + $0x1a9] sm:$0xff]
      %v7038 = vld [vmem:[%s3066 + $0x1b1] sm:$0xff]
      %v7039 = vld [vmem:[%s3066 + $0x1c9] sm:$0xff]
      %v7040 = vld [vmem:[%s3066 + $0x1d1] sm:$0xff]
      %v7041 = vld [vmem:[%s3066 + $0x1e9] sm:$0xff]
      %v7042 = vld [vmem:[%s3066 + $0x1f1] sm:$0xff]
      %7075 = vrot.lane.b32.xlu0 %v6979, 4
      %v7076 = vpop.permute.xlu0 %7075
      %7077 = vrot.lane.b32.xlu0 %v6980, 4
      %v7078 = vpop.permute.xlu0 %7077
      %7079 = vrot.lane.b32.xlu0 %v6981, 4
      %v7080 = vpop.permute.xlu0 %7079
      %7081 = vrot.lane.b32.xlu0 %v6982, 4
      %v7082 = vpop.permute.xlu0 %7081
      %7083 = vrot.lane.b32.xlu0 %v6983, 4
      %v7084 = vpop.permute.xlu0 %7083
      %7085 = vrot.lane.b32.xlu0 %v6984, 4
      %v7086 = vpop.permute.xlu0 %7085
      %7087 = vrot.lane.b32.xlu0 %v6985, 4
      %v7088 = vpop.permute.xlu0 %7087
      %7089 = vrot.lane.b32.xlu0 %v6986, 4
      %v7090 = vpop.permute.xlu0 %7089
      %7091 = vrot.lane.b32.xlu0 %v6987, 4
      %v7092 = vpop.permute.xlu0 %7091
      %7093 = vrot.lane.b32.xlu0 %v6988, 4
      %v7094 = vpop.permute.xlu0 %7093
      %7095 = vrot.lane.b32.xlu0 %v6989, 4
      %v7096 = vpop.permute.xlu0 %7095
      %7097 = vrot.lane.b32.xlu0 %v6990, 4
      %v7098 = vpop.permute.xlu0 %7097
      %7099 = vrot.lane.b32.xlu0 %v6991, 4
      %v7100 = vpop.permute.xlu0 %7099
      %7101 = vrot.lane.b32.xlu0 %v6992, 4
      %v7102 = vpop.permute.xlu0 %7101
      %7103 = vrot.lane.b32.xlu0 %v6993, 4
      %v7104 = vpop.permute.xlu0 %7103
      %7105 = vrot.lane.b32.xlu0 %v6994, 4
      %v7106 = vpop.permute.xlu0 %7105
      %7107 = vrot.lane.b32.xlu0 %v6995, 4
      %v7108 = vpop.permute.xlu0 %7107
      %7109 = vrot.lane.b32.xlu0 %v6996, 4
      %v7110 = vpop.permute.xlu0 %7109
      %7111 = vrot.lane.b32.xlu0 %v6997, 4
      %v7112 = vpop.permute.xlu0 %7111
      %7113 = vrot.lane.b32.xlu0 %v6998, 4
      %v7114 = vpop.permute.xlu0 %7113
      %7115 = vrot.lane.b32.xlu0 %v6999, 4
      %v7116 = vpop.permute.xlu0 %7115
      %7117 = vrot.lane.b32.xlu0 %v7000, 4
      %v7118 = vpop.permute.xlu0 %7117
      %7119 = vrot.lane.b32.xlu0 %v7001, 4
      %v7120 = vpop.permute.xlu0 %7119
      %7121 = vrot.lane.b32.xlu0 %v7002, 4
      %v7122 = vpop.permute.xlu0 %7121
      %7123 = vrot.lane.b32.xlu0 %v7003, 4
      %v7124 = vpop.permute.xlu0 %7123
      %7125 = vrot.lane.b32.xlu0 %v7004, 4
      %v7126 = vpop.permute.xlu0 %7125
      %7127 = vrot.lane.b32.xlu0 %v7005, 4
      %v7128 = vpop.permute.xlu0 %7127
      %7129 = vrot.lane.b32.xlu0 %v7006, 4
      %v7130 = vpop.permute.xlu0 %7129
      %7131 = vrot.lane.b32.xlu0 %v7007, 4
      %v7132 = vpop.permute.xlu0 %7131
      %7133 = vrot.lane.b32.xlu0 %v7008, 4
      %v7134 = vpop.permute.xlu0 %7133
      %7135 = vrot.lane.b32.xlu0 %v7009, 4
      %v7136 = vpop.permute.xlu0 %7135
      %7137 = vrot.lane.b32.xlu0 %v7010, 4
      %v7138 = vpop.permute.xlu0 %7137
      %7203 = vrot.lane.b32.xlu0 %v7011, 8
      %v7204 = vpop.permute.xlu0 %7203
      %7205 = vrot.lane.b32.xlu0 %v7012, 8
      %v7206 = vpop.permute.xlu0 %7205
      %7207 = vrot.lane.b32.xlu0 %v7013, 8
      %v7208 = vpop.permute.xlu0 %7207
      %7209 = vrot.lane.b32.xlu0 %v7014, 8
      %v7210 = vpop.permute.xlu0 %7209
      %7211 = vrot.lane.b32.xlu0 %v7015, 8
      %v7212 = vpop.permute.xlu0 %7211
      %7213 = vrot.lane.b32.xlu0 %v7016, 8
      %v7214 = vpop.permute.xlu0 %7213
      %7215 = vrot.lane.b32.xlu0 %v7017, 8
      %v7216 = vpop.permute.xlu0 %7215
      %7217 = vrot.lane.b32.xlu0 %v7018, 8
      %v7218 = vpop.permute.xlu0 %7217
      %7219 = vrot.lane.b32.xlu0 %v7019, 8
      %v7220 = vpop.permute.xlu0 %7219
      %7221 = vrot.lane.b32.xlu0 %v7020, 8
      %v7222 = vpop.permute.xlu0 %7221
      %7223 = vrot.lane.b32.xlu0 %v7021, 8
      %v7224 = vpop.permute.xlu0 %7223
      %7225 = vrot.lane.b32.xlu0 %v7022, 8
      %v7226 = vpop.permute.xlu0 %7225
      %7227 = vrot.lane.b32.xlu0 %v7023, 8
      %v7228 = vpop.permute.xlu0 %7227
      %7229 = vrot.lane.b32.xlu0 %v7024, 8
      %v7230 = vpop.permute.xlu0 %7229
      %7231 = vrot.lane.b32.xlu0 %v7025, 8
      %v7232 = vpop.permute.xlu0 %7231
      %7233 = vrot.lane.b32.xlu0 %v7026, 8
      %v7234 = vpop.permute.xlu0 %7233
      %7235 = vrot.lane.b32.xlu0 %v7027, 8
      %v7236 = vpop.permute.xlu0 %7235
      %7237 = vrot.lane.b32.xlu0 %v7028, 8
      %v7238 = vpop.permute.xlu0 %7237
      %7239 = vrot.lane.b32.xlu0 %v7029, 8
      %v7240 = vpop.permute.xlu0 %7239
      %7241 = vrot.lane.b32.xlu0 %v7030, 8
      %v7242 = vpop.permute.xlu0 %7241
      %7243 = vrot.lane.b32.xlu0 %v7031, 8
      %v7244 = vpop.permute.xlu0 %7243
      %7245 = vrot.lane.b32.xlu0 %v7032, 8
      %v7246 = vpop.permute.xlu0 %7245
      %7247 = vrot.lane.b32.xlu0 %v7033, 8
      %v7248 = vpop.permute.xlu0 %7247
      %7249 = vrot.lane.b32.xlu0 %v7034, 8
      %v7250 = vpop.permute.xlu0 %7249
      %7251 = vrot.lane.b32.xlu0 %v7035, 8
      %v7252 = vpop.permute.xlu0 %7251
      %7253 = vrot.lane.b32.xlu0 %v7036, 8
      %v7254 = vpop.permute.xlu0 %7253
      %7255 = vrot.lane.b32.xlu0 %v7037, 8
      %v7256 = vpop.permute.xlu0 %7255
      %7257 = vrot.lane.b32.xlu0 %v7038, 8
      %v7258 = vpop.permute.xlu0 %7257
      %7259 = vrot.lane.b32.xlu0 %v7039, 8
      %v7260 = vpop.permute.xlu0 %7259
      %7261 = vrot.lane.b32.xlu0 %v7040, 8
      %v7262 = vpop.permute.xlu0 %7261
      %7263 = vrot.lane.b32.xlu0 %v7041, 8
      %v7264 = vpop.permute.xlu0 %7263
      %7265 = vrot.lane.b32.xlu0 %v7042, 8
      %v7266 = vpop.permute.xlu0 %7265
      %v7299 = vsel %vm279, %v6947, %v7076
      %v7300 = vsel %vm279, %v6948, %v7078
      %v7301 = vsel %vm279, %v6949, %v7080
      %v7302 = vsel %vm279, %v6950, %v7082
      %v7303 = vsel %vm279, %v6951, %v7084
      %v7304 = vsel %vm279, %v6952, %v7086
      %v7305 = vsel %vm279, %v6953, %v7088
      %v7306 = vsel %vm279, %v6954, %v7090
      %v7307 = vsel %vm279, %v6955, %v7092
      %v7308 = vsel %vm279, %v6956, %v7094
      %v7309 = vsel %vm279, %v6957, %v7096
      %v7310 = vsel %vm279, %v6958, %v7098
      %v7311 = vsel %vm279, %v6959, %v7100
      %v7312 = vsel %vm279, %v6960, %v7102
      %v7313 = vsel %vm279, %v6961, %v7104
      %v7314 = vsel %vm279, %v6962, %v7106
      %v7315 = vsel %vm279, %v6963, %v7108
      %v7316 = vsel %vm279, %v6964, %v7110
      %v7317 = vsel %vm279, %v6965, %v7112
      %v7318 = vsel %vm279, %v6966, %v7114
      %v7319 = vsel %vm279, %v6967, %v7116
      %v7320 = vsel %vm279, %v6968, %v7118
      %v7321 = vsel %vm279, %v6969, %v7120
      %v7322 = vsel %vm279, %v6970, %v7122
      %v7323 = vsel %vm279, %v6971, %v7124
      %v7324 = vsel %vm279, %v6972, %v7126
      %v7325 = vsel %vm279, %v6973, %v7128
      %v7326 = vsel %vm279, %v6974, %v7130
      %v7327 = vsel %vm279, %v6975, %v7132
      %v7328 = vsel %vm279, %v6976, %v7134
      %v7329 = vsel %vm279, %v6977, %v7136
      %v7330 = vsel %vm279, %v6978, %v7138
      %v7331 = vsel %vm782, %v7299, %v7204
      %v7332 = vsel %vm782, %v7300, %v7206
      %v7333 = vsel %vm782, %v7301, %v7208
      %v7334 = vsel %vm782, %v7302, %v7210
      %v7335 = vsel %vm782, %v7303, %v7212
      %v7336 = vsel %vm782, %v7304, %v7214
      %v7337 = vsel %vm782, %v7305, %v7216
      %v7338 = vsel %vm782, %v7306, %v7218
      %v7339 = vsel %vm782, %v7307, %v7220
      %v7340 = vsel %vm782, %v7308, %v7222
      %v7341 = vsel %vm782, %v7309, %v7224
      %v7342 = vsel %vm782, %v7310, %v7226
      %v7343 = vsel %vm782, %v7311, %v7228
      %v7344 = vsel %vm782, %v7312, %v7230
      %v7345 = vsel %vm782, %v7313, %v7232
      %v7346 = vsel %vm782, %v7314, %v7234
      %v7347 = vsel %vm782, %v7315, %v7236
      %v7348 = vsel %vm782, %v7316, %v7238
      %v7349 = vsel %vm782, %v7317, %v7240
      %v7350 = vsel %vm782, %v7318, %v7242
      %v7351 = vsel %vm782, %v7319, %v7244
      %v7352 = vsel %vm782, %v7320, %v7246
      %v7353 = vsel %vm782, %v7321, %v7248
      %v7354 = vsel %vm782, %v7322, %v7250
      %v7355 = vsel %vm782, %v7323, %v7252
      %v7356 = vsel %vm782, %v7324, %v7254
      %v7357 = vsel %vm782, %v7325, %v7256
      %v7358 = vsel %vm782, %v7326, %v7258
      %v7359 = vsel %vm782, %v7327, %v7260
      %v7360 = vsel %vm782, %v7328, %v7262
      %v7361 = vsel %vm782, %v7329, %v7264
      %v7362 = vsel %vm782, %v7330, %v7266
      %s7363 = scalar_lea.vmem %s5, 32
      %v7364 = vld [vmem:[%s7363] sm:$0xff]
      %v7365 = vld [vmem:[%s7363 + $0x8] sm:$0xf]
      %v7367 = vsel %vm817, %v7331, 0
      %v7370 = vsel %vm817, %v7332, 0
      %v7373 = vsel %vm817, %v7333, 0
      %v7376 = vsel %vm817, %v7334, 0
      %v7379 = vsel %vm817, %v7335, 0
      %v7382 = vsel %vm817, %v7336, 0
      %v7385 = vsel %vm817, %v7337, 0
      %v7388 = vsel %vm817, %v7338, 0
      %v7391 = vsel %vm817, %v7339, 0
      %v7394 = vsel %vm817, %v7340, 0
      %v7397 = vsel %vm817, %v7341, 0
      %v7400 = vsel %vm817, %v7342, 0
      %v7403 = vsel %vm817, %v7343, 0
      %v7406 = vsel %vm817, %v7344, 0
      %v7409 = vsel %vm817, %v7345, 0
      %v7412 = vsel %vm817, %v7346, 0
      %v7415 = vsel %vm817, %v7347, 0
      %v7418 = vsel %vm817, %v7348, 0
      %v7421 = vsel %vm817, %v7349, 0
      %v7424 = vsel %vm817, %v7350, 0
      %v7427 = vsel %vm817, %v7351, 0
      %v7430 = vsel %vm817, %v7352, 0
      %v7433 = vsel %vm817, %v7353, 0
      %v7436 = vsel %vm817, %v7354, 0
      %v7439 = vsel %vm817, %v7355, 0
      %v7442 = vsel %vm817, %v7356, 0
      %v7445 = vsel %vm817, %v7357, 0
      %v7448 = vsel %vm817, %v7358, 0
      %v7451 = vsel %vm817, %v7359, 0
      %v7454 = vsel %vm817, %v7360, 0
      %v7457 = vsel %vm817, %v7361, 0
      %v7460 = vsel %vm817, %v7362, 0
      %v7463 = vsel %vm914, %v7365, 0
      %7465 = vmatprep.subr.mxu0 0.0
      %7466 = vmatpush1.msra.mxu0 %v7364
      %7467 = vmatprep.subr.mxu0 0.0
      %7468 = vmatpush1.msra.mxu0 %v7463
      %7469 = vmatprep.subr.mxu0 0.0
      %7470 = vmatpush1.msra.mxu0 0.0
      %7471 = vmatprep.subr.mxu0 0.0
      %7472 = vmatpush1.msra.mxu0 0.0
      %7473 = vmatprep.subr.mxu0 0.0
      %7474 = vmatpush1.msra.mxu0 0.0
      %7475 = vmatprep.subr.mxu0 0.0
      %7476 = vmatpush1.msra.mxu0 0.0
      %7477 = vmatprep.subr.mxu0 0.0
      %7478 = vmatpush1.msra.mxu0 0.0
      %7479 = vmatprep.subr.mxu0 0.0
      %7480 = vmatpush1.msra.mxu0 0.0
      %7481 = vmatprep.subr.mxu0 0.0
      %7482 = vmatpush1.msra.mxu0 0.0
      %7483 = vmatprep.subr.mxu0 0.0
      %7484 = vmatpush1.msra.mxu0 0.0
      %7485 = vmatprep.subr.mxu0 0.0
      %7486 = vmatpush1.msra.mxu0 0.0
      %7487 = vmatprep.subr.mxu0 0.0
      %7488 = vmatpush1.msra.mxu0 0.0
      %7489 = vmatprep.subr.mxu0 0.0
      %7490 = vmatpush1.msra.mxu0 0.0
      %7491 = vmatprep.subr.mxu0 0.0
      %7492 = vmatpush1.msra.mxu0 0.0
      %7493 = vmatprep.subr.mxu0 0.0
      %7494 = vmatpush1.msra.mxu0 0.0
      %7495 = vmatprep.subr.mxu0 0.0
      %7496 = vmatpush1.msra.mxu0 0.0
      %7497 = vmatprep.subr.mxu0 0.0
      %7498 = vmatpush1.msra.mxu0 0.0
      %7499 = vmatprep.subr.mxu0 0.0
      %7500 = vmatpush1.msra.mxu0 0.0
      %7501 = vmatprep.subr.mxu0 0.0
      %7502 = vmatpush1.msra.mxu0 0.0
      %7503 = vmatprep.subr.mxu0 0.0
      %7504 = vmatpush1.msra.mxu0 0.0
      %7505 = vmatprep.subr.mxu0 0.0
      %7506 = vmatpush1.msra.mxu0 0.0
      %7507 = vmatprep.subr.mxu0 0.0
      %7508 = vmatpush1.msra.mxu0 0.0
      %7509 = vmatprep.subr.mxu0 0.0
      %7510 = vmatpush1.msra.mxu0 0.0
      %7511 = vmatprep.subr.mxu0 0.0
      %7512 = vmatpush1.msra.mxu0 0.0
      %7513 = vmatprep.subr.mxu0 0.0
      %7514 = vmatpush1.msra.mxu0 0.0
      %7515 = vmatprep.subr.mxu0 0.0
      %7516 = vmatpush1.msra.mxu0 0.0
      %7517 = vmatprep.subr.mxu0 0.0
      %7518 = vmatpush1.msra.mxu0 0.0
      %7519 = vmatprep.subr.mxu0 0.0
      %7520 = vmatpush1.msra.mxu0 0.0
      %7521 = vmatprep.subr.mxu0 0.0
      %7522 = vmatpush1.msra.mxu0 0.0
      %7523 = vmatprep.subr.mxu0 0.0
      %7524 = vmatpush1.msra.mxu0 0.0
      %7525 = vmatprep.subr.mxu0 0.0
      %7526 = vmatpush1.msra.mxu0 0.0
      %7527 = vmatprep.subr.mxu0 0.0
      %7528 = vmatpush1.msra.mxu0 0.0
      %7529 = vmatprep.mubr.f32.mxu0 0.0
      %7530 = vmatmul.mubr.f32.gmra.mrb[0].mxu0 %v7367
      %v7531 = vpop.f32.mrb[0].mxu0
      %v7532 = vadd.f32 0.0, %v7531
      %v7533 = vpop.f32.mrb[0].mxu0
      %7534 = vmatprep.mubr.f32.mxu0 0.0
      %7535 = vmatmul.mubr.f32.gmra.mrb[0].mxu0 %v7370
      %v7536 = vpop.f32.mrb[0].mxu0
      %v7537 = vadd.f32 0.0, %v7536
      %v7538 = vpop.f32.mrb[0].mxu0
      %7539 = vmatprep.mubr.f32.mxu0 0.0
      %7540 = vmatmul.mubr.f32.gmra.mrb[0].mxu0 %v7373
      %v7541 = vpop.f32.mrb[0].mxu0
      %v7542 = vadd.f32 0.0, %v7541
      %v7543 = vpop.f32.mrb[0].mxu0
      %7544 = vmatprep.mubr.f32.mxu0 0.0
      %7545 = vmatmul.mubr.f32.gmra.mrb[0].mxu0 %v7376
      %v7546 = vpop.f32.mrb[0].mxu0
      %v7547 = vadd.f32 0.0, %v7546
      %v7548 = vpop.f32.mrb[0].mxu0
      %7549 = vmatprep.mubr.f32.mxu0 0.0
      %7550 = vmatmul.mubr.f32.gmra.mrb[0].mxu0 %v7379
      %v7551 = vpop.f32.mrb[0].mxu0
      %v7552 = vadd.f32 0.0, %v7551
      %v7553 = vpop.f32.mrb[0].mxu0
      %7554 = vmatprep.mubr.f32.mxu0 0.0
      %7555 = vmatmul.mubr.f32.gmra.mrb[0].mxu0 %v7382
      %v7556 = vpop.f32.mrb[0].mxu0
      %v7557 = vadd.f32 0.0, %v7556
      %v7558 = vpop.f32.mrb[0].mxu0
      %7559 = vmatprep.mubr.f32.mxu0 0.0
      %7560 = vmatmul.mubr.f32.gmra.mrb[0].mxu0 %v7385
      %v7561 = vpop.f32.mrb[0].mxu0
      %v7562 = vadd.f32 0.0, %v7561
      %v7563 = vpop.f32.mrb[0].mxu0
      %7564 = vmatprep.mubr.f32.mxu0 0.0
      %7565 = vmatmul.mubr.f32.gmra.mrb[0].mxu0 %v7388
      %v7566 = vpop.f32.mrb[0].mxu0
      %v7567 = vadd.f32 0.0, %v7566
      %v7568 = vpop.f32.mrb[0].mxu0
      %7569 = vmatprep.mubr.f32.mxu0 0.0
      %7570 = vmatmul.mubr.f32.gmra.mrb[0].mxu0 %v7391
      %v7571 = vpop.f32.mrb[0].mxu0
      %v7572 = vadd.f32 0.0, %v7571
      %v7573 = vpop.f32.mrb[0].mxu0
      %7574 = vmatprep.mubr.f32.mxu0 0.0
      %7575 = vmatmul.mubr.f32.gmra.mrb[0].mxu0 %v7394
      %v7576 = vpop.f32.mrb[0].mxu0
      %v7577 = vadd.f32 0.0, %v7576
      %v7578 = vpop.f32.mrb[0].mxu0
      %7579 = vmatprep.mubr.f32.mxu0 0.0
      %7580 = vmatmul.mubr.f32.gmra.mrb[0].mxu0 %v7397
      %v7581 = vpop.f32.mrb[0].mxu0
      %v7582 = vadd.f32 0.0, %v7581
      %v7583 = vpop.f32.mrb[0].mxu0
      %7584 = vmatprep.mubr.f32.mxu0 0.0
      %7585 = vmatmul.mubr.f32.gmra.mrb[0].mxu0 %v7400
      %v7586 = vpop.f32.mrb[0].mxu0
      %v7587 = vadd.f32 0.0, %v7586
      %v7588 = vpop.f32.mrb[0].mxu0
      %7589 = vmatprep.mubr.f32.mxu0 0.0
      %7590 = vmatmul.mubr.f32.gmra.mrb[0].mxu0 %v7403
      %v7591 = vpop.f32.mrb[0].mxu0
      %v7592 = vadd.f32 0.0, %v7591
      %v7593 = vpop.f32.mrb[0].mxu0
      %7594 = vmatprep.mubr.f32.mxu0 0.0
      %7595 = vmatmul.mubr.f32.gmra.mrb[0].mxu0 %v7406
      %v7596 = vpop.f32.mrb[0].mxu0
      %v7597 = vadd.f32 0.0, %v7596
      %v7598 = vpop.f32.mrb[0].mxu0
      %7599 = vmatprep.mubr.f32.mxu0 0.0
      %7600 = vmatmul.mubr.f32.gmra.mrb[0].mxu0 %v7409
      %v7601 = vpop.f32.mrb[0].mxu0
      %v7602 = vadd.f32 0.0, %v7601
      %v7603 = vpop.f32.mrb[0].mxu0
      %7604 = vmatprep.mubr.f32.mxu0 0.0
      %7605 = vmatmul.mubr.f32.gmra.mrb[0].mxu0 %v7412
      %v7606 = vpop.f32.mrb[0].mxu0
      %v7607 = vadd.f32 0.0, %v7606
      %v7608 = vpop.f32.mrb[0].mxu0
      %7609 = vmatprep.mubr.f32.mxu0 0.0
      %7610 = vmatmul.mubr.f32.gmra.mrb[0].mxu0 %v7415
      %v7611 = vpop.f32.mrb[0].mxu0
      %v7612 = vadd.f32 0.0, %v7611
      %v7613 = vpop.f32.mrb[0].mxu0
      %7614 = vmatprep.mubr.f32.mxu0 0.0
      %7615 = vmatmul.mubr.f32.gmra.mrb[0].mxu0 %v7418
      %v7616 = vpop.f32.mrb[0].mxu0
      %v7617 = vadd.f32 0.0, %v7616
      %v7618 = vpop.f32.mrb[0].mxu0
      %7619 = vmatprep.mubr.f32.mxu0 0.0
      %7620 = vmatmul.mubr.f32.gmra.mrb[0].mxu0 %v7421
      %v7621 = vpop.f32.mrb[0].mxu0
      %v7622 = vadd.f32 0.0, %v7621
      %v7623 = vpop.f32.mrb[0].mxu0
      %7624 = vmatprep.mubr.f32.mxu0 0.0
      %7625 = vmatmul.mubr.f32.gmra.mrb[0].mxu0 %v7424
      %v7626 = vpop.f32.mrb[0].mxu0
      %v7627 = vadd.f32 0.0, %v7626
      %v7628 = vpop.f32.mrb[0].mxu0
      %7629 = vmatprep.mubr.f32.mxu0 0.0
      %7630 = vmatmul.mubr.f32.gmra.mrb[0].mxu0 %v7427
      %v7631 = vpop.f32.mrb[0].mxu0
      %v7632 = vadd.f32 0.0, %v7631
      %v7633 = vpop.f32.mrb[0].mxu0
      %7634 = vmatprep.mubr.f32.mxu0 0.0
      %7635 = vmatmul.mubr.f32.gmra.mrb[0].mxu0 %v7430
      %v7636 = vpop.f32.mrb[0].mxu0
      %v7637 = vadd.f32 0.0, %v7636
      %v7638 = vpop.f32.mrb[0].mxu0
      %7639 = vmatprep.mubr.f32.mxu0 0.0
      %7640 = vmatmul.mubr.f32.gmra.mrb[0].mxu0 %v7433
      %v7641 = vpop.f32.mrb[0].mxu0
      %v7642 = vadd.f32 0.0, %v7641
      %v7643 = vpop.f32.mrb[0].mxu0
      %7644 = vmatprep.mubr.f32.mxu0 0.0
      %7645 = vmatmul.mubr.f32.gmra.mrb[0].mxu0 %v7436
      %v7646 = vpop.f32.mrb[0].mxu0
      %v7647 = vadd.f32 0.0, %v7646
      %v7648 = vpop.f32.mrb[0].mxu0
      %7649 = vmatprep.mubr.f32.mxu0 0.0
      %7650 = vmatmul.mubr.f32.gmra.mrb[0].mxu0 %v7439
      %v7651 = vpop.f32.mrb[0].mxu0
      %v7652 = vadd.f32 0.0, %v7651
      %v7653 = vpop.f32.mrb[0].mxu0
      %7654 = vmatprep.mubr.f32.mxu0 0.0
      %7655 = vmatmul.mubr.f32.gmra.mrb[0].mxu0 %v7442
      %v7656 = vpop.f32.mrb[0].mxu0
      %v7657 = vadd.f32 0.0, %v7656
      %v7658 = vpop.f32.mrb[0].mxu0
      %7659 = vmatprep.mubr.f32.mxu0 0.0
      %7660 = vmatmul.mubr.f32.gmra.mrb[0].mxu0 %v7445
      %v7661 = vpop.f32.mrb[0].mxu0
      %v7662 = vadd.f32 0.0, %v7661
      %v7663 = vpop.f32.mrb[0].mxu0
      %7664 = vmatprep.mubr.f32.mxu0 0.0
      %7665 = vmatmul.mubr.f32.gmra.mrb[0].mxu0 %v7448
      %v7666 = vpop.f32.mrb[0].mxu0
      %v7667 = vadd.f32 0.0, %v7666
      %v7668 = vpop.f32.mrb[0].mxu0
      %7669 = vmatprep.mubr.f32.mxu0 0.0
      %7670 = vmatmul.mubr.f32.gmra.mrb[0].mxu0 %v7451
      %v7671 = vpop.f32.mrb[0].mxu0
      %v7672 = vadd.f32 0.0, %v7671
      %v7673 = vpop.f32.mrb[0].mxu0
      %7674 = vmatprep.mubr.f32.mxu0 0.0
      %7675 = vmatmul.mubr.f32.gmra.mrb[0].mxu0 %v7454
      %v7676 = vpop.f32.mrb[0].mxu0
      %v7677 = vadd.f32 0.0, %v7676
      %v7678 = vpop.f32.mrb[0].mxu0
      %7679 = vmatprep.mubr.f32.mxu0 0.0
      %7680 = vmatmul.mubr.f32.gmra.mrb[0].mxu0 %v7457
      %v7681 = vpop.f32.mrb[0].mxu0
      %v7682 = vadd.f32 0.0, %v7681
      %v7683 = vpop.f32.mrb[0].mxu0
      %7684 = vmatprep.mubr.f32.mxu0 0.0
      %7685 = vmatmul.mubr.f32.gmra.mrb[0].mxu0 %v7460
      %v7686 = vpop.f32.mrb[0].mxu0
      %v7687 = vadd.f32 0.0, %v7686
      %v7688 = vpop.f32.mrb[0].mxu0
      %7689 = vdwg.mxu0
      %v7690 = vadd.f32 %v6915, %v7532
      %v7691 = vadd.f32 %v6916, %v7537
      %v7692 = vadd.f32 %v6917, %v7542
      %v7693 = vadd.f32 %v6918, %v7547
      %v7694 = vadd.f32 %v6919, %v7552
      %v7695 = vadd.f32 %v6920, %v7557
      %v7696 = vadd.f32 %v6921, %v7562
      %v7697 = vadd.f32 %v6922, %v7567
      %v7698 = vadd.f32 %v6923, %v7572
      %v7699 = vadd.f32 %v6924, %v7577
      %v7700 = vadd.f32 %v6925, %v7582
      %v7701 = vadd.f32 %v6926, %v7587
      %v7702 = vadd.f32 %v6927, %v7592
      %v7703 = vadd.f32 %v6928, %v7597
      %v7704 = vadd.f32 %v6929, %v7602
      %v7705 = vadd.f32 %v6930, %v7607
      %v7706 = vadd.f32 %v6931, %v7612
      %v7707 = vadd.f32 %v6932, %v7617
      %v7708 = vadd.f32 %v6933, %v7622
      %v7709 = vadd.f32 %v6934, %v7627
      %v7710 = vadd.f32 %v6935, %v7632
      %v7711 = vadd.f32 %v6936, %v7637
      %v7712 = vadd.f32 %v6937, %v7642
      %v7713 = vadd.f32 %v6938, %v7647
      %v7714 = vadd.f32 %v6939, %v7652
      %v7715 = vadd.f32 %v6940, %v7657
      %v7716 = vadd.f32 %v6941, %v7662
      %v7717 = vadd.f32 %v6942, %v7667
      %v7718 = vadd.f32 %v6943, %v7672
      %v7719 = vadd.f32 %v6944, %v7677
      %v7720 = vadd.f32 %v6945, %v7682
      %v7721 = vadd.f32 %v6946, %v7687
      %v7722 = vmax.f32 %v7690, 0.0
      %v7723 = vmax.f32 %v7691, 0.0
      %v7724 = vmax.f32 %v7692, 0.0
      %v7725 = vmax.f32 %v7693, 0.0
      %v7726 = vmax.f32 %v7694, 0.0
      %v7727 = vmax.f32 %v7695, 0.0
      %v7728 = vmax.f32 %v7696, 0.0
      %v7729 = vmax.f32 %v7697, 0.0
      %v7730 = vmax.f32 %v7698, 0.0
      %v7731 = vmax.f32 %v7699, 0.0
      %v7732 = vmax.f32 %v7700, 0.0
      %v7733 = vmax.f32 %v7701, 0.0
      %v7734 = vmax.f32 %v7702, 0.0
      %v7735 = vmax.f32 %v7703, 0.0
      %v7736 = vmax.f32 %v7704, 0.0
      %v7737 = vmax.f32 %v7705, 0.0
      %v7738 = vmax.f32 %v7706, 0.0
      %v7739 = vmax.f32 %v7707, 0.0
      %v7740 = vmax.f32 %v7708, 0.0
      %v7741 = vmax.f32 %v7709, 0.0
      %v7742 = vmax.f32 %v7710, 0.0
      %v7743 = vmax.f32 %v7711, 0.0
      %v7744 = vmax.f32 %v7712, 0.0
      %v7745 = vmax.f32 %v7713, 0.0
      %v7746 = vmax.f32 %v7714, 0.0
      %v7747 = vmax.f32 %v7715, 0.0
      %v7748 = vmax.f32 %v7716, 0.0
      %v7749 = vmax.f32 %v7717, 0.0
      %v7750 = vmax.f32 %v7718, 0.0
      %v7751 = vmax.f32 %v7719, 0.0
      %v7752 = vmax.f32 %v7720, 0.0
      %v7753 = vmax.f32 %v7721, 0.0
      %7786 = vrot.lane.b32.xlu0 %v5327, 124
      %v7787 = vpop.permute.xlu0 %7786
      %7788 = vrot.lane.b32.xlu0 %v5328, 124
      %v7789 = vpop.permute.xlu0 %7788
      %7790 = vrot.lane.b32.xlu0 %v5329, 124
      %v7791 = vpop.permute.xlu0 %7790
      %7792 = vrot.lane.b32.xlu0 %v5330, 124
      %v7793 = vpop.permute.xlu0 %7792
      %7794 = vrot.lane.b32.xlu0 %v5331, 124
      %v7795 = vpop.permute.xlu0 %7794
      %7796 = vrot.lane.b32.xlu0 %v5332, 124
      %v7797 = vpop.permute.xlu0 %7796
      %7798 = vrot.lane.b32.xlu0 %v5333, 124
      %v7799 = vpop.permute.xlu0 %7798
      %7800 = vrot.lane.b32.xlu0 %v5334, 124
      %v7801 = vpop.permute.xlu0 %7800
      %7802 = vrot.lane.b32.xlu0 %v5335, 124
      %v7803 = vpop.permute.xlu0 %7802
      %7804 = vrot.lane.b32.xlu0 %v5336, 124
      %v7805 = vpop.permute.xlu0 %7804
      %7806 = vrot.lane.b32.xlu0 %v5337, 124
      %v7807 = vpop.permute.xlu0 %7806
      %7808 = vrot.lane.b32.xlu0 %v5338, 124
      %v7809 = vpop.permute.xlu0 %7808
      %7810 = vrot.lane.b32.xlu0 %v5339, 124
      %v7811 = vpop.permute.xlu0 %7810
      %7812 = vrot.lane.b32.xlu0 %v5340, 124
      %v7813 = vpop.permute.xlu0 %7812
      %7814 = vrot.lane.b32.xlu0 %v5341, 124
      %v7815 = vpop.permute.xlu0 %7814
      %7816 = vrot.lane.b32.xlu0 %v5342, 124
      %v7817 = vpop.permute.xlu0 %7816
      %7818 = vrot.lane.b32.xlu0 %v5343, 124
      %v7819 = vpop.permute.xlu0 %7818
      %7820 = vrot.lane.b32.xlu0 %v5344, 124
      %v7821 = vpop.permute.xlu0 %7820
      %7822 = vrot.lane.b32.xlu0 %v5345, 124
      %v7823 = vpop.permute.xlu0 %7822
      %7824 = vrot.lane.b32.xlu0 %v5346, 124
      %v7825 = vpop.permute.xlu0 %7824
      %7826 = vrot.lane.b32.xlu0 %v5347, 124
      %v7827 = vpop.permute.xlu0 %7826
      %7828 = vrot.lane.b32.xlu0 %v5348, 124
      %v7829 = vpop.permute.xlu0 %7828
      %7830 = vrot.lane.b32.xlu0 %v5349, 124
      %v7831 = vpop.permute.xlu0 %7830
      %7832 = vrot.lane.b32.xlu0 %v5350, 124
      %v7833 = vpop.permute.xlu0 %7832
      %7834 = vrot.lane.b32.xlu0 %v5351, 124
      %v7835 = vpop.permute.xlu0 %7834
      %7836 = vrot.lane.b32.xlu0 %v5352, 124
      %v7837 = vpop.permute.xlu0 %7836
      %7838 = vrot.lane.b32.xlu0 %v5353, 124
      %v7839 = vpop.permute.xlu0 %7838
      %7840 = vrot.lane.b32.xlu0 %v5354, 124
      %v7841 = vpop.permute.xlu0 %7840
      %7842 = vrot.lane.b32.xlu0 %v5355, 124
      %v7843 = vpop.permute.xlu0 %7842
      %7844 = vrot.lane.b32.xlu0 %v5356, 124
      %v7845 = vpop.permute.xlu0 %7844
      %7846 = vrot.lane.b32.xlu0 %v5357, 124
      %v7847 = vpop.permute.xlu0 %7846
      %7848 = vrot.lane.b32.xlu0 %v5358, 124
      %v7849 = vpop.permute.xlu0 %7848
      %7914 = vrot.lane.b32.xlu0 %v7722, 4
      %v7915 = vpop.permute.xlu0 %7914
      %7916 = vrot.lane.b32.xlu0 %v7723, 4
      %v7917 = vpop.permute.xlu0 %7916
      %7918 = vrot.lane.b32.xlu0 %v7724, 4
      %v7919 = vpop.permute.xlu0 %7918
      %7920 = vrot.lane.b32.xlu0 %v7725, 4
      %v7921 = vpop.permute.xlu0 %7920
      %7922 = vrot.lane.b32.xlu0 %v7726, 4
      %v7923 = vpop.permute.xlu0 %7922
      %7924 = vrot.lane.b32.xlu0 %v7727, 4
      %v7925 = vpop.permute.xlu0 %7924
      %7926 = vrot.lane.b32.xlu0 %v7728, 4
      %v7927 = vpop.permute.xlu0 %7926
      %7928 = vrot.lane.b32.xlu0 %v7729, 4
      %v7929 = vpop.permute.xlu0 %7928
      %7930 = vrot.lane.b32.xlu0 %v7730, 4
      %v7931 = vpop.permute.xlu0 %7930
      %7932 = vrot.lane.b32.xlu0 %v7731, 4
      %v7933 = vpop.permute.xlu0 %7932
      %7934 = vrot.lane.b32.xlu0 %v7732, 4
      %v7935 = vpop.permute.xlu0 %7934
      %7936 = vrot.lane.b32.xlu0 %v7733, 4
      %v7937 = vpop.permute.xlu0 %7936
      %7938 = vrot.lane.b32.xlu0 %v7734, 4
      %v7939 = vpop.permute.xlu0 %7938
      %7940 = vrot.lane.b32.xlu0 %v7735, 4
      %v7941 = vpop.permute.xlu0 %7940
      %7942 = vrot.lane.b32.xlu0 %v7736, 4
      %v7943 = vpop.permute.xlu0 %7942
      %7944 = vrot.lane.b32.xlu0 %v7737, 4
      %v7945 = vpop.permute.xlu0 %7944
      %7946 = vrot.lane.b32.xlu0 %v7738, 4
      %v7947 = vpop.permute.xlu0 %7946
      %7948 = vrot.lane.b32.xlu0 %v7739, 4
      %v7949 = vpop.permute.xlu0 %7948
      %7950 = vrot.lane.b32.xlu0 %v7740, 4
      %v7951 = vpop.permute.xlu0 %7950
      %7952 = vrot.lane.b32.xlu0 %v7741, 4
      %v7953 = vpop.permute.xlu0 %7952
      %7954 = vrot.lane.b32.xlu0 %v7742, 4
      %v7955 = vpop.permute.xlu0 %7954
      %7956 = vrot.lane.b32.xlu0 %v7743, 4
      %v7957 = vpop.permute.xlu0 %7956
      %7958 = vrot.lane.b32.xlu0 %v7744, 4
      %v7959 = vpop.permute.xlu0 %7958
      %7960 = vrot.lane.b32.xlu0 %v7745, 4
      %v7961 = vpop.permute.xlu0 %7960
      %7962 = vrot.lane.b32.xlu0 %v7746, 4
      %v7963 = vpop.permute.xlu0 %7962
      %7964 = vrot.lane.b32.xlu0 %v7747, 4
      %v7965 = vpop.permute.xlu0 %7964
      %7966 = vrot.lane.b32.xlu0 %v7748, 4
      %v7967 = vpop.permute.xlu0 %7966
      %7968 = vrot.lane.b32.xlu0 %v7749, 4
      %v7969 = vpop.permute.xlu0 %7968
      %7970 = vrot.lane.b32.xlu0 %v7750, 4
      %v7971 = vpop.permute.xlu0 %7970
      %7972 = vrot.lane.b32.xlu0 %v7751, 4
      %v7973 = vpop.permute.xlu0 %7972
      %7974 = vrot.lane.b32.xlu0 %v7752, 4
      %v7975 = vpop.permute.xlu0 %7974
      %7976 = vrot.lane.b32.xlu0 %v7753, 4
      %v7977 = vpop.permute.xlu0 %7976
      %v8010 = vsel %vm279, %v7787, %v7915
      %v8011 = vsel %vm279, %v7789, %v7917
      %v8012 = vsel %vm279, %v7791, %v7919
      %v8013 = vsel %vm279, %v7793, %v7921
      %v8014 = vsel %vm279, %v7795, %v7923
      %v8015 = vsel %vm279, %v7797, %v7925
      %v8016 = vsel %vm279, %v7799, %v7927
      %v8017 = vsel %vm279, %v7801, %v7929
      %v8018 = vsel %vm279, %v7803, %v7931
      %v8019 = vsel %vm279, %v7805, %v7933
      %v8020 = vsel %vm279, %v7807, %v7935
      %v8021 = vsel %vm279, %v7809, %v7937
      %v8022 = vsel %vm279, %v7811, %v7939
      %v8023 = vsel %vm279, %v7813, %v7941
      %v8024 = vsel %vm279, %v7815, %v7943
      %v8025 = vsel %vm279, %v7817, %v7945
      %v8026 = vsel %vm279, %v7819, %v7947
      %v8027 = vsel %vm279, %v7821, %v7949
      %v8028 = vsel %vm279, %v7823, %v7951
      %v8029 = vsel %vm279, %v7825, %v7953
      %v8030 = vsel %vm279, %v7827, %v7955
      %v8031 = vsel %vm279, %v7829, %v7957
      %v8032 = vsel %vm279, %v7831, %v7959
      %v8033 = vsel %vm279, %v7833, %v7961
      %v8034 = vsel %vm279, %v7835, %v7963
      %v8035 = vsel %vm279, %v7837, %v7965
      %v8036 = vsel %vm279, %v7839, %v7967
      %v8037 = vsel %vm279, %v7841, %v7969
      %v8038 = vsel %vm279, %v7843, %v7971
      %v8039 = vsel %vm279, %v7845, %v7973
      %v8040 = vsel %vm279, %v7847, %v7975
      %v8041 = vsel %vm279, %v7849, %v7977
      %8074 = vrot.lane.b32.xlu0 %v8010, 8
      %v8075 = vpop.permute.xlu0 %8074
      %8076 = vrot.lane.b32.xlu0 %v8011, 8
      %v8077 = vpop.permute.xlu0 %8076
      %8078 = vrot.lane.b32.xlu0 %v8012, 8
      %v8079 = vpop.permute.xlu0 %8078
      %8080 = vrot.lane.b32.xlu0 %v8013, 8
      %v8081 = vpop.permute.xlu0 %8080
      %8082 = vrot.lane.b32.xlu0 %v8014, 8
      %v8083 = vpop.permute.xlu0 %8082
      %8084 = vrot.lane.b32.xlu0 %v8015, 8
      %v8085 = vpop.permute.xlu0 %8084
      %8086 = vrot.lane.b32.xlu0 %v8016, 8
      %v8087 = vpop.permute.xlu0 %8086
      %8088 = vrot.lane.b32.xlu0 %v8017, 8
      %v8089 = vpop.permute.xlu0 %8088
      %8090 = vrot.lane.b32.xlu0 %v8018, 8
      %v8091 = vpop.permute.xlu0 %8090
      %8092 = vrot.lane.b32.xlu0 %v8019, 8
      %v8093 = vpop.permute.xlu0 %8092
      %8094 = vrot.lane.b32.xlu0 %v8020, 8
      %v8095 = vpop.permute.xlu0 %8094
      %8096 = vrot.lane.b32.xlu0 %v8021, 8
      %v8097 = vpop.permute.xlu0 %8096
      %8098 = vrot.lane.b32.xlu0 %v8022, 8
      %v8099 = vpop.permute.xlu0 %8098
      %8100 = vrot.lane.b32.xlu0 %v8023, 8
      %v8101 = vpop.permute.xlu0 %8100
      %8102 = vrot.lane.b32.xlu0 %v8024, 8
      %v8103 = vpop.permute.xlu0 %8102
      %8104 = vrot.lane.b32.xlu0 %v8025, 8
      %v8105 = vpop.permute.xlu0 %8104
      %8106 = vrot.lane.b32.xlu0 %v8026, 8
      %v8107 = vpop.permute.xlu0 %8106
      %8108 = vrot.lane.b32.xlu0 %v8027, 8
      %v8109 = vpop.permute.xlu0 %8108
      %8110 = vrot.lane.b32.xlu0 %v8028, 8
      %v8111 = vpop.permute.xlu0 %8110
      %8112 = vrot.lane.b32.xlu0 %v8029, 8
      %v8113 = vpop.permute.xlu0 %8112
      %8114 = vrot.lane.b32.xlu0 %v8030, 8
      %v8115 = vpop.permute.xlu0 %8114
      %8116 = vrot.lane.b32.xlu0 %v8031, 8
      %v8117 = vpop.permute.xlu0 %8116
      %8118 = vrot.lane.b32.xlu0 %v8032, 8
      %v8119 = vpop.permute.xlu0 %8118
      %8120 = vrot.lane.b32.xlu0 %v8033, 8
      %v8121 = vpop.permute.xlu0 %8120
      %8122 = vrot.lane.b32.xlu0 %v8034, 8
      %v8123 = vpop.permute.xlu0 %8122
      %8124 = vrot.lane.b32.xlu0 %v8035, 8
      %v8125 = vpop.permute.xlu0 %8124
      %8126 = vrot.lane.b32.xlu0 %v8036, 8
      %v8127 = vpop.permute.xlu0 %8126
      %8128 = vrot.lane.b32.xlu0 %v8037, 8
      %v8129 = vpop.permute.xlu0 %8128
      %8130 = vrot.lane.b32.xlu0 %v8038, 8
      %v8131 = vpop.permute.xlu0 %8130
      %8132 = vrot.lane.b32.xlu0 %v8039, 8
      %v8133 = vpop.permute.xlu0 %8132
      %8134 = vrot.lane.b32.xlu0 %v8040, 8
      %v8135 = vpop.permute.xlu0 %8134
      %8136 = vrot.lane.b32.xlu0 %v8041, 8
      %v8137 = vpop.permute.xlu0 %8136
      %vm8170 = vcmask 130112
      %8171 = vst.msk [vmem:[%s278] sm:$0xff] %vm8170, %v8075
      %8172 = vst.msk [vmem:[%s278 + $0x8] sm:$0xff] %vm8170, %v8077
      %8173 = vst.msk [vmem:[%s278 + $0x10] sm:$0xff] %vm8170, %v8079
      %8174 = vst.msk [vmem:[%s278 + $0x18] sm:$0xff] %vm8170, %v8081
      %8175 = vst.msk [vmem:[%s278 + $0x20] sm:$0xff] %vm8170, %v8083
      %8176 = vst.msk [vmem:[%s278 + $0x28] sm:$0xff] %vm8170, %v8085
      %8177 = vst.msk [vmem:[%s278 + $0x30] sm:$0xff] %vm8170, %v8087
      %8178 = vst.msk [vmem:[%s278 + $0x38] sm:$0xff] %vm8170, %v8089
      %8179 = vst.msk [vmem:[%s278 + $0x40] sm:$0xff] %vm8170, %v8091
      %8180 = vst.msk [vmem:[%s278 + $0x48] sm:$0xff] %vm8170, %v8093
      %8181 = vst.msk [vmem:[%s278 + $0x50] sm:$0xff] %vm8170, %v8095
      %8182 = vst.msk [vmem:[%s278 + $0x58] sm:$0xff] %vm8170, %v8097
      %8183 = vst.msk [vmem:[%s278 + $0x60] sm:$0xff] %vm8170, %v8099
      %8184 = vst.msk [vmem:[%s278 + $0x68] sm:$0xff] %vm8170, %v8101
      %8185 = vst.msk [vmem:[%s278 + $0x70] sm:$0xff] %vm8170, %v8103
      %8186 = vst.msk [vmem:[%s278 + $0x78] sm:$0xff] %vm8170, %v8105
      %8187 = vst.msk [vmem:[%s278 + $0x80] sm:$0xff] %vm8170, %v8107
      %8188 = vst.msk [vmem:[%s278 + $0x88] sm:$0xff] %vm8170, %v8109
      %8189 = vst.msk [vmem:[%s278 + $0x90] sm:$0xff] %vm8170, %v8111
      %8190 = vst.msk [vmem:[%s278 + $0x98] sm:$0xff] %vm8170, %v8113
      %8191 = vst.msk [vmem:[%s278 + $0xa0] sm:$0xff] %vm8170, %v8115
      %8192 = vst.msk [vmem:[%s278 + $0xa8] sm:$0xff] %vm8170, %v8117
      %8193 = vst.msk [vmem:[%s278 + $0xb0] sm:$0xff] %vm8170, %v8119
      %8194 = vst.msk [vmem:[%s278 + $0xb8] sm:$0xff] %vm8170, %v8121
      %8195 = vst.msk [vmem:[%s278 + $0xc0] sm:$0xff] %vm8170, %v8123
      %8196 = vst.msk [vmem:[%s278 + $0xc8] sm:$0xff] %vm8170, %v8125
      %8197 = vst.msk [vmem:[%s278 + $0xd0] sm:$0xff] %vm8170, %v8127
      %8198 = vst.msk [vmem:[%s278 + $0xd8] sm:$0xff] %vm8170, %v8129
      %8199 = vst.msk [vmem:[%s278 + $0xe0] sm:$0xff] %vm8170, %v8131
      %8200 = vst.msk [vmem:[%s278 + $0xe8] sm:$0xff] %vm8170, %v8133
      %8201 = vst.msk [vmem:[%s278 + $0xf0] sm:$0xff] %vm8170, %v8135
      %8202 = vst.msk [vmem:[%s278 + $0xf8] sm:$0xff] %vm8170, %v8137
      %p8203 = scmp.lt.s32.totalorder %s18, 1
      %s8204 = scalar_select %p8203, %s18, 1
      %s8205 = smul.addr %s8204, 32
      %s8206 = smul.addr %s8205, 8
      %s8207 = scalar_lea.vmem %s7, %s8206
      // Predicated region
      $region49: #{ssh_forward.1} parent=47 // pred_check
        %p8208 = pneg %p188
      $region50: #{ssh_forward.1} parent=47 // pred_check_branch
        %8210 = sbr.rel (%p8208) target = $region52
      $region51: #{ssh_forward.1} parent=47 // pred_region
        _
      $region52: #{ssh_forward.1} parent=47 // pred_fallthru
        _
    $region48: #{ssh_forward.1} parent=5 // pred_fallthru
      _
    %p8211 = scmp.le.s32.totalorder 2, %s13
    // Predicated region
    $region53: #{ssh_forward.1} parent=5 // pred_check
      %p8212 = pneg %p8211
    $region54: #{ssh_forward.1} parent=5 // pred_check_branch
      %8214 = sbr.rel (%p8212) target = $region56
    $region55: #{ssh_forward.1} parent=5 // pred_region
      %s8215 = ssub.s32 %s13, 2
      // Predicated region
      $region57: #{ssh_forward.1} parent=55 // pred_check
        %p8216 = pneg %p194
      $region58: #{ssh_forward.1} parent=55 // pred_check_branch
        %8218 = sbr.rel (%p8216) target = $region60
      $region59: #{ssh_forward.1} parent=55 // pred_region
        %p8219 = scmp.lt.s32.totalorder %s19, 1
        %s8220 = scalar_select %p8219, %s19, 1
        %s8221 = smul.addr %s8220, 32
        %s8222 = smul.addr %s8221, 8
        %s8223 = scalar_lea.vmem %s7, %s8222
      $region60: #{ssh_forward.1} parent=55 // pred_fallthru
        _
    $region56: #{ssh_forward.1} parent=5 // pred_fallthru
      _
  $region6: #{ssh_forward.1} parent=0 // loop_footer
    %s17 = sadd.s32 1, %s13
  $region7: #{ssh_forward.1} parent=0 // loop_footer_branch
    %12 = sbr.rel target = $region3
  $region8: #{ssh_forward.1} parent=0 // loop_exit
    _

</llo_original>
